<compile_context>
chip_gen: v7x
topology: tpu7x:2x2x1
jax: 0.10.0
libtpu: 0.0.40
codegen_flags: <defaults>
</compile_context>

<pallas_src>
import functools

import jax
import jax.numpy as jnp
from jax.experimental import pallas as pl
from jax.experimental.pallas import tpu as pltpu


# ------------------------------ fused kernel -------------------------------

def _vit_kernel(
    patches_ref, pos_ref, pw_ref, pb_ref,
    wq_ref, bq_ref, wk_ref, bk_ref, wv_ref, bv_ref, wo_ref, bo_ref,
    ln1g_ref, ln1b_ref, w1_ref, b1_ref, w2_ref, b2_ref, ln2g_ref, ln2b_ref,
    hg_ref, hb_ref, hw_ref, hbias_ref,
    out_ref, *, num_layers, heads, eps):
    f32 = jnp.float32

    # ---- patch embedding (+ cls token via augmented row) + position emb ----
    x = jnp.dot(patches_ref[0], pw_ref[...], preferred_element_type=f32)
    x = x + pb_ref[...] + pos_ref[...]                       # (S, E)

    S = x.shape[0]
    E = pos_ref.shape[1]
    Dh = wq_ref.shape[-1]
    scale = 1.0 / float(Dh) ** 0.5

    def layernorm(z, g, b):                                  # biased var (PyTorch)
        mu = jnp.mean(z, axis=-1, keepdims=True)
        var = jnp.mean((z - mu) ** 2, axis=-1, keepdims=True)
        return (z - mu) * jax.lax.rsqrt(var + eps) * g + b

    # ------------------------- encoder layers (post-norm) ------------------
    for l in range(num_layers):
        # Multi-head self attention: statically unrolled over heads, no
        # transposes — per-head outputs are folded straight into out_proj.
        attn = jnp.zeros((S, E), f32)
        for h in range(heads):
            q = jnp.dot(x, wq_ref[l, h], preferred_element_type=f32) + bq_ref[l, h]
            k = jnp.dot(x, wk_ref[l, h], preferred_element_type=f32) + bk_ref[l, h]
            v = jnp.dot(x, wv_ref[l, h], preferred_element_type=f32) + bv_ref[l, h]
            # q @ k^T without materialising k.T: contract last dims.
            s = jax.lax.dot_general(
                q, k, (((1,), (1,)), ((), ())),
                preferred_element_type=f32) * scale          # (S, S)
            s = s - jnp.max(s, axis=-1, keepdims=True)
            p = jnp.exp(s)
            p = p * pl.reciprocal(jnp.sum(p, axis=-1, keepdims=True), approx=True)
            o = jnp.dot(p, v, preferred_element_type=f32)    # (S, Dh)
            attn = attn + jnp.dot(o, wo_ref[l, h], preferred_element_type=f32)
        attn = attn + bo_ref[l]
        x = layernorm(x + attn, ln1g_ref[l], ln1b_ref[l])    # norm1(x + attn)

        # Feed-forward (ReLU), dropout = 0.
        ff = jnp.dot(x, w1_ref[l], preferred_element_type=f32) + b1_ref[l]
        ff = jnp.maximum(ff, 0.0)
        ff = jnp.dot(ff, w2_ref[l], preferred_element_type=f32) + b2_ref[l]
        x = layernorm(x + ff, ln2g_ref[l], ln2b_ref[l])      # norm2(x + ff)

    # --------------------- mlp_head on the cls token (row 0) ---------------
    cls = x[0:1, :]                                          # (1, E)
    cls = layernorm(cls, hg_ref[...], hb_ref[...])
    logits = jnp.dot(cls, hw_ref[...], preferred_element_type=f32) + hbias_ref[...]
    out_ref[0] = logits.astype(out_ref.dtype)


# ------------------------------ model wrapper -------------------------------

def vit_forward(params, img, *, patch_size, heads):
    B, C, H, W = img.shape
    p = patch_size
    hp, wp = H // p, W // p
    E = params["patch_w"].shape[1]
    K = C * p * p
    P = hp * wp
    S = P + 1
    L = len(params["layers"])
    Dh = E // heads
    F = params["layers"][0]["lin1_w"].shape[1]
    NC = params["head_w"].shape[1]

    # ---- glue: patchify (== strided conv) + cls-token augmentation --------
    patches = img.reshape(B, C, hp, p, wp, p).transpose(0, 2, 4, 1, 3, 5)
    patches = patches.reshape(B, P, K)
    patch_rows = jnp.concatenate(
        [patches, jnp.zeros((B, P, 1), patches.dtype)], axis=-1)     # (B, P, K+1)
    cls_row = jnp.zeros((B, 1, K + 1), patches.dtype).at[:, :, K].set(1.0)
    aug_patches = jnp.concatenate([cls_row, patch_rows], axis=1)     # (B, S, K+1)

    # Augmented patch weight: extra row reproduces the cls token exactly
    # (kernel adds patch_b to every row, so subtract it here).
    aug_pw = jnp.concatenate(
        [params["patch_w"],
         params["cls_token"].reshape(1, E) - params["patch_b"].reshape(1, E)],
        axis=0)                                                      # (K+1, E)
    pb = params["patch_b"].reshape(1, E)
    pos = params["pos_emb"].reshape(S, E)

    # ---- glue: repack per-layer weights into per-head stacked layouts -----
    layers = params["layers"]

    def per_head_w(w, off):      # (E, 3E) column block -> (heads, E, Dh)
        return w[:, off:off + E].reshape(E, heads, Dh).transpose(1, 0, 2)

    def per_head_b(b, off):      # (3E,) block -> (heads, 1, Dh)
        return b[off:off + E].reshape(heads, 1, Dh)

    wq = jnp.stack([per_head_w(l["in_proj_w"], 0) for l in layers])
    wk = jnp.stack([per_head_w(l["in_proj_w"], E) for l in layers])
    wv = jnp.stack([per_head_w(l["in_proj_w"], 2 * E) for l in layers])
    bq = jnp.stack([per_head_b(l["in_proj_b"], 0) for l in layers])
    bk = jnp.stack([per_head_b(l["in_proj_b"], E) for l in layers])
    bv = jnp.stack([per_head_b(l["in_proj_b"], 2 * E) for l in layers])
    wo = jnp.stack([l["out_proj_w"].reshape(heads, Dh, E) for l in layers])
    bo = jnp.stack([l["out_proj_b"].reshape(1, E) for l in layers])
    ln1g = jnp.stack([l["ln1_g"].reshape(1, E) for l in layers])
    ln1b = jnp.stack([l["ln1_b"].reshape(1, E) for l in layers])
    w1 = jnp.stack([l["lin1_w"] for l in layers])
    b1 = jnp.stack([l["lin1_b"].reshape(1, F) for l in layers])
    w2 = jnp.stack([l["lin2_w"] for l in layers])
    b2 = jnp.stack([l["lin2_b"].reshape(1, E) for l in layers])
    ln2g = jnp.stack([l["ln2_g"].reshape(1, E) for l in layers])
    ln2b = jnp.stack([l["ln2_b"].reshape(1, E) for l in layers])

    hg = params["head_ln_g"].reshape(1, E)
    hb = params["head_ln_b"].reshape(1, E)
    hw = params["head_w"]
    hbias = params["head_b"].reshape(1, NC)

    args = (aug_patches, pos, aug_pw, pb,
            wq, bq, wk, bk, wv, bv, wo, bo,
            ln1g, ln1b, w1, b1, w2, b2, ln2g, ln2b,
            hg, hb, hw, hbias)

    def batch_spec(shape):
        nd = len(shape) - 1
        return pl.BlockSpec((1,) + tuple(shape[1:]),
                            lambda b, _n=nd: (b,) + (0,) * _n)

    def const_spec(shape):
        nd = len(shape)
        return pl.BlockSpec(tuple(shape), lambda b, _n=nd: (0,) * _n)

    in_specs = [batch_spec(aug_patches.shape)] + [const_spec(a.shape) for a in args[1:]]

    out = pl.pallas_call(
        functools.partial(_vit_kernel, num_layers=L, heads=heads, eps=1e-5),
        out_shape=jax.ShapeDtypeStruct((B, 1, NC), jnp.float32),
        grid=(B,),
        in_specs=in_specs,
        out_specs=pl.BlockSpec((1, 1, NC), lambda b: (b, 0, 0)),
        compiler_params=pltpu.CompilerParams(
            dimension_semantics=("parallel",)),   # lets v7x split batch across TCs
    )(*args)
    return out.reshape(B, NC)


# ------------------------------ init / main ---------------------------------

def init_params(key, *, patch_size, embed_size, num_classes, num_layers,
                mlp_dim, num_patches):
    def nrm(k, shape, scale=0.02):
        return scale * jax.random.normal(k, shape, jnp.float32)

    keys = jax.random.split(key, 6 + num_layers)
    params = {
        "patch_w": nrm(keys[0], (3 * patch_size * patch_size, embed_size)),
        "patch_b": nrm(keys[1], (embed_size,)),
        "cls_token": nrm(keys[2], (1, 1, embed_size)),
        "pos_emb": nrm(keys[3], (1, num_patches + 1, embed_size)),
        "head_ln_g": jnp.ones((embed_size,), jnp.float32),
        "head_ln_b": jnp.zeros((embed_size,), jnp.float32),
        "head_w": nrm(keys[4], (embed_size, num_classes)),
        "head_b": nrm(keys[5], (num_classes,)),
    }
    layers = []
    for i in range(num_layers):
        lk = jax.random.split(keys[6 + i], 8)
        layers.append(dict(
            in_proj_w=nrm(lk[0], (embed_size, 3 * embed_size)),
            in_proj_b=nrm(lk[1], (3 * embed_size,)),
            out_proj_w=nrm(lk[2], (embed_size, embed_size)),
            out_proj_b=nrm(lk[3], (embed_size,)),
            ln1_g=jnp.ones((embed_size,), jnp.float32),
            ln1_b=jnp.zeros((embed_size,), jnp.float32),
            lin1_w=nrm(lk[4], (embed_size, mlp_dim)),
            lin1_b=nrm(lk[5], (mlp_dim,)),
            lin2_w=nrm(lk[6], (mlp_dim, embed_size)),
            lin2_b=nrm(lk[7], (embed_size,)),
            ln2_g=jnp.ones((embed_size,), jnp.float32),
            ln2_b=jnp.zeros((embed_size,), jnp.float32),
        ))
    params["layers"] = layers
    return params


if __name__ == "__main__":
    B = 2
    image_size = 16
    patch_size = 4
    embed_size = 32
    num_classes = 10
    num_layers = 2
    heads = 4
    mlp_dim = 64
    num_patches = (image_size // patch_size) ** 2

    key = jax.random.PRNGKey(0)
    k_img, k_par = jax.random.split(key)
    img = jax.random.normal(k_img, (B, 3, image_size, image_size), jnp.float32)

    params = init_params(
        k_par, patch_size=patch_size, embed_size=embed_size,
        num_classes=num_classes, num_layers=num_layers,
        mlp_dim=mlp_dim, num_patches=num_patches)

    fwd = jax.jit(functools.partial(vit_forward, patch_size=patch_size, heads=heads))
    logits = fwd(params, img)
    logits = jax.block_until_ready(logits)

    assert logits.shape == (B, num_classes)
    assert bool(jnp.all(jnp.isfinite(logits)))
    print("KERNEL_OK")
</pallas_src>

<mosaic_0001>
module attributes {stable_mosaic.version = 11 : i64} {
  func.func @_vit_kernel(%arg0: i32, %arg1: memref<1x17x49xf32, #tpu.memory_space<vmem>>, %arg2: memref<17x32xf32, #tpu.memory_space<vmem>>, %arg3: memref<49x32xf32, #tpu.memory_space<vmem>>, %arg4: memref<1x32xf32, #tpu.memory_space<vmem>>, %arg5: memref<2x4x32x8xf32, #tpu.memory_space<vmem>>, %arg6: memref<2x4x1x8xf32, #tpu.memory_space<vmem>>, %arg7: memref<2x4x32x8xf32, #tpu.memory_space<vmem>>, %arg8: memref<2x4x1x8xf32, #tpu.memory_space<vmem>>, %arg9: memref<2x4x32x8xf32, #tpu.memory_space<vmem>>, %arg10: memref<2x4x1x8xf32, #tpu.memory_space<vmem>>, %arg11: memref<2x4x8x32xf32, #tpu.memory_space<vmem>>, %arg12: memref<2x1x32xf32, #tpu.memory_space<vmem>>, %arg13: memref<2x1x32xf32, #tpu.memory_space<vmem>>, %arg14: memref<2x1x32xf32, #tpu.memory_space<vmem>>, %arg15: memref<2x32x64xf32, #tpu.memory_space<vmem>>, %arg16: memref<2x1x64xf32, #tpu.memory_space<vmem>>, %arg17: memref<2x64x32xf32, #tpu.memory_space<vmem>>, %arg18: memref<2x1x32xf32, #tpu.memory_space<vmem>>, %arg19: memref<2x1x32xf32, #tpu.memory_space<vmem>>, %arg20: memref<2x1x32xf32, #tpu.memory_space<vmem>>, %arg21: memref<1x32xf32, #tpu.memory_space<vmem>>, %arg22: memref<1x32xf32, #tpu.memory_space<vmem>>, %arg23: memref<32x10xf32, #tpu.memory_space<vmem>>, %arg24: memref<1x10xf32, #tpu.memory_space<vmem>>, %arg25: memref<1x1x10xf32, #tpu.memory_space<vmem>>) attributes {dimension_semantics = [#tpu.dimension_semantics<parallel>], iteration_bounds = array<i64: 2>, scalar_prefetch = 0 : i64, scratch_operands = 0 : i64, tpu.core_type = #tpu.core_type<tc>, window_params = [{transform_indices = @transform_0, window_bounds = array<i64: 1, 17, 49>}, {pipeline_mode = #tpu.pipeline_mode<synchronous>, transform_indices = @transform_1, window_bounds = array<i64: 17, 32>}, {pipeline_mode = #tpu.pipeline_mode<synchronous>, transform_indices = @transform_2, window_bounds = array<i64: 49, 32>}, {pipeline_mode = #tpu.pipeline_mode<synchronous>, transform_indices = @transform_3, window_bounds = array<i64: 1, 32>}, {pipeline_mode = #tpu.pipeline_mode<synchronous>, transform_indices = @transform_4, window_bounds = array<i64: 2, 4, 32, 8>}, {pipeline_mode = #tpu.pipeline_mode<synchronous>, transform_indices = @transform_5, window_bounds = array<i64: 2, 4, 1, 8>}, {pipeline_mode = #tpu.pipeline_mode<synchronous>, transform_indices = @transform_6, window_bounds = array<i64: 2, 4, 32, 8>}, {pipeline_mode = #tpu.pipeline_mode<synchronous>, transform_indices = @transform_7, window_bounds = array<i64: 2, 4, 1, 8>}, {pipeline_mode = #tpu.pipeline_mode<synchronous>, transform_indices = @transform_8, window_bounds = array<i64: 2, 4, 32, 8>}, {pipeline_mode = #tpu.pipeline_mode<synchronous>, transform_indices = @transform_9, window_bounds = array<i64: 2, 4, 1, 8>}, {pipeline_mode = #tpu.pipeline_mode<synchronous>, transform_indices = @transform_10, window_bounds = array<i64: 2, 4, 8, 32>}, {pipeline_mode = #tpu.pipeline_mode<synchronous>, transform_indices = @transform_11, window_bounds = array<i64: 2, 1, 32>}, {pipeline_mode = #tpu.pipeline_mode<synchronous>, transform_indices = @transform_12, window_bounds = array<i64: 2, 1, 32>}, {pipeline_mode = #tpu.pipeline_mode<synchronous>, transform_indices = @transform_13, window_bounds = array<i64: 2, 1, 32>}, {pipeline_mode = #tpu.pipeline_mode<synchronous>, transform_indices = @transform_14, window_bounds = array<i64: 2, 32, 64>}, {pipeline_mode = #tpu.pipeline_mode<synchronous>, transform_indices = @transform_15, window_bounds = array<i64: 2, 1, 64>}, {pipeline_mode = #tpu.pipeline_mode<synchronous>, transform_indices = @transform_16, window_bounds = array<i64: 2, 64, 32>}, {pipeline_mode = #tpu.pipeline_mode<synchronous>, transform_indices = @transform_17, window_bounds = array<i64: 2, 1, 32>}, {pipeline_mode = #tpu.pipeline_mode<synchronous>, transform_indices = @transform_18, window_bounds = array<i64: 2, 1, 32>}, {pipeline_mode = #tpu.pipeline_mode<synchronous>, transform_indices = @transform_19, window_bounds = array<i64: 2, 1, 32>}, {pipeline_mode = #tpu.pipeline_mode<synchronous>, transform_indices = @transform_20, window_bounds = array<i64: 1, 32>}, {pipeline_mode = #tpu.pipeline_mode<synchronous>, transform_indices = @transform_21, window_bounds = array<i64: 1, 32>}, {pipeline_mode = #tpu.pipeline_mode<synchronous>, transform_indices = @transform_22, window_bounds = array<i64: 32, 10>}, {pipeline_mode = #tpu.pipeline_mode<synchronous>, transform_indices = @transform_23, window_bounds = array<i64: 1, 10>}, {transform_indices = @transform_24, window_bounds = array<i64: 1, 1, 10>}]} {
    %c0 = arith.constant 0 : index
    %c0_0 = arith.constant 0 : index
    %c0_1 = arith.constant 0 : index
    %0 = vector.load %arg1[%c0, %c0_0, %c0_1] : memref<1x17x49xf32, #tpu.memory_space<vmem>>, vector<1x17x49xf32>
    %1 = vector.shape_cast %0 : vector<1x17x49xf32> to vector<17x49xf32>
    %c0_2 = arith.constant 0 : index
    %c0_3 = arith.constant 0 : index
    %2 = vector.load %arg3[%c0_2, %c0_3] : memref<49x32xf32, #tpu.memory_space<vmem>>, vector<49x32xf32>
    %cst = arith.constant dense<0.000000e+00> : vector<17x32xf32>
    %3 = tpu.matmul %1, %2, %cst {dimension_numbers = #tpu.dot_dimension_numbers<[1], [0], [0], [1], [0, 0, 1, 1], [], []>} : vector<17x49xf32>, vector<49x32xf32>, vector<17x32xf32> -> vector<17x32xf32>
    %c0_4 = arith.constant 0 : index
    %c0_5 = arith.constant 0 : index
    %4 = vector.load %arg4[%c0_4, %c0_5] : memref<1x32xf32, #tpu.memory_space<vmem>>, vector<1x32xf32>
    %5 = vector.broadcast %4 : vector<1x32xf32> to vector<17x32xf32>
    %6 = arith.addf %3, %5 : vector<17x32xf32>
    %c0_6 = arith.constant 0 : index
    %c0_7 = arith.constant 0 : index
    %7 = vector.load %arg2[%c0_6, %c0_7] : memref<17x32xf32, #tpu.memory_space<vmem>>, vector<17x32xf32>
    %8 = arith.addf %6, %7 : vector<17x32xf32>
    %cst_8 = arith.constant 0.000000e+00 : f32
    %9 = vector.broadcast %cst_8 : f32 to vector<17x32xf32>
    %c0_9 = arith.constant 0 : index
    %c0_10 = arith.constant 0 : index
    %c0_11 = arith.constant 0 : index
    %c0_12 = arith.constant 0 : index
    %10 = vector.load %arg5[%c0_9, %c0_10, %c0_11, %c0_12] : memref<2x4x32x8xf32, #tpu.memory_space<vmem>>, vector<1x1x32x8xf32>
    %11 = vector.shape_cast %10 : vector<1x1x32x8xf32> to vector<32x8xf32>
    %cst_13 = arith.constant dense<0.000000e+00> : vector<17x8xf32>
    %12 = tpu.matmul %8, %11, %cst_13 {dimension_numbers = #tpu.dot_dimension_numbers<[1], [0], [0], [1], [0, 0, 1, 1], [], []>} : vector<17x32xf32>, vector<32x8xf32>, vector<17x8xf32> -> vector<17x8xf32>
    %c0_14 = arith.constant 0 : index
    %c0_15 = arith.constant 0 : index
    %c0_16 = arith.constant 0 : index
    %c0_17 = arith.constant 0 : index
    %13 = vector.load %arg6[%c0_14, %c0_15, %c0_16, %c0_17] : memref<2x4x1x8xf32, #tpu.memory_space<vmem>>, vector<1x1x1x8xf32>
    %14 = vector.shape_cast %13 : vector<1x1x1x8xf32> to vector<1x8xf32>
    %15 = vector.broadcast %14 : vector<1x8xf32> to vector<17x8xf32>
    %16 = arith.addf %12, %15 : vector<17x8xf32>
    %c0_18 = arith.constant 0 : index
    %c0_19 = arith.constant 0 : index
    %c0_20 = arith.constant 0 : index
    %c0_21 = arith.constant 0 : index
    %17 = vector.load %arg7[%c0_18, %c0_19, %c0_20, %c0_21] : memref<2x4x32x8xf32, #tpu.memory_space<vmem>>, vector<1x1x32x8xf32>
    %18 = vector.shape_cast %17 : vector<1x1x32x8xf32> to vector<32x8xf32>
    %cst_22 = arith.constant dense<0.000000e+00> : vector<17x8xf32>
    %19 = tpu.matmul %8, %18, %cst_22 {dimension_numbers = #tpu.dot_dimension_numbers<[1], [0], [0], [1], [0, 0, 1, 1], [], []>} : vector<17x32xf32>, vector<32x8xf32>, vector<17x8xf32> -> vector<17x8xf32>
    %c0_23 = arith.constant 0 : index
    %c0_24 = arith.constant 0 : index
    %c0_25 = arith.constant 0 : index
    %c0_26 = arith.constant 0 : index
    %20 = vector.load %arg8[%c0_23, %c0_24, %c0_25, %c0_26] : memref<2x4x1x8xf32, #tpu.memory_space<vmem>>, vector<1x1x1x8xf32>
    %21 = vector.shape_cast %20 : vector<1x1x1x8xf32> to vector<1x8xf32>
    %22 = vector.broadcast %21 : vector<1x8xf32> to vector<17x8xf32>
    %23 = arith.addf %19, %22 : vector<17x8xf32>
    %c0_27 = arith.constant 0 : index
    %c0_28 = arith.constant 0 : index
    %c0_29 = arith.constant 0 : index
    %c0_30 = arith.constant 0 : index
    %24 = vector.load %arg9[%c0_27, %c0_28, %c0_29, %c0_30] : memref<2x4x32x8xf32, #tpu.memory_space<vmem>>, vector<1x1x32x8xf32>
    %25 = vector.shape_cast %24 : vector<1x1x32x8xf32> to vector<32x8xf32>
    %cst_31 = arith.constant dense<0.000000e+00> : vector<17x8xf32>
    %26 = tpu.matmul %8, %25, %cst_31 {dimension_numbers = #tpu.dot_dimension_numbers<[1], [0], [0], [1], [0, 0, 1, 1], [], []>} : vector<17x32xf32>, vector<32x8xf32>, vector<17x8xf32> -> vector<17x8xf32>
    %c0_32 = arith.constant 0 : index
    %c0_33 = arith.constant 0 : index
    %c0_34 = arith.constant 0 : index
    %c0_35 = arith.constant 0 : index
    %27 = vector.load %arg10[%c0_32, %c0_33, %c0_34, %c0_35] : memref<2x4x1x8xf32, #tpu.memory_space<vmem>>, vector<1x1x1x8xf32>
    %28 = vector.shape_cast %27 : vector<1x1x1x8xf32> to vector<1x8xf32>
    %29 = vector.broadcast %28 : vector<1x8xf32> to vector<17x8xf32>
    %30 = arith.addf %26, %29 : vector<17x8xf32>
    %cst_36 = arith.constant dense<0.000000e+00> : vector<17x17xf32>
    %31 = tpu.matmul %16, %23, %cst_36 {dimension_numbers = #tpu.dot_dimension_numbers<[1], [1], [0], [0], [0, 0, 1, 0], [], []>} : vector<17x8xf32>, vector<17x8xf32>, vector<17x17xf32> -> vector<17x17xf32>
    %cst_37 = arith.constant 0.353553385 : f32
    %32 = vector.broadcast %cst_37 : f32 to vector<17x17xf32>
    %33 = arith.mulf %31, %32 : vector<17x17xf32>
    %cst_38 = arith.constant dense<0xFF800000> : vector<17xf32>
    %34 = vector.multi_reduction <maximumf>, %33, %cst_38 [1] : vector<17x17xf32> to vector<17xf32>
    %35 = vector.shape_cast %34 : vector<17xf32> to vector<17x1xf32>
    %36 = vector.broadcast %35 : vector<17x1xf32> to vector<17x17xf32>
    %37 = arith.subf %33, %36 : vector<17x17xf32>
    %38 = math.exp %37 : vector<17x17xf32>
    %cst_39 = arith.constant dense<0.000000e+00> : vector<17xf32>
    %39 = vector.multi_reduction <add>, %38, %cst_39 [1] : vector<17x17xf32> to vector<17xf32>
    %40 = vector.shape_cast %39 : vector<17xf32> to vector<17x1xf32>
    %41 = tpu.reciprocal %40 {approx = true} : vector<17x1xf32> -> vector<17x1xf32>
    %42 = vector.broadcast %41 : vector<17x1xf32> to vector<17x17xf32>
    %43 = arith.mulf %38, %42 : vector<17x17xf32>
    %cst_40 = arith.constant dense<0.000000e+00> : vector<17x8xf32>
    %44 = tpu.matmul %43, %30, %cst_40 {dimension_numbers = #tpu.dot_dimension_numbers<[1], [0], [0], [1], [0, 0, 1, 1], [], []>} : vector<17x17xf32>, vector<17x8xf32>, vector<17x8xf32> -> vector<17x8xf32>
    %c0_41 = arith.constant 0 : index
    %c0_42 = arith.constant 0 : index
    %c0_43 = arith.constant 0 : index
    %c0_44 = arith.constant 0 : index
    %45 = vector.load %arg11[%c0_41, %c0_42, %c0_43, %c0_44] : memref<2x4x8x32xf32, #tpu.memory_space<vmem>>, vector<1x1x8x32xf32>
    %46 = vector.shape_cast %45 : vector<1x1x8x32xf32> to vector<8x32xf32>
    %cst_45 = arith.constant dense<0.000000e+00> : vector<17x32xf32>
    %47 = tpu.matmul %44, %46, %cst_45 {dimension_numbers = #tpu.dot_dimension_numbers<[1], [0], [0], [1], [0, 0, 1, 1], [], []>} : vector<17x8xf32>, vector<8x32xf32>, vector<17x32xf32> -> vector<17x32xf32>
    %48 = arith.addf %9, %47 : vector<17x32xf32>
    %c0_46 = arith.constant 0 : index
    %c1 = arith.constant 1 : index
    %c0_47 = arith.constant 0 : index
    %c0_48 = arith.constant 0 : index
    %49 = vector.load %arg5[%c0_46, %c1, %c0_47, %c0_48] : memref<2x4x32x8xf32, #tpu.memory_space<vmem>>, vector<1x1x32x8xf32>
    %50 = vector.shape_cast %49 : vector<1x1x32x8xf32> to vector<32x8xf32>
    %cst_49 = arith.constant dense<0.000000e+00> : vector<17x8xf32>
    %51 = tpu.matmul %8, %50, %cst_49 {dimension_numbers = #tpu.dot_dimension_numbers<[1], [0], [0], [1], [0, 0, 1, 1], [], []>} : vector<17x32xf32>, vector<32x8xf32>, vector<17x8xf32> -> vector<17x8xf32>
    %c0_50 = arith.constant 0 : index
    %c1_51 = arith.constant 1 : index
    %c0_52 = arith.constant 0 : index
    %c0_53 = arith.constant 0 : index
    %52 = vector.load %arg6[%c0_50, %c1_51, %c0_52, %c0_53] : memref<2x4x1x8xf32, #tpu.memory_space<vmem>>, vector<1x1x1x8xf32>
    %53 = vector.shape_cast %52 : vector<1x1x1x8xf32> to vector<1x8xf32>
    %54 = vector.broadcast %53 : vector<1x8xf32> to vector<17x8xf32>
    %55 = arith.addf %51, %54 : vector<17x8xf32>
    %c0_54 = arith.constant 0 : index
    %c1_55 = arith.constant 1 : index
    %c0_56 = arith.constant 0 : index
    %c0_57 = arith.constant 0 : index
    %56 = vector.load %arg7[%c0_54, %c1_55, %c0_56, %c0_57] : memref<2x4x32x8xf32, #tpu.memory_space<vmem>>, vector<1x1x32x8xf32>
    %57 = vector.shape_cast %56 : vector<1x1x32x8xf32> to vector<32x8xf32>
    %cst_58 = arith.constant dense<0.000000e+00> : vector<17x8xf32>
    %58 = tpu.matmul %8, %57, %cst_58 {dimension_numbers = #tpu.dot_dimension_numbers<[1], [0], [0], [1], [0, 0, 1, 1], [], []>} : vector<17x32xf32>, vector<32x8xf32>, vector<17x8xf32> -> vector<17x8xf32>
    %c0_59 = arith.constant 0 : index
    %c1_60 = arith.constant 1 : index
    %c0_61 = arith.constant 0 : index
    %c0_62 = arith.constant 0 : index
    %59 = vector.load %arg8[%c0_59, %c1_60, %c0_61, %c0_62] : memref<2x4x1x8xf32, #tpu.memory_space<vmem>>, vector<1x1x1x8xf32>
    %60 = vector.shape_cast %59 : vector<1x1x1x8xf32> to vector<1x8xf32>
    %61 = vector.broadcast %60 : vector<1x8xf32> to vector<17x8xf32>
    %62 = arith.addf %58, %61 : vector<17x8xf32>
    %c0_63 = arith.constant 0 : index
    %c1_64 = arith.constant 1 : index
    %c0_65 = arith.constant 0 : index
    %c0_66 = arith.constant 0 : index
    %63 = vector.load %arg9[%c0_63, %c1_64, %c0_65, %c0_66] : memref<2x4x32x8xf32, #tpu.memory_space<vmem>>, vector<1x1x32x8xf32>
    %64 = vector.shape_cast %63 : vector<1x1x32x8xf32> to vector<32x8xf32>
    %cst_67 = arith.constant dense<0.000000e+00> : vector<17x8xf32>
    %65 = tpu.matmul %8, %64, %cst_67 {dimension_numbers = #tpu.dot_dimension_numbers<[1], [0], [0], [1], [0, 0, 1, 1], [], []>} : vector<17x32xf32>, vector<32x8xf32>, vector<17x8xf32> -> vector<17x8xf32>
    %c0_68 = arith.constant 0 : index
    %c1_69 = arith.constant 1 : index
    %c0_70 = arith.constant 0 : index
    %c0_71 = arith.constant 0 : index
    %66 = vector.load %arg10[%c0_68, %c1_69, %c0_70, %c0_71] : memref<2x4x1x8xf32, #tpu.memory_space<vmem>>, vector<1x1x1x8xf32>
    %67 = vector.shape_cast %66 : vector<1x1x1x8xf32> to vector<1x8xf32>
    %68 = vector.broadcast %67 : vector<1x8xf32> to vector<17x8xf32>
    %69 = arith.addf %65, %68 : vector<17x8xf32>
    %cst_72 = arith.constant dense<0.000000e+00> : vector<17x17xf32>
    %70 = tpu.matmul %55, %62, %cst_72 {dimension_numbers = #tpu.dot_dimension_numbers<[1], [1], [0], [0], [0, 0, 1, 0], [], []>} : vector<17x8xf32>, vector<17x8xf32>, vector<17x17xf32> -> vector<17x17xf32>
    %cst_73 = arith.constant 0.353553385 : f32
    %71 = vector.broadcast %cst_73 : f32 to vector<17x17xf32>
    %72 = arith.mulf %70, %71 : vector<17x17xf32>
    %cst_74 = arith.constant dense<0xFF800000> : vector<17xf32>
    %73 = vector.multi_reduction <maximumf>, %72, %cst_74 [1] : vector<17x17xf32> to vector<17xf32>
    %74 = vector.shape_cast %73 : vector<17xf32> to vector<17x1xf32>
    %75 = vector.broadcast %74 : vector<17x1xf32> to vector<17x17xf32>
    %76 = arith.subf %72, %75 : vector<17x17xf32>
    %77 = math.exp %76 : vector<17x17xf32>
    %cst_75 = arith.constant dense<0.000000e+00> : vector<17xf32>
    %78 = vector.multi_reduction <add>, %77, %cst_75 [1] : vector<17x17xf32> to vector<17xf32>
    %79 = vector.shape_cast %78 : vector<17xf32> to vector<17x1xf32>
    %80 = tpu.reciprocal %79 {approx = true} : vector<17x1xf32> -> vector<17x1xf32>
    %81 = vector.broadcast %80 : vector<17x1xf32> to vector<17x17xf32>
    %82 = arith.mulf %77, %81 : vector<17x17xf32>
    %cst_76 = arith.constant dense<0.000000e+00> : vector<17x8xf32>
    %83 = tpu.matmul %82, %69, %cst_76 {dimension_numbers = #tpu.dot_dimension_numbers<[1], [0], [0], [1], [0, 0, 1, 1], [], []>} : vector<17x17xf32>, vector<17x8xf32>, vector<17x8xf32> -> vector<17x8xf32>
    %c0_77 = arith.constant 0 : index
    %c1_78 = arith.constant 1 : index
    %c0_79 = arith.constant 0 : index
    %c0_80 = arith.constant 0 : index
    %84 = vector.load %arg11[%c0_77, %c1_78, %c0_79, %c0_80] : memref<2x4x8x32xf32, #tpu.memory_space<vmem>>, vector<1x1x8x32xf32>
    %85 = vector.shape_cast %84 : vector<1x1x8x32xf32> to vector<8x32xf32>
    %cst_81 = arith.constant dense<0.000000e+00> : vector<17x32xf32>
    %86 = tpu.matmul %83, %85, %cst_81 {dimension_numbers = #tpu.dot_dimension_numbers<[1], [0], [0], [1], [0, 0, 1, 1], [], []>} : vector<17x8xf32>, vector<8x32xf32>, vector<17x32xf32> -> vector<17x32xf32>
    %87 = arith.addf %48, %86 : vector<17x32xf32>
    %c0_82 = arith.constant 0 : index
    %c2 = arith.constant 2 : index
    %c0_83 = arith.constant 0 : index
    %c0_84 = arith.constant 0 : index
    %88 = vector.load %arg5[%c0_82, %c2, %c0_83, %c0_84] : memref<2x4x32x8xf32, #tpu.memory_space<vmem>>, vector<1x1x32x8xf32>
    %89 = vector.shape_cast %88 : vector<1x1x32x8xf32> to vector<32x8xf32>
    %cst_85 = arith.constant dense<0.000000e+00> : vector<17x8xf32>
    %90 = tpu.matmul %8, %89, %cst_85 {dimension_numbers = #tpu.dot_dimension_numbers<[1], [0], [0], [1], [0, 0, 1, 1], [], []>} : vector<17x32xf32>, vector<32x8xf32>, vector<17x8xf32> -> vector<17x8xf32>
    %c0_86 = arith.constant 0 : index
    %c2_87 = arith.constant 2 : index
    %c0_88 = arith.constant 0 : index
    %c0_89 = arith.constant 0 : index
    %91 = vector.load %arg6[%c0_86, %c2_87, %c0_88, %c0_89] : memref<2x4x1x8xf32, #tpu.memory_space<vmem>>, vector<1x1x1x8xf32>
    %92 = vector.shape_cast %91 : vector<1x1x1x8xf32> to vector<1x8xf32>
    %93 = vector.broadcast %92 : vector<1x8xf32> to vector<17x8xf32>
    %94 = arith.addf %90, %93 : vector<17x8xf32>
    %c0_90 = arith.constant 0 : index
    %c2_91 = arith.constant 2 : index
    %c0_92 = arith.constant 0 : index
    %c0_93 = arith.constant 0 : index
    %95 = vector.load %arg7[%c0_90, %c2_91, %c0_92, %c0_93] : memref<2x4x32x8xf32, #tpu.memory_space<vmem>>, vector<1x1x32x8xf32>
    %96 = vector.shape_cast %95 : vector<1x1x32x8xf32> to vector<32x8xf32>
    %cst_94 = arith.constant dense<0.000000e+00> : vector<17x8xf32>
    %97 = tpu.matmul %8, %96, %cst_94 {dimension_numbers = #tpu.dot_dimension_numbers<[1], [0], [0], [1], [0, 0, 1, 1], [], []>} : vector<17x32xf32>, vector<32x8xf32>, vector<17x8xf32> -> vector<17x8xf32>
    %c0_95 = arith.constant 0 : index
    %c2_96 = arith.constant 2 : index
    %c0_97 = arith.constant 0 : index
    %c0_98 = arith.constant 0 : index
    %98 = vector.load %arg8[%c0_95, %c2_96, %c0_97, %c0_98] : memref<2x4x1x8xf32, #tpu.memory_space<vmem>>, vector<1x1x1x8xf32>
    %99 = vector.shape_cast %98 : vector<1x1x1x8xf32> to vector<1x8xf32>
    %100 = vector.broadcast %99 : vector<1x8xf32> to vector<17x8xf32>
    %101 = arith.addf %97, %100 : vector<17x8xf32>
    %c0_99 = arith.constant 0 : index
    %c2_100 = arith.constant 2 : index
    %c0_101 = arith.constant 0 : index
    %c0_102 = arith.constant 0 : index
    %102 = vector.load %arg9[%c0_99, %c2_100, %c0_101, %c0_102] : memref<2x4x32x8xf32, #tpu.memory_space<vmem>>, vector<1x1x32x8xf32>
    %103 = vector.shape_cast %102 : vector<1x1x32x8xf32> to vector<32x8xf32>
    %cst_103 = arith.constant dense<0.000000e+00> : vector<17x8xf32>
    %104 = tpu.matmul %8, %103, %cst_103 {dimension_numbers = #tpu.dot_dimension_numbers<[1], [0], [0], [1], [0, 0, 1, 1], [], []>} : vector<17x32xf32>, vector<32x8xf32>, vector<17x8xf32> -> vector<17x8xf32>
    %c0_104 = arith.constant 0 : index
    %c2_105 = arith.constant 2 : index
    %c0_106 = arith.constant 0 : index
    %c0_107 = arith.constant 0 : index
    %105 = vector.load %arg10[%c0_104, %c2_105, %c0_106, %c0_107] : memref<2x4x1x8xf32, #tpu.memory_space<vmem>>, vector<1x1x1x8xf32>
    %106 = vector.shape_cast %105 : vector<1x1x1x8xf32> to vector<1x8xf32>
    %107 = vector.broadcast %106 : vector<1x8xf32> to vector<17x8xf32>
    %108 = arith.addf %104, %107 : vector<17x8xf32>
    %cst_108 = arith.constant dense<0.000000e+00> : vector<17x17xf32>
    %109 = tpu.matmul %94, %101, %cst_108 {dimension_numbers = #tpu.dot_dimension_numbers<[1], [1], [0], [0], [0, 0, 1, 0], [], []>} : vector<17x8xf32>, vector<17x8xf32>, vector<17x17xf32> -> vector<17x17xf32>
    %cst_109 = arith.constant 0.353553385 : f32
    %110 = vector.broadcast %cst_109 : f32 to vector<17x17xf32>
    %111 = arith.mulf %109, %110 : vector<17x17xf32>
    %cst_110 = arith.constant dense<0xFF800000> : vector<17xf32>
    %112 = vector.multi_reduction <maximumf>, %111, %cst_110 [1] : vector<17x17xf32> to vector<17xf32>
    %113 = vector.shape_cast %112 : vector<17xf32> to vector<17x1xf32>
    %114 = vector.broadcast %113 : vector<17x1xf32> to vector<17x17xf32>
    %115 = arith.subf %111, %114 : vector<17x17xf32>
    %116 = math.exp %115 : vector<17x17xf32>
    %cst_111 = arith.constant dense<0.000000e+00> : vector<17xf32>
    %117 = vector.multi_reduction <add>, %116, %cst_111 [1] : vector<17x17xf32> to vector<17xf32>
    %118 = vector.shape_cast %117 : vector<17xf32> to vector<17x1xf32>
    %119 = tpu.reciprocal %118 {approx = true} : vector<17x1xf32> -> vector<17x1xf32>
    %120 = vector.broadcast %119 : vector<17x1xf32> to vector<17x17xf32>
    %121 = arith.mulf %116, %120 : vector<17x17xf32>
    %cst_112 = arith.constant dense<0.000000e+00> : vector<17x8xf32>
    %122 = tpu.matmul %121, %108, %cst_112 {dimension_numbers = #tpu.dot_dimension_numbers<[1], [0], [0], [1], [0, 0, 1, 1], [], []>} : vector<17x17xf32>, vector<17x8xf32>, vector<17x8xf32> -> vector<17x8xf32>
    %c0_113 = arith.constant 0 : index
    %c2_114 = arith.constant 2 : index
    %c0_115 = arith.constant 0 : index
    %c0_116 = arith.constant 0 : index
    %123 = vector.load %arg11[%c0_113, %c2_114, %c0_115, %c0_116] : memref<2x4x8x32xf32, #tpu.memory_space<vmem>>, vector<1x1x8x32xf32>
    %124 = vector.shape_cast %123 : vector<1x1x8x32xf32> to vector<8x32xf32>
    %cst_117 = arith.constant dense<0.000000e+00> : vector<17x32xf32>
    %125 = tpu.matmul %122, %124, %cst_117 {dimension_numbers = #tpu.dot_dimension_numbers<[1], [0], [0], [1], [0, 0, 1, 1], [], []>} : vector<17x8xf32>, vector<8x32xf32>, vector<17x32xf32> -> vector<17x32xf32>
    %126 = arith.addf %87, %125 : vector<17x32xf32>
    %c0_118 = arith.constant 0 : index
    %c3 = arith.constant 3 : index
    %c0_119 = arith.constant 0 : index
    %c0_120 = arith.constant 0 : index
    %127 = vector.load %arg5[%c0_118, %c3, %c0_119, %c0_120] : memref<2x4x32x8xf32, #tpu.memory_space<vmem>>, vector<1x1x32x8xf32>
    %128 = vector.shape_cast %127 : vector<1x1x32x8xf32> to vector<32x8xf32>
    %cst_121 = arith.constant dense<0.000000e+00> : vector<17x8xf32>
    %129 = tpu.matmul %8, %128, %cst_121 {dimension_numbers = #tpu.dot_dimension_numbers<[1], [0], [0], [1], [0, 0, 1, 1], [], []>} : vector<17x32xf32>, vector<32x8xf32>, vector<17x8xf32> -> vector<17x8xf32>
    %c0_122 = arith.constant 0 : index
    %c3_123 = arith.constant 3 : index
    %c0_124 = arith.constant 0 : index
    %c0_125 = arith.constant 0 : index
    %130 = vector.load %arg6[%c0_122, %c3_123, %c0_124, %c0_125] : memref<2x4x1x8xf32, #tpu.memory_space<vmem>>, vector<1x1x1x8xf32>
    %131 = vector.shape_cast %130 : vector<1x1x1x8xf32> to vector<1x8xf32>
    %132 = vector.broadcast %131 : vector<1x8xf32> to vector<17x8xf32>
    %133 = arith.addf %129, %132 : vector<17x8xf32>
    %c0_126 = arith.constant 0 : index
    %c3_127 = arith.constant 3 : index
    %c0_128 = arith.constant 0 : index
    %c0_129 = arith.constant 0 : index
    %134 = vector.load %arg7[%c0_126, %c3_127, %c0_128, %c0_129] : memref<2x4x32x8xf32, #tpu.memory_space<vmem>>, vector<1x1x32x8xf32>
    %135 = vector.shape_cast %134 : vector<1x1x32x8xf32> to vector<32x8xf32>
    %cst_130 = arith.constant dense<0.000000e+00> : vector<17x8xf32>
    %136 = tpu.matmul %8, %135, %cst_130 {dimension_numbers = #tpu.dot_dimension_numbers<[1], [0], [0], [1], [0, 0, 1, 1], [], []>} : vector<17x32xf32>, vector<32x8xf32>, vector<17x8xf32> -> vector<17x8xf32>
    %c0_131 = arith.constant 0 : index
    %c3_132 = arith.constant 3 : index
    %c0_133 = arith.constant 0 : index
    %c0_134 = arith.constant 0 : index
    %137 = vector.load %arg8[%c0_131, %c3_132, %c0_133, %c0_134] : memref<2x4x1x8xf32, #tpu.memory_space<vmem>>, vector<1x1x1x8xf32>
    %138 = vector.shape_cast %137 : vector<1x1x1x8xf32> to vector<1x8xf32>
    %139 = vector.broadcast %138 : vector<1x8xf32> to vector<17x8xf32>
    %140 = arith.addf %136, %139 : vector<17x8xf32>
    %c0_135 = arith.constant 0 : index
    %c3_136 = arith.constant 3 : index
    %c0_137 = arith.constant 0 : index
    %c0_138 = arith.constant 0 : index
    %141 = vector.load %arg9[%c0_135, %c3_136, %c0_137, %c0_138] : memref<2x4x32x8xf32, #tpu.memory_space<vmem>>, vector<1x1x32x8xf32>
    %142 = vector.shape_cast %141 : vector<1x1x32x8xf32> to vector<32x8xf32>
    %cst_139 = arith.constant dense<0.000000e+00> : vector<17x8xf32>
    %143 = tpu.matmul %8, %142, %cst_139 {dimension_numbers = #tpu.dot_dimension_numbers<[1], [0], [0], [1], [0, 0, 1, 1], [], []>} : vector<17x32xf32>, vector<32x8xf32>, vector<17x8xf32> -> vector<17x8xf32>
    %c0_140 = arith.constant 0 : index
    %c3_141 = arith.constant 3 : index
    %c0_142 = arith.constant 0 : index
    %c0_143 = arith.constant 0 : index
    %144 = vector.load %arg10[%c0_140, %c3_141, %c0_142, %c0_143] : memref<2x4x1x8xf32, #tpu.memory_space<vmem>>, vector<1x1x1x8xf32>
    %145 = vector.shape_cast %144 : vector<1x1x1x8xf32> to vector<1x8xf32>
    %146 = vector.broadcast %145 : vector<1x8xf32> to vector<17x8xf32>
    %147 = arith.addf %143, %146 : vector<17x8xf32>
    %cst_144 = arith.constant dense<0.000000e+00> : vector<17x17xf32>
    %148 = tpu.matmul %133, %140, %cst_144 {dimension_numbers = #tpu.dot_dimension_numbers<[1], [1], [0], [0], [0, 0, 1, 0], [], []>} : vector<17x8xf32>, vector<17x8xf32>, vector<17x17xf32> -> vector<17x17xf32>
    %cst_145 = arith.constant 0.353553385 : f32
    %149 = vector.broadcast %cst_145 : f32 to vector<17x17xf32>
    %150 = arith.mulf %148, %149 : vector<17x17xf32>
    %cst_146 = arith.constant dense<0xFF800000> : vector<17xf32>
    %151 = vector.multi_reduction <maximumf>, %150, %cst_146 [1] : vector<17x17xf32> to vector<17xf32>
    %152 = vector.shape_cast %151 : vector<17xf32> to vector<17x1xf32>
    %153 = vector.broadcast %152 : vector<17x1xf32> to vector<17x17xf32>
    %154 = arith.subf %150, %153 : vector<17x17xf32>
    %155 = math.exp %154 : vector<17x17xf32>
    %cst_147 = arith.constant dense<0.000000e+00> : vector<17xf32>
    %156 = vector.multi_reduction <add>, %155, %cst_147 [1] : vector<17x17xf32> to vector<17xf32>
    %157 = vector.shape_cast %156 : vector<17xf32> to vector<17x1xf32>
    %158 = tpu.reciprocal %157 {approx = true} : vector<17x1xf32> -> vector<17x1xf32>
    %159 = vector.broadcast %158 : vector<17x1xf32> to vector<17x17xf32>
    %160 = arith.mulf %155, %159 : vector<17x17xf32>
    %cst_148 = arith.constant dense<0.000000e+00> : vector<17x8xf32>
    %161 = tpu.matmul %160, %147, %cst_148 {dimension_numbers = #tpu.dot_dimension_numbers<[1], [0], [0], [1], [0, 0, 1, 1], [], []>} : vector<17x17xf32>, vector<17x8xf32>, vector<17x8xf32> -> vector<17x8xf32>
    %c0_149 = arith.constant 0 : index
    %c3_150 = arith.constant 3 : index
    %c0_151 = arith.constant 0 : index
    %c0_152 = arith.constant 0 : index
    %162 = vector.load %arg11[%c0_149, %c3_150, %c0_151, %c0_152] : memref<2x4x8x32xf32, #tpu.memory_space<vmem>>, vector<1x1x8x32xf32>
    %163 = vector.shape_cast %162 : vector<1x1x8x32xf32> to vector<8x32xf32>
    %cst_153 = arith.constant dense<0.000000e+00> : vector<17x32xf32>
    %164 = tpu.matmul %161, %163, %cst_153 {dimension_numbers = #tpu.dot_dimension_numbers<[1], [0], [0], [1], [0, 0, 1, 1], [], []>} : vector<17x8xf32>, vector<8x32xf32>, vector<17x32xf32> -> vector<17x32xf32>
    %165 = arith.addf %126, %164 : vector<17x32xf32>
    %c0_154 = arith.constant 0 : index
    %c0_155 = arith.constant 0 : index
    %c0_156 = arith.constant 0 : index
    %166 = vector.load %arg12[%c0_154, %c0_155, %c0_156] : memref<2x1x32xf32, #tpu.memory_space<vmem>>, vector<1x1x32xf32>
    %167 = vector.shape_cast %166 : vector<1x1x32xf32> to vector<1x32xf32>
    %168 = vector.broadcast %167 : vector<1x32xf32> to vector<17x32xf32>
    %169 = arith.addf %165, %168 : vector<17x32xf32>
    %170 = arith.addf %8, %169 : vector<17x32xf32>
    %c0_157 = arith.constant 0 : index
    %c0_158 = arith.constant 0 : index
    %c0_159 = arith.constant 0 : index
    %171 = vector.load %arg13[%c0_157, %c0_158, %c0_159] : memref<2x1x32xf32, #tpu.memory_space<vmem>>, vector<1x1x32xf32>
    %172 = vector.shape_cast %171 : vector<1x1x32xf32> to vector<1x32xf32>
    %c0_160 = arith.constant 0 : index
    %c0_161 = arith.constant 0 : index
    %c0_162 = arith.constant 0 : index
    %173 = vector.load %arg14[%c0_160, %c0_161, %c0_162] : memref<2x1x32xf32, #tpu.memory_space<vmem>>, vector<1x1x32xf32>
    %174 = vector.shape_cast %173 : vector<1x1x32xf32> to vector<1x32xf32>
    %cst_163 = arith.constant dense<0.000000e+00> : vector<17xf32>
    %175 = vector.multi_reduction <add>, %170, %cst_163 [1] : vector<17x32xf32> to vector<17xf32>
    %176 = vector.shape_cast %175 : vector<17xf32> to vector<17x1xf32>
    %cst_164 = arith.constant 3.200000e+01 : f32
    %177 = vector.broadcast %cst_164 : f32 to vector<17x1xf32>
    %178 = arith.divf %176, %177 : vector<17x1xf32>
    %179 = vector.broadcast %178 : vector<17x1xf32> to vector<17x32xf32>
    %180 = arith.subf %170, %179 : vector<17x32xf32>
    %181 = arith.mulf %180, %180 : vector<17x32xf32>
    %cst_165 = arith.constant dense<0.000000e+00> : vector<17xf32>
    %182 = vector.multi_reduction <add>, %181, %cst_165 [1] : vector<17x32xf32> to vector<17xf32>
    %183 = vector.shape_cast %182 : vector<17xf32> to vector<17x1xf32>
    %cst_166 = arith.constant 3.200000e+01 : f32
    %184 = vector.broadcast %cst_166 : f32 to vector<17x1xf32>
    %185 = arith.divf %183, %184 : vector<17x1xf32>
    %186 = vector.broadcast %178 : vector<17x1xf32> to vector<17x32xf32>
    %187 = arith.subf %170, %186 : vector<17x32xf32>
    %cst_167 = arith.constant 9.99999974E-6 : f32
    %188 = vector.broadcast %cst_167 : f32 to vector<17x1xf32>
    %189 = arith.addf %185, %188 : vector<17x1xf32>
    %190 = math.rsqrt %189 : vector<17x1xf32>
    %191 = vector.broadcast %190 : vector<17x1xf32> to vector<17x32xf32>
    %192 = arith.mulf %187, %191 : vector<17x32xf32>
    %193 = vector.broadcast %172 : vector<1x32xf32> to vector<17x32xf32>
    %194 = arith.mulf %192, %193 : vector<17x32xf32>
    %195 = vector.broadcast %174 : vector<1x32xf32> to vector<17x32xf32>
    %196 = arith.addf %194, %195 : vector<17x32xf32>
    %c0_168 = arith.constant 0 : index
    %c0_169 = arith.constant 0 : index
    %c0_170 = arith.constant 0 : index
    %197 = vector.load %arg15[%c0_168, %c0_169, %c0_170] : memref<2x32x64xf32, #tpu.memory_space<vmem>>, vector<1x32x64xf32>
    %198 = vector.shape_cast %197 : vector<1x32x64xf32> to vector<32x64xf32>
    %cst_171 = arith.constant dense<0.000000e+00> : vector<17x64xf32>
    %199 = tpu.matmul %196, %198, %cst_171 {dimension_numbers = #tpu.dot_dimension_numbers<[1], [0], [0], [1], [0, 0, 1, 1], [], []>} : vector<17x32xf32>, vector<32x64xf32>, vector<17x64xf32> -> vector<17x64xf32>
    %c0_172 = arith.constant 0 : index
    %c0_173 = arith.constant 0 : index
    %c0_174 = arith.constant 0 : index
    %200 = vector.load %arg16[%c0_172, %c0_173, %c0_174] : memref<2x1x64xf32, #tpu.memory_space<vmem>>, vector<1x1x64xf32>
    %201 = vector.shape_cast %200 : vector<1x1x64xf32> to vector<1x64xf32>
    %202 = vector.broadcast %201 : vector<1x64xf32> to vector<17x64xf32>
    %203 = arith.addf %199, %202 : vector<17x64xf32>
    %cst_175 = arith.constant 0.000000e+00 : f32
    %204 = vector.broadcast %cst_175 : f32 to vector<17x64xf32>
    %205 = arith.maximumf %203, %204 : vector<17x64xf32>
    %c0_176 = arith.constant 0 : index
    %c0_177 = arith.constant 0 : index
    %c0_178 = arith.constant 0 : index
    %206 = vector.load %arg17[%c0_176, %c0_177, %c0_178] : memref<2x64x32xf32, #tpu.memory_space<vmem>>, vector<1x64x32xf32>
    %207 = vector.shape_cast %206 : vector<1x64x32xf32> to vector<64x32xf32>
    %cst_179 = arith.constant dense<0.000000e+00> : vector<17x32xf32>
    %208 = tpu.matmul %205, %207, %cst_179 {dimension_numbers = #tpu.dot_dimension_numbers<[1], [0], [0], [1], [0, 0, 1, 1], [], []>} : vector<17x64xf32>, vector<64x32xf32>, vector<17x32xf32> -> vector<17x32xf32>
    %c0_180 = arith.constant 0 : index
    %c0_181 = arith.constant 0 : index
    %c0_182 = arith.constant 0 : index
    %209 = vector.load %arg18[%c0_180, %c0_181, %c0_182] : memref<2x1x32xf32, #tpu.memory_space<vmem>>, vector<1x1x32xf32>
    %210 = vector.shape_cast %209 : vector<1x1x32xf32> to vector<1x32xf32>
    %211 = vector.broadcast %210 : vector<1x32xf32> to vector<17x32xf32>
    %212 = arith.addf %208, %211 : vector<17x32xf32>
    %213 = arith.addf %196, %212 : vector<17x32xf32>
    %c0_183 = arith.constant 0 : index
    %c0_184 = arith.constant 0 : index
    %c0_185 = arith.constant 0 : index
    %214 = vector.load %arg19[%c0_183, %c0_184, %c0_185] : memref<2x1x32xf32, #tpu.memory_space<vmem>>, vector<1x1x32xf32>
    %215 = vector.shape_cast %214 : vector<1x1x32xf32> to vector<1x32xf32>
    %c0_186 = arith.constant 0 : index
    %c0_187 = arith.constant 0 : index
    %c0_188 = arith.constant 0 : index
    %216 = vector.load %arg20[%c0_186, %c0_187, %c0_188] : memref<2x1x32xf32, #tpu.memory_space<vmem>>, vector<1x1x32xf32>
    %217 = vector.shape_cast %216 : vector<1x1x32xf32> to vector<1x32xf32>
    %cst_189 = arith.constant dense<0.000000e+00> : vector<17xf32>
    %218 = vector.multi_reduction <add>, %213, %cst_189 [1] : vector<17x32xf32> to vector<17xf32>
    %219 = vector.shape_cast %218 : vector<17xf32> to vector<17x1xf32>
    %cst_190 = arith.constant 3.200000e+01 : f32
    %220 = vector.broadcast %cst_190 : f32 to vector<17x1xf32>
    %221 = arith.divf %219, %220 : vector<17x1xf32>
    %222 = vector.broadcast %221 : vector<17x1xf32> to vector<17x32xf32>
    %223 = arith.subf %213, %222 : vector<17x32xf32>
    %224 = arith.mulf %223, %223 : vector<17x32xf32>
    %cst_191 = arith.constant dense<0.000000e+00> : vector<17xf32>
    %225 = vector.multi_reduction <add>, %224, %cst_191 [1] : vector<17x32xf32> to vector<17xf32>
    %226 = vector.shape_cast %225 : vector<17xf32> to vector<17x1xf32>
    %cst_192 = arith.constant 3.200000e+01 : f32
    %227 = vector.broadcast %cst_192 : f32 to vector<17x1xf32>
    %228 = arith.divf %226, %227 : vector<17x1xf32>
    %229 = vector.broadcast %221 : vector<17x1xf32> to vector<17x32xf32>
    %230 = arith.subf %213, %229 : vector<17x32xf32>
    %cst_193 = arith.constant 9.99999974E-6 : f32
    %231 = vector.broadcast %cst_193 : f32 to vector<17x1xf32>
    %232 = arith.addf %228, %231 : vector<17x1xf32>
    %233 = math.rsqrt %232 : vector<17x1xf32>
    %234 = vector.broadcast %233 : vector<17x1xf32> to vector<17x32xf32>
    %235 = arith.mulf %230, %234 : vector<17x32xf32>
    %236 = vector.broadcast %215 : vector<1x32xf32> to vector<17x32xf32>
    %237 = arith.mulf %235, %236 : vector<17x32xf32>
    %238 = vector.broadcast %217 : vector<1x32xf32> to vector<17x32xf32>
    %239 = arith.addf %237, %238 : vector<17x32xf32>
    %cst_194 = arith.constant 0.000000e+00 : f32
    %240 = vector.broadcast %cst_194 : f32 to vector<17x32xf32>
    %c1_195 = arith.constant 1 : index
    %c0_196 = arith.constant 0 : index
    %c0_197 = arith.constant 0 : index
    %c0_198 = arith.constant 0 : index
    %241 = vector.load %arg5[%c1_195, %c0_196, %c0_197, %c0_198] : memref<2x4x32x8xf32, #tpu.memory_space<vmem>>, vector<1x1x32x8xf32>
    %242 = vector.shape_cast %241 : vector<1x1x32x8xf32> to vector<32x8xf32>
    %cst_199 = arith.constant dense<0.000000e+00> : vector<17x8xf32>
    %243 = tpu.matmul %239, %242, %cst_199 {dimension_numbers = #tpu.dot_dimension_numbers<[1], [0], [0], [1], [0, 0, 1, 1], [], []>} : vector<17x32xf32>, vector<32x8xf32>, vector<17x8xf32> -> vector<17x8xf32>
    %c1_200 = arith.constant 1 : index
    %c0_201 = arith.constant 0 : index
    %c0_202 = arith.constant 0 : index
    %c0_203 = arith.constant 0 : index
    %244 = vector.load %arg6[%c1_200, %c0_201, %c0_202, %c0_203] : memref<2x4x1x8xf32, #tpu.memory_space<vmem>>, vector<1x1x1x8xf32>
    %245 = vector.shape_cast %244 : vector<1x1x1x8xf32> to vector<1x8xf32>
    %246 = vector.broadcast %245 : vector<1x8xf32> to vector<17x8xf32>
    %247 = arith.addf %243, %246 : vector<17x8xf32>
    %c1_204 = arith.constant 1 : index
    %c0_205 = arith.constant 0 : index
    %c0_206 = arith.constant 0 : index
    %c0_207 = arith.constant 0 : index
    %248 = vector.load %arg7[%c1_204, %c0_205, %c0_206, %c0_207] : memref<2x4x32x8xf32, #tpu.memory_space<vmem>>, vector<1x1x32x8xf32>
    %249 = vector.shape_cast %248 : vector<1x1x32x8xf32> to vector<32x8xf32>
    %cst_208 = arith.constant dense<0.000000e+00> : vector<17x8xf32>
    %250 = tpu.matmul %239, %249, %cst_208 {dimension_numbers = #tpu.dot_dimension_numbers<[1], [0], [0], [1], [0, 0, 1, 1], [], []>} : vector<17x32xf32>, vector<32x8xf32>, vector<17x8xf32> -> vector<17x8xf32>
    %c1_209 = arith.constant 1 : index
    %c0_210 = arith.constant 0 : index
    %c0_211 = arith.constant 0 : index
    %c0_212 = arith.constant 0 : index
    %251 = vector.load %arg8[%c1_209, %c0_210, %c0_211, %c0_212] : memref<2x4x1x8xf32, #tpu.memory_space<vmem>>, vector<1x1x1x8xf32>
    %252 = vector.shape_cast %251 : vector<1x1x1x8xf32> to vector<1x8xf32>
    %253 = vector.broadcast %252 : vector<1x8xf32> to vector<17x8xf32>
    %254 = arith.addf %250, %253 : vector<17x8xf32>
    %c1_213 = arith.constant 1 : index
    %c0_214 = arith.constant 0 : index
    %c0_215 = arith.constant 0 : index
    %c0_216 = arith.constant 0 : index
    %255 = vector.load %arg9[%c1_213, %c0_214, %c0_215, %c0_216] : memref<2x4x32x8xf32, #tpu.memory_space<vmem>>, vector<1x1x32x8xf32>
    %256 = vector.shape_cast %255 : vector<1x1x32x8xf32> to vector<32x8xf32>
    %cst_217 = arith.constant dense<0.000000e+00> : vector<17x8xf32>
    %257 = tpu.matmul %239, %256, %cst_217 {dimension_numbers = #tpu.dot_dimension_numbers<[1], [0], [0], [1], [0, 0, 1, 1], [], []>} : vector<17x32xf32>, vector<32x8xf32>, vector<17x8xf32> -> vector<17x8xf32>
    %c1_218 = arith.constant 1 : index
    %c0_219 = arith.constant 0 : index
    %c0_220 = arith.constant 0 : index
    %c0_221 = arith.constant 0 : index
    %258 = vector.load %arg10[%c1_218, %c0_219, %c0_220, %c0_221] : memref<2x4x1x8xf32, #tpu.memory_space<vmem>>, vector<1x1x1x8xf32>
    %259 = vector.shape_cast %258 : vector<1x1x1x8xf32> to vector<1x8xf32>
    %260 = vector.broadcast %259 : vector<1x8xf32> to vector<17x8xf32>
    %261 = arith.addf %257, %260 : vector<17x8xf32>
    %cst_222 = arith.constant dense<0.000000e+00> : vector<17x17xf32>
    %262 = tpu.matmul %247, %254, %cst_222 {dimension_numbers = #tpu.dot_dimension_numbers<[1], [1], [0], [0], [0, 0, 1, 0], [], []>} : vector<17x8xf32>, vector<17x8xf32>, vector<17x17xf32> -> vector<17x17xf32>
    %cst_223 = arith.constant 0.353553385 : f32
    %263 = vector.broadcast %cst_223 : f32 to vector<17x17xf32>
    %264 = arith.mulf %262, %263 : vector<17x17xf32>
    %cst_224 = arith.constant dense<0xFF800000> : vector<17xf32>
    %265 = vector.multi_reduction <maximumf>, %264, %cst_224 [1] : vector<17x17xf32> to vector<17xf32>
    %266 = vector.shape_cast %265 : vector<17xf32> to vector<17x1xf32>
    %267 = vector.broadcast %266 : vector<17x1xf32> to vector<17x17xf32>
    %268 = arith.subf %264, %267 : vector<17x17xf32>
    %269 = math.exp %268 : vector<17x17xf32>
    %cst_225 = arith.constant dense<0.000000e+00> : vector<17xf32>
    %270 = vector.multi_reduction <add>, %269, %cst_225 [1] : vector<17x17xf32> to vector<17xf32>
    %271 = vector.shape_cast %270 : vector<17xf32> to vector<17x1xf32>
    %272 = tpu.reciprocal %271 {approx = true} : vector<17x1xf32> -> vector<17x1xf32>
    %273 = vector.broadcast %272 : vector<17x1xf32> to vector<17x17xf32>
    %274 = arith.mulf %269, %273 : vector<17x17xf32>
    %cst_226 = arith.constant dense<0.000000e+00> : vector<17x8xf32>
    %275 = tpu.matmul %274, %261, %cst_226 {dimension_numbers = #tpu.dot_dimension_numbers<[1], [0], [0], [1], [0, 0, 1, 1], [], []>} : vector<17x17xf32>, vector<17x8xf32>, vector<17x8xf32> -> vector<17x8xf32>
    %c1_227 = arith.constant 1 : index
    %c0_228 = arith.constant 0 : index
    %c0_229 = arith.constant 0 : index
    %c0_230 = arith.constant 0 : index
    %276 = vector.load %arg11[%c1_227, %c0_228, %c0_229, %c0_230] : memref<2x4x8x32xf32, #tpu.memory_space<vmem>>, vector<1x1x8x32xf32>
    %277 = vector.shape_cast %276 : vector<1x1x8x32xf32> to vector<8x32xf32>
    %cst_231 = arith.constant dense<0.000000e+00> : vector<17x32xf32>
    %278 = tpu.matmul %275, %277, %cst_231 {dimension_numbers = #tpu.dot_dimension_numbers<[1], [0], [0], [1], [0, 0, 1, 1], [], []>} : vector<17x8xf32>, vector<8x32xf32>, vector<17x32xf32> -> vector<17x32xf32>
    %279 = arith.addf %240, %278 : vector<17x32xf32>
    %c1_232 = arith.constant 1 : index
    %c1_233 = arith.constant 1 : index
    %c0_234 = arith.constant 0 : index
    %c0_235 = arith.constant 0 : index
    %280 = vector.load %arg5[%c1_232, %c1_233, %c0_234, %c0_235] : memref<2x4x32x8xf32, #tpu.memory_space<vmem>>, vector<1x1x32x8xf32>
    %281 = vector.shape_cast %280 : vector<1x1x32x8xf32> to vector<32x8xf32>
    %cst_236 = arith.constant dense<0.000000e+00> : vector<17x8xf32>
    %282 = tpu.matmul %239, %281, %cst_236 {dimension_numbers = #tpu.dot_dimension_numbers<[1], [0], [0], [1], [0, 0, 1, 1], [], []>} : vector<17x32xf32>, vector<32x8xf32>, vector<17x8xf32> -> vector<17x8xf32>
    %c1_237 = arith.constant 1 : index
    %c1_238 = arith.constant 1 : index
    %c0_239 = arith.constant 0 : index
    %c0_240 = arith.constant 0 : index
    %283 = vector.load %arg6[%c1_237, %c1_238, %c0_239, %c0_240] : memref<2x4x1x8xf32, #tpu.memory_space<vmem>>, vector<1x1x1x8xf32>
    %284 = vector.shape_cast %283 : vector<1x1x1x8xf32> to vector<1x8xf32>
    %285 = vector.broadcast %284 : vector<1x8xf32> to vector<17x8xf32>
    %286 = arith.addf %282, %285 : vector<17x8xf32>
    %c1_241 = arith.constant 1 : index
    %c1_242 = arith.constant 1 : index
    %c0_243 = arith.constant 0 : index
    %c0_244 = arith.constant 0 : index
    %287 = vector.load %arg7[%c1_241, %c1_242, %c0_243, %c0_244] : memref<2x4x32x8xf32, #tpu.memory_space<vmem>>, vector<1x1x32x8xf32>
    %288 = vector.shape_cast %287 : vector<1x1x32x8xf32> to vector<32x8xf32>
    %cst_245 = arith.constant dense<0.000000e+00> : vector<17x8xf32>
    %289 = tpu.matmul %239, %288, %cst_245 {dimension_numbers = #tpu.dot_dimension_numbers<[1], [0], [0], [1], [0, 0, 1, 1], [], []>} : vector<17x32xf32>, vector<32x8xf32>, vector<17x8xf32> -> vector<17x8xf32>
    %c1_246 = arith.constant 1 : index
    %c1_247 = arith.constant 1 : index
    %c0_248 = arith.constant 0 : index
    %c0_249 = arith.constant 0 : index
    %290 = vector.load %arg8[%c1_246, %c1_247, %c0_248, %c0_249] : memref<2x4x1x8xf32, #tpu.memory_space<vmem>>, vector<1x1x1x8xf32>
    %291 = vector.shape_cast %290 : vector<1x1x1x8xf32> to vector<1x8xf32>
    %292 = vector.broadcast %291 : vector<1x8xf32> to vector<17x8xf32>
    %293 = arith.addf %289, %292 : vector<17x8xf32>
    %c1_250 = arith.constant 1 : index
    %c1_251 = arith.constant 1 : index
    %c0_252 = arith.constant 0 : index
    %c0_253 = arith.constant 0 : index
    %294 = vector.load %arg9[%c1_250, %c1_251, %c0_252, %c0_253] : memref<2x4x32x8xf32, #tpu.memory_space<vmem>>, vector<1x1x32x8xf32>
    %295 = vector.shape_cast %294 : vector<1x1x32x8xf32> to vector<32x8xf32>
    %cst_254 = arith.constant dense<0.000000e+00> : vector<17x8xf32>
    %296 = tpu.matmul %239, %295, %cst_254 {dimension_numbers = #tpu.dot_dimension_numbers<[1], [0], [0], [1], [0, 0, 1, 1], [], []>} : vector<17x32xf32>, vector<32x8xf32>, vector<17x8xf32> -> vector<17x8xf32>
    %c1_255 = arith.constant 1 : index
    %c1_256 = arith.constant 1 : index
    %c0_257 = arith.constant 0 : index
    %c0_258 = arith.constant 0 : index
    %297 = vector.load %arg10[%c1_255, %c1_256, %c0_257, %c0_258] : memref<2x4x1x8xf32, #tpu.memory_space<vmem>>, vector<1x1x1x8xf32>
    %298 = vector.shape_cast %297 : vector<1x1x1x8xf32> to vector<1x8xf32>
    %299 = vector.broadcast %298 : vector<1x8xf32> to vector<17x8xf32>
    %300 = arith.addf %296, %299 : vector<17x8xf32>
    %cst_259 = arith.constant dense<0.000000e+00> : vector<17x17xf32>
    %301 = tpu.matmul %286, %293, %cst_259 {dimension_numbers = #tpu.dot_dimension_numbers<[1], [1], [0], [0], [0, 0, 1, 0], [], []>} : vector<17x8xf32>, vector<17x8xf32>, vector<17x17xf32> -> vector<17x17xf32>
    %cst_260 = arith.constant 0.353553385 : f32
    %302 = vector.broadcast %cst_260 : f32 to vector<17x17xf32>
    %303 = arith.mulf %301, %302 : vector<17x17xf32>
    %cst_261 = arith.constant dense<0xFF800000> : vector<17xf32>
    %304 = vector.multi_reduction <maximumf>, %303, %cst_261 [1] : vector<17x17xf32> to vector<17xf32>
    %305 = vector.shape_cast %304 : vector<17xf32> to vector<17x1xf32>
    %306 = vector.broadcast %305 : vector<17x1xf32> to vector<17x17xf32>
    %307 = arith.subf %303, %306 : vector<17x17xf32>
    %308 = math.exp %307 : vector<17x17xf32>
    %cst_262 = arith.constant dense<0.000000e+00> : vector<17xf32>
    %309 = vector.multi_reduction <add>, %308, %cst_262 [1] : vector<17x17xf32> to vector<17xf32>
    %310 = vector.shape_cast %309 : vector<17xf32> to vector<17x1xf32>
    %311 = tpu.reciprocal %310 {approx = true} : vector<17x1xf32> -> vector<17x1xf32>
    %312 = vector.broadcast %311 : vector<17x1xf32> to vector<17x17xf32>
    %313 = arith.mulf %308, %312 : vector<17x17xf32>
    %cst_263 = arith.constant dense<0.000000e+00> : vector<17x8xf32>
    %314 = tpu.matmul %313, %300, %cst_263 {dimension_numbers = #tpu.dot_dimension_numbers<[1], [0], [0], [1], [0, 0, 1, 1], [], []>} : vector<17x17xf32>, vector<17x8xf32>, vector<17x8xf32> -> vector<17x8xf32>
    %c1_264 = arith.constant 1 : index
    %c1_265 = arith.constant 1 : index
    %c0_266 = arith.constant 0 : index
    %c0_267 = arith.constant 0 : index
    %315 = vector.load %arg11[%c1_264, %c1_265, %c0_266, %c0_267] : memref<2x4x8x32xf32, #tpu.memory_space<vmem>>, vector<1x1x8x32xf32>
    %316 = vector.shape_cast %315 : vector<1x1x8x32xf32> to vector<8x32xf32>
    %cst_268 = arith.constant dense<0.000000e+00> : vector<17x32xf32>
    %317 = tpu.matmul %314, %316, %cst_268 {dimension_numbers = #tpu.dot_dimension_numbers<[1], [0], [0], [1], [0, 0, 1, 1], [], []>} : vector<17x8xf32>, vector<8x32xf32>, vector<17x32xf32> -> vector<17x32xf32>
    %318 = arith.addf %279, %317 : vector<17x32xf32>
    %c1_269 = arith.constant 1 : index
    %c2_270 = arith.constant 2 : index
    %c0_271 = arith.constant 0 : index
    %c0_272 = arith.constant 0 : index
    %319 = vector.load %arg5[%c1_269, %c2_270, %c0_271, %c0_272] : memref<2x4x32x8xf32, #tpu.memory_space<vmem>>, vector<1x1x32x8xf32>
    %320 = vector.shape_cast %319 : vector<1x1x32x8xf32> to vector<32x8xf32>
    %cst_273 = arith.constant dense<0.000000e+00> : vector<17x8xf32>
    %321 = tpu.matmul %239, %320, %cst_273 {dimension_numbers = #tpu.dot_dimension_numbers<[1], [0], [0], [1], [0, 0, 1, 1], [], []>} : vector<17x32xf32>, vector<32x8xf32>, vector<17x8xf32> -> vector<17x8xf32>
    %c1_274 = arith.constant 1 : index
    %c2_275 = arith.constant 2 : index
    %c0_276 = arith.constant 0 : index
    %c0_277 = arith.constant 0 : index
    %322 = vector.load %arg6[%c1_274, %c2_275, %c0_276, %c0_277] : memref<2x4x1x8xf32, #tpu.memory_space<vmem>>, vector<1x1x1x8xf32>
    %323 = vector.shape_cast %322 : vector<1x1x1x8xf32> to vector<1x8xf32>
    %324 = vector.broadcast %323 : vector<1x8xf32> to vector<17x8xf32>
    %325 = arith.addf %321, %324 : vector<17x8xf32>
    %c1_278 = arith.constant 1 : index
    %c2_279 = arith.constant 2 : index
    %c0_280 = arith.constant 0 : index
    %c0_281 = arith.constant 0 : index
    %326 = vector.load %arg7[%c1_278, %c2_279, %c0_280, %c0_281] : memref<2x4x32x8xf32, #tpu.memory_space<vmem>>, vector<1x1x32x8xf32>
    %327 = vector.shape_cast %326 : vector<1x1x32x8xf32> to vector<32x8xf32>
    %cst_282 = arith.constant dense<0.000000e+00> : vector<17x8xf32>
    %328 = tpu.matmul %239, %327, %cst_282 {dimension_numbers = #tpu.dot_dimension_numbers<[1], [0], [0], [1], [0, 0, 1, 1], [], []>} : vector<17x32xf32>, vector<32x8xf32>, vector<17x8xf32> -> vector<17x8xf32>
    %c1_283 = arith.constant 1 : index
    %c2_284 = arith.constant 2 : index
    %c0_285 = arith.constant 0 : index
    %c0_286 = arith.constant 0 : index
    %329 = vector.load %arg8[%c1_283, %c2_284, %c0_285, %c0_286] : memref<2x4x1x8xf32, #tpu.memory_space<vmem>>, vector<1x1x1x8xf32>
    %330 = vector.shape_cast %329 : vector<1x1x1x8xf32> to vector<1x8xf32>
    %331 = vector.broadcast %330 : vector<1x8xf32> to vector<17x8xf32>
    %332 = arith.addf %328, %331 : vector<17x8xf32>
    %c1_287 = arith.constant 1 : index
    %c2_288 = arith.constant 2 : index
    %c0_289 = arith.constant 0 : index
    %c0_290 = arith.constant 0 : index
    %333 = vector.load %arg9[%c1_287, %c2_288, %c0_289, %c0_290] : memref<2x4x32x8xf32, #tpu.memory_space<vmem>>, vector<1x1x32x8xf32>
    %334 = vector.shape_cast %333 : vector<1x1x32x8xf32> to vector<32x8xf32>
    %cst_291 = arith.constant dense<0.000000e+00> : vector<17x8xf32>
    %335 = tpu.matmul %239, %334, %cst_291 {dimension_numbers = #tpu.dot_dimension_numbers<[1], [0], [0], [1], [0, 0, 1, 1], [], []>} : vector<17x32xf32>, vector<32x8xf32>, vector<17x8xf32> -> vector<17x8xf32>
    %c1_292 = arith.constant 1 : index
    %c2_293 = arith.constant 2 : index
    %c0_294 = arith.constant 0 : index
    %c0_295 = arith.constant 0 : index
    %336 = vector.load %arg10[%c1_292, %c2_293, %c0_294, %c0_295] : memref<2x4x1x8xf32, #tpu.memory_space<vmem>>, vector<1x1x1x8xf32>
    %337 = vector.shape_cast %336 : vector<1x1x1x8xf32> to vector<1x8xf32>
    %338 = vector.broadcast %337 : vector<1x8xf32> to vector<17x8xf32>
    %339 = arith.addf %335, %338 : vector<17x8xf32>
    %cst_296 = arith.constant dense<0.000000e+00> : vector<17x17xf32>
    %340 = tpu.matmul %325, %332, %cst_296 {dimension_numbers = #tpu.dot_dimension_numbers<[1], [1], [0], [0], [0, 0, 1, 0], [], []>} : vector<17x8xf32>, vector<17x8xf32>, vector<17x17xf32> -> vector<17x17xf32>
    %cst_297 = arith.constant 0.353553385 : f32
    %341 = vector.broadcast %cst_297 : f32 to vector<17x17xf32>
    %342 = arith.mulf %340, %341 : vector<17x17xf32>
    %cst_298 = arith.constant dense<0xFF800000> : vector<17xf32>
    %343 = vector.multi_reduction <maximumf>, %342, %cst_298 [1] : vector<17x17xf32> to vector<17xf32>
    %344 = vector.shape_cast %343 : vector<17xf32> to vector<17x1xf32>
    %345 = vector.broadcast %344 : vector<17x1xf32> to vector<17x17xf32>
    %346 = arith.subf %342, %345 : vector<17x17xf32>
    %347 = math.exp %346 : vector<17x17xf32>
    %cst_299 = arith.constant dense<0.000000e+00> : vector<17xf32>
    %348 = vector.multi_reduction <add>, %347, %cst_299 [1] : vector<17x17xf32> to vector<17xf32>
    %349 = vector.shape_cast %348 : vector<17xf32> to vector<17x1xf32>
    %350 = tpu.reciprocal %349 {approx = true} : vector<17x1xf32> -> vector<17x1xf32>
    %351 = vector.broadcast %350 : vector<17x1xf32> to vector<17x17xf32>
    %352 = arith.mulf %347, %351 : vector<17x17xf32>
    %cst_300 = arith.constant dense<0.000000e+00> : vector<17x8xf32>
    %353 = tpu.matmul %352, %339, %cst_300 {dimension_numbers = #tpu.dot_dimension_numbers<[1], [0], [0], [1], [0, 0, 1, 1], [], []>} : vector<17x17xf32>, vector<17x8xf32>, vector<17x8xf32> -> vector<17x8xf32>
    %c1_301 = arith.constant 1 : index
    %c2_302 = arith.constant 2 : index
    %c0_303 = arith.constant 0 : index
    %c0_304 = arith.constant 0 : index
    %354 = vector.load %arg11[%c1_301, %c2_302, %c0_303, %c0_304] : memref<2x4x8x32xf32, #tpu.memory_space<vmem>>, vector<1x1x8x32xf32>
    %355 = vector.shape_cast %354 : vector<1x1x8x32xf32> to vector<8x32xf32>
    %cst_305 = arith.constant dense<0.000000e+00> : vector<17x32xf32>
    %356 = tpu.matmul %353, %355, %cst_305 {dimension_numbers = #tpu.dot_dimension_numbers<[1], [0], [0], [1], [0, 0, 1, 1], [], []>} : vector<17x8xf32>, vector<8x32xf32>, vector<17x32xf32> -> vector<17x32xf32>
    %357 = arith.addf %318, %356 : vector<17x32xf32>
    %c1_306 = arith.constant 1 : index
    %c3_307 = arith.constant 3 : index
    %c0_308 = arith.constant 0 : index
    %c0_309 = arith.constant 0 : index
    %358 = vector.load %arg5[%c1_306, %c3_307, %c0_308, %c0_309] : memref<2x4x32x8xf32, #tpu.memory_space<vmem>>, vector<1x1x32x8xf32>
    %359 = vector.shape_cast %358 : vector<1x1x32x8xf32> to vector<32x8xf32>
    %cst_310 = arith.constant dense<0.000000e+00> : vector<17x8xf32>
    %360 = tpu.matmul %239, %359, %cst_310 {dimension_numbers = #tpu.dot_dimension_numbers<[1], [0], [0], [1], [0, 0, 1, 1], [], []>} : vector<17x32xf32>, vector<32x8xf32>, vector<17x8xf32> -> vector<17x8xf32>
    %c1_311 = arith.constant 1 : index
    %c3_312 = arith.constant 3 : index
    %c0_313 = arith.constant 0 : index
    %c0_314 = arith.constant 0 : index
    %361 = vector.load %arg6[%c1_311, %c3_312, %c0_313, %c0_314] : memref<2x4x1x8xf32, #tpu.memory_space<vmem>>, vector<1x1x1x8xf32>
    %362 = vector.shape_cast %361 : vector<1x1x1x8xf32> to vector<1x8xf32>
    %363 = vector.broadcast %362 : vector<1x8xf32> to vector<17x8xf32>
    %364 = arith.addf %360, %363 : vector<17x8xf32>
    %c1_315 = arith.constant 1 : index
    %c3_316 = arith.constant 3 : index
    %c0_317 = arith.constant 0 : index
    %c0_318 = arith.constant 0 : index
    %365 = vector.load %arg7[%c1_315, %c3_316, %c0_317, %c0_318] : memref<2x4x32x8xf32, #tpu.memory_space<vmem>>, vector<1x1x32x8xf32>
    %366 = vector.shape_cast %365 : vector<1x1x32x8xf32> to vector<32x8xf32>
    %cst_319 = arith.constant dense<0.000000e+00> : vector<17x8xf32>
    %367 = tpu.matmul %239, %366, %cst_319 {dimension_numbers = #tpu.dot_dimension_numbers<[1], [0], [0], [1], [0, 0, 1, 1], [], []>} : vector<17x32xf32>, vector<32x8xf32>, vector<17x8xf32> -> vector<17x8xf32>
    %c1_320 = arith.constant 1 : index
    %c3_321 = arith.constant 3 : index
    %c0_322 = arith.constant 0 : index
    %c0_323 = arith.constant 0 : index
    %368 = vector.load %arg8[%c1_320, %c3_321, %c0_322, %c0_323] : memref<2x4x1x8xf32, #tpu.memory_space<vmem>>, vector<1x1x1x8xf32>
    %369 = vector.shape_cast %368 : vector<1x1x1x8xf32> to vector<1x8xf32>
    %370 = vector.broadcast %369 : vector<1x8xf32> to vector<17x8xf32>
    %371 = arith.addf %367, %370 : vector<17x8xf32>
    %c1_324 = arith.constant 1 : index
    %c3_325 = arith.constant 3 : index
    %c0_326 = arith.constant 0 : index
    %c0_327 = arith.constant 0 : index
    %372 = vector.load %arg9[%c1_324, %c3_325, %c0_326, %c0_327] : memref<2x4x32x8xf32, #tpu.memory_space<vmem>>, vector<1x1x32x8xf32>
    %373 = vector.shape_cast %372 : vector<1x1x32x8xf32> to vector<32x8xf32>
    %cst_328 = arith.constant dense<0.000000e+00> : vector<17x8xf32>
    %374 = tpu.matmul %239, %373, %cst_328 {dimension_numbers = #tpu.dot_dimension_numbers<[1], [0], [0], [1], [0, 0, 1, 1], [], []>} : vector<17x32xf32>, vector<32x8xf32>, vector<17x8xf32> -> vector<17x8xf32>
    %c1_329 = arith.constant 1 : index
    %c3_330 = arith.constant 3 : index
    %c0_331 = arith.constant 0 : index
    %c0_332 = arith.constant 0 : index
    %375 = vector.load %arg10[%c1_329, %c3_330, %c0_331, %c0_332] : memref<2x4x1x8xf32, #tpu.memory_space<vmem>>, vector<1x1x1x8xf32>
    %376 = vector.shape_cast %375 : vector<1x1x1x8xf32> to vector<1x8xf32>
    %377 = vector.broadcast %376 : vector<1x8xf32> to vector<17x8xf32>
    %378 = arith.addf %374, %377 : vector<17x8xf32>
    %cst_333 = arith.constant dense<0.000000e+00> : vector<17x17xf32>
    %379 = tpu.matmul %364, %371, %cst_333 {dimension_numbers = #tpu.dot_dimension_numbers<[1], [1], [0], [0], [0, 0, 1, 0], [], []>} : vector<17x8xf32>, vector<17x8xf32>, vector<17x17xf32> -> vector<17x17xf32>
    %cst_334 = arith.constant 0.353553385 : f32
    %380 = vector.broadcast %cst_334 : f32 to vector<17x17xf32>
    %381 = arith.mulf %379, %380 : vector<17x17xf32>
    %cst_335 = arith.constant dense<0xFF800000> : vector<17xf32>
    %382 = vector.multi_reduction <maximumf>, %381, %cst_335 [1] : vector<17x17xf32> to vector<17xf32>
    %383 = vector.shape_cast %382 : vector<17xf32> to vector<17x1xf32>
    %384 = vector.broadcast %383 : vector<17x1xf32> to vector<17x17xf32>
    %385 = arith.subf %381, %384 : vector<17x17xf32>
    %386 = math.exp %385 : vector<17x17xf32>
    %cst_336 = arith.constant dense<0.000000e+00> : vector<17xf32>
    %387 = vector.multi_reduction <add>, %386, %cst_336 [1] : vector<17x17xf32> to vector<17xf32>
    %388 = vector.shape_cast %387 : vector<17xf32> to vector<17x1xf32>
    %389 = tpu.reciprocal %388 {approx = true} : vector<17x1xf32> -> vector<17x1xf32>
    %390 = vector.broadcast %389 : vector<17x1xf32> to vector<17x17xf32>
    %391 = arith.mulf %386, %390 : vector<17x17xf32>
    %cst_337 = arith.constant dense<0.000000e+00> : vector<17x8xf32>
    %392 = tpu.matmul %391, %378, %cst_337 {dimension_numbers = #tpu.dot_dimension_numbers<[1], [0], [0], [1], [0, 0, 1, 1], [], []>} : vector<17x17xf32>, vector<17x8xf32>, vector<17x8xf32> -> vector<17x8xf32>
    %c1_338 = arith.constant 1 : index
    %c3_339 = arith.constant 3 : index
    %c0_340 = arith.constant 0 : index
    %c0_341 = arith.constant 0 : index
    %393 = vector.load %arg11[%c1_338, %c3_339, %c0_340, %c0_341] : memref<2x4x8x32xf32, #tpu.memory_space<vmem>>, vector<1x1x8x32xf32>
    %394 = vector.shape_cast %393 : vector<1x1x8x32xf32> to vector<8x32xf32>
    %cst_342 = arith.constant dense<0.000000e+00> : vector<17x32xf32>
    %395 = tpu.matmul %392, %394, %cst_342 {dimension_numbers = #tpu.dot_dimension_numbers<[1], [0], [0], [1], [0, 0, 1, 1], [], []>} : vector<17x8xf32>, vector<8x32xf32>, vector<17x32xf32> -> vector<17x32xf32>
    %396 = arith.addf %357, %395 : vector<17x32xf32>
    %c1_343 = arith.constant 1 : index
    %c0_344 = arith.constant 0 : index
    %c0_345 = arith.constant 0 : index
    %397 = vector.load %arg12[%c1_343, %c0_344, %c0_345] : memref<2x1x32xf32, #tpu.memory_space<vmem>>, vector<1x1x32xf32>
    %398 = vector.shape_cast %397 : vector<1x1x32xf32> to vector<1x32xf32>
    %399 = vector.broadcast %398 : vector<1x32xf32> to vector<17x32xf32>
    %400 = arith.addf %396, %399 : vector<17x32xf32>
    %401 = arith.addf %239, %400 : vector<17x32xf32>
    %c1_346 = arith.constant 1 : index
    %c0_347 = arith.constant 0 : index
    %c0_348 = arith.constant 0 : index
    %402 = vector.load %arg13[%c1_346, %c0_347, %c0_348] : memref<2x1x32xf32, #tpu.memory_space<vmem>>, vector<1x1x32xf32>
    %403 = vector.shape_cast %402 : vector<1x1x32xf32> to vector<1x32xf32>
    %c1_349 = arith.constant 1 : index
    %c0_350 = arith.constant 0 : index
    %c0_351 = arith.constant 0 : index
    %404 = vector.load %arg14[%c1_349, %c0_350, %c0_351] : memref<2x1x32xf32, #tpu.memory_space<vmem>>, vector<1x1x32xf32>
    %405 = vector.shape_cast %404 : vector<1x1x32xf32> to vector<1x32xf32>
    %cst_352 = arith.constant dense<0.000000e+00> : vector<17xf32>
    %406 = vector.multi_reduction <add>, %401, %cst_352 [1] : vector<17x32xf32> to vector<17xf32>
    %407 = vector.shape_cast %406 : vector<17xf32> to vector<17x1xf32>
    %cst_353 = arith.constant 3.200000e+01 : f32
    %408 = vector.broadcast %cst_353 : f32 to vector<17x1xf32>
    %409 = arith.divf %407, %408 : vector<17x1xf32>
    %410 = vector.broadcast %409 : vector<17x1xf32> to vector<17x32xf32>
    %411 = arith.subf %401, %410 : vector<17x32xf32>
    %412 = arith.mulf %411, %411 : vector<17x32xf32>
    %cst_354 = arith.constant dense<0.000000e+00> : vector<17xf32>
    %413 = vector.multi_reduction <add>, %412, %cst_354 [1] : vector<17x32xf32> to vector<17xf32>
    %414 = vector.shape_cast %413 : vector<17xf32> to vector<17x1xf32>
    %cst_355 = arith.constant 3.200000e+01 : f32
    %415 = vector.broadcast %cst_355 : f32 to vector<17x1xf32>
    %416 = arith.divf %414, %415 : vector<17x1xf32>
    %417 = vector.broadcast %409 : vector<17x1xf32> to vector<17x32xf32>
    %418 = arith.subf %401, %417 : vector<17x32xf32>
    %cst_356 = arith.constant 9.99999974E-6 : f32
    %419 = vector.broadcast %cst_356 : f32 to vector<17x1xf32>
    %420 = arith.addf %416, %419 : vector<17x1xf32>
    %421 = math.rsqrt %420 : vector<17x1xf32>
    %422 = vector.broadcast %421 : vector<17x1xf32> to vector<17x32xf32>
    %423 = arith.mulf %418, %422 : vector<17x32xf32>
    %424 = vector.broadcast %403 : vector<1x32xf32> to vector<17x32xf32>
    %425 = arith.mulf %423, %424 : vector<17x32xf32>
    %426 = vector.broadcast %405 : vector<1x32xf32> to vector<17x32xf32>
    %427 = arith.addf %425, %426 : vector<17x32xf32>
    %c1_357 = arith.constant 1 : index
    %c0_358 = arith.constant 0 : index
    %c0_359 = arith.constant 0 : index
    %428 = vector.load %arg15[%c1_357, %c0_358, %c0_359] : memref<2x32x64xf32, #tpu.memory_space<vmem>>, vector<1x32x64xf32>
    %429 = vector.shape_cast %428 : vector<1x32x64xf32> to vector<32x64xf32>
    %cst_360 = arith.constant dense<0.000000e+00> : vector<17x64xf32>
    %430 = tpu.matmul %427, %429, %cst_360 {dimension_numbers = #tpu.dot_dimension_numbers<[1], [0], [0], [1], [0, 0, 1, 1], [], []>} : vector<17x32xf32>, vector<32x64xf32>, vector<17x64xf32> -> vector<17x64xf32>
    %c1_361 = arith.constant 1 : index
    %c0_362 = arith.constant 0 : index
    %c0_363 = arith.constant 0 : index
    %431 = vector.load %arg16[%c1_361, %c0_362, %c0_363] : memref<2x1x64xf32, #tpu.memory_space<vmem>>, vector<1x1x64xf32>
    %432 = vector.shape_cast %431 : vector<1x1x64xf32> to vector<1x64xf32>
    %433 = vector.broadcast %432 : vector<1x64xf32> to vector<17x64xf32>
    %434 = arith.addf %430, %433 : vector<17x64xf32>
    %cst_364 = arith.constant 0.000000e+00 : f32
    %435 = vector.broadcast %cst_364 : f32 to vector<17x64xf32>
    %436 = arith.maximumf %434, %435 : vector<17x64xf32>
    %c1_365 = arith.constant 1 : index
    %c0_366 = arith.constant 0 : index
    %c0_367 = arith.constant 0 : index
    %437 = vector.load %arg17[%c1_365, %c0_366, %c0_367] : memref<2x64x32xf32, #tpu.memory_space<vmem>>, vector<1x64x32xf32>
    %438 = vector.shape_cast %437 : vector<1x64x32xf32> to vector<64x32xf32>
    %cst_368 = arith.constant dense<0.000000e+00> : vector<17x32xf32>
    %439 = tpu.matmul %436, %438, %cst_368 {dimension_numbers = #tpu.dot_dimension_numbers<[1], [0], [0], [1], [0, 0, 1, 1], [], []>} : vector<17x64xf32>, vector<64x32xf32>, vector<17x32xf32> -> vector<17x32xf32>
    %c1_369 = arith.constant 1 : index
    %c0_370 = arith.constant 0 : index
    %c0_371 = arith.constant 0 : index
    %440 = vector.load %arg18[%c1_369, %c0_370, %c0_371] : memref<2x1x32xf32, #tpu.memory_space<vmem>>, vector<1x1x32xf32>
    %441 = vector.shape_cast %440 : vector<1x1x32xf32> to vector<1x32xf32>
    %442 = vector.broadcast %441 : vector<1x32xf32> to vector<17x32xf32>
    %443 = arith.addf %439, %442 : vector<17x32xf32>
    %444 = arith.addf %427, %443 : vector<17x32xf32>
    %c1_372 = arith.constant 1 : index
    %c0_373 = arith.constant 0 : index
    %c0_374 = arith.constant 0 : index
    %445 = vector.load %arg19[%c1_372, %c0_373, %c0_374] : memref<2x1x32xf32, #tpu.memory_space<vmem>>, vector<1x1x32xf32>
    %446 = vector.shape_cast %445 : vector<1x1x32xf32> to vector<1x32xf32>
    %c1_375 = arith.constant 1 : index
    %c0_376 = arith.constant 0 : index
    %c0_377 = arith.constant 0 : index
    %447 = vector.load %arg20[%c1_375, %c0_376, %c0_377] : memref<2x1x32xf32, #tpu.memory_space<vmem>>, vector<1x1x32xf32>
    %448 = vector.shape_cast %447 : vector<1x1x32xf32> to vector<1x32xf32>
    %cst_378 = arith.constant dense<0.000000e+00> : vector<17xf32>
    %449 = vector.multi_reduction <add>, %444, %cst_378 [1] : vector<17x32xf32> to vector<17xf32>
    %450 = vector.shape_cast %449 : vector<17xf32> to vector<17x1xf32>
    %cst_379 = arith.constant 3.200000e+01 : f32
    %451 = vector.broadcast %cst_379 : f32 to vector<17x1xf32>
    %452 = arith.divf %450, %451 : vector<17x1xf32>
    %453 = vector.broadcast %452 : vector<17x1xf32> to vector<17x32xf32>
    %454 = arith.subf %444, %453 : vector<17x32xf32>
    %455 = arith.mulf %454, %454 : vector<17x32xf32>
    %cst_380 = arith.constant dense<0.000000e+00> : vector<17xf32>
    %456 = vector.multi_reduction <add>, %455, %cst_380 [1] : vector<17x32xf32> to vector<17xf32>
    %457 = vector.shape_cast %456 : vector<17xf32> to vector<17x1xf32>
    %cst_381 = arith.constant 3.200000e+01 : f32
    %458 = vector.broadcast %cst_381 : f32 to vector<17x1xf32>
    %459 = arith.divf %457, %458 : vector<17x1xf32>
    %460 = vector.broadcast %452 : vector<17x1xf32> to vector<17x32xf32>
    %461 = arith.subf %444, %460 : vector<17x32xf32>
    %cst_382 = arith.constant 9.99999974E-6 : f32
    %462 = vector.broadcast %cst_382 : f32 to vector<17x1xf32>
    %463 = arith.addf %459, %462 : vector<17x1xf32>
    %464 = math.rsqrt %463 : vector<17x1xf32>
    %465 = vector.broadcast %464 : vector<17x1xf32> to vector<17x32xf32>
    %466 = arith.mulf %461, %465 : vector<17x32xf32>
    %467 = vector.broadcast %446 : vector<1x32xf32> to vector<17x32xf32>
    %468 = arith.mulf %466, %467 : vector<17x32xf32>
    %469 = vector.broadcast %448 : vector<1x32xf32> to vector<17x32xf32>
    %470 = arith.addf %468, %469 : vector<17x32xf32>
    %471 = vector.extract_strided_slice %470 {offsets = [0, 0], sizes = [1, 32], strides = [1, 1]} : vector<17x32xf32> to vector<1x32xf32>
    %c0_383 = arith.constant 0 : index
    %c0_384 = arith.constant 0 : index
    %472 = vector.load %arg21[%c0_383, %c0_384] : memref<1x32xf32, #tpu.memory_space<vmem>>, vector<1x32xf32>
    %c0_385 = arith.constant 0 : index
    %c0_386 = arith.constant 0 : index
    %473 = vector.load %arg22[%c0_385, %c0_386] : memref<1x32xf32, #tpu.memory_space<vmem>>, vector<1x32xf32>
    %cst_387 = arith.constant dense<0.000000e+00> : vector<1xf32>
    %474 = vector.multi_reduction <add>, %471, %cst_387 [1] : vector<1x32xf32> to vector<1xf32>
    %475 = vector.shape_cast %474 : vector<1xf32> to vector<1x1xf32>
    %cst_388 = arith.constant 3.200000e+01 : f32
    %476 = vector.broadcast %cst_388 : f32 to vector<1x1xf32>
    %477 = arith.divf %475, %476 : vector<1x1xf32>
    %478 = vector.broadcast %477 : vector<1x1xf32> to vector<1x32xf32>
    %479 = arith.subf %471, %478 : vector<1x32xf32>
    %480 = arith.mulf %479, %479 : vector<1x32xf32>
    %cst_389 = arith.constant dense<0.000000e+00> : vector<1xf32>
    %481 = vector.multi_reduction <add>, %480, %cst_389 [1] : vector<1x32xf32> to vector<1xf32>
    %482 = vector.shape_cast %481 : vector<1xf32> to vector<1x1xf32>
    %cst_390 = arith.constant 3.200000e+01 : f32
    %483 = vector.broadcast %cst_390 : f32 to vector<1x1xf32>
    %484 = arith.divf %482, %483 : vector<1x1xf32>
    %485 = vector.broadcast %477 : vector<1x1xf32> to vector<1x32xf32>
    %486 = arith.subf %471, %485 : vector<1x32xf32>
    %cst_391 = arith.constant 9.99999974E-6 : f32
    %487 = vector.broadcast %cst_391 : f32 to vector<1x1xf32>
    %488 = arith.addf %484, %487 : vector<1x1xf32>
    %489 = math.rsqrt %488 : vector<1x1xf32>
    %490 = vector.broadcast %489 : vector<1x1xf32> to vector<1x32xf32>
    %491 = arith.mulf %486, %490 : vector<1x32xf32>
    %492 = arith.mulf %491, %472 : vector<1x32xf32>
    %493 = arith.addf %492, %473 : vector<1x32xf32>
    %c0_392 = arith.constant 0 : index
    %c0_393 = arith.constant 0 : index
    %494 = vector.load %arg23[%c0_392, %c0_393] : memref<32x10xf32, #tpu.memory_space<vmem>>, vector<32x10xf32>
    %cst_394 = arith.constant dense<0.000000e+00> : vector<1x10xf32>
    %495 = tpu.matmul %493, %494, %cst_394 {dimension_numbers = #tpu.dot_dimension_numbers<[1], [0], [0], [1], [0, 0, 1, 1], [], []>} : vector<1x32xf32>, vector<32x10xf32>, vector<1x10xf32> -> vector<1x10xf32>
    %c0_395 = arith.constant 0 : index
    %c0_396 = arith.constant 0 : index
    %496 = vector.load %arg24[%c0_395, %c0_396] : memref<1x10xf32, #tpu.memory_space<vmem>>, vector<1x10xf32>
    %497 = arith.addf %495, %496 : vector<1x10xf32>
    %c0_397 = arith.constant 0 : index
    %c0_398 = arith.constant 0 : index
    %c0_399 = arith.constant 0 : index
    %498 = vector.load %arg25[%c0_397, %c0_398, %c0_399] : memref<1x1x10xf32, #tpu.memory_space<vmem>>, vector<1x1x10xf32>
    %499 = vector.shape_cast %498 : vector<1x1x10xf32> to vector<1x10xf32>
    %500 = vector.shape_cast %497 : vector<1x10xf32> to vector<1x1x10xf32>
    tpu.vector_store %arg25[%c0_397, %c0_398, %c0_399], %500 {strides = array<i32>} : memref<1x1x10xf32, #tpu.memory_space<vmem>>, vector<1x1x10xf32>,
    return
  }
  func.func @transform_0(%arg0: i32) -> (i32, i32, i32) {
    %c0_i32 = arith.constant 0 : i32
    %c0_i32_0 = arith.constant 0 : i32
    %c0_i32_1 = arith.constant 0 : i32
    return %arg0, %c0_i32, %c0_i32_0 : i32, i32, i32
  }
  func.func @transform_1(%arg0: i32) -> (i32, i32) {
    %c0_i32 = arith.constant 0 : i32
    %c0_i32_0 = arith.constant 0 : i32
    %c0_i32_1 = arith.constant 0 : i32
    return %c0_i32, %c0_i32_0 : i32, i32
  }
  func.func @transform_2(%arg0: i32) -> (i32, i32) {
    %c0_i32 = arith.constant 0 : i32
    %c0_i32_0 = arith.constant 0 : i32
    %c0_i32_1 = arith.constant 0 : i32
    return %c0_i32, %c0_i32_0 : i32, i32
  }
  func.func @transform_3(%arg0: i32) -> (i32, i32) {
    %c0_i32 = arith.constant 0 : i32
    %c0_i32_0 = arith.constant 0 : i32
    %c0_i32_1 = arith.constant 0 : i32
    return %c0_i32, %c0_i32_0 : i32, i32
  }
  func.func @transform_4(%arg0: i32) -> (i32, i32, i32, i32) {
    %c0_i32 = arith.constant 0 : i32
    %c0_i32_0 = arith.constant 0 : i32
    %c0_i32_1 = arith.constant 0 : i32
    %c0_i32_2 = arith.constant 0 : i32
    %c0_i32_3 = arith.constant 0 : i32
    return %c0_i32, %c0_i32_0, %c0_i32_1, %c0_i32_2 : i32, i32, i32, i32
  }
  func.func @transform_5(%arg0: i32) -> (i32, i32, i32, i32) {
    %c0_i32 = arith.constant 0 : i32
    %c0_i32_0 = arith.constant 0 : i32
    %c0_i32_1 = arith.constant 0 : i32
    %c0_i32_2 = arith.constant 0 : i32
    %c0_i32_3 = arith.constant 0 : i32
    return %c0_i32, %c0_i32_0, %c0_i32_1, %c0_i32_2 : i32, i32, i32, i32
  }
  func.func @transform_6(%arg0: i32) -> (i32, i32, i32, i32) {
    %c0_i32 = arith.constant 0 : i32
    %c0_i32_0 = arith.constant 0 : i32
    %c0_i32_1 = arith.constant 0 : i32
    %c0_i32_2 = arith.constant 0 : i32
    %c0_i32_3 = arith.constant 0 : i32
    return %c0_i32, %c0_i32_0, %c0_i32_1, %c0_i32_2 : i32, i32, i32, i32
  }
  func.func @transform_7(%arg0: i32) -> (i32, i32, i32, i32) {
    %c0_i32 = arith.constant 0 : i32
    %c0_i32_0 = arith.constant 0 : i32
    %c0_i32_1 = arith.constant 0 : i32
    %c0_i32_2 = arith.constant 0 : i32
    %c0_i32_3 = arith.constant 0 : i32
    return %c0_i32, %c0_i32_0, %c0_i32_1, %c0_i32_2 : i32, i32, i32, i32
  }
  func.func @transform_8(%arg0: i32) -> (i32, i32, i32, i32) {
    %c0_i32 = arith.constant 0 : i32
    %c0_i32_0 = arith.constant 0 : i32
    %c0_i32_1 = arith.constant 0 : i32
    %c0_i32_2 = arith.constant 0 : i32
    %c0_i32_3 = arith.constant 0 : i32
    return %c0_i32, %c0_i32_0, %c0_i32_1, %c0_i32_2 : i32, i32, i32, i32
  }
  func.func @transform_9(%arg0: i32) -> (i32, i32, i32, i32) {
    %c0_i32 = arith.constant 0 : i32
    %c0_i32_0 = arith.constant 0 : i32
    %c0_i32_1 = arith.constant 0 : i32
    %c0_i32_2 = arith.constant 0 : i32
    %c0_i32_3 = arith.constant 0 : i32
    return %c0_i32, %c0_i32_0, %c0_i32_1, %c0_i32_2 : i32, i32, i32, i32
  }
  func.func @transform_10(%arg0: i32) -> (i32, i32, i32, i32) {
    %c0_i32 = arith.constant 0 : i32
    %c0_i32_0 = arith.constant 0 : i32
    %c0_i32_1 = arith.constant 0 : i32
    %c0_i32_2 = arith.constant 0 : i32
    %c0_i32_3 = arith.constant 0 : i32
    return %c0_i32, %c0_i32_0, %c0_i32_1, %c0_i32_2 : i32, i32, i32, i32
  }
  func.func @transform_11(%arg0: i32) -> (i32, i32, i32) {
    %c0_i32 = arith.constant 0 : i32
    %c0_i32_0 = arith.constant 0 : i32
    %c0_i32_1 = arith.constant 0 : i32
    %c0_i32_2 = arith.constant 0 : i32
    return %c0_i32, %c0_i32_0, %c0_i32_1 : i32, i32, i32
  }
  func.func @transform_12(%arg0: i32) -> (i32, i32, i32) {
    %c0_i32 = arith.constant 0 : i32
    %c0_i32_0 = arith.constant 0 : i32
    %c0_i32_1 = arith.constant 0 : i32
    %c0_i32_2 = arith.constant 0 : i32
    return %c0_i32, %c0_i32_0, %c0_i32_1 : i32, i32, i32
  }
  func.func @transform_13(%arg0: i32) -> (i32, i32, i32) {
    %c0_i32 = arith.constant 0 : i32
    %c0_i32_0 = arith.constant 0 : i32
    %c0_i32_1 = arith.constant 0 : i32
    %c0_i32_2 = arith.constant 0 : i32
    return %c0_i32, %c0_i32_0, %c0_i32_1 : i32, i32, i32
  }
  func.func @transform_14(%arg0: i32) -> (i32, i32, i32) {
    %c0_i32 = arith.constant 0 : i32
    %c0_i32_0 = arith.constant 0 : i32
    %c0_i32_1 = arith.constant 0 : i32
    %c0_i32_2 = arith.constant 0 : i32
    return %c0_i32, %c0_i32_0, %c0_i32_1 : i32, i32, i32
  }
  func.func @transform_15(%arg0: i32) -> (i32, i32, i32) {
    %c0_i32 = arith.constant 0 : i32
    %c0_i32_0 = arith.constant 0 : i32
    %c0_i32_1 = arith.constant 0 : i32
    %c0_i32_2 = arith.constant 0 : i32
    return %c0_i32, %c0_i32_0, %c0_i32_1 : i32, i32, i32
  }
  func.func @transform_16(%arg0: i32) -> (i32, i32, i32) {
    %c0_i32 = arith.constant 0 : i32
    %c0_i32_0 = arith.constant 0 : i32
    %c0_i32_1 = arith.constant 0 : i32
    %c0_i32_2 = arith.constant 0 : i32
    return %c0_i32, %c0_i32_0, %c0_i32_1 : i32, i32, i32
  }
  func.func @transform_17(%arg0: i32) -> (i32, i32, i32) {
    %c0_i32 = arith.constant 0 : i32
    %c0_i32_0 = arith.constant 0 : i32
    %c0_i32_1 = arith.constant 0 : i32
    %c0_i32_2 = arith.constant 0 : i32
    return %c0_i32, %c0_i32_0, %c0_i32_1 : i32, i32, i32
  }
  func.func @transform_18(%arg0: i32) -> (i32, i32, i32) {
    %c0_i32 = arith.constant 0 : i32
    %c0_i32_0 = arith.constant 0 : i32
    %c0_i32_1 = arith.constant 0 : i32
    %c0_i32_2 = arith.constant 0 : i32
    return %c0_i32, %c0_i32_0, %c0_i32_1 : i32, i32, i32
  }
  func.func @transform_19(%arg0: i32) -> (i32, i32, i32) {
    %c0_i32 = arith.constant 0 : i32
    %c0_i32_0 = arith.constant 0 : i32
    %c0_i32_1 = arith.constant 0 : i32
    %c0_i32_2 = arith.constant 0 : i32
    return %c0_i32, %c0_i32_0, %c0_i32_1 : i32, i32, i32
  }
  func.func @transform_20(%arg0: i32) -> (i32, i32) {
    %c0_i32 = arith.constant 0 : i32
    %c0_i32_0 = arith.constant 0 : i32
    %c0_i32_1 = arith.constant 0 : i32
    return %c0_i32, %c0_i32_0 : i32, i32
  }
  func.func @transform_21(%arg0: i32) -> (i32, i32) {
    %c0_i32 = arith.constant 0 : i32
    %c0_i32_0 = arith.constant 0 : i32
    %c0_i32_1 = arith.constant 0 : i32
    return %c0_i32, %c0_i32_0 : i32, i32
  }
  func.func @transform_22(%arg0: i32) -> (i32, i32) {
    %c0_i32 = arith.constant 0 : i32
    %c0_i32_0 = arith.constant 0 : i32
    %c0_i32_1 = arith.constant 0 : i32
    return %c0_i32, %c0_i32_0 : i32, i32
  }
  func.func @transform_23(%arg0: i32) -> (i32, i32) {
    %c0_i32 = arith.constant 0 : i32
    %c0_i32_0 = arith.constant 0 : i32
    %c0_i32_1 = arith.constant 0 : i32
    return %c0_i32, %c0_i32_0 : i32, i32
  }
  func.func @transform_24(%arg0: i32) -> (i32, i32, i32) {
    %c0_i32 = arith.constant 0 : i32
    %c0_i32_0 = arith.constant 0 : i32
    %c0_i32_1 = arith.constant 0 : i32
    return %arg0, %c0_i32, %c0_i32_0 : i32, i32, i32
  }
}

</mosaic_0001>

<llo_original>
// kernel: vit_forward.1
$region0: #{vit_forward.1}
  #allocation0 [shape = 'u32[]', space=smem, size = 0x4, offset = 0x4, fixed_abs, tag = 'smem constant byte address 0x4 - core index']
  #allocation1 [shape = 'u32[144,128]{1,0:T(1,128)}', space=vmem, size = 0x12000, scoped, tag = 'internal scratch']
  %s0 = inlined_call_operand.vmem [shape: f32[2,17,49], index: 0, kind: input, shape index: {}]
  %s1 = inlined_call_operand.vmem [shape: f32[17,32], index: 1, kind: input, shape index: {}]
  %s2 = inlined_call_operand.vmem [shape: f32[49,32], index: 2, kind: input, shape index: {}]
  %s3 = inlined_call_operand.vmem [shape: f32[1,32], index: 3, kind: input, shape index: {}]
  %s4 = inlined_call_operand.vmem [shape: f32[2,4,32,8], index: 4, kind: input, shape index: {}]
  %s5 = inlined_call_operand.vmem [shape: f32[2,4,1,8], index: 5, kind: input, shape index: {}]
  %s6 = inlined_call_operand.vmem [shape: f32[2,4,32,8], index: 6, kind: input, shape index: {}]
  %s7 = inlined_call_operand.vmem [shape: f32[2,4,1,8], index: 7, kind: input, shape index: {}]
  %s8 = inlined_call_operand.vmem [shape: f32[2,4,32,8], index: 8, kind: input, shape index: {}]
  %s9 = inlined_call_operand.vmem [shape: f32[2,4,1,8], index: 9, kind: input, shape index: {}]
  %s10 = inlined_call_operand.vmem [shape: f32[2,4,8,32], index: 10, kind: input, shape index: {}]
  %s11 = inlined_call_operand.vmem [shape: f32[2,1,32], index: 11, kind: input, shape index: {}]
  %s12 = inlined_call_operand.vmem [shape: f32[2,1,32], index: 12, kind: input, shape index: {}]
  %s13 = inlined_call_operand.vmem [shape: f32[2,1,32], index: 13, kind: input, shape index: {}]
  %s14 = inlined_call_operand.vmem [shape: f32[2,32,64], index: 14, kind: input, shape index: {}]
  %s15 = inlined_call_operand.vmem [shape: f32[2,1,64], index: 15, kind: input, shape index: {}]
  %s16 = inlined_call_operand.vmem [shape: f32[2,64,32], index: 16, kind: input, shape index: {}]
  %s17 = inlined_call_operand.vmem [shape: f32[2,1,32], index: 17, kind: input, shape index: {}]
  %s18 = inlined_call_operand.vmem [shape: f32[2,1,32], index: 18, kind: input, shape index: {}]
  %s19 = inlined_call_operand.vmem [shape: f32[2,1,32], index: 19, kind: input, shape index: {}]
  %s20 = inlined_call_operand.vmem [shape: f32[1,32], index: 20, kind: input, shape index: {}]
  %s21 = inlined_call_operand.vmem [shape: f32[1,32], index: 21, kind: input, shape index: {}]
  %s22 = inlined_call_operand.vmem [shape: f32[32,10], index: 22, kind: input, shape index: {}]
  %s23 = inlined_call_operand.vmem [shape: f32[1,10], index: 23, kind: input, shape index: {}]
  %s24 = inlined_call_operand.hbm [shape: f32[2,1,10], index: 24, kind: output, shape index: {}]
  %s25 = sld [smem:[#allocation0]]
  $region129: #{vit_forward.1} parent=0
    _
  %s27 = ssub.s32 1, %s25
  %s28 = scalar_select 0, %s27, %s25
  $region1: #{vit_forward.1} parent=0
    #allocation2 [shape = 'u8[1024]{0}', space=vmem, size = 0x400, scoped, tag = 'output window, operand 0']
    #allocation3 [shape = 's32[2]{0}', space=sflag, size = 0x8, scoped, tag = 'scoped memory for vit_forward.1']
    %29 = vsyncpa [#allocation3], 0
    %s30 = scalar_lea.sflag [#allocation3], 1
    %31 = vsyncpa %s30, 0
    loop: start=0, step=1, limit=4
    $region2: #{vit_forward.1} parent=1 // loop_pre_header
      _
    $region3: #{vit_forward.1} parent=1 // loop_header
      %s33 = sphi 0, %s37
      %p34 = scmp.ge.s32.totalorder %s33, 4
      %s43 = sphi 0, %s45
      %s46 = sphi 0, %s43
      %s47 = sphi 0, %s46
      %s63 = sphi 0, %s47
      %s67 = sphi 0, %s67
      %s69 = sphi 0, %s67
      %s70 = sphi 0, %s69
      %s84 = sphi 0, %s70
      %s88 = sphi 0, %s88
      %s90 = sphi 0, %s88
      %s91 = sphi 0, %s90
      %s105 = sphi 0, %s91
      %s109 = sphi 0, %s109
      %s111 = sphi 0, %s109
      %s112 = sphi 0, %s111
      %s126 = sphi 0, %s112
      %s130 = sphi 0, %s130
      %s132 = sphi 0, %s130
      %s133 = sphi 0, %s132
      %s147 = sphi 0, %s133
      %s151 = sphi 0, %s151
      %s153 = sphi 0, %s151
      %s154 = sphi 0, %s153
      %s168 = sphi 0, %s154
      %s172 = sphi 0, %s172
      %s174 = sphi 0, %s172
      %s175 = sphi 0, %s174
      %s189 = sphi 0, %s175
      %s193 = sphi 0, %s193
      %s195 = sphi 0, %s193
      %s196 = sphi 0, %s195
      %s210 = sphi 0, %s196
      %s214 = sphi 0, %s214
      %s216 = sphi 0, %s214
      %s217 = sphi 0, %s216
      %s231 = sphi 0, %s217
      %s235 = sphi 0, %s235
      %s237 = sphi 0, %s235
      %s238 = sphi 0, %s237
      %s252 = sphi 0, %s238
      %s256 = sphi 0, %s256
      %s258 = sphi 0, %s256
      %s259 = sphi 0, %s258
      %s273 = sphi 0, %s259
      %s277 = sphi 0, %s277
      %s279 = sphi 0, %s277
      %s280 = sphi 0, %s279
      %s294 = sphi 0, %s280
      %s298 = sphi 0, %s298
      %s300 = sphi 0, %s298
      %s301 = sphi 0, %s300
      %s315 = sphi 0, %s301
      %s319 = sphi 0, %s319
      %s321 = sphi 0, %s319
      %s322 = sphi 0, %s321
      %s336 = sphi 0, %s322
      %s340 = sphi 0, %s340
      %s342 = sphi 0, %s340
      %s343 = sphi 0, %s342
      %s357 = sphi 0, %s343
      %s361 = sphi 0, %s361
      %s363 = sphi 0, %s361
      %s364 = sphi 0, %s363
      %s378 = sphi 0, %s364
      %s382 = sphi 0, %s382
      %s384 = sphi 0, %s382
      %s385 = sphi 0, %s384
      %s399 = sphi 0, %s385
      %s403 = sphi 0, %s403
      %s405 = sphi 0, %s403
      %s406 = sphi 0, %s405
      %s420 = sphi 0, %s406
      %s424 = sphi 0, %s424
      %s426 = sphi 0, %s424
      %s427 = sphi 0, %s426
      %s441 = sphi 0, %s427
      %s445 = sphi 0, %s445
      %s447 = sphi 0, %s445
      %s448 = sphi 0, %s447
      %s462 = sphi 0, %s448
      %s466 = sphi 0, %s466
      %s468 = sphi 0, %s466
      %s469 = sphi 0, %s468
      %s483 = sphi 0, %s469
      %s487 = sphi 0, %s487
      %s489 = sphi 0, %s487
      %s490 = sphi 0, %s489
      %s504 = sphi 0, %s490
      %s508 = sphi 0, %s508
      %s510 = sphi 0, %s508
      %s511 = sphi 0, %s510
      %s525 = sphi 0, %s511
      %s529 = sphi 0, %s529
      %s531 = sphi 0, %s529
      %s532 = sphi 0, %s531
      %s546 = sphi 0, %s532
      %s552 = sphi 0, %s554
      %s555 = sphi 0, %s552
      %s556 = sphi 0, %s555
      %s572 = sphi 0, %s556
    $region4: #{vit_forward.1} parent=1 // loop_header_branch
      %36 = sbr.rel (%p34) target = $region8
    $region5: #{vit_forward.1} parent=1 // loop_body
      %s38 = ssub.s32 %s33, 1
      %s39 = ssub.s32 %s33, 2
      %s40 = sadd.s32 %s33, 1
      %s41 = ssub.s32 %s33, %s40
      %p42 = scmp.eq.s32.totalorder %s41, 0
      %s44 = sadd.s32 %s43, 1
      %s45 = scalar_select %p42, %s43, %s44
      %p48 = pneg %p42
      %p49 = scmp.eq.s32.totalorder %s33, 1
      %p50 = por %p48, %p49
      %p51 = scmp.ne.s32.totalorder %s43, %s46
      %p52 = scmp.eq.s32.totalorder %s33, 0
      %p53 = por %p51, %p52
      %p54 = scmp.ne.s32.totalorder %s43, %s46
      %p55 = scmp.eq.s32.totalorder %s38, 1
      %p56 = por %p54, %p55
      %p57 = scmp.ne.s32.totalorder %s46, %s47
      %p58 = scmp.eq.s32.totalorder %s38, 0
      %p59 = por %p57, %p58
      %p60 = scmp.ne.s32.totalorder %s46, %s47
      %p61 = scmp.eq.s32.totalorder %s39, 1
      %p62 = por %p60, %p61
      %p64 = scmp.ne.s32.totalorder %s47, %s63
      %p65 = scmp.eq.s32.totalorder %s39, 0
      %p66 = por %p64, %p65
      %s68 = sadd.s32 %s67, 1
      %p71 = scmp.eq.s32.totalorder %s33, 1
      %p72 = scmp.ne.s32.totalorder %s67, %s69
      %p73 = scmp.eq.s32.totalorder %s33, 0
      %p74 = por %p72, %p73
      %p75 = scmp.ne.s32.totalorder %s67, %s69
      %p76 = scmp.eq.s32.totalorder %s38, 1
      %p77 = por %p75, %p76
      %p78 = scmp.ne.s32.totalorder %s69, %s70
      %p79 = scmp.eq.s32.totalorder %s38, 0
      %p80 = por %p78, %p79
      %p81 = scmp.ne.s32.totalorder %s69, %s70
      %p82 = scmp.eq.s32.totalorder %s39, 1
      %p83 = por %p81, %p82
      %p85 = scmp.ne.s32.totalorder %s70, %s84
      %p86 = scmp.eq.s32.totalorder %s39, 0
      %p87 = por %p85, %p86
      %s89 = sadd.s32 %s88, 1
      %p92 = scmp.eq.s32.totalorder %s33, 1
      %p93 = scmp.ne.s32.totalorder %s88, %s90
      %p94 = scmp.eq.s32.totalorder %s33, 0
      %p95 = por %p93, %p94
      %p96 = scmp.ne.s32.totalorder %s88, %s90
      %p97 = scmp.eq.s32.totalorder %s38, 1
      %p98 = por %p96, %p97
      %p99 = scmp.ne.s32.totalorder %s90, %s91
      %p100 = scmp.eq.s32.totalorder %s38, 0
      %p101 = por %p99, %p100
      %p102 = scmp.ne.s32.totalorder %s90, %s91
      %p103 = scmp.eq.s32.totalorder %s39, 1
      %p104 = por %p102, %p103
      %p106 = scmp.ne.s32.totalorder %s91, %s105
      %p107 = scmp.eq.s32.totalorder %s39, 0
      %p108 = por %p106, %p107
      %s110 = sadd.s32 %s109, 1
      %p113 = scmp.eq.s32.totalorder %s33, 1
      %p114 = scmp.ne.s32.totalorder %s109, %s111
      %p115 = scmp.eq.s32.totalorder %s33, 0
      %p116 = por %p114, %p115
      %p117 = scmp.ne.s32.totalorder %s109, %s111
      %p118 = scmp.eq.s32.totalorder %s38, 1
      %p119 = por %p117, %p118
      %p120 = scmp.ne.s32.totalorder %s111, %s112
      %p121 = scmp.eq.s32.totalorder %s38, 0
      %p122 = por %p120, %p121
      %p123 = scmp.ne.s32.totalorder %s111, %s112
      %p124 = scmp.eq.s32.totalorder %s39, 1
      %p125 = por %p123, %p124
      %p127 = scmp.ne.s32.totalorder %s112, %s126
      %p128 = scmp.eq.s32.totalorder %s39, 0
      %p129 = por %p127, %p128
      %s131 = sadd.s32 %s130, 1
      %p134 = scmp.eq.s32.totalorder %s33, 1
      %p135 = scmp.ne.s32.totalorder %s130, %s132
      %p136 = scmp.eq.s32.totalorder %s33, 0
      %p137 = por %p135, %p136
      %p138 = scmp.ne.s32.totalorder %s130, %s132
      %p139 = scmp.eq.s32.totalorder %s38, 1
      %p140 = por %p138, %p139
      %p141 = scmp.ne.s32.totalorder %s132, %s133
      %p142 = scmp.eq.s32.totalorder %s38, 0
      %p143 = por %p141, %p142
      %p144 = scmp.ne.s32.totalorder %s132, %s133
      %p145 = scmp.eq.s32.totalorder %s39, 1
      %p146 = por %p144, %p145
      %p148 = scmp.ne.s32.totalorder %s133, %s147
      %p149 = scmp.eq.s32.totalorder %s39, 0
      %p150 = por %p148, %p149
      %s152 = sadd.s32 %s151, 1
      %p155 = scmp.eq.s32.totalorder %s33, 1
      %p156 = scmp.ne.s32.totalorder %s151, %s153
      %p157 = scmp.eq.s32.totalorder %s33, 0
      %p158 = por %p156, %p157
      %p159 = scmp.ne.s32.totalorder %s151, %s153
      %p160 = scmp.eq.s32.totalorder %s38, 1
      %p161 = por %p159, %p160
      %p162 = scmp.ne.s32.totalorder %s153, %s154
      %p163 = scmp.eq.s32.totalorder %s38, 0
      %p164 = por %p162, %p163
      %p165 = scmp.ne.s32.totalorder %s153, %s154
      %p166 = scmp.eq.s32.totalorder %s39, 1
      %p167 = por %p165, %p166
      %p169 = scmp.ne.s32.totalorder %s154, %s168
      %p170 = scmp.eq.s32.totalorder %s39, 0
      %p171 = por %p169, %p170
      %s173 = sadd.s32 %s172, 1
      %p176 = scmp.eq.s32.totalorder %s33, 1
      %p177 = scmp.ne.s32.totalorder %s172, %s174
      %p178 = scmp.eq.s32.totalorder %s33, 0
      %p179 = por %p177, %p178
      %p180 = scmp.ne.s32.totalorder %s172, %s174
      %p181 = scmp.eq.s32.totalorder %s38, 1
      %p182 = por %p180, %p181
      %p183 = scmp.ne.s32.totalorder %s174, %s175
      %p184 = scmp.eq.s32.totalorder %s38, 0
      %p185 = por %p183, %p184
      %p186 = scmp.ne.s32.totalorder %s174, %s175
      %p187 = scmp.eq.s32.totalorder %s39, 1
      %p188 = por %p186, %p187
      %p190 = scmp.ne.s32.totalorder %s175, %s189
      %p191 = scmp.eq.s32.totalorder %s39, 0
      %p192 = por %p190, %p191
      %s194 = sadd.s32 %s193, 1
      %p197 = scmp.eq.s32.totalorder %s33, 1
      %p198 = scmp.ne.s32.totalorder %s193, %s195
      %p199 = scmp.eq.s32.totalorder %s33, 0
      %p200 = por %p198, %p199
      %p201 = scmp.ne.s32.totalorder %s193, %s195
      %p202 = scmp.eq.s32.totalorder %s38, 1
      %p203 = por %p201, %p202
      %p204 = scmp.ne.s32.totalorder %s195, %s196
      %p205 = scmp.eq.s32.totalorder %s38, 0
      %p206 = por %p204, %p205
      %p207 = scmp.ne.s32.totalorder %s195, %s196
      %p208 = scmp.eq.s32.totalorder %s39, 1
      %p209 = por %p207, %p208
      %p211 = scmp.ne.s32.totalorder %s196, %s210
      %p212 = scmp.eq.s32.totalorder %s39, 0
      %p213 = por %p211, %p212
      %s215 = sadd.s32 %s214, 1
      %p218 = scmp.eq.s32.totalorder %s33, 1
      %p219 = scmp.ne.s32.totalorder %s214, %s216
      %p220 = scmp.eq.s32.totalorder %s33, 0
      %p221 = por %p219, %p220
      %p222 = scmp.ne.s32.totalorder %s214, %s216
      %p223 = scmp.eq.s32.totalorder %s38, 1
      %p224 = por %p222, %p223
      %p225 = scmp.ne.s32.totalorder %s216, %s217
      %p226 = scmp.eq.s32.totalorder %s38, 0
      %p227 = por %p225, %p226
      %p228 = scmp.ne.s32.totalorder %s216, %s217
      %p229 = scmp.eq.s32.totalorder %s39, 1
      %p230 = por %p228, %p229
      %p232 = scmp.ne.s32.totalorder %s217, %s231
      %p233 = scmp.eq.s32.totalorder %s39, 0
      %p234 = por %p232, %p233
      %s236 = sadd.s32 %s235, 1
      %p239 = scmp.eq.s32.totalorder %s33, 1
      %p240 = scmp.ne.s32.totalorder %s235, %s237
      %p241 = scmp.eq.s32.totalorder %s33, 0
      %p242 = por %p240, %p241
      %p243 = scmp.ne.s32.totalorder %s235, %s237
      %p244 = scmp.eq.s32.totalorder %s38, 1
      %p245 = por %p243, %p244
      %p246 = scmp.ne.s32.totalorder %s237, %s238
      %p247 = scmp.eq.s32.totalorder %s38, 0
      %p248 = por %p246, %p247
      %p249 = scmp.ne.s32.totalorder %s237, %s238
      %p250 = scmp.eq.s32.totalorder %s39, 1
      %p251 = por %p249, %p250
      %p253 = scmp.ne.s32.totalorder %s238, %s252
      %p254 = scmp.eq.s32.totalorder %s39, 0
      %p255 = por %p253, %p254
      %s257 = sadd.s32 %s256, 1
      %p260 = scmp.eq.s32.totalorder %s33, 1
      %p261 = scmp.ne.s32.totalorder %s256, %s258
      %p262 = scmp.eq.s32.totalorder %s33, 0
      %p263 = por %p261, %p262
      %p264 = scmp.ne.s32.totalorder %s256, %s258
      %p265 = scmp.eq.s32.totalorder %s38, 1
      %p266 = por %p264, %p265
      %p267 = scmp.ne.s32.totalorder %s258, %s259
      %p268 = scmp.eq.s32.totalorder %s38, 0
      %p269 = por %p267, %p268
      %p270 = scmp.ne.s32.totalorder %s258, %s259
      %p271 = scmp.eq.s32.totalorder %s39, 1
      %p272 = por %p270, %p271
      %p274 = scmp.ne.s32.totalorder %s259, %s273
      %p275 = scmp.eq.s32.totalorder %s39, 0
      %p276 = por %p274, %p275
      %s278 = sadd.s32 %s277, 1
      %p281 = scmp.eq.s32.totalorder %s33, 1
      %p282 = scmp.ne.s32.totalorder %s277, %s279
      %p283 = scmp.eq.s32.totalorder %s33, 0
      %p284 = por %p282, %p283
      %p285 = scmp.ne.s32.totalorder %s277, %s279
      %p286 = scmp.eq.s32.totalorder %s38, 1
      %p287 = por %p285, %p286
      %p288 = scmp.ne.s32.totalorder %s279, %s280
      %p289 = scmp.eq.s32.totalorder %s38, 0
      %p290 = por %p288, %p289
      %p291 = scmp.ne.s32.totalorder %s279, %s280
      %p292 = scmp.eq.s32.totalorder %s39, 1
      %p293 = por %p291, %p292
      %p295 = scmp.ne.s32.totalorder %s280, %s294
      %p296 = scmp.eq.s32.totalorder %s39, 0
      %p297 = por %p295, %p296
      %s299 = sadd.s32 %s298, 1
      %p302 = scmp.eq.s32.totalorder %s33, 1
      %p303 = scmp.ne.s32.totalorder %s298, %s300
      %p304 = scmp.eq.s32.totalorder %s33, 0
      %p305 = por %p303, %p304
      %p306 = scmp.ne.s32.totalorder %s298, %s300
      %p307 = scmp.eq.s32.totalorder %s38, 1
      %p308 = por %p306, %p307
      %p309 = scmp.ne.s32.totalorder %s300, %s301
      %p310 = scmp.eq.s32.totalorder %s38, 0
      %p311 = por %p309, %p310
      %p312 = scmp.ne.s32.totalorder %s300, %s301
      %p313 = scmp.eq.s32.totalorder %s39, 1
      %p314 = por %p312, %p313
      %p316 = scmp.ne.s32.totalorder %s301, %s315
      %p317 = scmp.eq.s32.totalorder %s39, 0
      %p318 = por %p316, %p317
      %s320 = sadd.s32 %s319, 1
      %p323 = scmp.eq.s32.totalorder %s33, 1
      %p324 = scmp.ne.s32.totalorder %s319, %s321
      %p325 = scmp.eq.s32.totalorder %s33, 0
      %p326 = por %p324, %p325
      %p327 = scmp.ne.s32.totalorder %s319, %s321
      %p328 = scmp.eq.s32.totalorder %s38, 1
      %p329 = por %p327, %p328
      %p330 = scmp.ne.s32.totalorder %s321, %s322
      %p331 = scmp.eq.s32.totalorder %s38, 0
      %p332 = por %p330, %p331
      %p333 = scmp.ne.s32.totalorder %s321, %s322
      %p334 = scmp.eq.s32.totalorder %s39, 1
      %p335 = por %p333, %p334
      %p337 = scmp.ne.s32.totalorder %s322, %s336
      %p338 = scmp.eq.s32.totalorder %s39, 0
      %p339 = por %p337, %p338
      %s341 = sadd.s32 %s340, 1
      %p344 = scmp.eq.s32.totalorder %s33, 1
      %p345 = scmp.ne.s32.totalorder %s340, %s342
      %p346 = scmp.eq.s32.totalorder %s33, 0
      %p347 = por %p345, %p346
      %p348 = scmp.ne.s32.totalorder %s340, %s342
      %p349 = scmp.eq.s32.totalorder %s38, 1
      %p350 = por %p348, %p349
      %p351 = scmp.ne.s32.totalorder %s342, %s343
      %p352 = scmp.eq.s32.totalorder %s38, 0
      %p353 = por %p351, %p352
      %p354 = scmp.ne.s32.totalorder %s342, %s343
      %p355 = scmp.eq.s32.totalorder %s39, 1
      %p356 = por %p354, %p355
      %p358 = scmp.ne.s32.totalorder %s343, %s357
      %p359 = scmp.eq.s32.totalorder %s39, 0
      %p360 = por %p358, %p359
      %s362 = sadd.s32 %s361, 1
      %p365 = scmp.eq.s32.totalorder %s33, 1
      %p366 = scmp.ne.s32.totalorder %s361, %s363
      %p367 = scmp.eq.s32.totalorder %s33, 0
      %p368 = por %p366, %p367
      %p369 = scmp.ne.s32.totalorder %s361, %s363
      %p370 = scmp.eq.s32.totalorder %s38, 1
      %p371 = por %p369, %p370
      %p372 = scmp.ne.s32.totalorder %s363, %s364
      %p373 = scmp.eq.s32.totalorder %s38, 0
      %p374 = por %p372, %p373
      %p375 = scmp.ne.s32.totalorder %s363, %s364
      %p376 = scmp.eq.s32.totalorder %s39, 1
      %p377 = por %p375, %p376
      %p379 = scmp.ne.s32.totalorder %s364, %s378
      %p380 = scmp.eq.s32.totalorder %s39, 0
      %p381 = por %p379, %p380
      %s383 = sadd.s32 %s382, 1
      %p386 = scmp.eq.s32.totalorder %s33, 1
      %p387 = scmp.ne.s32.totalorder %s382, %s384
      %p388 = scmp.eq.s32.totalorder %s33, 0
      %p389 = por %p387, %p388
      %p390 = scmp.ne.s32.totalorder %s382, %s384
      %p391 = scmp.eq.s32.totalorder %s38, 1
      %p392 = por %p390, %p391
      %p393 = scmp.ne.s32.totalorder %s384, %s385
      %p394 = scmp.eq.s32.totalorder %s38, 0
      %p395 = por %p393, %p394
      %p396 = scmp.ne.s32.totalorder %s384, %s385
      %p397 = scmp.eq.s32.totalorder %s39, 1
      %p398 = por %p396, %p397
      %p400 = scmp.ne.s32.totalorder %s385, %s399
      %p401 = scmp.eq.s32.totalorder %s39, 0
      %p402 = por %p400, %p401
      %s404 = sadd.s32 %s403, 1
      %p407 = scmp.eq.s32.totalorder %s33, 1
      %p408 = scmp.ne.s32.totalorder %s403, %s405
      %p409 = scmp.eq.s32.totalorder %s33, 0
      %p410 = por %p408, %p409
      %p411 = scmp.ne.s32.totalorder %s403, %s405
      %p412 = scmp.eq.s32.totalorder %s38, 1
      %p413 = por %p411, %p412
      %p414 = scmp.ne.s32.totalorder %s405, %s406
      %p415 = scmp.eq.s32.totalorder %s38, 0
      %p416 = por %p414, %p415
      %p417 = scmp.ne.s32.totalorder %s405, %s406
      %p418 = scmp.eq.s32.totalorder %s39, 1
      %p419 = por %p417, %p418
      %p421 = scmp.ne.s32.totalorder %s406, %s420
      %p422 = scmp.eq.s32.totalorder %s39, 0
      %p423 = por %p421, %p422
      %s425 = sadd.s32 %s424, 1
      %p428 = scmp.eq.s32.totalorder %s33, 1
      %p429 = scmp.ne.s32.totalorder %s424, %s426
      %p430 = scmp.eq.s32.totalorder %s33, 0
      %p431 = por %p429, %p430
      %p432 = scmp.ne.s32.totalorder %s424, %s426
      %p433 = scmp.eq.s32.totalorder %s38, 1
      %p434 = por %p432, %p433
      %p435 = scmp.ne.s32.totalorder %s426, %s427
      %p436 = scmp.eq.s32.totalorder %s38, 0
      %p437 = por %p435, %p436
      %p438 = scmp.ne.s32.totalorder %s426, %s427
      %p439 = scmp.eq.s32.totalorder %s39, 1
      %p440 = por %p438, %p439
      %p442 = scmp.ne.s32.totalorder %s427, %s441
      %p443 = scmp.eq.s32.totalorder %s39, 0
      %p444 = por %p442, %p443
      %s446 = sadd.s32 %s445, 1
      %p449 = scmp.eq.s32.totalorder %s33, 1
      %p450 = scmp.ne.s32.totalorder %s445, %s447
      %p451 = scmp.eq.s32.totalorder %s33, 0
      %p452 = por %p450, %p451
      %p453 = scmp.ne.s32.totalorder %s445, %s447
      %p454 = scmp.eq.s32.totalorder %s38, 1
      %p455 = por %p453, %p454
      %p456 = scmp.ne.s32.totalorder %s447, %s448
      %p457 = scmp.eq.s32.totalorder %s38, 0
      %p458 = por %p456, %p457
      %p459 = scmp.ne.s32.totalorder %s447, %s448
      %p460 = scmp.eq.s32.totalorder %s39, 1
      %p461 = por %p459, %p460
      %p463 = scmp.ne.s32.totalorder %s448, %s462
      %p464 = scmp.eq.s32.totalorder %s39, 0
      %p465 = por %p463, %p464
      %s467 = sadd.s32 %s466, 1
      %p470 = scmp.eq.s32.totalorder %s33, 1
      %p471 = scmp.ne.s32.totalorder %s466, %s468
      %p472 = scmp.eq.s32.totalorder %s33, 0
      %p473 = por %p471, %p472
      %p474 = scmp.ne.s32.totalorder %s466, %s468
      %p475 = scmp.eq.s32.totalorder %s38, 1
      %p476 = por %p474, %p475
      %p477 = scmp.ne.s32.totalorder %s468, %s469
      %p478 = scmp.eq.s32.totalorder %s38, 0
      %p479 = por %p477, %p478
      %p480 = scmp.ne.s32.totalorder %s468, %s469
      %p481 = scmp.eq.s32.totalorder %s39, 1
      %p482 = por %p480, %p481
      %p484 = scmp.ne.s32.totalorder %s469, %s483
      %p485 = scmp.eq.s32.totalorder %s39, 0
      %p486 = por %p484, %p485
      %s488 = sadd.s32 %s487, 1
      %p491 = scmp.eq.s32.totalorder %s33, 1
      %p492 = scmp.ne.s32.totalorder %s487, %s489
      %p493 = scmp.eq.s32.totalorder %s33, 0
      %p494 = por %p492, %p493
      %p495 = scmp.ne.s32.totalorder %s487, %s489
      %p496 = scmp.eq.s32.totalorder %s38, 1
      %p497 = por %p495, %p496
      %p498 = scmp.ne.s32.totalorder %s489, %s490
      %p499 = scmp.eq.s32.totalorder %s38, 0
      %p500 = por %p498, %p499
      %p501 = scmp.ne.s32.totalorder %s489, %s490
      %p502 = scmp.eq.s32.totalorder %s39, 1
      %p503 = por %p501, %p502
      %p505 = scmp.ne.s32.totalorder %s490, %s504
      %p506 = scmp.eq.s32.totalorder %s39, 0
      %p507 = por %p505, %p506
      %s509 = sadd.s32 %s508, 1
      %p512 = scmp.eq.s32.totalorder %s33, 1
      %p513 = scmp.ne.s32.totalorder %s508, %s510
      %p514 = scmp.eq.s32.totalorder %s33, 0
      %p515 = por %p513, %p514
      %p516 = scmp.ne.s32.totalorder %s508, %s510
      %p517 = scmp.eq.s32.totalorder %s38, 1
      %p518 = por %p516, %p517
      %p519 = scmp.ne.s32.totalorder %s510, %s511
      %p520 = scmp.eq.s32.totalorder %s38, 0
      %p521 = por %p519, %p520
      %p522 = scmp.ne.s32.totalorder %s510, %s511
      %p523 = scmp.eq.s32.totalorder %s39, 1
      %p524 = por %p522, %p523
      %p526 = scmp.ne.s32.totalorder %s511, %s525
      %p527 = scmp.eq.s32.totalorder %s39, 0
      %p528 = por %p526, %p527
      %s530 = sadd.s32 %s529, 1
      %p533 = scmp.eq.s32.totalorder %s33, 1
      %p534 = scmp.ne.s32.totalorder %s529, %s531
      %p535 = scmp.eq.s32.totalorder %s33, 0
      %p536 = por %p534, %p535
      %p537 = scmp.ne.s32.totalorder %s529, %s531
      %p538 = scmp.eq.s32.totalorder %s38, 1
      %p539 = por %p537, %p538
      %p540 = scmp.ne.s32.totalorder %s531, %s532
      %p541 = scmp.eq.s32.totalorder %s38, 0
      %p542 = por %p540, %p541
      %p543 = scmp.ne.s32.totalorder %s531, %s532
      %p544 = scmp.eq.s32.totalorder %s39, 1
      %p545 = por %p543, %p544
      %p547 = scmp.ne.s32.totalorder %s532, %s546
      %p548 = scmp.eq.s32.totalorder %s39, 0
      %p549 = por %p547, %p548
      %s550 = ssub.s32 %s33, %s40
      %p551 = scmp.eq.s32.totalorder %s550, 0
      %s553 = sadd.s32 %s552, 1
      %s554 = scalar_select %p551, %s552, %s553
      %p557 = pneg %p551
      %p558 = scmp.eq.s32.totalorder %s33, 1
      %p559 = por %p557, %p558
      %p560 = scmp.ne.s32.totalorder %s552, %s555
      %p561 = scmp.eq.s32.totalorder %s33, 0
      %p562 = por %p560, %p561
      %p563 = scmp.ne.s32.totalorder %s552, %s555
      %p564 = scmp.eq.s32.totalorder %s38, 1
      %p565 = por %p563, %p564
      %p566 = scmp.ne.s32.totalorder %s555, %s556
      %p567 = scmp.eq.s32.totalorder %s38, 0
      %p568 = por %p566, %p567
      %p569 = scmp.ne.s32.totalorder %s555, %s556
      %p570 = scmp.eq.s32.totalorder %s39, 1
      %p571 = por %p569, %p570
      %p573 = scmp.ne.s32.totalorder %s556, %s572
      %p574 = scmp.eq.s32.totalorder %s39, 0
      %p575 = por %p573, %p574
      %p576 = scmp.le.s32.totalorder 1, %s33
      %p577 = scmp.lt.s32.totalorder %s33, 3
      %p578 = pnand %p576, %p577
      %p579 = pneg %p578
      // Predicated region
      $region9: #{vit_forward.1} parent=5 // pred_check
        _
      $region10: #{vit_forward.1} parent=5 // pred_check_branch
        %581 = sbr.rel (%p578) target = $region12
      $region11: #{vit_forward.1} parent=5 // pred_region
        %s582 = ssub.s32 %s33, 1
        // Predicated region
        $region13: #{vit_forward.1} parent=11 // pred_check
          %p583 = pneg %p80
        $region14: #{vit_forward.1} parent=11 // pred_check_branch
          %585 = sbr.rel (%p583) target = $region16
        $region15: #{vit_forward.1} parent=11 // pred_region
          _
        $region16: #{vit_forward.1} parent=11 // pred_fallthru
          _
        // Predicated region
        $region17: #{vit_forward.1} parent=11 // pred_check
          %p586 = pneg %p101
        $region18: #{vit_forward.1} parent=11 // pred_check_branch
          %588 = sbr.rel (%p586) target = $region20
        $region19: #{vit_forward.1} parent=11 // pred_region
          _
        $region20: #{vit_forward.1} parent=11 // pred_fallthru
          _
        // Predicated region
        $region21: #{vit_forward.1} parent=11 // pred_check
          %p589 = pneg %p122
        $region22: #{vit_forward.1} parent=11 // pred_check_branch
          %591 = sbr.rel (%p589) target = $region24
        $region23: #{vit_forward.1} parent=11 // pred_region
          _
        $region24: #{vit_forward.1} parent=11 // pred_fallthru
          _
        // Predicated region
        $region25: #{vit_forward.1} parent=11 // pred_check
          %p592 = pneg %p143
        $region26: #{vit_forward.1} parent=11 // pred_check_branch
          %594 = sbr.rel (%p592) target = $region28
        $region27: #{vit_forward.1} parent=11 // pred_region
          _
        $region28: #{vit_forward.1} parent=11 // pred_fallthru
          _
        // Predicated region
        $region29: #{vit_forward.1} parent=11 // pred_check
          %p595 = pneg %p164
        $region30: #{vit_forward.1} parent=11 // pred_check_branch
          %597 = sbr.rel (%p595) target = $region32
        $region31: #{vit_forward.1} parent=11 // pred_region
          _
        $region32: #{vit_forward.1} parent=11 // pred_fallthru
          _
        // Predicated region
        $region33: #{vit_forward.1} parent=11 // pred_check
          %p598 = pneg %p185
        $region34: #{vit_forward.1} parent=11 // pred_check_branch
          %600 = sbr.rel (%p598) target = $region36
        $region35: #{vit_forward.1} parent=11 // pred_region
          _
        $region36: #{vit_forward.1} parent=11 // pred_fallthru
          _
        // Predicated region
        $region37: #{vit_forward.1} parent=11 // pred_check
          %p601 = pneg %p206
        $region38: #{vit_forward.1} parent=11 // pred_check_branch
          %603 = sbr.rel (%p601) target = $region40
        $region39: #{vit_forward.1} parent=11 // pred_region
          _
        $region40: #{vit_forward.1} parent=11 // pred_fallthru
          _
        // Predicated region
        $region41: #{vit_forward.1} parent=11 // pred_check
          %p604 = pneg %p227
        $region42: #{vit_forward.1} parent=11 // pred_check_branch
          %606 = sbr.rel (%p604) target = $region44
        $region43: #{vit_forward.1} parent=11 // pred_region
          _
        $region44: #{vit_forward.1} parent=11 // pred_fallthru
          _
        // Predicated region
        $region45: #{vit_forward.1} parent=11 // pred_check
          %p607 = pneg %p248
        $region46: #{vit_forward.1} parent=11 // pred_check_branch
          %609 = sbr.rel (%p607) target = $region48
        $region47: #{vit_forward.1} parent=11 // pred_region
          _
        $region48: #{vit_forward.1} parent=11 // pred_fallthru
          _
        // Predicated region
        $region49: #{vit_forward.1} parent=11 // pred_check
          %p610 = pneg %p269
        $region50: #{vit_forward.1} parent=11 // pred_check_branch
          %612 = sbr.rel (%p610) target = $region52
        $region51: #{vit_forward.1} parent=11 // pred_region
          _
        $region52: #{vit_forward.1} parent=11 // pred_fallthru
          _
        // Predicated region
        $region53: #{vit_forward.1} parent=11 // pred_check
          %p613 = pneg %p290
        $region54: #{vit_forward.1} parent=11 // pred_check_branch
          %615 = sbr.rel (%p613) target = $region56
        $region55: #{vit_forward.1} parent=11 // pred_region
          _
        $region56: #{vit_forward.1} parent=11 // pred_fallthru
          _
        // Predicated region
        $region57: #{vit_forward.1} parent=11 // pred_check
          %p616 = pneg %p311
        $region58: #{vit_forward.1} parent=11 // pred_check_branch
          %618 = sbr.rel (%p616) target = $region60
        $region59: #{vit_forward.1} parent=11 // pred_region
          _
        $region60: #{vit_forward.1} parent=11 // pred_fallthru
          _
        // Predicated region
        $region61: #{vit_forward.1} parent=11 // pred_check
          %p619 = pneg %p332
        $region62: #{vit_forward.1} parent=11 // pred_check_branch
          %621 = sbr.rel (%p619) target = $region64
        $region63: #{vit_forward.1} parent=11 // pred_region
          _
        $region64: #{vit_forward.1} parent=11 // pred_fallthru
          _
        // Predicated region
        $region65: #{vit_forward.1} parent=11 // pred_check
          %p622 = pneg %p353
        $region66: #{vit_forward.1} parent=11 // pred_check_branch
          %624 = sbr.rel (%p622) target = $region68
        $region67: #{vit_forward.1} parent=11 // pred_region
          _
        $region68: #{vit_forward.1} parent=11 // pred_fallthru
          _
        // Predicated region
        $region69: #{vit_forward.1} parent=11 // pred_check
          %p625 = pneg %p374
        $region70: #{vit_forward.1} parent=11 // pred_check_branch
          %627 = sbr.rel (%p625) target = $region72
        $region71: #{vit_forward.1} parent=11 // pred_region
          _
        $region72: #{vit_forward.1} parent=11 // pred_fallthru
          _
        // Predicated region
        $region73: #{vit_forward.1} parent=11 // pred_check
          %p628 = pneg %p395
        $region74: #{vit_forward.1} parent=11 // pred_check_branch
          %630 = sbr.rel (%p628) target = $region76
        $region75: #{vit_forward.1} parent=11 // pred_region
          _
        $region76: #{vit_forward.1} parent=11 // pred_fallthru
          _
        // Predicated region
        $region77: #{vit_forward.1} parent=11 // pred_check
          %p631 = pneg %p416
        $region78: #{vit_forward.1} parent=11 // pred_check_branch
          %633 = sbr.rel (%p631) target = $region80
        $region79: #{vit_forward.1} parent=11 // pred_region
          _
        $region80: #{vit_forward.1} parent=11 // pred_fallthru
          _
        // Predicated region
        $region81: #{vit_forward.1} parent=11 // pred_check
          %p634 = pneg %p437
        $region82: #{vit_forward.1} parent=11 // pred_check_branch
          %636 = sbr.rel (%p634) target = $region84
        $region83: #{vit_forward.1} parent=11 // pred_region
          _
        $region84: #{vit_forward.1} parent=11 // pred_fallthru
          _
        // Predicated region
        $region85: #{vit_forward.1} parent=11 // pred_check
          %p637 = pneg %p458
        $region86: #{vit_forward.1} parent=11 // pred_check_branch
          %639 = sbr.rel (%p637) target = $region88
        $region87: #{vit_forward.1} parent=11 // pred_region
          _
        $region88: #{vit_forward.1} parent=11 // pred_fallthru
          _
        // Predicated region
        $region89: #{vit_forward.1} parent=11 // pred_check
          %p640 = pneg %p479
        $region90: #{vit_forward.1} parent=11 // pred_check_branch
          %642 = sbr.rel (%p640) target = $region92
        $region91: #{vit_forward.1} parent=11 // pred_region
          _
        $region92: #{vit_forward.1} parent=11 // pred_fallthru
          _
        // Predicated region
        $region93: #{vit_forward.1} parent=11 // pred_check
          %p643 = pneg %p500
        $region94: #{vit_forward.1} parent=11 // pred_check_branch
          %645 = sbr.rel (%p643) target = $region96
        $region95: #{vit_forward.1} parent=11 // pred_region
          _
        $region96: #{vit_forward.1} parent=11 // pred_fallthru
          _
        // Predicated region
        $region97: #{vit_forward.1} parent=11 // pred_check
          %p646 = pneg %p521
        $region98: #{vit_forward.1} parent=11 // pred_check_branch
          %648 = sbr.rel (%p646) target = $region100
        $region99: #{vit_forward.1} parent=11 // pred_region
          _
        $region100: #{vit_forward.1} parent=11 // pred_fallthru
          _
        // Predicated region
        $region101: #{vit_forward.1} parent=11 // pred_check
          %p649 = pneg %p542
        $region102: #{vit_forward.1} parent=11 // pred_check_branch
          %651 = sbr.rel (%p649) target = $region104
        $region103: #{vit_forward.1} parent=11 // pred_region
          _
        $region104: #{vit_forward.1} parent=11 // pred_fallthru
          _
      $region12: #{vit_forward.1} parent=5 // pred_fallthru
        _
      %p652 = scmp.lt.s32.totalorder %s33, 2
      // Predicated region
      $region105: #{vit_forward.1} parent=5 // pred_check
        %p653 = pneg %p652
      $region106: #{vit_forward.1} parent=5 // pred_check_branch
        %655 = sbr.rel (%p653) target = $region108
      $region107: #{vit_forward.1} parent=5 // pred_region
        // Predicated region
        $region109: #{vit_forward.1} parent=107 // pred_check
          %p656 = pneg %p53
        $region110: #{vit_forward.1} parent=107 // pred_check_branch
          %658 = sbr.rel (%p656) target = $region112
        $region111: #{vit_forward.1} parent=107 // pred_region
          %p659 = scmp.lt.s32.totalorder %s33, 1
          %s660 = scalar_select %p659, %s33, 1
          %s661 = smul.addr %s660, 3
          %s662 = smul.addr %s661, 8
          %s663 = scalar_lea.vmem %s0, %s662
        $region112: #{vit_forward.1} parent=107 // pred_fallthru
          _
      $region108: #{vit_forward.1} parent=5 // pred_fallthru
        _
      %p664 = scmp.le.s32.totalorder 1, %s33
      %p665 = scmp.lt.s32.totalorder %s33, 3
      %p666 = pnand %p664, %p665
      %p667 = pneg %p666
      // Predicated region
      $region113: #{vit_forward.1} parent=5 // pred_check
        _
      $region114: #{vit_forward.1} parent=5 // pred_check_branch
        %669 = sbr.rel (%p666) target = $region116
      $region115: #{vit_forward.1} parent=5 // pred_region
        %s670 = ssub.s32 %s33, 1
        %p671 = scmp.lt.s32.totalorder %s38, 1
        %s672 = scalar_select %p671, %s38, 1
        %s673 = smul.addr %s672, 3
        %s674 = smul.addr %s673, 8
        %s675 = scalar_lea.vmem %s0, %s674
        %p676 = pneg %p59
        %p677 = pneg %p56
        %p678 = pneg %p80
        %p679 = pneg %p77
        %p680 = pneg %p101
        %p681 = pneg %p98
        %p682 = pneg %p122
        %p683 = pneg %p119
        %p684 = pneg %p143
        %p685 = pneg %p140
        %p686 = pneg %p164
        %p687 = pneg %p161
        %p688 = pneg %p185
        %p689 = pneg %p182
        %p690 = pneg %p206
        %p691 = pneg %p203
        %p692 = pneg %p227
        %p693 = pneg %p224
        %p694 = pneg %p248
        %p695 = pneg %p245
        %p696 = pneg %p269
        %p697 = pneg %p266
        %p698 = pneg %p290
        %p699 = pneg %p287
        %p700 = pneg %p311
        %p701 = pneg %p308
        %p702 = pneg %p332
        %p703 = pneg %p329
        %p704 = pneg %p353
        %p705 = pneg %p350
        %p706 = pneg %p374
        %p707 = pneg %p371
        %p708 = pneg %p395
        %p709 = pneg %p392
        %p710 = pneg %p416
        %p711 = pneg %p413
        %p712 = pneg %p437
        %p713 = pneg %p434
        %p714 = pneg %p458
        %p715 = pneg %p455
        %p716 = pneg %p479
        %p717 = pneg %p476
        %p718 = pneg %p500
        %p719 = pneg %p497
        %p720 = pneg %p521
        %p721 = pneg %p518
        %p722 = pneg %p542
        %p723 = pneg %p539
        %p724 = pneg %p568
        %p725 = pneg %p565
        %s726 = sand.u32 %s555, 1
        %s727 = scalar_lea.sflag [#allocation3], %s726
        %s728 = sand.u32 %s555, 1
        %s729 = scalar_lea.vmem [#allocation2], %s728
        %p730 = scmp.lt.s32.totalorder %s38, 1
        %s731 = scalar_select %p730, %s38, 1
        %s732 = smul.addr %s731, 3
        %s733 = smul.addr %s732, 8
        %s734 = scalar_lea.vmem %s0, %s733
        %v735 = vld [vmem:[%s734] sm:$0xff]
        %v736 = vld [vmem:[%s734 + $0x8] sm:$0xff]
        %v737 = vld [vmem:[%s734 + $0x10] sm:$0x1]
        %v738 = vld [vmem:[%s2] sm:$0xff]
        %v739 = vld [vmem:[%s2 + $0x8] sm:$0xff]
        %v740 = vld [vmem:[%s2 + $0x10] sm:$0xff]
        %v741 = vld [vmem:[%s2 + $0x18] sm:$0xff]
        %v742 = vld [vmem:[%s2 + $0x20] sm:$0xff]
        %v743 = vld [vmem:[%s2 + $0x28] sm:$0xff]
        %v744 = vld [vmem:[%s2 + $0x30] sm:$0x1]
        %v745 = vld [vmem:[%s3] sm:$0x1]
        %v747 = vlaneseq
        %v748 = vshrl.u32 %v747, 7
        %v749 = vsub.s32 0, %v748
        %v750 = vrot.slane %v745, %v749
        %vm752 = vcmask 400384
        %v754 = vsel %vm752, %v735, 0
        %v757 = vsel %vm752, %v736, 0
        %v760 = vsel %vm752, %v737, 0
        %vm762 = vcmask 1040384
        %v764 = vsel %vm762, %v744, 0
        %766 = vmatprep.subr.mxu0 0.0
        %767 = vmatpush1.msra.mxu0 %v738
        %768 = vmatprep.subr.mxu0 0.0
        %769 = vmatpush1.msra.mxu0 %v739
        %770 = vmatprep.subr.mxu0 0.0
        %771 = vmatpush1.msra.mxu0 %v740
        %772 = vmatprep.subr.mxu0 0.0
        %773 = vmatpush1.msra.mxu0 %v741
        %774 = vmatprep.subr.mxu0 0.0
        %775 = vmatpush1.msra.mxu0 %v742
        %776 = vmatprep.subr.mxu0 0.0
        %777 = vmatpush1.msra.mxu0 %v743
        %778 = vmatprep.subr.mxu0 0.0
        %779 = vmatpush1.msra.mxu0 %v764
        %780 = vmatprep.subr.mxu0 0.0
        %781 = vmatpush1.msra.mxu0 0.0
        %782 = vmatprep.subr.mxu0 0.0
        %783 = vmatpush1.msra.mxu0 0.0
        %784 = vmatprep.subr.mxu0 0.0
        %785 = vmatpush1.msra.mxu0 0.0
        %786 = vmatprep.subr.mxu0 0.0
        %787 = vmatpush1.msra.mxu0 0.0
        %788 = vmatprep.subr.mxu0 0.0
        %789 = vmatpush1.msra.mxu0 0.0
        %790 = vmatprep.subr.mxu0 0.0
        %791 = vmatpush1.msra.mxu0 0.0
        %792 = vmatprep.subr.mxu0 0.0
        %793 = vmatpush1.msra.mxu0 0.0
        %794 = vmatprep.subr.mxu0 0.0
        %795 = vmatpush1.msra.mxu0 0.0
        %796 = vmatprep.subr.mxu0 0.0
        %797 = vmatpush1.msra.mxu0 0.0
        %798 = vmatprep.subr.mxu0 0.0
        %799 = vmatpush1.msra.mxu0 0.0
        %800 = vmatprep.subr.mxu0 0.0
        %801 = vmatpush1.msra.mxu0 0.0
        %802 = vmatprep.subr.mxu0 0.0
        %803 = vmatpush1.msra.mxu0 0.0
        %804 = vmatprep.subr.mxu0 0.0
        %805 = vmatpush1.msra.mxu0 0.0
        %806 = vmatprep.subr.mxu0 0.0
        %807 = vmatpush1.msra.mxu0 0.0
        %808 = vmatprep.subr.mxu0 0.0
        %809 = vmatpush1.msra.mxu0 0.0
        %810 = vmatprep.subr.mxu0 0.0
        %811 = vmatpush1.msra.mxu0 0.0
        %812 = vmatprep.subr.mxu0 0.0
        %813 = vmatpush1.msra.mxu0 0.0
        %814 = vmatprep.subr.mxu0 0.0
        %815 = vmatpush1.msra.mxu0 0.0
        %816 = vmatprep.subr.mxu0 0.0
        %817 = vmatpush1.msra.mxu0 0.0
        %818 = vmatprep.subr.mxu0 0.0
        %819 = vmatpush1.msra.mxu0 0.0
        %820 = vmatprep.subr.mxu0 0.0
        %821 = vmatpush1.msra.mxu0 0.0
        %822 = vmatprep.subr.mxu0 0.0
        %823 = vmatpush1.msra.mxu0 0.0
        %824 = vmatprep.subr.mxu0 0.0
        %825 = vmatpush1.msra.mxu0 0.0
        %826 = vmatprep.subr.mxu0 0.0
        %827 = vmatpush1.msra.mxu0 0.0
        %828 = vmatprep.subr.mxu0 0.0
        %829 = vmatpush1.msra.mxu0 0.0
        %830 = vmatprep.mubr.f32.mxu0 0.0
        %831 = vmatmul.mubr.f32.gmra.mrb[0].mxu0 %v754
        %v832 = vpop.f32.mrb[0].mxu0
        %v833 = vadd.f32 %v750, %v832
        %v834 = vpop.f32.mrb[0].mxu0
        %835 = vmatprep.mubr.f32.mxu0 0.0
        %836 = vmatmul.mubr.f32.gmra.mrb[0].mxu0 %v757
        %v837 = vpop.f32.mrb[0].mxu0
        %v838 = vadd.f32 %v750, %v837
        %v839 = vpop.f32.mrb[0].mxu0
        %840 = vmatprep.mubr.f32.mxu0 0.0
        %841 = vmatmul.mubr.f32.gmra.mrb[0].mxu0 %v760
        %v842 = vpop.f32.mrb[0].mxu0
        %v843 = vadd.f32 %v750, %v842
        %v844 = vpop.f32.mrb[0].mxu0
        %845 = vdwg.mxu0
        %v846 = vld [vmem:[%s1] sm:$0xff]
        %v847 = vld [vmem:[%s1 + $0x8] sm:$0xff]
        %v848 = vld [vmem:[%s1 + $0x10] sm:$0x1]
        %v849 = vadd.f32 %v833, %v846
        %v850 = vadd.f32 %v838, %v847
        %v851 = vadd.f32 %v843, %v848
        %v852 = vld [vmem:[%s4] sm:$0xff]
        %v853 = vld [vmem:[%s4 + $0x8] sm:$0xff]
        %v854 = vld [vmem:[%s4 + $0x10] sm:$0xff]
        %v855 = vld [vmem:[%s4 + $0x18] sm:$0xff]
        %v856 = vld [vmem:[%s5] sm:$0x1]
        %v858 = vlaneseq
        %v859 = vshrl.u32 %v858, 7
        %v860 = vsub.s32 0, %v859
        %v861 = vrot.slane %v856, %v860
        %vm863 = vcmask 261120
        %v865 = vsel %vm863, %v849, 0
        %v868 = vsel %vm863, %v850, 0
        %v871 = vsel %vm863, %v851, 0
        %873 = vmatprep.subr.mxu0 0.0
        %874 = vmatpush1.msra.mxu0 %v852
        %875 = vmatprep.subr.mxu0 0.0
        %876 = vmatpush1.msra.mxu0 %v853
        %877 = vmatprep.subr.mxu0 0.0
        %878 = vmatpush1.msra.mxu0 %v854
        %879 = vmatprep.subr.mxu0 0.0
        %880 = vmatpush1.msra.mxu0 %v855
        %881 = vmatprep.subr.mxu0 0.0
        %882 = vmatpush1.msra.mxu0 0.0
        %883 = vmatprep.subr.mxu0 0.0
        %884 = vmatpush1.msra.mxu0 0.0
        %885 = vmatprep.subr.mxu0 0.0
        %886 = vmatpush1.msra.mxu0 0.0
        %887 = vmatprep.subr.mxu0 0.0
        %888 = vmatpush1.msra.mxu0 0.0
        %889 = vmatprep.subr.mxu0 0.0
        %890 = vmatpush1.msra.mxu0 0.0
        %891 = vmatprep.subr.mxu0 0.0
        %892 = vmatpush1.msra.mxu0 0.0
        %893 = vmatprep.subr.mxu0 0.0
        %894 = vmatpush1.msra.mxu0 0.0
        %895 = vmatprep.subr.mxu0 0.0
        %896 = vmatpush1.msra.mxu0 0.0
        %897 = vmatprep.subr.mxu0 0.0
        %898 = vmatpush1.msra.mxu0 0.0
        %899 = vmatprep.subr.mxu0 0.0
        %900 = vmatpush1.msra.mxu0 0.0
        %901 = vmatprep.subr.mxu0 0.0
        %902 = vmatpush1.msra.mxu0 0.0
        %903 = vmatprep.subr.mxu0 0.0
        %904 = vmatpush1.msra.mxu0 0.0
        %905 = vmatprep.subr.mxu0 0.0
        %906 = vmatpush1.msra.mxu0 0.0
        %907 = vmatprep.subr.mxu0 0.0
        %908 = vmatpush1.msra.mxu0 0.0
        %909 = vmatprep.subr.mxu0 0.0
        %910 = vmatpush1.msra.mxu0 0.0
        %911 = vmatprep.subr.mxu0 0.0
        %912 = vmatpush1.msra.mxu0 0.0
        %913 = vmatprep.subr.mxu0 0.0
        %914 = vmatpush1.msra.mxu0 0.0
        %915 = vmatprep.subr.mxu0 0.0
        %916 = vmatpush1.msra.mxu0 0.0
        %917 = vmatprep.subr.mxu0 0.0
        %918 = vmatpush1.msra.mxu0 0.0
        %919 = vmatprep.subr.mxu0 0.0
        %920 = vmatpush1.msra.mxu0 0.0
        %921 = vmatprep.subr.mxu0 0.0
        %922 = vmatpush1.msra.mxu0 0.0
        %923 = vmatprep.subr.mxu0 0.0
        %924 = vmatpush1.msra.mxu0 0.0
        %925 = vmatprep.subr.mxu0 0.0
        %926 = vmatpush1.msra.mxu0 0.0
        %927 = vmatprep.subr.mxu0 0.0
        %928 = vmatpush1.msra.mxu0 0.0
        %929 = vmatprep.subr.mxu0 0.0
        %930 = vmatpush1.msra.mxu0 0.0
        %931 = vmatprep.subr.mxu0 0.0
        %932 = vmatpush1.msra.mxu0 0.0
        %933 = vmatprep.subr.mxu0 0.0
        %934 = vmatpush1.msra.mxu0 0.0
        %935 = vmatprep.subr.mxu0 0.0
        %936 = vmatpush1.msra.mxu0 0.0
        %937 = vmatprep.mubr.f32.mxu0 0.0
        %938 = vmatmul.mubr.f32.gmra.mrb[0].mxu0 %v865
        %v939 = vpop.f32.mrb[0].mxu0
        %v940 = vadd.f32 %v861, %v939
        %v941 = vpop.f32.mrb[0].mxu0
        %942 = vmatprep.mubr.f32.mxu0 0.0
        %943 = vmatmul.mubr.f32.gmra.mrb[0].mxu0 %v868
        %v944 = vpop.f32.mrb[0].mxu0
        %v945 = vadd.f32 %v861, %v944
        %v946 = vpop.f32.mrb[0].mxu0
        %947 = vmatprep.mubr.f32.mxu0 0.0
        %948 = vmatmul.mubr.f32.gmra.mrb[0].mxu0 %v871
        %v949 = vpop.f32.mrb[0].mxu0
        %v950 = vadd.f32 %v861, %v949
        %v951 = vpop.f32.mrb[0].mxu0
        %952 = vdwg.mxu0
        %v953 = vld [vmem:[%s6] sm:$0xff]
        %v954 = vld [vmem:[%s6 + $0x8] sm:$0xff]
        %v955 = vld [vmem:[%s6 + $0x10] sm:$0xff]
        %v956 = vld [vmem:[%s6 + $0x18] sm:$0xff]
        %v957 = vld [vmem:[%s7] sm:$0x1]
        %v959 = vlaneseq
        %v960 = vshrl.u32 %v959, 7
        %v961 = vsub.s32 0, %v960
        %v962 = vrot.slane %v957, %v961
        %964 = vmatprep.subr.mxu0 0.0
        %965 = vmatpush1.msra.mxu0 %v953
        %966 = vmatprep.subr.mxu0 0.0
        %967 = vmatpush1.msra.mxu0 %v954
        %968 = vmatprep.subr.mxu0 0.0
        %969 = vmatpush1.msra.mxu0 %v955
        %970 = vmatprep.subr.mxu0 0.0
        %971 = vmatpush1.msra.mxu0 %v956
        %972 = vmatprep.subr.mxu0 0.0
        %973 = vmatpush1.msra.mxu0 0.0
        %974 = vmatprep.subr.mxu0 0.0
        %975 = vmatpush1.msra.mxu0 0.0
        %976 = vmatprep.subr.mxu0 0.0
        %977 = vmatpush1.msra.mxu0 0.0
        %978 = vmatprep.subr.mxu0 0.0
        %979 = vmatpush1.msra.mxu0 0.0
        %980 = vmatprep.subr.mxu0 0.0
        %981 = vmatpush1.msra.mxu0 0.0
        %982 = vmatprep.subr.mxu0 0.0
        %983 = vmatpush1.msra.mxu0 0.0
        %984 = vmatprep.subr.mxu0 0.0
        %985 = vmatpush1.msra.mxu0 0.0
        %986 = vmatprep.subr.mxu0 0.0
        %987 = vmatpush1.msra.mxu0 0.0
        %988 = vmatprep.subr.mxu0 0.0
        %989 = vmatpush1.msra.mxu0 0.0
        %990 = vmatprep.subr.mxu0 0.0
        %991 = vmatpush1.msra.mxu0 0.0
        %992 = vmatprep.subr.mxu0 0.0
        %993 = vmatpush1.msra.mxu0 0.0
        %994 = vmatprep.subr.mxu0 0.0
        %995 = vmatpush1.msra.mxu0 0.0
        %996 = vmatprep.subr.mxu0 0.0
        %997 = vmatpush1.msra.mxu0 0.0
        %998 = vmatprep.subr.mxu0 0.0
        %999 = vmatpush1.msra.mxu0 0.0
        %1000 = vmatprep.subr.mxu0 0.0
        %1001 = vmatpush1.msra.mxu0 0.0
        %1002 = vmatprep.subr.mxu0 0.0
        %1003 = vmatpush1.msra.mxu0 0.0
        %1004 = vmatprep.subr.mxu0 0.0
        %1005 = vmatpush1.msra.mxu0 0.0
        %1006 = vmatprep.subr.mxu0 0.0
        %1007 = vmatpush1.msra.mxu0 0.0
        %1008 = vmatprep.subr.mxu0 0.0
        %1009 = vmatpush1.msra.mxu0 0.0
        %1010 = vmatprep.subr.mxu0 0.0
        %1011 = vmatpush1.msra.mxu0 0.0
        %1012 = vmatprep.subr.mxu0 0.0
        %1013 = vmatpush1.msra.mxu0 0.0
        %1014 = vmatprep.subr.mxu0 0.0
        %1015 = vmatpush1.msra.mxu0 0.0
        %1016 = vmatprep.subr.mxu0 0.0
        %1017 = vmatpush1.msra.mxu0 0.0
        %1018 = vmatprep.subr.mxu0 0.0
        %1019 = vmatpush1.msra.mxu0 0.0
        %1020 = vmatprep.subr.mxu0 0.0
        %1021 = vmatpush1.msra.mxu0 0.0
        %1022 = vmatprep.subr.mxu0 0.0
        %1023 = vmatpush1.msra.mxu0 0.0
        %1024 = vmatprep.subr.mxu0 0.0
        %1025 = vmatpush1.msra.mxu0 0.0
        %1026 = vmatprep.subr.mxu0 0.0
        %1027 = vmatpush1.msra.mxu0 0.0
        %1028 = vmatprep.mubr.f32.mxu0 0.0
        %1029 = vmatmul.mubr.f32.gmra.mrb[0].mxu0 %v865
        %v1030 = vpop.f32.mrb[0].mxu0
        %v1031 = vadd.f32 %v962, %v1030
        %v1032 = vpop.f32.mrb[0].mxu0
        %1033 = vmatprep.mubr.f32.mxu0 0.0
        %1034 = vmatmul.mubr.f32.gmra.mrb[0].mxu0 %v868
        %v1035 = vpop.f32.mrb[0].mxu0
        %v1036 = vadd.f32 %v962, %v1035
        %v1037 = vpop.f32.mrb[0].mxu0
        %1038 = vmatprep.mubr.f32.mxu0 0.0
        %1039 = vmatmul.mubr.f32.gmra.mrb[0].mxu0 %v871
        %v1040 = vpop.f32.mrb[0].mxu0
        %v1041 = vadd.f32 %v962, %v1040
        %v1042 = vpop.f32.mrb[0].mxu0
        %1043 = vdwg.mxu0
        %v1044 = vld [vmem:[%s8] sm:$0xff]
        %v1045 = vld [vmem:[%s8 + $0x8] sm:$0xff]
        %v1046 = vld [vmem:[%s8 + $0x10] sm:$0xff]
        %v1047 = vld [vmem:[%s8 + $0x18] sm:$0xff]
        %v1048 = vld [vmem:[%s9] sm:$0x1]
        %v1050 = vlaneseq
        %v1051 = vshrl.u32 %v1050, 7
        %v1052 = vsub.s32 0, %v1051
        %v1053 = vrot.slane %v1048, %v1052
        %1055 = vmatprep.subr.mxu0 0.0
        %1056 = vmatpush1.msra.mxu0 %v1044
        %1057 = vmatprep.subr.mxu0 0.0
        %1058 = vmatpush1.msra.mxu0 %v1045
        %1059 = vmatprep.subr.mxu0 0.0
        %1060 = vmatpush1.msra.mxu0 %v1046
        %1061 = vmatprep.subr.mxu0 0.0
        %1062 = vmatpush1.msra.mxu0 %v1047
        %1063 = vmatprep.subr.mxu0 0.0
        %1064 = vmatpush1.msra.mxu0 0.0
        %1065 = vmatprep.subr.mxu0 0.0
        %1066 = vmatpush1.msra.mxu0 0.0
        %1067 = vmatprep.subr.mxu0 0.0
        %1068 = vmatpush1.msra.mxu0 0.0
        %1069 = vmatprep.subr.mxu0 0.0
        %1070 = vmatpush1.msra.mxu0 0.0
        %1071 = vmatprep.subr.mxu0 0.0
        %1072 = vmatpush1.msra.mxu0 0.0
        %1073 = vmatprep.subr.mxu0 0.0
        %1074 = vmatpush1.msra.mxu0 0.0
        %1075 = vmatprep.subr.mxu0 0.0
        %1076 = vmatpush1.msra.mxu0 0.0
        %1077 = vmatprep.subr.mxu0 0.0
        %1078 = vmatpush1.msra.mxu0 0.0
        %1079 = vmatprep.subr.mxu0 0.0
        %1080 = vmatpush1.msra.mxu0 0.0
        %1081 = vmatprep.subr.mxu0 0.0
        %1082 = vmatpush1.msra.mxu0 0.0
        %1083 = vmatprep.subr.mxu0 0.0
        %1084 = vmatpush1.msra.mxu0 0.0
        %1085 = vmatprep.subr.mxu0 0.0
        %1086 = vmatpush1.msra.mxu0 0.0
        %1087 = vmatprep.subr.mxu0 0.0
        %1088 = vmatpush1.msra.mxu0 0.0
        %1089 = vmatprep.subr.mxu0 0.0
        %1090 = vmatpush1.msra.mxu0 0.0
        %1091 = vmatprep.subr.mxu0 0.0
        %1092 = vmatpush1.msra.mxu0 0.0
        %1093 = vmatprep.subr.mxu0 0.0
        %1094 = vmatpush1.msra.mxu0 0.0
        %1095 = vmatprep.subr.mxu0 0.0
        %1096 = vmatpush1.msra.mxu0 0.0
        %1097 = vmatprep.subr.mxu0 0.0
        %1098 = vmatpush1.msra.mxu0 0.0
        %1099 = vmatprep.subr.mxu0 0.0
        %1100 = vmatpush1.msra.mxu0 0.0
        %1101 = vmatprep.subr.mxu0 0.0
        %1102 = vmatpush1.msra.mxu0 0.0
        %1103 = vmatprep.subr.mxu0 0.0
        %1104 = vmatpush1.msra.mxu0 0.0
        %1105 = vmatprep.subr.mxu0 0.0
        %1106 = vmatpush1.msra.mxu0 0.0
        %1107 = vmatprep.subr.mxu0 0.0
        %1108 = vmatpush1.msra.mxu0 0.0
        %1109 = vmatprep.subr.mxu0 0.0
        %1110 = vmatpush1.msra.mxu0 0.0
        %1111 = vmatprep.subr.mxu0 0.0
        %1112 = vmatpush1.msra.mxu0 0.0
        %1113 = vmatprep.subr.mxu0 0.0
        %1114 = vmatpush1.msra.mxu0 0.0
        %1115 = vmatprep.subr.mxu0 0.0
        %1116 = vmatpush1.msra.mxu0 0.0
        %1117 = vmatprep.subr.mxu0 0.0
        %1118 = vmatpush1.msra.mxu0 0.0
        %1119 = vmatprep.mubr.f32.mxu0 0.0
        %1120 = vmatmul.mubr.f32.gmra.mrb[0].mxu0 %v865
        %v1121 = vpop.f32.mrb[0].mxu0
        %v1122 = vadd.f32 %v1053, %v1121
        %v1123 = vpop.f32.mrb[0].mxu0
        %1124 = vmatprep.mubr.f32.mxu0 0.0
        %1125 = vmatmul.mubr.f32.gmra.mrb[0].mxu0 %v868
        %v1126 = vpop.f32.mrb[0].mxu0
        %v1127 = vadd.f32 %v1053, %v1126
        %v1128 = vpop.f32.mrb[0].mxu0
        %1129 = vmatprep.mubr.f32.mxu0 0.0
        %1130 = vmatmul.mubr.f32.gmra.mrb[0].mxu0 %v871
        %v1131 = vpop.f32.mrb[0].mxu0
        %v1132 = vadd.f32 %v1053, %v1131
        %v1133 = vpop.f32.mrb[0].mxu0
        %1134 = vdwg.mxu0
        %vm1135 = vcmask 64512
        %v1137 = vsel %vm1135, %v940, 0
        %v1140 = vsel %vm1135, %v945, 0
        %v1143 = vsel %vm1135, %v950, 0
        %v1146 = vsel %vm1135, %v1031, 0
        %v1149 = vsel %vm1135, %v1036, 0
        %v1152 = vsel %vm1135, %v1041, 0
        %1154 = vmatprep.subr.mxu0 0.0
        %1155 = vmatpush1.xpose.msra.mxu0 %v1146
        %1156 = vmatprep.subr.mxu0 0.0
        %1157 = vmatpush1.xpose.msra.mxu0 %v1149
        %1158 = vmatprep.subr.mxu0 0.0
        %1159 = vmatpush1.xpose.msra.mxu0 %v1152
        %1160 = vmatprep.subr.mxu0 0.0
        %1161 = vmatpush1.xpose.msra.mxu0 0.0
        %1162 = vmatprep.subr.mxu0 0.0
        %1163 = vmatpush1.xpose.msra.mxu0 0.0
        %1164 = vmatprep.subr.mxu0 0.0
        %1165 = vmatpush1.xpose.msra.mxu0 0.0
        %1166 = vmatprep.subr.mxu0 0.0
        %1167 = vmatpush1.xpose.msra.mxu0 0.0
        %1168 = vmatprep.subr.mxu0 0.0
        %1169 = vmatpush1.xpose.msra.mxu0 0.0
        %1170 = vmatprep.subr.mxu0 0.0
        %1171 = vmatpush1.xpose.msra.mxu0 0.0
        %1172 = vmatprep.subr.mxu0 0.0
        %1173 = vmatpush1.xpose.msra.mxu0 0.0
        %1174 = vmatprep.subr.mxu0 0.0
        %1175 = vmatpush1.xpose.msra.mxu0 0.0
        %1176 = vmatprep.subr.mxu0 0.0
        %1177 = vmatpush1.xpose.msra.mxu0 0.0
        %1178 = vmatprep.subr.mxu0 0.0
        %1179 = vmatpush1.xpose.msra.mxu0 0.0
        %1180 = vmatprep.subr.mxu0 0.0
        %1181 = vmatpush1.xpose.msra.mxu0 0.0
        %1182 = vmatprep.subr.mxu0 0.0
        %1183 = vmatpush1.xpose.msra.mxu0 0.0
        %1184 = vmatprep.subr.mxu0 0.0
        %1185 = vmatpush1.xpose.msra.mxu0 0.0
        %1186 = vmatprep.subr.mxu0 0.0
        %1187 = vmatpush1.xpose.msra.mxu0 0.0
        %1188 = vmatprep.subr.mxu0 0.0
        %1189 = vmatpush1.xpose.msra.mxu0 0.0
        %1190 = vmatprep.subr.mxu0 0.0
        %1191 = vmatpush1.xpose.msra.mxu0 0.0
        %1192 = vmatprep.subr.mxu0 0.0
        %1193 = vmatpush1.xpose.msra.mxu0 0.0
        %1194 = vmatprep.subr.mxu0 0.0
        %1195 = vmatpush1.xpose.msra.mxu0 0.0
        %1196 = vmatprep.subr.mxu0 0.0
        %1197 = vmatpush1.xpose.msra.mxu0 0.0
        %1198 = vmatprep.subr.mxu0 0.0
        %1199 = vmatpush1.xpose.msra.mxu0 0.0
        %1200 = vmatprep.subr.mxu0 0.0
        %1201 = vmatpush1.xpose.msra.mxu0 0.0
        %1202 = vmatprep.subr.mxu0 0.0
        %1203 = vmatpush1.xpose.msra.mxu0 0.0
        %1204 = vmatprep.subr.mxu0 0.0
        %1205 = vmatpush1.xpose.msra.mxu0 0.0
        %1206 = vmatprep.subr.mxu0 0.0
        %1207 = vmatpush1.xpose.msra.mxu0 0.0
        %1208 = vmatprep.subr.mxu0 0.0
        %1209 = vmatpush1.xpose.msra.mxu0 0.0
        %1210 = vmatprep.subr.mxu0 0.0
        %1211 = vmatpush1.xpose.msra.mxu0 0.0
        %1212 = vmatprep.subr.mxu0 0.0
        %1213 = vmatpush1.xpose.msra.mxu0 0.0
        %1214 = vmatprep.subr.mxu0 0.0
        %1215 = vmatpush1.xpose.msra.mxu0 0.0
        %1216 = vmatprep.subr.mxu0 0.0
        %1217 = vmatpush1.xpose.msra.mxu0 0.0
        %1218 = vmatprep.mubr.f32.mxu0 0.0
        %1219 = vmatmul.mubr.f32.gmra.mrb[0].mxu0 %v1137
        %v1220 = vpop.f32.mrb[0].mxu0
        %v1221 = vadd.f32 0.0, %v1220
        %v1222 = vpop.f32.mrb[0].mxu0
        %1223 = vmatprep.mubr.f32.mxu0 0.0
        %1224 = vmatmul.mubr.f32.gmra.mrb[0].mxu0 %v1140
        %v1225 = vpop.f32.mrb[0].mxu0
        %v1226 = vadd.f32 0.0, %v1225
        %v1227 = vpop.f32.mrb[0].mxu0
        %1228 = vmatprep.mubr.f32.mxu0 0.0
        %1229 = vmatmul.mubr.f32.gmra.mrb[0].mxu0 %v1143
        %v1230 = vpop.f32.mrb[0].mxu0
        %v1231 = vadd.f32 0.0, %v1230
        %v1232 = vpop.f32.mrb[0].mxu0
        %1233 = vdwg.mxu0
        %v1234 = vmul.f32 %v1221, 0.35355338
        %v1235 = vmul.f32 %v1226, 0.35355338
        %v1236 = vmul.f32 %v1231, 0.35355338
        %vm1237 = vcmask 138240
        %v1238 = vsel %vm1237, %v1234, -inf
        %1239 = vmax.xlane.f32.xlu0 %v1238
        %v1240 = vpop.xlane.xlu0 %1239
        %v1241 = vsel %vm1237, %v1235, -inf
        %1242 = vmax.xlane.f32.xlu0 %v1241
        %v1243 = vpop.xlane.xlu0 %1242
        %vm1244 = vcmask 131072
        %v1245 = vsel %vm1244, %v1236, -inf
        %1246 = vmax.xlane.f32.xlu0 %v1245
        %v1247 = vpop.xlane.xlu0 %1246
        %v1248 = vsub.f32 %v1234, %v1240
        %v1249 = vsub.f32 %v1235, %v1243
        %v1250 = vsub.f32 %v1236, %v1247
        %v1251 = vmul.f32 %v1248, 1.442695
        %v1252 = vpow.pop %v1251
        %v1253 = vmul.f32 %v1249, 1.442695
        %v1254 = vpow.pop %v1253
        %v1255 = vmul.f32 %v1250, 1.442695
        %v1256 = vpow.pop %v1255
        %v1257 = vsel %vm1237, %v1252, 0.0
        %1258 = vadd.xlane.f32.xlu0 %v1257
        %v1259 = vpop.xlane.xlu0 %1258
        %v1260 = vsel %vm1237, %v1254, 0.0
        %1261 = vadd.xlane.f32.xlu0 %v1260
        %v1262 = vpop.xlane.xlu0 %1261
        %v1263 = vsel %vm1244, %v1256, 0.0
        %1264 = vadd.xlane.f32.xlu0 %v1263
        %v1265 = vpop.xlane.xlu0 %1264
        %v1266 = vrcp.pop %v1259
        %v1267 = vrcp.pop %v1262
        %v1268 = vrcp.pop %v1265
        %v1269 = vmul.f32 %v1252, %v1266
        %v1270 = vmul.f32 %v1254, %v1267
        %v1271 = vmul.f32 %v1256, %v1268
        %v1273 = vsel %vm1237, %v1269, 0
        %v1276 = vsel %vm1237, %v1270, 0
        %v1279 = vsel %vm1237, %v1271, 0
        %v1282 = vsel %vm762, %v1132, 0
        %1284 = vmatprep.subr.mxu0 0.0
        %1285 = vmatpush1.msra.mxu0 %v1122
        %1286 = vmatprep.subr.mxu0 0.0
        %1287 = vmatpush1.msra.mxu0 %v1127
        %1288 = vmatprep.subr.mxu0 0.0
        %1289 = vmatpush1.msra.mxu0 %v1282
        %1290 = vmatprep.subr.mxu0 0.0
        %1291 = vmatpush1.msra.mxu0 0.0
        %1292 = vmatprep.subr.mxu0 0.0
        %1293 = vmatpush1.msra.mxu0 0.0
        %1294 = vmatprep.subr.mxu0 0.0
        %1295 = vmatpush1.msra.mxu0 0.0
        %1296 = vmatprep.subr.mxu0 0.0
        %1297 = vmatpush1.msra.mxu0 0.0
        %1298 = vmatprep.subr.mxu0 0.0
        %1299 = vmatpush1.msra.mxu0 0.0
        %1300 = vmatprep.subr.mxu0 0.0
        %1301 = vmatpush1.msra.mxu0 0.0
        %1302 = vmatprep.subr.mxu0 0.0
        %1303 = vmatpush1.msra.mxu0 0.0
        %1304 = vmatprep.subr.mxu0 0.0
        %1305 = vmatpush1.msra.mxu0 0.0
        %1306 = vmatprep.subr.mxu0 0.0
        %1307 = vmatpush1.msra.mxu0 0.0
        %1308 = vmatprep.subr.mxu0 0.0
        %1309 = vmatpush1.msra.mxu0 0.0
        %1310 = vmatprep.subr.mxu0 0.0
        %1311 = vmatpush1.msra.mxu0 0.0
        %1312 = vmatprep.subr.mxu0 0.0
        %1313 = vmatpush1.msra.mxu0 0.0
        %1314 = vmatprep.subr.mxu0 0.0
        %1315 = vmatpush1.msra.mxu0 0.0
        %1316 = vmatprep.subr.mxu0 0.0
        %1317 = vmatpush1.msra.mxu0 0.0
        %1318 = vmatprep.subr.mxu0 0.0
        %1319 = vmatpush1.msra.mxu0 0.0
        %1320 = vmatprep.subr.mxu0 0.0
        %1321 = vmatpush1.msra.mxu0 0.0
        %1322 = vmatprep.subr.mxu0 0.0
        %1323 = vmatpush1.msra.mxu0 0.0
        %1324 = vmatprep.subr.mxu0 0.0
        %1325 = vmatpush1.msra.mxu0 0.0
        %1326 = vmatprep.subr.mxu0 0.0
        %1327 = vmatpush1.msra.mxu0 0.0
        %1328 = vmatprep.subr.mxu0 0.0
        %1329 = vmatpush1.msra.mxu0 0.0
        %1330 = vmatprep.subr.mxu0 0.0
        %1331 = vmatpush1.msra.mxu0 0.0
        %1332 = vmatprep.subr.mxu0 0.0
        %1333 = vmatpush1.msra.mxu0 0.0
        %1334 = vmatprep.subr.mxu0 0.0
        %1335 = vmatpush1.msra.mxu0 0.0
        %1336 = vmatprep.subr.mxu0 0.0
        %1337 = vmatpush1.msra.mxu0 0.0
        %1338 = vmatprep.subr.mxu0 0.0
        %1339 = vmatpush1.msra.mxu0 0.0
        %1340 = vmatprep.subr.mxu0 0.0
        %1341 = vmatpush1.msra.mxu0 0.0
        %1342 = vmatprep.subr.mxu0 0.0
        %1343 = vmatpush1.msra.mxu0 0.0
        %1344 = vmatprep.subr.mxu0 0.0
        %1345 = vmatpush1.msra.mxu0 0.0
        %1346 = vmatprep.subr.mxu0 0.0
        %1347 = vmatpush1.msra.mxu0 0.0
        %1348 = vmatprep.mubr.f32.mxu0 0.0
        %1349 = vmatmul.mubr.f32.gmra.mrb[0].mxu0 %v1273
        %v1350 = vpop.f32.mrb[0].mxu0
        %v1351 = vadd.f32 0.0, %v1350
        %v1352 = vpop.f32.mrb[0].mxu0
        %1353 = vmatprep.mubr.f32.mxu0 0.0
        %1354 = vmatmul.mubr.f32.gmra.mrb[0].mxu0 %v1276
        %v1355 = vpop.f32.mrb[0].mxu0
        %v1356 = vadd.f32 0.0, %v1355
        %v1357 = vpop.f32.mrb[0].mxu0
        %1358 = vmatprep.mubr.f32.mxu0 0.0
        %1359 = vmatmul.mubr.f32.gmra.mrb[0].mxu0 %v1279
        %v1360 = vpop.f32.mrb[0].mxu0
        %v1361 = vadd.f32 0.0, %v1360
        %v1362 = vpop.f32.mrb[0].mxu0
        %1363 = vdwg.mxu0
        %v1364 = vld [vmem:[%s10] sm:$0xff]
        %s1365 = scalar_lea.vmem %s4, 32
        %v1366 = vld [vmem:[%s1365] sm:$0xff]
        %v1367 = vld [vmem:[%s1365 + $0x8] sm:$0xff]
        %v1368 = vld [vmem:[%s1365 + $0x10] sm:$0xff]
        %v1369 = vld [vmem:[%s1365 + $0x18] sm:$0xff]
        %s1370 = scalar_lea.vmem %s5, 1
        %v1371 = vld [vmem:[%s1370] sm:$0x1]
        %v1373 = vlaneseq
        %v1374 = vshrl.u32 %v1373, 7
        %v1375 = vsub.s32 0, %v1374
        %v1376 = vrot.slane %v1371, %v1375
        %1378 = vmatprep.subr.mxu0 0.0
        %1379 = vmatpush1.msra.mxu0 %v1366
        %1380 = vmatprep.subr.mxu0 0.0
        %1381 = vmatpush1.msra.mxu0 %v1367
        %1382 = vmatprep.subr.mxu0 0.0
        %1383 = vmatpush1.msra.mxu0 %v1368
        %1384 = vmatprep.subr.mxu0 0.0
        %1385 = vmatpush1.msra.mxu0 %v1369
        %1386 = vmatprep.subr.mxu0 0.0
        %1387 = vmatpush1.msra.mxu0 0.0
        %1388 = vmatprep.subr.mxu0 0.0
        %1389 = vmatpush1.msra.mxu0 0.0
        %1390 = vmatprep.subr.mxu0 0.0
        %1391 = vmatpush1.msra.mxu0 0.0
        %1392 = vmatprep.subr.mxu0 0.0
        %1393 = vmatpush1.msra.mxu0 0.0
        %1394 = vmatprep.subr.mxu0 0.0
        %1395 = vmatpush1.msra.mxu0 0.0
        %1396 = vmatprep.subr.mxu0 0.0
        %1397 = vmatpush1.msra.mxu0 0.0
        %1398 = vmatprep.subr.mxu0 0.0
        %1399 = vmatpush1.msra.mxu0 0.0
        %1400 = vmatprep.subr.mxu0 0.0
        %1401 = vmatpush1.msra.mxu0 0.0
        %1402 = vmatprep.subr.mxu0 0.0
        %1403 = vmatpush1.msra.mxu0 0.0
        %1404 = vmatprep.subr.mxu0 0.0
        %1405 = vmatpush1.msra.mxu0 0.0
        %1406 = vmatprep.subr.mxu0 0.0
        %1407 = vmatpush1.msra.mxu0 0.0
        %1408 = vmatprep.subr.mxu0 0.0
        %1409 = vmatpush1.msra.mxu0 0.0
        %1410 = vmatprep.subr.mxu0 0.0
        %1411 = vmatpush1.msra.mxu0 0.0
        %1412 = vmatprep.subr.mxu0 0.0
        %1413 = vmatpush1.msra.mxu0 0.0
        %1414 = vmatprep.subr.mxu0 0.0
        %1415 = vmatpush1.msra.mxu0 0.0
        %1416 = vmatprep.subr.mxu0 0.0
        %1417 = vmatpush1.msra.mxu0 0.0
        %1418 = vmatprep.subr.mxu0 0.0
        %1419 = vmatpush1.msra.mxu0 0.0
        %1420 = vmatprep.subr.mxu0 0.0
        %1421 = vmatpush1.msra.mxu0 0.0
        %1422 = vmatprep.subr.mxu0 0.0
        %1423 = vmatpush1.msra.mxu0 0.0
        %1424 = vmatprep.subr.mxu0 0.0
        %1425 = vmatpush1.msra.mxu0 0.0
        %1426 = vmatprep.subr.mxu0 0.0
        %1427 = vmatpush1.msra.mxu0 0.0
        %1428 = vmatprep.subr.mxu0 0.0
        %1429 = vmatpush1.msra.mxu0 0.0
        %1430 = vmatprep.subr.mxu0 0.0
        %1431 = vmatpush1.msra.mxu0 0.0
        %1432 = vmatprep.subr.mxu0 0.0
        %1433 = vmatpush1.msra.mxu0 0.0
        %1434 = vmatprep.subr.mxu0 0.0
        %1435 = vmatpush1.msra.mxu0 0.0
        %1436 = vmatprep.subr.mxu0 0.0
        %1437 = vmatpush1.msra.mxu0 0.0
        %1438 = vmatprep.subr.mxu0 0.0
        %1439 = vmatpush1.msra.mxu0 0.0
        %1440 = vmatprep.subr.mxu0 0.0
        %1441 = vmatpush1.msra.mxu0 0.0
        %1442 = vmatprep.mubr.f32.mxu0 0.0
        %1443 = vmatmul.mubr.f32.gmra.mrb[0].mxu0 %v865
        %v1444 = vpop.f32.mrb[0].mxu0
        %v1445 = vadd.f32 %v1376, %v1444
        %v1446 = vpop.f32.mrb[0].mxu0
        %1447 = vmatprep.mubr.f32.mxu0 0.0
        %1448 = vmatmul.mubr.f32.gmra.mrb[0].mxu0 %v868
        %v1449 = vpop.f32.mrb[0].mxu0
        %v1450 = vadd.f32 %v1376, %v1449
        %v1451 = vpop.f32.mrb[0].mxu0
        %1452 = vmatprep.mubr.f32.mxu0 0.0
        %1453 = vmatmul.mubr.f32.gmra.mrb[0].mxu0 %v871
        %v1454 = vpop.f32.mrb[0].mxu0
        %v1455 = vadd.f32 %v1376, %v1454
        %v1456 = vpop.f32.mrb[0].mxu0
        %1457 = vdwg.mxu0
        %s1458 = scalar_lea.vmem %s6, 32
        %v1459 = vld [vmem:[%s1458] sm:$0xff]
        %v1460 = vld [vmem:[%s1458 + $0x8] sm:$0xff]
        %v1461 = vld [vmem:[%s1458 + $0x10] sm:$0xff]
        %v1462 = vld [vmem:[%s1458 + $0x18] sm:$0xff]
        %s1463 = scalar_lea.vmem %s7, 1
        %v1464 = vld [vmem:[%s1463] sm:$0x1]
        %v1466 = vlaneseq
        %v1467 = vshrl.u32 %v1466, 7
        %v1468 = vsub.s32 0, %v1467
        %v1469 = vrot.slane %v1464, %v1468
        %1471 = vmatprep.subr.mxu0 0.0
        %1472 = vmatpush1.msra.mxu0 %v1459
        %1473 = vmatprep.subr.mxu0 0.0
        %1474 = vmatpush1.msra.mxu0 %v1460
        %1475 = vmatprep.subr.mxu0 0.0
        %1476 = vmatpush1.msra.mxu0 %v1461
        %1477 = vmatprep.subr.mxu0 0.0
        %1478 = vmatpush1.msra.mxu0 %v1462
        %1479 = vmatprep.subr.mxu0 0.0
        %1480 = vmatpush1.msra.mxu0 0.0
        %1481 = vmatprep.subr.mxu0 0.0
        %1482 = vmatpush1.msra.mxu0 0.0
        %1483 = vmatprep.subr.mxu0 0.0
        %1484 = vmatpush1.msra.mxu0 0.0
        %1485 = vmatprep.subr.mxu0 0.0
        %1486 = vmatpush1.msra.mxu0 0.0
        %1487 = vmatprep.subr.mxu0 0.0
        %1488 = vmatpush1.msra.mxu0 0.0
        %1489 = vmatprep.subr.mxu0 0.0
        %1490 = vmatpush1.msra.mxu0 0.0
        %1491 = vmatprep.subr.mxu0 0.0
        %1492 = vmatpush1.msra.mxu0 0.0
        %1493 = vmatprep.subr.mxu0 0.0
        %1494 = vmatpush1.msra.mxu0 0.0
        %1495 = vmatprep.subr.mxu0 0.0
        %1496 = vmatpush1.msra.mxu0 0.0
        %1497 = vmatprep.subr.mxu0 0.0
        %1498 = vmatpush1.msra.mxu0 0.0
        %1499 = vmatprep.subr.mxu0 0.0
        %1500 = vmatpush1.msra.mxu0 0.0
        %1501 = vmatprep.subr.mxu0 0.0
        %1502 = vmatpush1.msra.mxu0 0.0
        %1503 = vmatprep.subr.mxu0 0.0
        %1504 = vmatpush1.msra.mxu0 0.0
        %1505 = vmatprep.subr.mxu0 0.0
        %1506 = vmatpush1.msra.mxu0 0.0
        %1507 = vmatprep.subr.mxu0 0.0
        %1508 = vmatpush1.msra.mxu0 0.0
        %1509 = vmatprep.subr.mxu0 0.0
        %1510 = vmatpush1.msra.mxu0 0.0
        %1511 = vmatprep.subr.mxu0 0.0
        %1512 = vmatpush1.msra.mxu0 0.0
        %1513 = vmatprep.subr.mxu0 0.0
        %1514 = vmatpush1.msra.mxu0 0.0
        %1515 = vmatprep.subr.mxu0 0.0
        %1516 = vmatpush1.msra.mxu0 0.0
        %1517 = vmatprep.subr.mxu0 0.0
        %1518 = vmatpush1.msra.mxu0 0.0
        %1519 = vmatprep.subr.mxu0 0.0
        %1520 = vmatpush1.msra.mxu0 0.0
        %1521 = vmatprep.subr.mxu0 0.0
        %1522 = vmatpush1.msra.mxu0 0.0
        %1523 = vmatprep.subr.mxu0 0.0
        %1524 = vmatpush1.msra.mxu0 0.0
        %1525 = vmatprep.subr.mxu0 0.0
        %1526 = vmatpush1.msra.mxu0 0.0
        %1527 = vmatprep.subr.mxu0 0.0
        %1528 = vmatpush1.msra.mxu0 0.0
        %1529 = vmatprep.subr.mxu0 0.0
        %1530 = vmatpush1.msra.mxu0 0.0
        %1531 = vmatprep.subr.mxu0 0.0
        %1532 = vmatpush1.msra.mxu0 0.0
        %1533 = vmatprep.subr.mxu0 0.0
        %1534 = vmatpush1.msra.mxu0 0.0
        %1535 = vmatprep.mubr.f32.mxu0 0.0
        %1536 = vmatmul.mubr.f32.gmra.mrb[0].mxu0 %v865
        %v1537 = vpop.f32.mrb[0].mxu0
        %v1538 = vadd.f32 %v1469, %v1537
        %v1539 = vpop.f32.mrb[0].mxu0
        %1540 = vmatprep.mubr.f32.mxu0 0.0
        %1541 = vmatmul.mubr.f32.gmra.mrb[0].mxu0 %v868
        %v1542 = vpop.f32.mrb[0].mxu0
        %v1543 = vadd.f32 %v1469, %v1542
        %v1544 = vpop.f32.mrb[0].mxu0
        %1545 = vmatprep.mubr.f32.mxu0 0.0
        %1546 = vmatmul.mubr.f32.gmra.mrb[0].mxu0 %v871
        %v1547 = vpop.f32.mrb[0].mxu0
        %v1548 = vadd.f32 %v1469, %v1547
        %v1549 = vpop.f32.mrb[0].mxu0
        %1550 = vdwg.mxu0
        %s1551 = scalar_lea.vmem %s8, 32
        %v1552 = vld [vmem:[%s1551] sm:$0xff]
        %v1553 = vld [vmem:[%s1551 + $0x8] sm:$0xff]
        %v1554 = vld [vmem:[%s1551 + $0x10] sm:$0xff]
        %v1555 = vld [vmem:[%s1551 + $0x18] sm:$0xff]
        %s1556 = scalar_lea.vmem %s9, 1
        %v1557 = vld [vmem:[%s1556] sm:$0x1]
        %v1559 = vlaneseq
        %v1560 = vshrl.u32 %v1559, 7
        %v1561 = vsub.s32 0, %v1560
        %v1562 = vrot.slane %v1557, %v1561
        %1564 = vmatprep.subr.mxu0 0.0
        %1565 = vmatpush1.msra.mxu0 %v1552
        %1566 = vmatprep.subr.mxu0 0.0
        %1567 = vmatpush1.msra.mxu0 %v1553
        %1568 = vmatprep.subr.mxu0 0.0
        %1569 = vmatpush1.msra.mxu0 %v1554
        %1570 = vmatprep.subr.mxu0 0.0
        %1571 = vmatpush1.msra.mxu0 %v1555
        %1572 = vmatprep.subr.mxu0 0.0
        %1573 = vmatpush1.msra.mxu0 0.0
        %1574 = vmatprep.subr.mxu0 0.0
        %1575 = vmatpush1.msra.mxu0 0.0
        %1576 = vmatprep.subr.mxu0 0.0
        %1577 = vmatpush1.msra.mxu0 0.0
        %1578 = vmatprep.subr.mxu0 0.0
        %1579 = vmatpush1.msra.mxu0 0.0
        %1580 = vmatprep.subr.mxu0 0.0
        %1581 = vmatpush1.msra.mxu0 0.0
        %1582 = vmatprep.subr.mxu0 0.0
        %1583 = vmatpush1.msra.mxu0 0.0
        %1584 = vmatprep.subr.mxu0 0.0
        %1585 = vmatpush1.msra.mxu0 0.0
        %1586 = vmatprep.subr.mxu0 0.0
        %1587 = vmatpush1.msra.mxu0 0.0
        %1588 = vmatprep.subr.mxu0 0.0
        %1589 = vmatpush1.msra.mxu0 0.0
        %1590 = vmatprep.subr.mxu0 0.0
        %1591 = vmatpush1.msra.mxu0 0.0
        %1592 = vmatprep.subr.mxu0 0.0
        %1593 = vmatpush1.msra.mxu0 0.0
        %1594 = vmatprep.subr.mxu0 0.0
        %1595 = vmatpush1.msra.mxu0 0.0
        %1596 = vmatprep.subr.mxu0 0.0
        %1597 = vmatpush1.msra.mxu0 0.0
        %1598 = vmatprep.subr.mxu0 0.0
        %1599 = vmatpush1.msra.mxu0 0.0
        %1600 = vmatprep.subr.mxu0 0.0
        %1601 = vmatpush1.msra.mxu0 0.0
        %1602 = vmatprep.subr.mxu0 0.0
        %1603 = vmatpush1.msra.mxu0 0.0
        %1604 = vmatprep.subr.mxu0 0.0
        %1605 = vmatpush1.msra.mxu0 0.0
        %1606 = vmatprep.subr.mxu0 0.0
        %1607 = vmatpush1.msra.mxu0 0.0
        %1608 = vmatprep.subr.mxu0 0.0
        %1609 = vmatpush1.msra.mxu0 0.0
        %1610 = vmatprep.subr.mxu0 0.0
        %1611 = vmatpush1.msra.mxu0 0.0
        %1612 = vmatprep.subr.mxu0 0.0
        %1613 = vmatpush1.msra.mxu0 0.0
        %1614 = vmatprep.subr.mxu0 0.0
        %1615 = vmatpush1.msra.mxu0 0.0
        %1616 = vmatprep.subr.mxu0 0.0
        %1617 = vmatpush1.msra.mxu0 0.0
        %1618 = vmatprep.subr.mxu0 0.0
        %1619 = vmatpush1.msra.mxu0 0.0
        %1620 = vmatprep.subr.mxu0 0.0
        %1621 = vmatpush1.msra.mxu0 0.0
        %1622 = vmatprep.subr.mxu0 0.0
        %1623 = vmatpush1.msra.mxu0 0.0
        %1624 = vmatprep.subr.mxu0 0.0
        %1625 = vmatpush1.msra.mxu0 0.0
        %1626 = vmatprep.subr.mxu0 0.0
        %1627 = vmatpush1.msra.mxu0 0.0
        %1628 = vmatprep.mubr.f32.mxu0 0.0
        %1629 = vmatmul.mubr.f32.gmra.mrb[0].mxu0 %v865
        %v1630 = vpop.f32.mrb[0].mxu0
        %v1631 = vadd.f32 %v1562, %v1630
        %v1632 = vpop.f32.mrb[0].mxu0
        %1633 = vmatprep.mubr.f32.mxu0 0.0
        %1634 = vmatmul.mubr.f32.gmra.mrb[0].mxu0 %v868
        %v1635 = vpop.f32.mrb[0].mxu0
        %v1636 = vadd.f32 %v1562, %v1635
        %v1637 = vpop.f32.mrb[0].mxu0
        %1638 = vmatprep.mubr.f32.mxu0 0.0
        %1639 = vmatmul.mubr.f32.gmra.mrb[0].mxu0 %v871
        %v1640 = vpop.f32.mrb[0].mxu0
        %v1641 = vadd.f32 %v1562, %v1640
        %v1642 = vpop.f32.mrb[0].mxu0
        %1643 = vdwg.mxu0
        %v1645 = vsel %vm1135, %v1445, 0
        %v1648 = vsel %vm1135, %v1450, 0
        %v1651 = vsel %vm1135, %v1455, 0
        %v1654 = vsel %vm1135, %v1538, 0
        %v1657 = vsel %vm1135, %v1543, 0
        %v1660 = vsel %vm1135, %v1548, 0
        %1662 = vmatprep.subr.mxu0 0.0
        %1663 = vmatpush1.xpose.msra.mxu0 %v1654
        %1664 = vmatprep.subr.mxu0 0.0
        %1665 = vmatpush1.xpose.msra.mxu0 %v1657
        %1666 = vmatprep.subr.mxu0 0.0
        %1667 = vmatpush1.xpose.msra.mxu0 %v1660
        %1668 = vmatprep.subr.mxu0 0.0
        %1669 = vmatpush1.xpose.msra.mxu0 0.0
        %1670 = vmatprep.subr.mxu0 0.0
        %1671 = vmatpush1.xpose.msra.mxu0 0.0
        %1672 = vmatprep.subr.mxu0 0.0
        %1673 = vmatpush1.xpose.msra.mxu0 0.0
        %1674 = vmatprep.subr.mxu0 0.0
        %1675 = vmatpush1.xpose.msra.mxu0 0.0
        %1676 = vmatprep.subr.mxu0 0.0
        %1677 = vmatpush1.xpose.msra.mxu0 0.0
        %1678 = vmatprep.subr.mxu0 0.0
        %1679 = vmatpush1.xpose.msra.mxu0 0.0
        %1680 = vmatprep.subr.mxu0 0.0
        %1681 = vmatpush1.xpose.msra.mxu0 0.0
        %1682 = vmatprep.subr.mxu0 0.0
        %1683 = vmatpush1.xpose.msra.mxu0 0.0
        %1684 = vmatprep.subr.mxu0 0.0
        %1685 = vmatpush1.xpose.msra.mxu0 0.0
        %1686 = vmatprep.subr.mxu0 0.0
        %1687 = vmatpush1.xpose.msra.mxu0 0.0
        %1688 = vmatprep.subr.mxu0 0.0
        %1689 = vmatpush1.xpose.msra.mxu0 0.0
        %1690 = vmatprep.subr.mxu0 0.0
        %1691 = vmatpush1.xpose.msra.mxu0 0.0
        %1692 = vmatprep.subr.mxu0 0.0
        %1693 = vmatpush1.xpose.msra.mxu0 0.0
        %1694 = vmatprep.subr.mxu0 0.0
        %1695 = vmatpush1.xpose.msra.mxu0 0.0
        %1696 = vmatprep.subr.mxu0 0.0
        %1697 = vmatpush1.xpose.msra.mxu0 0.0
        %1698 = vmatprep.subr.mxu0 0.0
        %1699 = vmatpush1.xpose.msra.mxu0 0.0
        %1700 = vmatprep.subr.mxu0 0.0
        %1701 = vmatpush1.xpose.msra.mxu0 0.0
        %1702 = vmatprep.subr.mxu0 0.0
        %1703 = vmatpush1.xpose.msra.mxu0 0.0
        %1704 = vmatprep.subr.mxu0 0.0
        %1705 = vmatpush1.xpose.msra.mxu0 0.0
        %1706 = vmatprep.subr.mxu0 0.0
        %1707 = vmatpush1.xpose.msra.mxu0 0.0
        %1708 = vmatprep.subr.mxu0 0.0
        %1709 = vmatpush1.xpose.msra.mxu0 0.0
        %1710 = vmatprep.subr.mxu0 0.0
        %1711 = vmatpush1.xpose.msra.mxu0 0.0
        %1712 = vmatprep.subr.mxu0 0.0
        %1713 = vmatpush1.xpose.msra.mxu0 0.0
        %1714 = vmatprep.subr.mxu0 0.0
        %1715 = vmatpush1.xpose.msra.mxu0 0.0
        %1716 = vmatprep.subr.mxu0 0.0
        %1717 = vmatpush1.xpose.msra.mxu0 0.0
        %1718 = vmatprep.subr.mxu0 0.0
        %1719 = vmatpush1.xpose.msra.mxu0 0.0
        %1720 = vmatprep.subr.mxu0 0.0
        %1721 = vmatpush1.xpose.msra.mxu0 0.0
        %1722 = vmatprep.subr.mxu0 0.0
        %1723 = vmatpush1.xpose.msra.mxu0 0.0
        %1724 = vmatprep.subr.mxu0 0.0
        %1725 = vmatpush1.xpose.msra.mxu0 0.0
        %1726 = vmatprep.mubr.f32.mxu0 0.0
        %1727 = vmatmul.mubr.f32.gmra.mrb[0].mxu0 %v1645
        %v1728 = vpop.f32.mrb[0].mxu0
        %v1729 = vadd.f32 0.0, %v1728
        %v1730 = vpop.f32.mrb[0].mxu0
        %1731 = vmatprep.mubr.f32.mxu0 0.0
        %1732 = vmatmul.mubr.f32.gmra.mrb[0].mxu0 %v1648
        %v1733 = vpop.f32.mrb[0].mxu0
        %v1734 = vadd.f32 0.0, %v1733
        %v1735 = vpop.f32.mrb[0].mxu0
        %1736 = vmatprep.mubr.f32.mxu0 0.0
        %1737 = vmatmul.mubr.f32.gmra.mrb[0].mxu0 %v1651
        %v1738 = vpop.f32.mrb[0].mxu0
        %v1739 = vadd.f32 0.0, %v1738
        %v1740 = vpop.f32.mrb[0].mxu0
        %1741 = vdwg.mxu0
        %v1742 = vmul.f32 %v1729, 0.35355338
        %v1743 = vmul.f32 %v1734, 0.35355338
        %v1744 = vmul.f32 %v1739, 0.35355338
        %v1745 = vsel %vm1237, %v1742, -inf
        %1746 = vmax.xlane.f32.xlu0 %v1745
        %v1747 = vpop.xlane.xlu0 %1746
        %v1748 = vsel %vm1237, %v1743, -inf
        %1749 = vmax.xlane.f32.xlu0 %v1748
        %v1750 = vpop.xlane.xlu0 %1749
        %v1751 = vsel %vm1244, %v1744, -inf
        %1752 = vmax.xlane.f32.xlu0 %v1751
        %v1753 = vpop.xlane.xlu0 %1752
        %v1754 = vsub.f32 %v1742, %v1747
        %v1755 = vsub.f32 %v1743, %v1750
        %v1756 = vsub.f32 %v1744, %v1753
        %v1757 = vmul.f32 %v1754, 1.442695
        %v1758 = vpow.pop %v1757
        %v1759 = vmul.f32 %v1755, 1.442695
        %v1760 = vpow.pop %v1759
        %v1761 = vmul.f32 %v1756, 1.442695
        %v1762 = vpow.pop %v1761
        %v1763 = vsel %vm1237, %v1758, 0.0
        %1764 = vadd.xlane.f32.xlu0 %v1763
        %v1765 = vpop.xlane.xlu0 %1764
        %v1766 = vsel %vm1237, %v1760, 0.0
        %1767 = vadd.xlane.f32.xlu0 %v1766
        %v1768 = vpop.xlane.xlu0 %1767
        %v1769 = vsel %vm1244, %v1762, 0.0
        %1770 = vadd.xlane.f32.xlu0 %v1769
        %v1771 = vpop.xlane.xlu0 %1770
        %v1772 = vrcp.pop %v1765
        %v1773 = vrcp.pop %v1768
        %v1774 = vrcp.pop %v1771
        %v1775 = vmul.f32 %v1758, %v1772
        %v1776 = vmul.f32 %v1760, %v1773
        %v1777 = vmul.f32 %v1762, %v1774
        %v1779 = vsel %vm1237, %v1775, 0
        %v1782 = vsel %vm1237, %v1776, 0
        %v1785 = vsel %vm1237, %v1777, 0
        %v1788 = vsel %vm762, %v1641, 0
        %1790 = vmatprep.subr.mxu0 0.0
        %1791 = vmatpush1.msra.mxu0 %v1631
        %1792 = vmatprep.subr.mxu0 0.0
        %1793 = vmatpush1.msra.mxu0 %v1636
        %1794 = vmatprep.subr.mxu0 0.0
        %1795 = vmatpush1.msra.mxu0 %v1788
        %1796 = vmatprep.subr.mxu0 0.0
        %1797 = vmatpush1.msra.mxu0 0.0
        %1798 = vmatprep.subr.mxu0 0.0
        %1799 = vmatpush1.msra.mxu0 0.0
        %1800 = vmatprep.subr.mxu0 0.0
        %1801 = vmatpush1.msra.mxu0 0.0
        %1802 = vmatprep.subr.mxu0 0.0
        %1803 = vmatpush1.msra.mxu0 0.0
        %1804 = vmatprep.subr.mxu0 0.0
        %1805 = vmatpush1.msra.mxu0 0.0
        %1806 = vmatprep.subr.mxu0 0.0
        %1807 = vmatpush1.msra.mxu0 0.0
        %1808 = vmatprep.subr.mxu0 0.0
        %1809 = vmatpush1.msra.mxu0 0.0
        %1810 = vmatprep.subr.mxu0 0.0
        %1811 = vmatpush1.msra.mxu0 0.0
        %1812 = vmatprep.subr.mxu0 0.0
        %1813 = vmatpush1.msra.mxu0 0.0
        %1814 = vmatprep.subr.mxu0 0.0
        %1815 = vmatpush1.msra.mxu0 0.0
        %1816 = vmatprep.subr.mxu0 0.0
        %1817 = vmatpush1.msra.mxu0 0.0
        %1818 = vmatprep.subr.mxu0 0.0
        %1819 = vmatpush1.msra.mxu0 0.0
        %1820 = vmatprep.subr.mxu0 0.0
        %1821 = vmatpush1.msra.mxu0 0.0
        %1822 = vmatprep.subr.mxu0 0.0
        %1823 = vmatpush1.msra.mxu0 0.0
        %1824 = vmatprep.subr.mxu0 0.0
        %1825 = vmatpush1.msra.mxu0 0.0
        %1826 = vmatprep.subr.mxu0 0.0
        %1827 = vmatpush1.msra.mxu0 0.0
        %1828 = vmatprep.subr.mxu0 0.0
        %1829 = vmatpush1.msra.mxu0 0.0
        %1830 = vmatprep.subr.mxu0 0.0
        %1831 = vmatpush1.msra.mxu0 0.0
        %1832 = vmatprep.subr.mxu0 0.0
        %1833 = vmatpush1.msra.mxu0 0.0
        %1834 = vmatprep.subr.mxu0 0.0
        %1835 = vmatpush1.msra.mxu0 0.0
        %1836 = vmatprep.subr.mxu0 0.0
        %1837 = vmatpush1.msra.mxu0 0.0
        %1838 = vmatprep.subr.mxu0 0.0
        %1839 = vmatpush1.msra.mxu0 0.0
        %1840 = vmatprep.subr.mxu0 0.0
        %1841 = vmatpush1.msra.mxu0 0.0
        %1842 = vmatprep.subr.mxu0 0.0
        %1843 = vmatpush1.msra.mxu0 0.0
        %1844 = vmatprep.subr.mxu0 0.0
        %1845 = vmatpush1.msra.mxu0 0.0
        %1846 = vmatprep.subr.mxu0 0.0
        %1847 = vmatpush1.msra.mxu0 0.0
        %1848 = vmatprep.subr.mxu0 0.0
        %1849 = vmatpush1.msra.mxu0 0.0
        %1850 = vmatprep.subr.mxu0 0.0
        %1851 = vmatpush1.msra.mxu0 0.0
        %1852 = vmatprep.subr.mxu0 0.0
        %1853 = vmatpush1.msra.mxu0 0.0
        %1854 = vmatprep.mubr.f32.mxu0 0.0
        %1855 = vmatmul.mubr.f32.gmra.mrb[0].mxu0 %v1779
        %v1856 = vpop.f32.mrb[0].mxu0
        %v1857 = vadd.f32 0.0, %v1856
        %v1858 = vpop.f32.mrb[0].mxu0
        %1859 = vmatprep.mubr.f32.mxu0 0.0
        %1860 = vmatmul.mubr.f32.gmra.mrb[0].mxu0 %v1782
        %v1861 = vpop.f32.mrb[0].mxu0
        %v1862 = vadd.f32 0.0, %v1861
        %v1863 = vpop.f32.mrb[0].mxu0
        %1864 = vmatprep.mubr.f32.mxu0 0.0
        %1865 = vmatmul.mubr.f32.gmra.mrb[0].mxu0 %v1785
        %v1866 = vpop.f32.mrb[0].mxu0
        %v1867 = vadd.f32 0.0, %v1866
        %v1868 = vpop.f32.mrb[0].mxu0
        %1869 = vdwg.mxu0
        %s1870 = scalar_lea.vmem %s10, 8
        %v1871 = vld [vmem:[%s1870] sm:$0xff]
        %v1873 = vsel %vm1135, %v1857, 0
        %v1876 = vsel %vm1135, %v1862, 0
        %v1879 = vsel %vm1135, %v1867, 0
        %1881 = vmatprep.subr.mxu0 0.0
        %1882 = vmatpush1.msra.mxu0 %v1871
        %1883 = vmatprep.subr.mxu0 0.0
        %1884 = vmatpush1.msra.mxu0 0.0
        %1885 = vmatprep.subr.mxu0 0.0
        %1886 = vmatpush1.msra.mxu0 0.0
        %1887 = vmatprep.subr.mxu0 0.0
        %1888 = vmatpush1.msra.mxu0 0.0
        %1889 = vmatprep.subr.mxu0 0.0
        %1890 = vmatpush1.msra.mxu0 0.0
        %1891 = vmatprep.subr.mxu0 0.0
        %1892 = vmatpush1.msra.mxu0 0.0
        %1893 = vmatprep.subr.mxu0 0.0
        %1894 = vmatpush1.msra.mxu0 0.0
        %1895 = vmatprep.subr.mxu0 0.0
        %1896 = vmatpush1.msra.mxu0 0.0
        %1897 = vmatprep.subr.mxu0 0.0
        %1898 = vmatpush1.msra.mxu0 0.0
        %1899 = vmatprep.subr.mxu0 0.0
        %1900 = vmatpush1.msra.mxu0 0.0
        %1901 = vmatprep.subr.mxu0 0.0
        %1902 = vmatpush1.msra.mxu0 0.0
        %1903 = vmatprep.subr.mxu0 0.0
        %1904 = vmatpush1.msra.mxu0 0.0
        %1905 = vmatprep.subr.mxu0 0.0
        %1906 = vmatpush1.msra.mxu0 0.0
        %1907 = vmatprep.subr.mxu0 0.0
        %1908 = vmatpush1.msra.mxu0 0.0
        %1909 = vmatprep.subr.mxu0 0.0
        %1910 = vmatpush1.msra.mxu0 0.0
        %1911 = vmatprep.subr.mxu0 0.0
        %1912 = vmatpush1.msra.mxu0 0.0
        %1913 = vmatprep.subr.mxu0 0.0
        %1914 = vmatpush1.msra.mxu0 0.0
        %1915 = vmatprep.subr.mxu0 0.0
        %1916 = vmatpush1.msra.mxu0 0.0
        %1917 = vmatprep.subr.mxu0 0.0
        %1918 = vmatpush1.msra.mxu0 0.0
        %1919 = vmatprep.subr.mxu0 0.0
        %1920 = vmatpush1.msra.mxu0 0.0
        %1921 = vmatprep.subr.mxu0 0.0
        %1922 = vmatpush1.msra.mxu0 0.0
        %1923 = vmatprep.subr.mxu0 0.0
        %1924 = vmatpush1.msra.mxu0 0.0
        %1925 = vmatprep.subr.mxu0 0.0
        %1926 = vmatpush1.msra.mxu0 0.0
        %1927 = vmatprep.subr.mxu0 0.0
        %1928 = vmatpush1.msra.mxu0 0.0
        %1929 = vmatprep.subr.mxu0 0.0
        %1930 = vmatpush1.msra.mxu0 0.0
        %1931 = vmatprep.subr.mxu0 0.0
        %1932 = vmatpush1.msra.mxu0 0.0
        %1933 = vmatprep.subr.mxu0 0.0
        %1934 = vmatpush1.msra.mxu0 0.0
        %1935 = vmatprep.subr.mxu0 0.0
        %1936 = vmatpush1.msra.mxu0 0.0
        %1937 = vmatprep.subr.mxu0 0.0
        %1938 = vmatpush1.msra.mxu0 0.0
        %1939 = vmatprep.subr.mxu0 0.0
        %1940 = vmatpush1.msra.mxu0 0.0
        %1941 = vmatprep.subr.mxu0 0.0
        %1942 = vmatpush1.msra.mxu0 0.0
        %1943 = vmatprep.subr.mxu0 0.0
        %1944 = vmatpush1.msra.mxu0 0.0
        %1945 = vmatprep.mubr.f32.mxu0 0.0
        %1946 = vmatmul.mubr.f32.gmra.mrb[0].mxu0 %v1873
        %v1947 = vpop.f32.mrb[0].mxu0
        %v1948 = vadd.f32 0.0, %v1947
        %v1949 = vpop.f32.mrb[0].mxu0
        %1950 = vmatprep.mubr.f32.mxu0 0.0
        %1951 = vmatmul.mubr.f32.gmra.mrb[0].mxu0 %v1876
        %v1952 = vpop.f32.mrb[0].mxu0
        %v1953 = vadd.f32 0.0, %v1952
        %v1954 = vpop.f32.mrb[0].mxu0
        %1955 = vmatprep.mubr.f32.mxu0 0.0
        %1956 = vmatmul.mubr.f32.gmra.mrb[0].mxu0 %v1879
        %v1957 = vpop.f32.mrb[0].mxu0
        %v1958 = vadd.f32 0.0, %v1957
        %v1959 = vpop.f32.mrb[0].mxu0
        %1960 = vdwg.mxu0
        %v1962 = vsel %vm1135, %v1351, 0
        %v1965 = vsel %vm1135, %v1356, 0
        %v1968 = vsel %vm1135, %v1361, 0
        %1970 = vmatprep.subr.mxu0 0.0
        %1971 = vmatpush1.msra.mxu0 %v1364
        %1972 = vmatprep.subr.mxu0 0.0
        %1973 = vmatpush1.msra.mxu0 0.0
        %1974 = vmatprep.subr.mxu0 0.0
        %1975 = vmatpush1.msra.mxu0 0.0
        %1976 = vmatprep.subr.mxu0 0.0
        %1977 = vmatpush1.msra.mxu0 0.0
        %1978 = vmatprep.subr.mxu0 0.0
        %1979 = vmatpush1.msra.mxu0 0.0
        %1980 = vmatprep.subr.mxu0 0.0
        %1981 = vmatpush1.msra.mxu0 0.0
        %1982 = vmatprep.subr.mxu0 0.0
        %1983 = vmatpush1.msra.mxu0 0.0
        %1984 = vmatprep.subr.mxu0 0.0
        %1985 = vmatpush1.msra.mxu0 0.0
        %1986 = vmatprep.subr.mxu0 0.0
        %1987 = vmatpush1.msra.mxu0 0.0
        %1988 = vmatprep.subr.mxu0 0.0
        %1989 = vmatpush1.msra.mxu0 0.0
        %1990 = vmatprep.subr.mxu0 0.0
        %1991 = vmatpush1.msra.mxu0 0.0
        %1992 = vmatprep.subr.mxu0 0.0
        %1993 = vmatpush1.msra.mxu0 0.0
        %1994 = vmatprep.subr.mxu0 0.0
        %1995 = vmatpush1.msra.mxu0 0.0
        %1996 = vmatprep.subr.mxu0 0.0
        %1997 = vmatpush1.msra.mxu0 0.0
        %1998 = vmatprep.subr.mxu0 0.0
        %1999 = vmatpush1.msra.mxu0 0.0
        %2000 = vmatprep.subr.mxu0 0.0
        %2001 = vmatpush1.msra.mxu0 0.0
        %2002 = vmatprep.subr.mxu0 0.0
        %2003 = vmatpush1.msra.mxu0 0.0
        %2004 = vmatprep.subr.mxu0 0.0
        %2005 = vmatpush1.msra.mxu0 0.0
        %2006 = vmatprep.subr.mxu0 0.0
        %2007 = vmatpush1.msra.mxu0 0.0
        %2008 = vmatprep.subr.mxu0 0.0
        %2009 = vmatpush1.msra.mxu0 0.0
        %2010 = vmatprep.subr.mxu0 0.0
        %2011 = vmatpush1.msra.mxu0 0.0
        %2012 = vmatprep.subr.mxu0 0.0
        %2013 = vmatpush1.msra.mxu0 0.0
        %2014 = vmatprep.subr.mxu0 0.0
        %2015 = vmatpush1.msra.mxu0 0.0
        %2016 = vmatprep.subr.mxu0 0.0
        %2017 = vmatpush1.msra.mxu0 0.0
        %2018 = vmatprep.subr.mxu0 0.0
        %2019 = vmatpush1.msra.mxu0 0.0
        %2020 = vmatprep.subr.mxu0 0.0
        %2021 = vmatpush1.msra.mxu0 0.0
        %2022 = vmatprep.subr.mxu0 0.0
        %2023 = vmatpush1.msra.mxu0 0.0
        %2024 = vmatprep.subr.mxu0 0.0
        %2025 = vmatpush1.msra.mxu0 0.0
        %2026 = vmatprep.subr.mxu0 0.0
        %2027 = vmatpush1.msra.mxu0 0.0
        %2028 = vmatprep.subr.mxu0 0.0
        %2029 = vmatpush1.msra.mxu0 0.0
        %2030 = vmatprep.subr.mxu0 0.0
        %2031 = vmatpush1.msra.mxu0 0.0
        %2032 = vmatprep.subr.mxu0 0.0
        %2033 = vmatpush1.msra.mxu0 0.0
        %2034 = vmatprep.mubr.f32.mxu0 0.0
        %2035 = vmatmul.mubr.f32.gmra.mrb[0].mxu0 %v1962
        %v2036 = vpop.f32.mrb[0].mxu0
        %v2037 = vadd.f32 %v1948, %v2036
        %v2038 = vpop.f32.mrb[0].mxu0
        %2039 = vmatprep.mubr.f32.mxu0 0.0
        %2040 = vmatmul.mubr.f32.gmra.mrb[0].mxu0 %v1965
        %v2041 = vpop.f32.mrb[0].mxu0
        %v2042 = vadd.f32 %v1953, %v2041
        %v2043 = vpop.f32.mrb[0].mxu0
        %2044 = vmatprep.mubr.f32.mxu0 0.0
        %2045 = vmatmul.mubr.f32.gmra.mrb[0].mxu0 %v1968
        %v2046 = vpop.f32.mrb[0].mxu0
        %v2047 = vadd.f32 %v1958, %v2046
        %v2048 = vpop.f32.mrb[0].mxu0
        %2049 = vdwg.mxu0
        %s2050 = scalar_lea.vmem %s4, 64
        %v2051 = vld [vmem:[%s2050] sm:$0xff]
        %v2052 = vld [vmem:[%s2050 + $0x8] sm:$0xff]
        %v2053 = vld [vmem:[%s2050 + $0x10] sm:$0xff]
        %v2054 = vld [vmem:[%s2050 + $0x18] sm:$0xff]
        %s2055 = scalar_lea.vmem %s5, 2
        %v2056 = vld [vmem:[%s2055] sm:$0x1]
        %v2058 = vlaneseq
        %v2059 = vshrl.u32 %v2058, 7
        %v2060 = vsub.s32 0, %v2059
        %v2061 = vrot.slane %v2056, %v2060
        %2063 = vmatprep.subr.mxu0 0.0
        %2064 = vmatpush1.msra.mxu0 %v2051
        %2065 = vmatprep.subr.mxu0 0.0
        %2066 = vmatpush1.msra.mxu0 %v2052
        %2067 = vmatprep.subr.mxu0 0.0
        %2068 = vmatpush1.msra.mxu0 %v2053
        %2069 = vmatprep.subr.mxu0 0.0
        %2070 = vmatpush1.msra.mxu0 %v2054
        %2071 = vmatprep.subr.mxu0 0.0
        %2072 = vmatpush1.msra.mxu0 0.0
        %2073 = vmatprep.subr.mxu0 0.0
        %2074 = vmatpush1.msra.mxu0 0.0
        %2075 = vmatprep.subr.mxu0 0.0
        %2076 = vmatpush1.msra.mxu0 0.0
        %2077 = vmatprep.subr.mxu0 0.0
        %2078 = vmatpush1.msra.mxu0 0.0
        %2079 = vmatprep.subr.mxu0 0.0
        %2080 = vmatpush1.msra.mxu0 0.0
        %2081 = vmatprep.subr.mxu0 0.0
        %2082 = vmatpush1.msra.mxu0 0.0
        %2083 = vmatprep.subr.mxu0 0.0
        %2084 = vmatpush1.msra.mxu0 0.0
        %2085 = vmatprep.subr.mxu0 0.0
        %2086 = vmatpush1.msra.mxu0 0.0
        %2087 = vmatprep.subr.mxu0 0.0
        %2088 = vmatpush1.msra.mxu0 0.0
        %2089 = vmatprep.subr.mxu0 0.0
        %2090 = vmatpush1.msra.mxu0 0.0
        %2091 = vmatprep.subr.mxu0 0.0
        %2092 = vmatpush1.msra.mxu0 0.0
        %2093 = vmatprep.subr.mxu0 0.0
        %2094 = vmatpush1.msra.mxu0 0.0
        %2095 = vmatprep.subr.mxu0 0.0
        %2096 = vmatpush1.msra.mxu0 0.0
        %2097 = vmatprep.subr.mxu0 0.0
        %2098 = vmatpush1.msra.mxu0 0.0
        %2099 = vmatprep.subr.mxu0 0.0
        %2100 = vmatpush1.msra.mxu0 0.0
        %2101 = vmatprep.subr.mxu0 0.0
        %2102 = vmatpush1.msra.mxu0 0.0
        %2103 = vmatprep.subr.mxu0 0.0
        %2104 = vmatpush1.msra.mxu0 0.0
        %2105 = vmatprep.subr.mxu0 0.0
        %2106 = vmatpush1.msra.mxu0 0.0
        %2107 = vmatprep.subr.mxu0 0.0
        %2108 = vmatpush1.msra.mxu0 0.0
        %2109 = vmatprep.subr.mxu0 0.0
        %2110 = vmatpush1.msra.mxu0 0.0
        %2111 = vmatprep.subr.mxu0 0.0
        %2112 = vmatpush1.msra.mxu0 0.0
        %2113 = vmatprep.subr.mxu0 0.0
        %2114 = vmatpush1.msra.mxu0 0.0
        %2115 = vmatprep.subr.mxu0 0.0
        %2116 = vmatpush1.msra.mxu0 0.0
        %2117 = vmatprep.subr.mxu0 0.0
        %2118 = vmatpush1.msra.mxu0 0.0
        %2119 = vmatprep.subr.mxu0 0.0
        %2120 = vmatpush1.msra.mxu0 0.0
        %2121 = vmatprep.subr.mxu0 0.0
        %2122 = vmatpush1.msra.mxu0 0.0
        %2123 = vmatprep.subr.mxu0 0.0
        %2124 = vmatpush1.msra.mxu0 0.0
        %2125 = vmatprep.subr.mxu0 0.0
        %2126 = vmatpush1.msra.mxu0 0.0
        %2127 = vmatprep.mubr.f32.mxu0 0.0
        %2128 = vmatmul.mubr.f32.gmra.mrb[0].mxu0 %v865
        %v2129 = vpop.f32.mrb[0].mxu0
        %v2130 = vadd.f32 %v2061, %v2129
        %v2131 = vpop.f32.mrb[0].mxu0
        %2132 = vmatprep.mubr.f32.mxu0 0.0
        %2133 = vmatmul.mubr.f32.gmra.mrb[0].mxu0 %v868
        %v2134 = vpop.f32.mrb[0].mxu0
        %v2135 = vadd.f32 %v2061, %v2134
        %v2136 = vpop.f32.mrb[0].mxu0
        %2137 = vmatprep.mubr.f32.mxu0 0.0
        %2138 = vmatmul.mubr.f32.gmra.mrb[0].mxu0 %v871
        %v2139 = vpop.f32.mrb[0].mxu0
        %v2140 = vadd.f32 %v2061, %v2139
        %v2141 = vpop.f32.mrb[0].mxu0
        %2142 = vdwg.mxu0
        %s2143 = scalar_lea.vmem %s6, 64
        %v2144 = vld [vmem:[%s2143] sm:$0xff]
        %v2145 = vld [vmem:[%s2143 + $0x8] sm:$0xff]
        %v2146 = vld [vmem:[%s2143 + $0x10] sm:$0xff]
        %v2147 = vld [vmem:[%s2143 + $0x18] sm:$0xff]
        %s2148 = scalar_lea.vmem %s7, 2
        %v2149 = vld [vmem:[%s2148] sm:$0x1]
        %v2151 = vlaneseq
        %v2152 = vshrl.u32 %v2151, 7
        %v2153 = vsub.s32 0, %v2152
        %v2154 = vrot.slane %v2149, %v2153
        %2156 = vmatprep.subr.mxu0 0.0
        %2157 = vmatpush1.msra.mxu0 %v2144
        %2158 = vmatprep.subr.mxu0 0.0
        %2159 = vmatpush1.msra.mxu0 %v2145
        %2160 = vmatprep.subr.mxu0 0.0
        %2161 = vmatpush1.msra.mxu0 %v2146
        %2162 = vmatprep.subr.mxu0 0.0
        %2163 = vmatpush1.msra.mxu0 %v2147
        %2164 = vmatprep.subr.mxu0 0.0
        %2165 = vmatpush1.msra.mxu0 0.0
        %2166 = vmatprep.subr.mxu0 0.0
        %2167 = vmatpush1.msra.mxu0 0.0
        %2168 = vmatprep.subr.mxu0 0.0
        %2169 = vmatpush1.msra.mxu0 0.0
        %2170 = vmatprep.subr.mxu0 0.0
        %2171 = vmatpush1.msra.mxu0 0.0
        %2172 = vmatprep.subr.mxu0 0.0
        %2173 = vmatpush1.msra.mxu0 0.0
        %2174 = vmatprep.subr.mxu0 0.0
        %2175 = vmatpush1.msra.mxu0 0.0
        %2176 = vmatprep.subr.mxu0 0.0
        %2177 = vmatpush1.msra.mxu0 0.0
        %2178 = vmatprep.subr.mxu0 0.0
        %2179 = vmatpush1.msra.mxu0 0.0
        %2180 = vmatprep.subr.mxu0 0.0
        %2181 = vmatpush1.msra.mxu0 0.0
        %2182 = vmatprep.subr.mxu0 0.0
        %2183 = vmatpush1.msra.mxu0 0.0
        %2184 = vmatprep.subr.mxu0 0.0
        %2185 = vmatpush1.msra.mxu0 0.0
        %2186 = vmatprep.subr.mxu0 0.0
        %2187 = vmatpush1.msra.mxu0 0.0
        %2188 = vmatprep.subr.mxu0 0.0
        %2189 = vmatpush1.msra.mxu0 0.0
        %2190 = vmatprep.subr.mxu0 0.0
        %2191 = vmatpush1.msra.mxu0 0.0
        %2192 = vmatprep.subr.mxu0 0.0
        %2193 = vmatpush1.msra.mxu0 0.0
        %2194 = vmatprep.subr.mxu0 0.0
        %2195 = vmatpush1.msra.mxu0 0.0
        %2196 = vmatprep.subr.mxu0 0.0
        %2197 = vmatpush1.msra.mxu0 0.0
        %2198 = vmatprep.subr.mxu0 0.0
        %2199 = vmatpush1.msra.mxu0 0.0
        %2200 = vmatprep.subr.mxu0 0.0
        %2201 = vmatpush1.msra.mxu0 0.0
        %2202 = vmatprep.subr.mxu0 0.0
        %2203 = vmatpush1.msra.mxu0 0.0
        %2204 = vmatprep.subr.mxu0 0.0
        %2205 = vmatpush1.msra.mxu0 0.0
        %2206 = vmatprep.subr.mxu0 0.0
        %2207 = vmatpush1.msra.mxu0 0.0
        %2208 = vmatprep.subr.mxu0 0.0
        %2209 = vmatpush1.msra.mxu0 0.0
        %2210 = vmatprep.subr.mxu0 0.0
        %2211 = vmatpush1.msra.mxu0 0.0
        %2212 = vmatprep.subr.mxu0 0.0
        %2213 = vmatpush1.msra.mxu0 0.0
        %2214 = vmatprep.subr.mxu0 0.0
        %2215 = vmatpush1.msra.mxu0 0.0
        %2216 = vmatprep.subr.mxu0 0.0
        %2217 = vmatpush1.msra.mxu0 0.0
        %2218 = vmatprep.subr.mxu0 0.0
        %2219 = vmatpush1.msra.mxu0 0.0
        %2220 = vmatprep.mubr.f32.mxu0 0.0
        %2221 = vmatmul.mubr.f32.gmra.mrb[0].mxu0 %v865
        %v2222 = vpop.f32.mrb[0].mxu0
        %v2223 = vadd.f32 %v2154, %v2222
        %v2224 = vpop.f32.mrb[0].mxu0
        %2225 = vmatprep.mubr.f32.mxu0 0.0
        %2226 = vmatmul.mubr.f32.gmra.mrb[0].mxu0 %v868
        %v2227 = vpop.f32.mrb[0].mxu0
        %v2228 = vadd.f32 %v2154, %v2227
        %v2229 = vpop.f32.mrb[0].mxu0
        %2230 = vmatprep.mubr.f32.mxu0 0.0
        %2231 = vmatmul.mubr.f32.gmra.mrb[0].mxu0 %v871
        %v2232 = vpop.f32.mrb[0].mxu0
        %v2233 = vadd.f32 %v2154, %v2232
        %v2234 = vpop.f32.mrb[0].mxu0
        %2235 = vdwg.mxu0
        %s2236 = scalar_lea.vmem %s8, 64
        %v2237 = vld [vmem:[%s2236] sm:$0xff]
        %v2238 = vld [vmem:[%s2236 + $0x8] sm:$0xff]
        %v2239 = vld [vmem:[%s2236 + $0x10] sm:$0xff]
        %v2240 = vld [vmem:[%s2236 + $0x18] sm:$0xff]
        %s2241 = scalar_lea.vmem %s9, 2
        %v2242 = vld [vmem:[%s2241] sm:$0x1]
        %v2244 = vlaneseq
        %v2245 = vshrl.u32 %v2244, 7
        %v2246 = vsub.s32 0, %v2245
        %v2247 = vrot.slane %v2242, %v2246
        %2249 = vmatprep.subr.mxu0 0.0
        %2250 = vmatpush1.msra.mxu0 %v2237
        %2251 = vmatprep.subr.mxu0 0.0
        %2252 = vmatpush1.msra.mxu0 %v2238
        %2253 = vmatprep.subr.mxu0 0.0
        %2254 = vmatpush1.msra.mxu0 %v2239
        %2255 = vmatprep.subr.mxu0 0.0
        %2256 = vmatpush1.msra.mxu0 %v2240
        %2257 = vmatprep.subr.mxu0 0.0
        %2258 = vmatpush1.msra.mxu0 0.0
        %2259 = vmatprep.subr.mxu0 0.0
        %2260 = vmatpush1.msra.mxu0 0.0
        %2261 = vmatprep.subr.mxu0 0.0
        %2262 = vmatpush1.msra.mxu0 0.0
        %2263 = vmatprep.subr.mxu0 0.0
        %2264 = vmatpush1.msra.mxu0 0.0
        %2265 = vmatprep.subr.mxu0 0.0
        %2266 = vmatpush1.msra.mxu0 0.0
        %2267 = vmatprep.subr.mxu0 0.0
        %2268 = vmatpush1.msra.mxu0 0.0
        %2269 = vmatprep.subr.mxu0 0.0
        %2270 = vmatpush1.msra.mxu0 0.0
        %2271 = vmatprep.subr.mxu0 0.0
        %2272 = vmatpush1.msra.mxu0 0.0
        %2273 = vmatprep.subr.mxu0 0.0
        %2274 = vmatpush1.msra.mxu0 0.0
        %2275 = vmatprep.subr.mxu0 0.0
        %2276 = vmatpush1.msra.mxu0 0.0
        %2277 = vmatprep.subr.mxu0 0.0
        %2278 = vmatpush1.msra.mxu0 0.0
        %2279 = vmatprep.subr.mxu0 0.0
        %2280 = vmatpush1.msra.mxu0 0.0
        %2281 = vmatprep.subr.mxu0 0.0
        %2282 = vmatpush1.msra.mxu0 0.0
        %2283 = vmatprep.subr.mxu0 0.0
        %2284 = vmatpush1.msra.mxu0 0.0
        %2285 = vmatprep.subr.mxu0 0.0
        %2286 = vmatpush1.msra.mxu0 0.0
        %2287 = vmatprep.subr.mxu0 0.0
        %2288 = vmatpush1.msra.mxu0 0.0
        %2289 = vmatprep.subr.mxu0 0.0
        %2290 = vmatpush1.msra.mxu0 0.0
        %2291 = vmatprep.subr.mxu0 0.0
        %2292 = vmatpush1.msra.mxu0 0.0
        %2293 = vmatprep.subr.mxu0 0.0
        %2294 = vmatpush1.msra.mxu0 0.0
        %2295 = vmatprep.subr.mxu0 0.0
        %2296 = vmatpush1.msra.mxu0 0.0
        %2297 = vmatprep.subr.mxu0 0.0
        %2298 = vmatpush1.msra.mxu0 0.0
        %2299 = vmatprep.subr.mxu0 0.0
        %2300 = vmatpush1.msra.mxu0 0.0
        %2301 = vmatprep.subr.mxu0 0.0
        %2302 = vmatpush1.msra.mxu0 0.0
        %2303 = vmatprep.subr.mxu0 0.0
        %2304 = vmatpush1.msra.mxu0 0.0
        %2305 = vmatprep.subr.mxu0 0.0
        %2306 = vmatpush1.msra.mxu0 0.0
        %2307 = vmatprep.subr.mxu0 0.0
        %2308 = vmatpush1.msra.mxu0 0.0
        %2309 = vmatprep.subr.mxu0 0.0
        %2310 = vmatpush1.msra.mxu0 0.0
        %2311 = vmatprep.subr.mxu0 0.0
        %2312 = vmatpush1.msra.mxu0 0.0
        %2313 = vmatprep.mubr.f32.mxu0 0.0
        %2314 = vmatmul.mubr.f32.gmra.mrb[0].mxu0 %v865
        %v2315 = vpop.f32.mrb[0].mxu0
        %v2316 = vadd.f32 %v2247, %v2315
        %v2317 = vpop.f32.mrb[0].mxu0
        %2318 = vmatprep.mubr.f32.mxu0 0.0
        %2319 = vmatmul.mubr.f32.gmra.mrb[0].mxu0 %v868
        %v2320 = vpop.f32.mrb[0].mxu0
        %v2321 = vadd.f32 %v2247, %v2320
        %v2322 = vpop.f32.mrb[0].mxu0
        %2323 = vmatprep.mubr.f32.mxu0 0.0
        %2324 = vmatmul.mubr.f32.gmra.mrb[0].mxu0 %v871
        %v2325 = vpop.f32.mrb[0].mxu0
        %v2326 = vadd.f32 %v2247, %v2325
        %v2327 = vpop.f32.mrb[0].mxu0
        %2328 = vdwg.mxu0
        %v2330 = vsel %vm1135, %v2130, 0
        %v2333 = vsel %vm1135, %v2135, 0
        %v2336 = vsel %vm1135, %v2140, 0
        %v2339 = vsel %vm1135, %v2223, 0
        %v2342 = vsel %vm1135, %v2228, 0
        %v2345 = vsel %vm1135, %v2233, 0
        %2347 = vmatprep.subr.mxu0 0.0
        %2348 = vmatpush1.xpose.msra.mxu0 %v2339
        %2349 = vmatprep.subr.mxu0 0.0
        %2350 = vmatpush1.xpose.msra.mxu0 %v2342
        %2351 = vmatprep.subr.mxu0 0.0
        %2352 = vmatpush1.xpose.msra.mxu0 %v2345
        %2353 = vmatprep.subr.mxu0 0.0
        %2354 = vmatpush1.xpose.msra.mxu0 0.0
        %2355 = vmatprep.subr.mxu0 0.0
        %2356 = vmatpush1.xpose.msra.mxu0 0.0
        %2357 = vmatprep.subr.mxu0 0.0
        %2358 = vmatpush1.xpose.msra.mxu0 0.0
        %2359 = vmatprep.subr.mxu0 0.0
        %2360 = vmatpush1.xpose.msra.mxu0 0.0
        %2361 = vmatprep.subr.mxu0 0.0
        %2362 = vmatpush1.xpose.msra.mxu0 0.0
        %2363 = vmatprep.subr.mxu0 0.0
        %2364 = vmatpush1.xpose.msra.mxu0 0.0
        %2365 = vmatprep.subr.mxu0 0.0
        %2366 = vmatpush1.xpose.msra.mxu0 0.0
        %2367 = vmatprep.subr.mxu0 0.0
        %2368 = vmatpush1.xpose.msra.mxu0 0.0
        %2369 = vmatprep.subr.mxu0 0.0
        %2370 = vmatpush1.xpose.msra.mxu0 0.0
        %2371 = vmatprep.subr.mxu0 0.0
        %2372 = vmatpush1.xpose.msra.mxu0 0.0
        %2373 = vmatprep.subr.mxu0 0.0
        %2374 = vmatpush1.xpose.msra.mxu0 0.0
        %2375 = vmatprep.subr.mxu0 0.0
        %2376 = vmatpush1.xpose.msra.mxu0 0.0
        %2377 = vmatprep.subr.mxu0 0.0
        %2378 = vmatpush1.xpose.msra.mxu0 0.0
        %2379 = vmatprep.subr.mxu0 0.0
        %2380 = vmatpush1.xpose.msra.mxu0 0.0
        %2381 = vmatprep.subr.mxu0 0.0
        %2382 = vmatpush1.xpose.msra.mxu0 0.0
        %2383 = vmatprep.subr.mxu0 0.0
        %2384 = vmatpush1.xpose.msra.mxu0 0.0
        %2385 = vmatprep.subr.mxu0 0.0
        %2386 = vmatpush1.xpose.msra.mxu0 0.0
        %2387 = vmatprep.subr.mxu0 0.0
        %2388 = vmatpush1.xpose.msra.mxu0 0.0
        %2389 = vmatprep.subr.mxu0 0.0
        %2390 = vmatpush1.xpose.msra.mxu0 0.0
        %2391 = vmatprep.subr.mxu0 0.0
        %2392 = vmatpush1.xpose.msra.mxu0 0.0
        %2393 = vmatprep.subr.mxu0 0.0
        %2394 = vmatpush1.xpose.msra.mxu0 0.0
        %2395 = vmatprep.subr.mxu0 0.0
        %2396 = vmatpush1.xpose.msra.mxu0 0.0
        %2397 = vmatprep.subr.mxu0 0.0
        %2398 = vmatpush1.xpose.msra.mxu0 0.0
        %2399 = vmatprep.subr.mxu0 0.0
        %2400 = vmatpush1.xpose.msra.mxu0 0.0
        %2401 = vmatprep.subr.mxu0 0.0
        %2402 = vmatpush1.xpose.msra.mxu0 0.0
        %2403 = vmatprep.subr.mxu0 0.0
        %2404 = vmatpush1.xpose.msra.mxu0 0.0
        %2405 = vmatprep.subr.mxu0 0.0
        %2406 = vmatpush1.xpose.msra.mxu0 0.0
        %2407 = vmatprep.subr.mxu0 0.0
        %2408 = vmatpush1.xpose.msra.mxu0 0.0
        %2409 = vmatprep.subr.mxu0 0.0
        %2410 = vmatpush1.xpose.msra.mxu0 0.0
        %2411 = vmatprep.mubr.f32.mxu0 0.0
        %2412 = vmatmul.mubr.f32.gmra.mrb[0].mxu0 %v2330
        %v2413 = vpop.f32.mrb[0].mxu0
        %v2414 = vadd.f32 0.0, %v2413
        %v2415 = vpop.f32.mrb[0].mxu0
        %2416 = vmatprep.mubr.f32.mxu0 0.0
        %2417 = vmatmul.mubr.f32.gmra.mrb[0].mxu0 %v2333
        %v2418 = vpop.f32.mrb[0].mxu0
        %v2419 = vadd.f32 0.0, %v2418
        %v2420 = vpop.f32.mrb[0].mxu0
        %2421 = vmatprep.mubr.f32.mxu0 0.0
        %2422 = vmatmul.mubr.f32.gmra.mrb[0].mxu0 %v2336
        %v2423 = vpop.f32.mrb[0].mxu0
        %v2424 = vadd.f32 0.0, %v2423
        %v2425 = vpop.f32.mrb[0].mxu0
        %2426 = vdwg.mxu0
        %v2427 = vmul.f32 %v2414, 0.35355338
        %v2428 = vmul.f32 %v2419, 0.35355338
        %v2429 = vmul.f32 %v2424, 0.35355338
        %v2430 = vsel %vm1237, %v2427, -inf
        %2431 = vmax.xlane.f32.xlu0 %v2430
        %v2432 = vpop.xlane.xlu0 %2431
        %v2433 = vsel %vm1237, %v2428, -inf
        %2434 = vmax.xlane.f32.xlu0 %v2433
        %v2435 = vpop.xlane.xlu0 %2434
        %v2436 = vsel %vm1244, %v2429, -inf
        %2437 = vmax.xlane.f32.xlu0 %v2436
        %v2438 = vpop.xlane.xlu0 %2437
        %v2439 = vsub.f32 %v2427, %v2432
        %v2440 = vsub.f32 %v2428, %v2435
        %v2441 = vsub.f32 %v2429, %v2438
        %v2442 = vmul.f32 %v2439, 1.442695
        %v2443 = vpow.pop %v2442
        %v2444 = vmul.f32 %v2440, 1.442695
        %v2445 = vpow.pop %v2444
        %v2446 = vmul.f32 %v2441, 1.442695
        %v2447 = vpow.pop %v2446
        %v2448 = vsel %vm1237, %v2443, 0.0
        %2449 = vadd.xlane.f32.xlu0 %v2448
        %v2450 = vpop.xlane.xlu0 %2449
        %v2451 = vsel %vm1237, %v2445, 0.0
        %2452 = vadd.xlane.f32.xlu0 %v2451
        %v2453 = vpop.xlane.xlu0 %2452
        %v2454 = vsel %vm1244, %v2447, 0.0
        %2455 = vadd.xlane.f32.xlu0 %v2454
        %v2456 = vpop.xlane.xlu0 %2455
        %v2457 = vrcp.pop %v2450
        %v2458 = vrcp.pop %v2453
        %v2459 = vrcp.pop %v2456
        %v2460 = vmul.f32 %v2443, %v2457
        %v2461 = vmul.f32 %v2445, %v2458
        %v2462 = vmul.f32 %v2447, %v2459
        %v2464 = vsel %vm1237, %v2460, 0
        %v2467 = vsel %vm1237, %v2461, 0
        %v2470 = vsel %vm1237, %v2462, 0
        %v2473 = vsel %vm762, %v2326, 0
        %2475 = vmatprep.subr.mxu0 0.0
        %2476 = vmatpush1.msra.mxu0 %v2316
        %2477 = vmatprep.subr.mxu0 0.0
        %2478 = vmatpush1.msra.mxu0 %v2321
        %2479 = vmatprep.subr.mxu0 0.0
        %2480 = vmatpush1.msra.mxu0 %v2473
        %2481 = vmatprep.subr.mxu0 0.0
        %2482 = vmatpush1.msra.mxu0 0.0
        %2483 = vmatprep.subr.mxu0 0.0
        %2484 = vmatpush1.msra.mxu0 0.0
        %2485 = vmatprep.subr.mxu0 0.0
        %2486 = vmatpush1.msra.mxu0 0.0
        %2487 = vmatprep.subr.mxu0 0.0
        %2488 = vmatpush1.msra.mxu0 0.0
        %2489 = vmatprep.subr.mxu0 0.0
        %2490 = vmatpush1.msra.mxu0 0.0
        %2491 = vmatprep.subr.mxu0 0.0
        %2492 = vmatpush1.msra.mxu0 0.0
        %2493 = vmatprep.subr.mxu0 0.0
        %2494 = vmatpush1.msra.mxu0 0.0
        %2495 = vmatprep.subr.mxu0 0.0
        %2496 = vmatpush1.msra.mxu0 0.0
        %2497 = vmatprep.subr.mxu0 0.0
        %2498 = vmatpush1.msra.mxu0 0.0
        %2499 = vmatprep.subr.mxu0 0.0
        %2500 = vmatpush1.msra.mxu0 0.0
        %2501 = vmatprep.subr.mxu0 0.0
        %2502 = vmatpush1.msra.mxu0 0.0
        %2503 = vmatprep.subr.mxu0 0.0
        %2504 = vmatpush1.msra.mxu0 0.0
        %2505 = vmatprep.subr.mxu0 0.0
        %2506 = vmatpush1.msra.mxu0 0.0
        %2507 = vmatprep.subr.mxu0 0.0
        %2508 = vmatpush1.msra.mxu0 0.0
        %2509 = vmatprep.subr.mxu0 0.0
        %2510 = vmatpush1.msra.mxu0 0.0
        %2511 = vmatprep.subr.mxu0 0.0
        %2512 = vmatpush1.msra.mxu0 0.0
        %2513 = vmatprep.subr.mxu0 0.0
        %2514 = vmatpush1.msra.mxu0 0.0
        %2515 = vmatprep.subr.mxu0 0.0
        %2516 = vmatpush1.msra.mxu0 0.0
        %2517 = vmatprep.subr.mxu0 0.0
        %2518 = vmatpush1.msra.mxu0 0.0
        %2519 = vmatprep.subr.mxu0 0.0
        %2520 = vmatpush1.msra.mxu0 0.0
        %2521 = vmatprep.subr.mxu0 0.0
        %2522 = vmatpush1.msra.mxu0 0.0
        %2523 = vmatprep.subr.mxu0 0.0
        %2524 = vmatpush1.msra.mxu0 0.0
        %2525 = vmatprep.subr.mxu0 0.0
        %2526 = vmatpush1.msra.mxu0 0.0
        %2527 = vmatprep.subr.mxu0 0.0
        %2528 = vmatpush1.msra.mxu0 0.0
        %2529 = vmatprep.subr.mxu0 0.0
        %2530 = vmatpush1.msra.mxu0 0.0
        %2531 = vmatprep.subr.mxu0 0.0
        %2532 = vmatpush1.msra.mxu0 0.0
        %2533 = vmatprep.subr.mxu0 0.0
        %2534 = vmatpush1.msra.mxu0 0.0
        %2535 = vmatprep.subr.mxu0 0.0
        %2536 = vmatpush1.msra.mxu0 0.0
        %2537 = vmatprep.subr.mxu0 0.0
        %2538 = vmatpush1.msra.mxu0 0.0
        %2539 = vmatprep.mubr.f32.mxu0 0.0
        %2540 = vmatmul.mubr.f32.gmra.mrb[0].mxu0 %v2464
        %v2541 = vpop.f32.mrb[0].mxu0
        %v2542 = vadd.f32 0.0, %v2541
        %v2543 = vpop.f32.mrb[0].mxu0
        %2544 = vmatprep.mubr.f32.mxu0 0.0
        %2545 = vmatmul.mubr.f32.gmra.mrb[0].mxu0 %v2467
        %v2546 = vpop.f32.mrb[0].mxu0
        %v2547 = vadd.f32 0.0, %v2546
        %v2548 = vpop.f32.mrb[0].mxu0
        %2549 = vmatprep.mubr.f32.mxu0 0.0
        %2550 = vmatmul.mubr.f32.gmra.mrb[0].mxu0 %v2470
        %v2551 = vpop.f32.mrb[0].mxu0
        %v2552 = vadd.f32 0.0, %v2551
        %v2553 = vpop.f32.mrb[0].mxu0
        %2554 = vdwg.mxu0
        %s2555 = scalar_lea.vmem %s10, 16
        %v2556 = vld [vmem:[%s2555] sm:$0xff]
        %v2558 = vsel %vm1135, %v2542, 0
        %v2561 = vsel %vm1135, %v2547, 0
        %v2564 = vsel %vm1135, %v2552, 0
        %2566 = vmatprep.subr.mxu0 0.0
        %2567 = vmatpush1.msra.mxu0 %v2556
        %2568 = vmatprep.subr.mxu0 0.0
        %2569 = vmatpush1.msra.mxu0 0.0
        %2570 = vmatprep.subr.mxu0 0.0
        %2571 = vmatpush1.msra.mxu0 0.0
        %2572 = vmatprep.subr.mxu0 0.0
        %2573 = vmatpush1.msra.mxu0 0.0
        %2574 = vmatprep.subr.mxu0 0.0
        %2575 = vmatpush1.msra.mxu0 0.0
        %2576 = vmatprep.subr.mxu0 0.0
        %2577 = vmatpush1.msra.mxu0 0.0
        %2578 = vmatprep.subr.mxu0 0.0
        %2579 = vmatpush1.msra.mxu0 0.0
        %2580 = vmatprep.subr.mxu0 0.0
        %2581 = vmatpush1.msra.mxu0 0.0
        %2582 = vmatprep.subr.mxu0 0.0
        %2583 = vmatpush1.msra.mxu0 0.0
        %2584 = vmatprep.subr.mxu0 0.0
        %2585 = vmatpush1.msra.mxu0 0.0
        %2586 = vmatprep.subr.mxu0 0.0
        %2587 = vmatpush1.msra.mxu0 0.0
        %2588 = vmatprep.subr.mxu0 0.0
        %2589 = vmatpush1.msra.mxu0 0.0
        %2590 = vmatprep.subr.mxu0 0.0
        %2591 = vmatpush1.msra.mxu0 0.0
        %2592 = vmatprep.subr.mxu0 0.0
        %2593 = vmatpush1.msra.mxu0 0.0
        %2594 = vmatprep.subr.mxu0 0.0
        %2595 = vmatpush1.msra.mxu0 0.0
        %2596 = vmatprep.subr.mxu0 0.0
        %2597 = vmatpush1.msra.mxu0 0.0
        %2598 = vmatprep.subr.mxu0 0.0
        %2599 = vmatpush1.msra.mxu0 0.0
        %2600 = vmatprep.subr.mxu0 0.0
        %2601 = vmatpush1.msra.mxu0 0.0
        %2602 = vmatprep.subr.mxu0 0.0
        %2603 = vmatpush1.msra.mxu0 0.0
        %2604 = vmatprep.subr.mxu0 0.0
        %2605 = vmatpush1.msra.mxu0 0.0
        %2606 = vmatprep.subr.mxu0 0.0
        %2607 = vmatpush1.msra.mxu0 0.0
        %2608 = vmatprep.subr.mxu0 0.0
        %2609 = vmatpush1.msra.mxu0 0.0
        %2610 = vmatprep.subr.mxu0 0.0
        %2611 = vmatpush1.msra.mxu0 0.0
        %2612 = vmatprep.subr.mxu0 0.0
        %2613 = vmatpush1.msra.mxu0 0.0
        %2614 = vmatprep.subr.mxu0 0.0
        %2615 = vmatpush1.msra.mxu0 0.0
        %2616 = vmatprep.subr.mxu0 0.0
        %2617 = vmatpush1.msra.mxu0 0.0
        %2618 = vmatprep.subr.mxu0 0.0
        %2619 = vmatpush1.msra.mxu0 0.0
        %2620 = vmatprep.subr.mxu0 0.0
        %2621 = vmatpush1.msra.mxu0 0.0
        %2622 = vmatprep.subr.mxu0 0.0
        %2623 = vmatpush1.msra.mxu0 0.0
        %2624 = vmatprep.subr.mxu0 0.0
        %2625 = vmatpush1.msra.mxu0 0.0
        %2626 = vmatprep.subr.mxu0 0.0
        %2627 = vmatpush1.msra.mxu0 0.0
        %2628 = vmatprep.subr.mxu0 0.0
        %2629 = vmatpush1.msra.mxu0 0.0
        %2630 = vmatprep.mubr.f32.mxu0 0.0
        %2631 = vmatmul.mubr.f32.gmra.mrb[0].mxu0 %v2558
        %v2632 = vpop.f32.mrb[0].mxu0
        %v2633 = vadd.f32 0.0, %v2632
        %v2634 = vpop.f32.mrb[0].mxu0
        %2635 = vmatprep.mubr.f32.mxu0 0.0
        %2636 = vmatmul.mubr.f32.gmra.mrb[0].mxu0 %v2561
        %v2637 = vpop.f32.mrb[0].mxu0
        %v2638 = vadd.f32 0.0, %v2637
        %v2639 = vpop.f32.mrb[0].mxu0
        %2640 = vmatprep.mubr.f32.mxu0 0.0
        %2641 = vmatmul.mubr.f32.gmra.mrb[0].mxu0 %v2564
        %v2642 = vpop.f32.mrb[0].mxu0
        %v2643 = vadd.f32 0.0, %v2642
        %v2644 = vpop.f32.mrb[0].mxu0
        %2645 = vdwg.mxu0
        %v2646 = vadd.f32 %v2037, %v2633
        %v2647 = vadd.f32 %v2042, %v2638
        %v2648 = vadd.f32 %v2047, %v2643
        %s2649 = scalar_lea.vmem %s4, 96
        %v2650 = vld [vmem:[%s2649] sm:$0xff]
        %v2651 = vld [vmem:[%s2649 + $0x8] sm:$0xff]
        %v2652 = vld [vmem:[%s2649 + $0x10] sm:$0xff]
        %v2653 = vld [vmem:[%s2649 + $0x18] sm:$0xff]
        %s2654 = scalar_lea.vmem %s5, 3
        %v2655 = vld [vmem:[%s2654] sm:$0x1]
        %v2657 = vlaneseq
        %v2658 = vshrl.u32 %v2657, 7
        %v2659 = vsub.s32 0, %v2658
        %v2660 = vrot.slane %v2655, %v2659
        %2662 = vmatprep.subr.mxu0 0.0
        %2663 = vmatpush1.msra.mxu0 %v2650
        %2664 = vmatprep.subr.mxu0 0.0
        %2665 = vmatpush1.msra.mxu0 %v2651
        %2666 = vmatprep.subr.mxu0 0.0
        %2667 = vmatpush1.msra.mxu0 %v2652
        %2668 = vmatprep.subr.mxu0 0.0
        %2669 = vmatpush1.msra.mxu0 %v2653
        %2670 = vmatprep.subr.mxu0 0.0
        %2671 = vmatpush1.msra.mxu0 0.0
        %2672 = vmatprep.subr.mxu0 0.0
        %2673 = vmatpush1.msra.mxu0 0.0
        %2674 = vmatprep.subr.mxu0 0.0
        %2675 = vmatpush1.msra.mxu0 0.0
        %2676 = vmatprep.subr.mxu0 0.0
        %2677 = vmatpush1.msra.mxu0 0.0
        %2678 = vmatprep.subr.mxu0 0.0
        %2679 = vmatpush1.msra.mxu0 0.0
        %2680 = vmatprep.subr.mxu0 0.0
        %2681 = vmatpush1.msra.mxu0 0.0
        %2682 = vmatprep.subr.mxu0 0.0
        %2683 = vmatpush1.msra.mxu0 0.0
        %2684 = vmatprep.subr.mxu0 0.0
        %2685 = vmatpush1.msra.mxu0 0.0
        %2686 = vmatprep.subr.mxu0 0.0
        %2687 = vmatpush1.msra.mxu0 0.0
        %2688 = vmatprep.subr.mxu0 0.0
        %2689 = vmatpush1.msra.mxu0 0.0
        %2690 = vmatprep.subr.mxu0 0.0
        %2691 = vmatpush1.msra.mxu0 0.0
        %2692 = vmatprep.subr.mxu0 0.0
        %2693 = vmatpush1.msra.mxu0 0.0
        %2694 = vmatprep.subr.mxu0 0.0
        %2695 = vmatpush1.msra.mxu0 0.0
        %2696 = vmatprep.subr.mxu0 0.0
        %2697 = vmatpush1.msra.mxu0 0.0
        %2698 = vmatprep.subr.mxu0 0.0
        %2699 = vmatpush1.msra.mxu0 0.0
        %2700 = vmatprep.subr.mxu0 0.0
        %2701 = vmatpush1.msra.mxu0 0.0
        %2702 = vmatprep.subr.mxu0 0.0
        %2703 = vmatpush1.msra.mxu0 0.0
        %2704 = vmatprep.subr.mxu0 0.0
        %2705 = vmatpush1.msra.mxu0 0.0
        %2706 = vmatprep.subr.mxu0 0.0
        %2707 = vmatpush1.msra.mxu0 0.0
        %2708 = vmatprep.subr.mxu0 0.0
        %2709 = vmatpush1.msra.mxu0 0.0
        %2710 = vmatprep.subr.mxu0 0.0
        %2711 = vmatpush1.msra.mxu0 0.0
        %2712 = vmatprep.subr.mxu0 0.0
        %2713 = vmatpush1.msra.mxu0 0.0
        %2714 = vmatprep.subr.mxu0 0.0
        %2715 = vmatpush1.msra.mxu0 0.0
        %2716 = vmatprep.subr.mxu0 0.0
        %2717 = vmatpush1.msra.mxu0 0.0
        %2718 = vmatprep.subr.mxu0 0.0
        %2719 = vmatpush1.msra.mxu0 0.0
        %2720 = vmatprep.subr.mxu0 0.0
        %2721 = vmatpush1.msra.mxu0 0.0
        %2722 = vmatprep.subr.mxu0 0.0
        %2723 = vmatpush1.msra.mxu0 0.0
        %2724 = vmatprep.subr.mxu0 0.0
        %2725 = vmatpush1.msra.mxu0 0.0
        %2726 = vmatprep.mubr.f32.mxu0 0.0
        %2727 = vmatmul.mubr.f32.gmra.mrb[0].mxu0 %v865
        %v2728 = vpop.f32.mrb[0].mxu0
        %v2729 = vadd.f32 %v2660, %v2728
        %v2730 = vpop.f32.mrb[0].mxu0
        %2731 = vmatprep.mubr.f32.mxu0 0.0
        %2732 = vmatmul.mubr.f32.gmra.mrb[0].mxu0 %v868
        %v2733 = vpop.f32.mrb[0].mxu0
        %v2734 = vadd.f32 %v2660, %v2733
        %v2735 = vpop.f32.mrb[0].mxu0
        %2736 = vmatprep.mubr.f32.mxu0 0.0
        %2737 = vmatmul.mubr.f32.gmra.mrb[0].mxu0 %v871
        %v2738 = vpop.f32.mrb[0].mxu0
        %v2739 = vadd.f32 %v2660, %v2738
        %v2740 = vpop.f32.mrb[0].mxu0
        %2741 = vdwg.mxu0
        %s2742 = scalar_lea.vmem %s6, 96
        %v2743 = vld [vmem:[%s2742] sm:$0xff]
        %v2744 = vld [vmem:[%s2742 + $0x8] sm:$0xff]
        %v2745 = vld [vmem:[%s2742 + $0x10] sm:$0xff]
        %v2746 = vld [vmem:[%s2742 + $0x18] sm:$0xff]
        %s2747 = scalar_lea.vmem %s7, 3
        %v2748 = vld [vmem:[%s2747] sm:$0x1]
        %v2750 = vlaneseq
        %v2751 = vshrl.u32 %v2750, 7
        %v2752 = vsub.s32 0, %v2751
        %v2753 = vrot.slane %v2748, %v2752
        %2755 = vmatprep.subr.mxu0 0.0
        %2756 = vmatpush1.msra.mxu0 %v2743
        %2757 = vmatprep.subr.mxu0 0.0
        %2758 = vmatpush1.msra.mxu0 %v2744
        %2759 = vmatprep.subr.mxu0 0.0
        %2760 = vmatpush1.msra.mxu0 %v2745
        %2761 = vmatprep.subr.mxu0 0.0
        %2762 = vmatpush1.msra.mxu0 %v2746
        %2763 = vmatprep.subr.mxu0 0.0
        %2764 = vmatpush1.msra.mxu0 0.0
        %2765 = vmatprep.subr.mxu0 0.0
        %2766 = vmatpush1.msra.mxu0 0.0
        %2767 = vmatprep.subr.mxu0 0.0
        %2768 = vmatpush1.msra.mxu0 0.0
        %2769 = vmatprep.subr.mxu0 0.0
        %2770 = vmatpush1.msra.mxu0 0.0
        %2771 = vmatprep.subr.mxu0 0.0
        %2772 = vmatpush1.msra.mxu0 0.0
        %2773 = vmatprep.subr.mxu0 0.0
        %2774 = vmatpush1.msra.mxu0 0.0
        %2775 = vmatprep.subr.mxu0 0.0
        %2776 = vmatpush1.msra.mxu0 0.0
        %2777 = vmatprep.subr.mxu0 0.0
        %2778 = vmatpush1.msra.mxu0 0.0
        %2779 = vmatprep.subr.mxu0 0.0
        %2780 = vmatpush1.msra.mxu0 0.0
        %2781 = vmatprep.subr.mxu0 0.0
        %2782 = vmatpush1.msra.mxu0 0.0
        %2783 = vmatprep.subr.mxu0 0.0
        %2784 = vmatpush1.msra.mxu0 0.0
        %2785 = vmatprep.subr.mxu0 0.0
        %2786 = vmatpush1.msra.mxu0 0.0
        %2787 = vmatprep.subr.mxu0 0.0
        %2788 = vmatpush1.msra.mxu0 0.0
        %2789 = vmatprep.subr.mxu0 0.0
        %2790 = vmatpush1.msra.mxu0 0.0
        %2791 = vmatprep.subr.mxu0 0.0
        %2792 = vmatpush1.msra.mxu0 0.0
        %2793 = vmatprep.subr.mxu0 0.0
        %2794 = vmatpush1.msra.mxu0 0.0
        %2795 = vmatprep.subr.mxu0 0.0
        %2796 = vmatpush1.msra.mxu0 0.0
        %2797 = vmatprep.subr.mxu0 0.0
        %2798 = vmatpush1.msra.mxu0 0.0
        %2799 = vmatprep.subr.mxu0 0.0
        %2800 = vmatpush1.msra.mxu0 0.0
        %2801 = vmatprep.subr.mxu0 0.0
        %2802 = vmatpush1.msra.mxu0 0.0
        %2803 = vmatprep.subr.mxu0 0.0
        %2804 = vmatpush1.msra.mxu0 0.0
        %2805 = vmatprep.subr.mxu0 0.0
        %2806 = vmatpush1.msra.mxu0 0.0
        %2807 = vmatprep.subr.mxu0 0.0
        %2808 = vmatpush1.msra.mxu0 0.0
        %2809 = vmatprep.subr.mxu0 0.0
        %2810 = vmatpush1.msra.mxu0 0.0
        %2811 = vmatprep.subr.mxu0 0.0
        %2812 = vmatpush1.msra.mxu0 0.0
        %2813 = vmatprep.subr.mxu0 0.0
        %2814 = vmatpush1.msra.mxu0 0.0
        %2815 = vmatprep.subr.mxu0 0.0
        %2816 = vmatpush1.msra.mxu0 0.0
        %2817 = vmatprep.subr.mxu0 0.0
        %2818 = vmatpush1.msra.mxu0 0.0
        %2819 = vmatprep.mubr.f32.mxu0 0.0
        %2820 = vmatmul.mubr.f32.gmra.mrb[0].mxu0 %v865
        %v2821 = vpop.f32.mrb[0].mxu0
        %v2822 = vadd.f32 %v2753, %v2821
        %v2823 = vpop.f32.mrb[0].mxu0
        %2824 = vmatprep.mubr.f32.mxu0 0.0
        %2825 = vmatmul.mubr.f32.gmra.mrb[0].mxu0 %v868
        %v2826 = vpop.f32.mrb[0].mxu0
        %v2827 = vadd.f32 %v2753, %v2826
        %v2828 = vpop.f32.mrb[0].mxu0
        %2829 = vmatprep.mubr.f32.mxu0 0.0
        %2830 = vmatmul.mubr.f32.gmra.mrb[0].mxu0 %v871
        %v2831 = vpop.f32.mrb[0].mxu0
        %v2832 = vadd.f32 %v2753, %v2831
        %v2833 = vpop.f32.mrb[0].mxu0
        %2834 = vdwg.mxu0
        %s2835 = scalar_lea.vmem %s8, 96
        %v2836 = vld [vmem:[%s2835] sm:$0xff]
        %v2837 = vld [vmem:[%s2835 + $0x8] sm:$0xff]
        %v2838 = vld [vmem:[%s2835 + $0x10] sm:$0xff]
        %v2839 = vld [vmem:[%s2835 + $0x18] sm:$0xff]
        %s2840 = scalar_lea.vmem %s9, 3
        %v2841 = vld [vmem:[%s2840] sm:$0x1]
        %v2843 = vlaneseq
        %v2844 = vshrl.u32 %v2843, 7
        %v2845 = vsub.s32 0, %v2844
        %v2846 = vrot.slane %v2841, %v2845
        %2848 = vmatprep.subr.mxu0 0.0
        %2849 = vmatpush1.msra.mxu0 %v2836
        %2850 = vmatprep.subr.mxu0 0.0
        %2851 = vmatpush1.msra.mxu0 %v2837
        %2852 = vmatprep.subr.mxu0 0.0
        %2853 = vmatpush1.msra.mxu0 %v2838
        %2854 = vmatprep.subr.mxu0 0.0
        %2855 = vmatpush1.msra.mxu0 %v2839
        %2856 = vmatprep.subr.mxu0 0.0
        %2857 = vmatpush1.msra.mxu0 0.0
        %2858 = vmatprep.subr.mxu0 0.0
        %2859 = vmatpush1.msra.mxu0 0.0
        %2860 = vmatprep.subr.mxu0 0.0
        %2861 = vmatpush1.msra.mxu0 0.0
        %2862 = vmatprep.subr.mxu0 0.0
        %2863 = vmatpush1.msra.mxu0 0.0
        %2864 = vmatprep.subr.mxu0 0.0
        %2865 = vmatpush1.msra.mxu0 0.0
        %2866 = vmatprep.subr.mxu0 0.0
        %2867 = vmatpush1.msra.mxu0 0.0
        %2868 = vmatprep.subr.mxu0 0.0
        %2869 = vmatpush1.msra.mxu0 0.0
        %2870 = vmatprep.subr.mxu0 0.0
        %2871 = vmatpush1.msra.mxu0 0.0
        %2872 = vmatprep.subr.mxu0 0.0
        %2873 = vmatpush1.msra.mxu0 0.0
        %2874 = vmatprep.subr.mxu0 0.0
        %2875 = vmatpush1.msra.mxu0 0.0
        %2876 = vmatprep.subr.mxu0 0.0
        %2877 = vmatpush1.msra.mxu0 0.0
        %2878 = vmatprep.subr.mxu0 0.0
        %2879 = vmatpush1.msra.mxu0 0.0
        %2880 = vmatprep.subr.mxu0 0.0
        %2881 = vmatpush1.msra.mxu0 0.0
        %2882 = vmatprep.subr.mxu0 0.0
        %2883 = vmatpush1.msra.mxu0 0.0
        %2884 = vmatprep.subr.mxu0 0.0
        %2885 = vmatpush1.msra.mxu0 0.0
        %2886 = vmatprep.subr.mxu0 0.0
        %2887 = vmatpush1.msra.mxu0 0.0
        %2888 = vmatprep.subr.mxu0 0.0
        %2889 = vmatpush1.msra.mxu0 0.0
        %2890 = vmatprep.subr.mxu0 0.0
        %2891 = vmatpush1.msra.mxu0 0.0
        %2892 = vmatprep.subr.mxu0 0.0
        %2893 = vmatpush1.msra.mxu0 0.0
        %2894 = vmatprep.subr.mxu0 0.0
        %2895 = vmatpush1.msra.mxu0 0.0
        %2896 = vmatprep.subr.mxu0 0.0
        %2897 = vmatpush1.msra.mxu0 0.0
        %2898 = vmatprep.subr.mxu0 0.0
        %2899 = vmatpush1.msra.mxu0 0.0
        %2900 = vmatprep.subr.mxu0 0.0
        %2901 = vmatpush1.msra.mxu0 0.0
        %2902 = vmatprep.subr.mxu0 0.0
        %2903 = vmatpush1.msra.mxu0 0.0
        %2904 = vmatprep.subr.mxu0 0.0
        %2905 = vmatpush1.msra.mxu0 0.0
        %2906 = vmatprep.subr.mxu0 0.0
        %2907 = vmatpush1.msra.mxu0 0.0
        %2908 = vmatprep.subr.mxu0 0.0
        %2909 = vmatpush1.msra.mxu0 0.0
        %2910 = vmatprep.subr.mxu0 0.0
        %2911 = vmatpush1.msra.mxu0 0.0
        %2912 = vmatprep.mubr.f32.mxu0 0.0
        %2913 = vmatmul.mubr.f32.gmra.mrb[0].mxu0 %v865
        %v2914 = vpop.f32.mrb[0].mxu0
        %v2915 = vadd.f32 %v2846, %v2914
        %v2916 = vpop.f32.mrb[0].mxu0
        %2917 = vmatprep.mubr.f32.mxu0 0.0
        %2918 = vmatmul.mubr.f32.gmra.mrb[0].mxu0 %v868
        %v2919 = vpop.f32.mrb[0].mxu0
        %v2920 = vadd.f32 %v2846, %v2919
        %v2921 = vpop.f32.mrb[0].mxu0
        %2922 = vmatprep.mubr.f32.mxu0 0.0
        %2923 = vmatmul.mubr.f32.gmra.mrb[0].mxu0 %v871
        %v2924 = vpop.f32.mrb[0].mxu0
        %v2925 = vadd.f32 %v2846, %v2924
        %v2926 = vpop.f32.mrb[0].mxu0
        %2927 = vdwg.mxu0
        %v2929 = vsel %vm1135, %v2729, 0
        %v2932 = vsel %vm1135, %v2734, 0
        %v2935 = vsel %vm1135, %v2739, 0
        %v2938 = vsel %vm1135, %v2822, 0
        %v2941 = vsel %vm1135, %v2827, 0
        %v2944 = vsel %vm1135, %v2832, 0
        %2946 = vmatprep.subr.mxu0 0.0
        %2947 = vmatpush1.xpose.msra.mxu0 %v2938
        %2948 = vmatprep.subr.mxu0 0.0
        %2949 = vmatpush1.xpose.msra.mxu0 %v2941
        %2950 = vmatprep.subr.mxu0 0.0
        %2951 = vmatpush1.xpose.msra.mxu0 %v2944
        %2952 = vmatprep.subr.mxu0 0.0
        %2953 = vmatpush1.xpose.msra.mxu0 0.0
        %2954 = vmatprep.subr.mxu0 0.0
        %2955 = vmatpush1.xpose.msra.mxu0 0.0
        %2956 = vmatprep.subr.mxu0 0.0
        %2957 = vmatpush1.xpose.msra.mxu0 0.0
        %2958 = vmatprep.subr.mxu0 0.0
        %2959 = vmatpush1.xpose.msra.mxu0 0.0
        %2960 = vmatprep.subr.mxu0 0.0
        %2961 = vmatpush1.xpose.msra.mxu0 0.0
        %2962 = vmatprep.subr.mxu0 0.0
        %2963 = vmatpush1.xpose.msra.mxu0 0.0
        %2964 = vmatprep.subr.mxu0 0.0
        %2965 = vmatpush1.xpose.msra.mxu0 0.0
        %2966 = vmatprep.subr.mxu0 0.0
        %2967 = vmatpush1.xpose.msra.mxu0 0.0
        %2968 = vmatprep.subr.mxu0 0.0
        %2969 = vmatpush1.xpose.msra.mxu0 0.0
        %2970 = vmatprep.subr.mxu0 0.0
        %2971 = vmatpush1.xpose.msra.mxu0 0.0
        %2972 = vmatprep.subr.mxu0 0.0
        %2973 = vmatpush1.xpose.msra.mxu0 0.0
        %2974 = vmatprep.subr.mxu0 0.0
        %2975 = vmatpush1.xpose.msra.mxu0 0.0
        %2976 = vmatprep.subr.mxu0 0.0
        %2977 = vmatpush1.xpose.msra.mxu0 0.0
        %2978 = vmatprep.subr.mxu0 0.0
        %2979 = vmatpush1.xpose.msra.mxu0 0.0
        %2980 = vmatprep.subr.mxu0 0.0
        %2981 = vmatpush1.xpose.msra.mxu0 0.0
        %2982 = vmatprep.subr.mxu0 0.0
        %2983 = vmatpush1.xpose.msra.mxu0 0.0
        %2984 = vmatprep.subr.mxu0 0.0
        %2985 = vmatpush1.xpose.msra.mxu0 0.0
        %2986 = vmatprep.subr.mxu0 0.0
        %2987 = vmatpush1.xpose.msra.mxu0 0.0
        %2988 = vmatprep.subr.mxu0 0.0
        %2989 = vmatpush1.xpose.msra.mxu0 0.0
        %2990 = vmatprep.subr.mxu0 0.0
        %2991 = vmatpush1.xpose.msra.mxu0 0.0
        %2992 = vmatprep.subr.mxu0 0.0
        %2993 = vmatpush1.xpose.msra.mxu0 0.0
        %2994 = vmatprep.subr.mxu0 0.0
        %2995 = vmatpush1.xpose.msra.mxu0 0.0
        %2996 = vmatprep.subr.mxu0 0.0
        %2997 = vmatpush1.xpose.msra.mxu0 0.0
        %2998 = vmatprep.subr.mxu0 0.0
        %2999 = vmatpush1.xpose.msra.mxu0 0.0
        %3000 = vmatprep.subr.mxu0 0.0
        %3001 = vmatpush1.xpose.msra.mxu0 0.0
        %3002 = vmatprep.subr.mxu0 0.0
        %3003 = vmatpush1.xpose.msra.mxu0 0.0
        %3004 = vmatprep.subr.mxu0 0.0
        %3005 = vmatpush1.xpose.msra.mxu0 0.0
        %3006 = vmatprep.subr.mxu0 0.0
        %3007 = vmatpush1.xpose.msra.mxu0 0.0
        %3008 = vmatprep.subr.mxu0 0.0
        %3009 = vmatpush1.xpose.msra.mxu0 0.0
        %3010 = vmatprep.mubr.f32.mxu0 0.0
        %3011 = vmatmul.mubr.f32.gmra.mrb[0].mxu0 %v2929
        %v3012 = vpop.f32.mrb[0].mxu0
        %v3013 = vadd.f32 0.0, %v3012
        %v3014 = vpop.f32.mrb[0].mxu0
        %3015 = vmatprep.mubr.f32.mxu0 0.0
        %3016 = vmatmul.mubr.f32.gmra.mrb[0].mxu0 %v2932
        %v3017 = vpop.f32.mrb[0].mxu0
        %v3018 = vadd.f32 0.0, %v3017
        %v3019 = vpop.f32.mrb[0].mxu0
        %3020 = vmatprep.mubr.f32.mxu0 0.0
        %3021 = vmatmul.mubr.f32.gmra.mrb[0].mxu0 %v2935
        %v3022 = vpop.f32.mrb[0].mxu0
        %v3023 = vadd.f32 0.0, %v3022
        %v3024 = vpop.f32.mrb[0].mxu0
        %3025 = vdwg.mxu0
        %v3026 = vmul.f32 %v3013, 0.35355338
        %v3027 = vmul.f32 %v3018, 0.35355338
        %v3028 = vmul.f32 %v3023, 0.35355338
        %v3029 = vsel %vm1237, %v3026, -inf
        %3030 = vmax.xlane.f32.xlu0 %v3029
        %v3031 = vpop.xlane.xlu0 %3030
        %v3032 = vsel %vm1237, %v3027, -inf
        %3033 = vmax.xlane.f32.xlu0 %v3032
        %v3034 = vpop.xlane.xlu0 %3033
        %v3035 = vsel %vm1244, %v3028, -inf
        %3036 = vmax.xlane.f32.xlu0 %v3035
        %v3037 = vpop.xlane.xlu0 %3036
        %v3038 = vsub.f32 %v3026, %v3031
        %v3039 = vsub.f32 %v3027, %v3034
        %v3040 = vsub.f32 %v3028, %v3037
        %v3041 = vmul.f32 %v3038, 1.442695
        %v3042 = vpow.pop %v3041
        %v3043 = vmul.f32 %v3039, 1.442695
        %v3044 = vpow.pop %v3043
        %v3045 = vmul.f32 %v3040, 1.442695
        %v3046 = vpow.pop %v3045
        %v3047 = vsel %vm1237, %v3042, 0.0
        %3048 = vadd.xlane.f32.xlu0 %v3047
        %v3049 = vpop.xlane.xlu0 %3048
        %v3050 = vsel %vm1237, %v3044, 0.0
        %3051 = vadd.xlane.f32.xlu0 %v3050
        %v3052 = vpop.xlane.xlu0 %3051
        %v3053 = vsel %vm1244, %v3046, 0.0
        %3054 = vadd.xlane.f32.xlu0 %v3053
        %v3055 = vpop.xlane.xlu0 %3054
        %v3056 = vrcp.pop %v3049
        %v3057 = vrcp.pop %v3052
        %v3058 = vrcp.pop %v3055
        %v3059 = vmul.f32 %v3042, %v3056
        %v3060 = vmul.f32 %v3044, %v3057
        %v3061 = vmul.f32 %v3046, %v3058
        %v3063 = vsel %vm1237, %v3059, 0
        %v3066 = vsel %vm1237, %v3060, 0
        %v3069 = vsel %vm1237, %v3061, 0
        %v3072 = vsel %vm762, %v2925, 0
        %3074 = vmatprep.subr.mxu0 0.0
        %3075 = vmatpush1.msra.mxu0 %v2915
        %3076 = vmatprep.subr.mxu0 0.0
        %3077 = vmatpush1.msra.mxu0 %v2920
        %3078 = vmatprep.subr.mxu0 0.0
        %3079 = vmatpush1.msra.mxu0 %v3072
        %3080 = vmatprep.subr.mxu0 0.0
        %3081 = vmatpush1.msra.mxu0 0.0
        %3082 = vmatprep.subr.mxu0 0.0
        %3083 = vmatpush1.msra.mxu0 0.0
        %3084 = vmatprep.subr.mxu0 0.0
        %3085 = vmatpush1.msra.mxu0 0.0
        %3086 = vmatprep.subr.mxu0 0.0
        %3087 = vmatpush1.msra.mxu0 0.0
        %3088 = vmatprep.subr.mxu0 0.0
        %3089 = vmatpush1.msra.mxu0 0.0
        %3090 = vmatprep.subr.mxu0 0.0
        %3091 = vmatpush1.msra.mxu0 0.0
        %3092 = vmatprep.subr.mxu0 0.0
        %3093 = vmatpush1.msra.mxu0 0.0
        %3094 = vmatprep.subr.mxu0 0.0
        %3095 = vmatpush1.msra.mxu0 0.0
        %3096 = vmatprep.subr.mxu0 0.0
        %3097 = vmatpush1.msra.mxu0 0.0
        %3098 = vmatprep.subr.mxu0 0.0
        %3099 = vmatpush1.msra.mxu0 0.0
        %3100 = vmatprep.subr.mxu0 0.0
        %3101 = vmatpush1.msra.mxu0 0.0
        %3102 = vmatprep.subr.mxu0 0.0
        %3103 = vmatpush1.msra.mxu0 0.0
        %3104 = vmatprep.subr.mxu0 0.0
        %3105 = vmatpush1.msra.mxu0 0.0
        %3106 = vmatprep.subr.mxu0 0.0
        %3107 = vmatpush1.msra.mxu0 0.0
        %3108 = vmatprep.subr.mxu0 0.0
        %3109 = vmatpush1.msra.mxu0 0.0
        %3110 = vmatprep.subr.mxu0 0.0
        %3111 = vmatpush1.msra.mxu0 0.0
        %3112 = vmatprep.subr.mxu0 0.0
        %3113 = vmatpush1.msra.mxu0 0.0
        %3114 = vmatprep.subr.mxu0 0.0
        %3115 = vmatpush1.msra.mxu0 0.0
        %3116 = vmatprep.subr.mxu0 0.0
        %3117 = vmatpush1.msra.mxu0 0.0
        %3118 = vmatprep.subr.mxu0 0.0
        %3119 = vmatpush1.msra.mxu0 0.0
        %3120 = vmatprep.subr.mxu0 0.0
        %3121 = vmatpush1.msra.mxu0 0.0
        %3122 = vmatprep.subr.mxu0 0.0
        %3123 = vmatpush1.msra.mxu0 0.0
        %3124 = vmatprep.subr.mxu0 0.0
        %3125 = vmatpush1.msra.mxu0 0.0
        %3126 = vmatprep.subr.mxu0 0.0
        %3127 = vmatpush1.msra.mxu0 0.0
        %3128 = vmatprep.subr.mxu0 0.0
        %3129 = vmatpush1.msra.mxu0 0.0
        %3130 = vmatprep.subr.mxu0 0.0
        %3131 = vmatpush1.msra.mxu0 0.0
        %3132 = vmatprep.subr.mxu0 0.0
        %3133 = vmatpush1.msra.mxu0 0.0
        %3134 = vmatprep.subr.mxu0 0.0
        %3135 = vmatpush1.msra.mxu0 0.0
        %3136 = vmatprep.subr.mxu0 0.0
        %3137 = vmatpush1.msra.mxu0 0.0
        %3138 = vmatprep.mubr.f32.mxu0 0.0
        %3139 = vmatmul.mubr.f32.gmra.mrb[0].mxu0 %v3063
        %v3140 = vpop.f32.mrb[0].mxu0
        %v3141 = vadd.f32 0.0, %v3140
        %v3142 = vpop.f32.mrb[0].mxu0
        %3143 = vmatprep.mubr.f32.mxu0 0.0
        %3144 = vmatmul.mubr.f32.gmra.mrb[0].mxu0 %v3066
        %v3145 = vpop.f32.mrb[0].mxu0
        %v3146 = vadd.f32 0.0, %v3145
        %v3147 = vpop.f32.mrb[0].mxu0
        %3148 = vmatprep.mubr.f32.mxu0 0.0
        %3149 = vmatmul.mubr.f32.gmra.mrb[0].mxu0 %v3069
        %v3150 = vpop.f32.mrb[0].mxu0
        %v3151 = vadd.f32 0.0, %v3150
        %v3152 = vpop.f32.mrb[0].mxu0
        %3153 = vdwg.mxu0
        %s3154 = scalar_lea.vmem %s10, 24
        %v3155 = vld [vmem:[%s3154] sm:$0xff]
        %v3157 = vsel %vm1135, %v3141, 0
        %v3160 = vsel %vm1135, %v3146, 0
        %v3163 = vsel %vm1135, %v3151, 0
        %3165 = vmatprep.subr.mxu0 0.0
        %3166 = vmatpush1.msra.mxu0 %v3155
        %3167 = vmatprep.subr.mxu0 0.0
        %3168 = vmatpush1.msra.mxu0 0.0
        %3169 = vmatprep.subr.mxu0 0.0
        %3170 = vmatpush1.msra.mxu0 0.0
        %3171 = vmatprep.subr.mxu0 0.0
        %3172 = vmatpush1.msra.mxu0 0.0
        %3173 = vmatprep.subr.mxu0 0.0
        %3174 = vmatpush1.msra.mxu0 0.0
        %3175 = vmatprep.subr.mxu0 0.0
        %3176 = vmatpush1.msra.mxu0 0.0
        %3177 = vmatprep.subr.mxu0 0.0
        %3178 = vmatpush1.msra.mxu0 0.0
        %3179 = vmatprep.subr.mxu0 0.0
        %3180 = vmatpush1.msra.mxu0 0.0
        %3181 = vmatprep.subr.mxu0 0.0
        %3182 = vmatpush1.msra.mxu0 0.0
        %3183 = vmatprep.subr.mxu0 0.0
        %3184 = vmatpush1.msra.mxu0 0.0
        %3185 = vmatprep.subr.mxu0 0.0
        %3186 = vmatpush1.msra.mxu0 0.0
        %3187 = vmatprep.subr.mxu0 0.0
        %3188 = vmatpush1.msra.mxu0 0.0
        %3189 = vmatprep.subr.mxu0 0.0
        %3190 = vmatpush1.msra.mxu0 0.0
        %3191 = vmatprep.subr.mxu0 0.0
        %3192 = vmatpush1.msra.mxu0 0.0
        %3193 = vmatprep.subr.mxu0 0.0
        %3194 = vmatpush1.msra.mxu0 0.0
        %3195 = vmatprep.subr.mxu0 0.0
        %3196 = vmatpush1.msra.mxu0 0.0
        %3197 = vmatprep.subr.mxu0 0.0
        %3198 = vmatpush1.msra.mxu0 0.0
        %3199 = vmatprep.subr.mxu0 0.0
        %3200 = vmatpush1.msra.mxu0 0.0
        %3201 = vmatprep.subr.mxu0 0.0
        %3202 = vmatpush1.msra.mxu0 0.0
        %3203 = vmatprep.subr.mxu0 0.0
        %3204 = vmatpush1.msra.mxu0 0.0
        %3205 = vmatprep.subr.mxu0 0.0
        %3206 = vmatpush1.msra.mxu0 0.0
        %3207 = vmatprep.subr.mxu0 0.0
        %3208 = vmatpush1.msra.mxu0 0.0
        %3209 = vmatprep.subr.mxu0 0.0
        %3210 = vmatpush1.msra.mxu0 0.0
        %3211 = vmatprep.subr.mxu0 0.0
        %3212 = vmatpush1.msra.mxu0 0.0
        %3213 = vmatprep.subr.mxu0 0.0
        %3214 = vmatpush1.msra.mxu0 0.0
        %3215 = vmatprep.subr.mxu0 0.0
        %3216 = vmatpush1.msra.mxu0 0.0
        %3217 = vmatprep.subr.mxu0 0.0
        %3218 = vmatpush1.msra.mxu0 0.0
        %3219 = vmatprep.subr.mxu0 0.0
        %3220 = vmatpush1.msra.mxu0 0.0
        %3221 = vmatprep.subr.mxu0 0.0
        %3222 = vmatpush1.msra.mxu0 0.0
        %3223 = vmatprep.subr.mxu0 0.0
        %3224 = vmatpush1.msra.mxu0 0.0
        %3225 = vmatprep.subr.mxu0 0.0
        %3226 = vmatpush1.msra.mxu0 0.0
        %3227 = vmatprep.subr.mxu0 0.0
        %3228 = vmatpush1.msra.mxu0 0.0
        %3229 = vmatprep.mubr.f32.mxu0 0.0
        %3230 = vmatmul.mubr.f32.gmra.mrb[0].mxu0 %v3157
        %v3231 = vpop.f32.mrb[0].mxu0
        %v3232 = vadd.f32 0.0, %v3231
        %v3233 = vpop.f32.mrb[0].mxu0
        %3234 = vmatprep.mubr.f32.mxu0 0.0
        %3235 = vmatmul.mubr.f32.gmra.mrb[0].mxu0 %v3160
        %v3236 = vpop.f32.mrb[0].mxu0
        %v3237 = vadd.f32 0.0, %v3236
        %v3238 = vpop.f32.mrb[0].mxu0
        %3239 = vmatprep.mubr.f32.mxu0 0.0
        %3240 = vmatmul.mubr.f32.gmra.mrb[0].mxu0 %v3163
        %v3241 = vpop.f32.mrb[0].mxu0
        %v3242 = vadd.f32 0.0, %v3241
        %v3243 = vpop.f32.mrb[0].mxu0
        %3244 = vdwg.mxu0
        %v3245 = vadd.f32 %v2646, %v3232
        %v3246 = vadd.f32 %v2647, %v3237
        %v3247 = vadd.f32 %v2648, %v3242
        %v3248 = vld [vmem:[%s11] sm:$0x1]
        %v3250 = vlaneseq
        %v3251 = vshrl.u32 %v3250, 7
        %v3252 = vsub.s32 0, %v3251
        %v3253 = vrot.slane %v3248, %v3252
        %v3255 = vadd.f32 %v3245, %v3253
        %v3256 = vadd.f32 %v3246, %v3253
        %v3257 = vadd.f32 %v3247, %v3253
        %v3258 = vadd.f32 %v849, %v3255
        %v3259 = vadd.f32 %v850, %v3256
        %v3260 = vadd.f32 %v851, %v3257
        %v3261 = vld [vmem:[%s12] sm:$0x1]
        %v3262 = vld [vmem:[%s13] sm:$0x1]
        %v3263 = vsel %vm863, %v3258, 0.0
        %3264 = vadd.xlane.f32.xlu0 %v3263
        %v3265 = vpop.xlane.xlu0 %3264
        %v3266 = vsel %vm863, %v3259, 0.0
        %3267 = vadd.xlane.f32.xlu0 %v3266
        %v3268 = vpop.xlane.xlu0 %3267
        %vm3269 = vcmask 253952
        %v3270 = vsel %vm3269, %v3260, 0.0
        %3271 = vadd.xlane.f32.xlu0 %v3270
        %v3272 = vpop.xlane.xlu0 %3271
        %v3273 = vrcp.pop 32.0
        %v3274 = vmul.f32 %v3265, %v3273
        %v3275 = vmul.f32 %v3268, %v3273
        %v3276 = vmul.f32 %v3272, %v3273
        %v3277 = vsub.f32 %v3258, %v3274
        %v3278 = vsub.f32 %v3259, %v3275
        %v3279 = vsub.f32 %v3260, %v3276
        %v3280 = vmul.f32 %v3277, %v3277
        %v3281 = vmul.f32 %v3278, %v3278
        %v3282 = vmul.f32 %v3279, %v3279
        %v3283 = vsel %vm863, %v3280, 0.0
        %3284 = vadd.xlane.f32.xlu0 %v3283
        %v3285 = vpop.xlane.xlu0 %3284
        %v3286 = vsel %vm863, %v3281, 0.0
        %3287 = vadd.xlane.f32.xlu0 %v3286
        %v3288 = vpop.xlane.xlu0 %3287
        %v3289 = vsel %vm3269, %v3282, 0.0
        %3290 = vadd.xlane.f32.xlu0 %v3289
        %v3291 = vpop.xlane.xlu0 %3290
        %v3292 = vmul.f32 %v3285, %v3273
        %v3293 = vmul.f32 %v3288, %v3273
        %v3294 = vmul.f32 %v3291, %v3273
        %v3295 = vadd.f32 %v3292, 1e-05
        %v3296 = vadd.f32 %v3293, 1e-05
        %v3297 = vadd.f32 %v3294, 1e-05
        %v3298 = vrsqrt.pop %v3295
        %v3299 = vrsqrt.pop %v3296
        %v3300 = vrsqrt.pop %v3297
        %v3301 = vmul.f32 %v3277, %v3298
        %v3302 = vmul.f32 %v3278, %v3299
        %v3303 = vmul.f32 %v3279, %v3300
        %v3305 = vlaneseq
        %v3306 = vshrl.u32 %v3305, 7
        %v3307 = vsub.s32 0, %v3306
        %v3308 = vrot.slane %v3261, %v3307
        %v3310 = vmul.f32 %v3301, %v3308
        %v3311 = vmul.f32 %v3302, %v3308
        %v3312 = vmul.f32 %v3303, %v3308
        %v3314 = vlaneseq
        %v3315 = vshrl.u32 %v3314, 7
        %v3316 = vsub.s32 0, %v3315
        %v3317 = vrot.slane %v3262, %v3316
        %v3319 = vadd.f32 %v3310, %v3317
        %v3320 = vadd.f32 %v3311, %v3317
        %v3321 = vadd.f32 %v3312, %v3317
        %v3322 = vld [vmem:[%s14] sm:$0xff]
        %v3323 = vld [vmem:[%s14 + $0x8] sm:$0xff]
        %v3324 = vld [vmem:[%s14 + $0x10] sm:$0xff]
        %v3325 = vld [vmem:[%s14 + $0x18] sm:$0xff]
        %v3326 = vld [vmem:[%s15] sm:$0x1]
        %v3328 = vlaneseq
        %v3329 = vshrl.u32 %v3328, 7
        %v3330 = vsub.s32 0, %v3329
        %v3331 = vrot.slane %v3326, %v3330
        %v3334 = vsel %vm863, %v3319, 0
        %v3337 = vsel %vm863, %v3320, 0
        %v3340 = vsel %vm863, %v3321, 0
        %3342 = vmatprep.subr.mxu0 0.0
        %3343 = vmatpush1.msra.mxu0 %v3322
        %3344 = vmatprep.subr.mxu0 0.0
        %3345 = vmatpush1.msra.mxu0 %v3323
        %3346 = vmatprep.subr.mxu0 0.0
        %3347 = vmatpush1.msra.mxu0 %v3324
        %3348 = vmatprep.subr.mxu0 0.0
        %3349 = vmatpush1.msra.mxu0 %v3325
        %3350 = vmatprep.subr.mxu0 0.0
        %3351 = vmatpush1.msra.mxu0 0.0
        %3352 = vmatprep.subr.mxu0 0.0
        %3353 = vmatpush1.msra.mxu0 0.0
        %3354 = vmatprep.subr.mxu0 0.0
        %3355 = vmatpush1.msra.mxu0 0.0
        %3356 = vmatprep.subr.mxu0 0.0
        %3357 = vmatpush1.msra.mxu0 0.0
        %3358 = vmatprep.subr.mxu0 0.0
        %3359 = vmatpush1.msra.mxu0 0.0
        %3360 = vmatprep.subr.mxu0 0.0
        %3361 = vmatpush1.msra.mxu0 0.0
        %3362 = vmatprep.subr.mxu0 0.0
        %3363 = vmatpush1.msra.mxu0 0.0
        %3364 = vmatprep.subr.mxu0 0.0
        %3365 = vmatpush1.msra.mxu0 0.0
        %3366 = vmatprep.subr.mxu0 0.0
        %3367 = vmatpush1.msra.mxu0 0.0
        %3368 = vmatprep.subr.mxu0 0.0
        %3369 = vmatpush1.msra.mxu0 0.0
        %3370 = vmatprep.subr.mxu0 0.0
        %3371 = vmatpush1.msra.mxu0 0.0
        %3372 = vmatprep.subr.mxu0 0.0
        %3373 = vmatpush1.msra.mxu0 0.0
        %3374 = vmatprep.subr.mxu0 0.0
        %3375 = vmatpush1.msra.mxu0 0.0
        %3376 = vmatprep.subr.mxu0 0.0
        %3377 = vmatpush1.msra.mxu0 0.0
        %3378 = vmatprep.subr.mxu0 0.0
        %3379 = vmatpush1.msra.mxu0 0.0
        %3380 = vmatprep.subr.mxu0 0.0
        %3381 = vmatpush1.msra.mxu0 0.0
        %3382 = vmatprep.subr.mxu0 0.0
        %3383 = vmatpush1.msra.mxu0 0.0
        %3384 = vmatprep.subr.mxu0 0.0
        %3385 = vmatpush1.msra.mxu0 0.0
        %3386 = vmatprep.subr.mxu0 0.0
        %3387 = vmatpush1.msra.mxu0 0.0
        %3388 = vmatprep.subr.mxu0 0.0
        %3389 = vmatpush1.msra.mxu0 0.0
        %3390 = vmatprep.subr.mxu0 0.0
        %3391 = vmatpush1.msra.mxu0 0.0
        %3392 = vmatprep.subr.mxu0 0.0
        %3393 = vmatpush1.msra.mxu0 0.0
        %3394 = vmatprep.subr.mxu0 0.0
        %3395 = vmatpush1.msra.mxu0 0.0
        %3396 = vmatprep.subr.mxu0 0.0
        %3397 = vmatpush1.msra.mxu0 0.0
        %3398 = vmatprep.subr.mxu0 0.0
        %3399 = vmatpush1.msra.mxu0 0.0
        %3400 = vmatprep.subr.mxu0 0.0
        %3401 = vmatpush1.msra.mxu0 0.0
        %3402 = vmatprep.subr.mxu0 0.0
        %3403 = vmatpush1.msra.mxu0 0.0
        %3404 = vmatprep.subr.mxu0 0.0
        %3405 = vmatpush1.msra.mxu0 0.0
        %3406 = vmatprep.mubr.f32.mxu0 0.0
        %3407 = vmatmul.mubr.f32.gmra.mrb[0].mxu0 %v3334
        %v3408 = vpop.f32.mrb[0].mxu0
        %v3409 = vadd.f32 %v3331, %v3408
        %v3410 = vpop.f32.mrb[0].mxu0
        %3411 = vmatprep.mubr.f32.mxu0 0.0
        %3412 = vmatmul.mubr.f32.gmra.mrb[0].mxu0 %v3337
        %v3413 = vpop.f32.mrb[0].mxu0
        %v3414 = vadd.f32 %v3331, %v3413
        %v3415 = vpop.f32.mrb[0].mxu0
        %3416 = vmatprep.mubr.f32.mxu0 0.0
        %3417 = vmatmul.mubr.f32.gmra.mrb[0].mxu0 %v3340
        %v3418 = vpop.f32.mrb[0].mxu0
        %v3419 = vadd.f32 %v3331, %v3418
        %v3420 = vpop.f32.mrb[0].mxu0
        %3421 = vdwg.mxu0
        %v3422 = vmax.f32 %v3409, 0.0
        %v3423 = vmax.f32 %v3414, 0.0
        %v3424 = vmax.f32 %v3419, 0.0
        %v3425 = vld [vmem:[%s16] sm:$0xff]
        %v3426 = vld [vmem:[%s16 + $0x8] sm:$0xff]
        %v3427 = vld [vmem:[%s16 + $0x10] sm:$0xff]
        %v3428 = vld [vmem:[%s16 + $0x18] sm:$0xff]
        %v3429 = vld [vmem:[%s16 + $0x20] sm:$0xff]
        %v3430 = vld [vmem:[%s16 + $0x28] sm:$0xff]
        %v3431 = vld [vmem:[%s16 + $0x30] sm:$0xff]
        %v3432 = vld [vmem:[%s16 + $0x38] sm:$0xff]
        %v3433 = vld [vmem:[%s17] sm:$0x1]
        %v3435 = vlaneseq
        %v3436 = vshrl.u32 %v3435, 7
        %v3437 = vsub.s32 0, %v3436
        %v3438 = vrot.slane %v3433, %v3437
        %vm3440 = vcmask 523264
        %v3442 = vsel %vm3440, %v3422, 0
        %v3445 = vsel %vm3440, %v3423, 0
        %v3448 = vsel %vm3440, %v3424, 0
        %3450 = vmatprep.subr.mxu0 0.0
        %3451 = vmatpush1.msra.mxu0 %v3425
        %3452 = vmatprep.subr.mxu0 0.0
        %3453 = vmatpush1.msra.mxu0 %v3426
        %3454 = vmatprep.subr.mxu0 0.0
        %3455 = vmatpush1.msra.mxu0 %v3427
        %3456 = vmatprep.subr.mxu0 0.0
        %3457 = vmatpush1.msra.mxu0 %v3428
        %3458 = vmatprep.subr.mxu0 0.0
        %3459 = vmatpush1.msra.mxu0 %v3429
        %3460 = vmatprep.subr.mxu0 0.0
        %3461 = vmatpush1.msra.mxu0 %v3430
        %3462 = vmatprep.subr.mxu0 0.0
        %3463 = vmatpush1.msra.mxu0 %v3431
        %3464 = vmatprep.subr.mxu0 0.0
        %3465 = vmatpush1.msra.mxu0 %v3432
        %3466 = vmatprep.subr.mxu0 0.0
        %3467 = vmatpush1.msra.mxu0 0.0
        %3468 = vmatprep.subr.mxu0 0.0
        %3469 = vmatpush1.msra.mxu0 0.0
        %3470 = vmatprep.subr.mxu0 0.0
        %3471 = vmatpush1.msra.mxu0 0.0
        %3472 = vmatprep.subr.mxu0 0.0
        %3473 = vmatpush1.msra.mxu0 0.0
        %3474 = vmatprep.subr.mxu0 0.0
        %3475 = vmatpush1.msra.mxu0 0.0
        %3476 = vmatprep.subr.mxu0 0.0
        %3477 = vmatpush1.msra.mxu0 0.0
        %3478 = vmatprep.subr.mxu0 0.0
        %3479 = vmatpush1.msra.mxu0 0.0
        %3480 = vmatprep.subr.mxu0 0.0
        %3481 = vmatpush1.msra.mxu0 0.0
        %3482 = vmatprep.subr.mxu0 0.0
        %3483 = vmatpush1.msra.mxu0 0.0
        %3484 = vmatprep.subr.mxu0 0.0
        %3485 = vmatpush1.msra.mxu0 0.0
        %3486 = vmatprep.subr.mxu0 0.0
        %3487 = vmatpush1.msra.mxu0 0.0
        %3488 = vmatprep.subr.mxu0 0.0
        %3489 = vmatpush1.msra.mxu0 0.0
        %3490 = vmatprep.subr.mxu0 0.0
        %3491 = vmatpush1.msra.mxu0 0.0
        %3492 = vmatprep.subr.mxu0 0.0
        %3493 = vmatpush1.msra.mxu0 0.0
        %3494 = vmatprep.subr.mxu0 0.0
        %3495 = vmatpush1.msra.mxu0 0.0
        %3496 = vmatprep.subr.mxu0 0.0
        %3497 = vmatpush1.msra.mxu0 0.0
        %3498 = vmatprep.subr.mxu0 0.0
        %3499 = vmatpush1.msra.mxu0 0.0
        %3500 = vmatprep.subr.mxu0 0.0
        %3501 = vmatpush1.msra.mxu0 0.0
        %3502 = vmatprep.subr.mxu0 0.0
        %3503 = vmatpush1.msra.mxu0 0.0
        %3504 = vmatprep.subr.mxu0 0.0
        %3505 = vmatpush1.msra.mxu0 0.0
        %3506 = vmatprep.subr.mxu0 0.0
        %3507 = vmatpush1.msra.mxu0 0.0
        %3508 = vmatprep.subr.mxu0 0.0
        %3509 = vmatpush1.msra.mxu0 0.0
        %3510 = vmatprep.subr.mxu0 0.0
        %3511 = vmatpush1.msra.mxu0 0.0
        %3512 = vmatprep.subr.mxu0 0.0
        %3513 = vmatpush1.msra.mxu0 0.0
        %3514 = vmatprep.mubr.f32.mxu0 0.0
        %3515 = vmatmul.mubr.f32.gmra.mrb[0].mxu0 %v3442
        %v3516 = vpop.f32.mrb[0].mxu0
        %v3517 = vadd.f32 %v3438, %v3516
        %v3518 = vpop.f32.mrb[0].mxu0
        %3519 = vmatprep.mubr.f32.mxu0 0.0
        %3520 = vmatmul.mubr.f32.gmra.mrb[0].mxu0 %v3445
        %v3521 = vpop.f32.mrb[0].mxu0
        %v3522 = vadd.f32 %v3438, %v3521
        %v3523 = vpop.f32.mrb[0].mxu0
        %3524 = vmatprep.mubr.f32.mxu0 0.0
        %3525 = vmatmul.mubr.f32.gmra.mrb[0].mxu0 %v3448
        %v3526 = vpop.f32.mrb[0].mxu0
        %v3527 = vadd.f32 %v3438, %v3526
        %v3528 = vpop.f32.mrb[0].mxu0
        %3529 = vdwg.mxu0
        %v3530 = vadd.f32 %v3319, %v3517
        %v3531 = vadd.f32 %v3320, %v3522
        %v3532 = vadd.f32 %v3321, %v3527
        %v3533 = vld [vmem:[%s18] sm:$0x1]
        %v3534 = vld [vmem:[%s19] sm:$0x1]
        %v3535 = vsel %vm863, %v3530, 0.0
        %3536 = vadd.xlane.f32.xlu0 %v3535
        %v3537 = vpop.xlane.xlu0 %3536
        %v3538 = vsel %vm863, %v3531, 0.0
        %3539 = vadd.xlane.f32.xlu0 %v3538
        %v3540 = vpop.xlane.xlu0 %3539
        %v3541 = vsel %vm3269, %v3532, 0.0
        %3542 = vadd.xlane.f32.xlu0 %v3541
        %v3543 = vpop.xlane.xlu0 %3542
        %v3544 = vmul.f32 %v3537, %v3273
        %v3545 = vmul.f32 %v3540, %v3273
        %v3546 = vmul.f32 %v3543, %v3273
        %v3547 = vsub.f32 %v3530, %v3544
        %v3548 = vsub.f32 %v3531, %v3545
        %v3549 = vsub.f32 %v3532, %v3546
        %v3550 = vmul.f32 %v3547, %v3547
        %v3551 = vmul.f32 %v3548, %v3548
        %v3552 = vmul.f32 %v3549, %v3549
        %v3553 = vsel %vm863, %v3550, 0.0
        %3554 = vadd.xlane.f32.xlu0 %v3553
        %v3555 = vpop.xlane.xlu0 %3554
        %v3556 = vsel %vm863, %v3551, 0.0
        %3557 = vadd.xlane.f32.xlu0 %v3556
        %v3558 = vpop.xlane.xlu0 %3557
        %v3559 = vsel %vm3269, %v3552, 0.0
        %3560 = vadd.xlane.f32.xlu0 %v3559
        %v3561 = vpop.xlane.xlu0 %3560
        %v3562 = vmul.f32 %v3555, %v3273
        %v3563 = vmul.f32 %v3558, %v3273
        %v3564 = vmul.f32 %v3561, %v3273
        %v3565 = vadd.f32 %v3562, 1e-05
        %v3566 = vadd.f32 %v3563, 1e-05
        %v3567 = vadd.f32 %v3564, 1e-05
        %v3568 = vrsqrt.pop %v3565
        %v3569 = vrsqrt.pop %v3566
        %v3570 = vrsqrt.pop %v3567
        %v3571 = vmul.f32 %v3547, %v3568
        %v3572 = vmul.f32 %v3548, %v3569
        %v3573 = vmul.f32 %v3549, %v3570
        %v3575 = vlaneseq
        %v3576 = vshrl.u32 %v3575, 7
        %v3577 = vsub.s32 0, %v3576
        %v3578 = vrot.slane %v3533, %v3577
        %v3580 = vmul.f32 %v3571, %v3578
        %v3581 = vmul.f32 %v3572, %v3578
        %v3582 = vmul.f32 %v3573, %v3578
        %v3584 = vlaneseq
        %v3585 = vshrl.u32 %v3584, 7
        %v3586 = vsub.s32 0, %v3585
        %v3587 = vrot.slane %v3534, %v3586
        %v3589 = vadd.f32 %v3580, %v3587
        %v3590 = vadd.f32 %v3581, %v3587
        %v3591 = vadd.f32 %v3582, %v3587
        %s3592 = scalar_lea.vmem %s4, 128
        %v3593 = vld [vmem:[%s3592] sm:$0xff]
        %v3594 = vld [vmem:[%s3592 + $0x8] sm:$0xff]
        %v3595 = vld [vmem:[%s3592 + $0x10] sm:$0xff]
        %v3596 = vld [vmem:[%s3592 + $0x18] sm:$0xff]
        %s3597 = scalar_lea.vmem %s5, 4
        %v3598 = vld [vmem:[%s3597] sm:$0x1]
        %v3600 = vlaneseq
        %v3601 = vshrl.u32 %v3600, 7
        %v3602 = vsub.s32 0, %v3601
        %v3603 = vrot.slane %v3598, %v3602
        %v3606 = vsel %vm863, %v3589, 0
        %v3609 = vsel %vm863, %v3590, 0
        %v3612 = vsel %vm863, %v3591, 0
        %3614 = vmatprep.subr.mxu0 0.0
        %3615 = vmatpush1.msra.mxu0 %v3593
        %3616 = vmatprep.subr.mxu0 0.0
        %3617 = vmatpush1.msra.mxu0 %v3594
        %3618 = vmatprep.subr.mxu0 0.0
        %3619 = vmatpush1.msra.mxu0 %v3595
        %3620 = vmatprep.subr.mxu0 0.0
        %3621 = vmatpush1.msra.mxu0 %v3596
        %3622 = vmatprep.subr.mxu0 0.0
        %3623 = vmatpush1.msra.mxu0 0.0
        %3624 = vmatprep.subr.mxu0 0.0
        %3625 = vmatpush1.msra.mxu0 0.0
        %3626 = vmatprep.subr.mxu0 0.0
        %3627 = vmatpush1.msra.mxu0 0.0
        %3628 = vmatprep.subr.mxu0 0.0
        %3629 = vmatpush1.msra.mxu0 0.0
        %3630 = vmatprep.subr.mxu0 0.0
        %3631 = vmatpush1.msra.mxu0 0.0
        %3632 = vmatprep.subr.mxu0 0.0
        %3633 = vmatpush1.msra.mxu0 0.0
        %3634 = vmatprep.subr.mxu0 0.0
        %3635 = vmatpush1.msra.mxu0 0.0
        %3636 = vmatprep.subr.mxu0 0.0
        %3637 = vmatpush1.msra.mxu0 0.0
        %3638 = vmatprep.subr.mxu0 0.0
        %3639 = vmatpush1.msra.mxu0 0.0
        %3640 = vmatprep.subr.mxu0 0.0
        %3641 = vmatpush1.msra.mxu0 0.0
        %3642 = vmatprep.subr.mxu0 0.0
        %3643 = vmatpush1.msra.mxu0 0.0
        %3644 = vmatprep.subr.mxu0 0.0
        %3645 = vmatpush1.msra.mxu0 0.0
        %3646 = vmatprep.subr.mxu0 0.0
        %3647 = vmatpush1.msra.mxu0 0.0
        %3648 = vmatprep.subr.mxu0 0.0
        %3649 = vmatpush1.msra.mxu0 0.0
        %3650 = vmatprep.subr.mxu0 0.0
        %3651 = vmatpush1.msra.mxu0 0.0
        %3652 = vmatprep.subr.mxu0 0.0
        %3653 = vmatpush1.msra.mxu0 0.0
        %3654 = vmatprep.subr.mxu0 0.0
        %3655 = vmatpush1.msra.mxu0 0.0
        %3656 = vmatprep.subr.mxu0 0.0
        %3657 = vmatpush1.msra.mxu0 0.0
        %3658 = vmatprep.subr.mxu0 0.0
        %3659 = vmatpush1.msra.mxu0 0.0
        %3660 = vmatprep.subr.mxu0 0.0
        %3661 = vmatpush1.msra.mxu0 0.0
        %3662 = vmatprep.subr.mxu0 0.0
        %3663 = vmatpush1.msra.mxu0 0.0
        %3664 = vmatprep.subr.mxu0 0.0
        %3665 = vmatpush1.msra.mxu0 0.0
        %3666 = vmatprep.subr.mxu0 0.0
        %3667 = vmatpush1.msra.mxu0 0.0
        %3668 = vmatprep.subr.mxu0 0.0
        %3669 = vmatpush1.msra.mxu0 0.0
        %3670 = vmatprep.subr.mxu0 0.0
        %3671 = vmatpush1.msra.mxu0 0.0
        %3672 = vmatprep.subr.mxu0 0.0
        %3673 = vmatpush1.msra.mxu0 0.0
        %3674 = vmatprep.subr.mxu0 0.0
        %3675 = vmatpush1.msra.mxu0 0.0
        %3676 = vmatprep.subr.mxu0 0.0
        %3677 = vmatpush1.msra.mxu0 0.0
        %3678 = vmatprep.mubr.f32.mxu0 0.0
        %3679 = vmatmul.mubr.f32.gmra.mrb[0].mxu0 %v3606
        %v3680 = vpop.f32.mrb[0].mxu0
        %v3681 = vadd.f32 %v3603, %v3680
        %v3682 = vpop.f32.mrb[0].mxu0
        %3683 = vmatprep.mubr.f32.mxu0 0.0
        %3684 = vmatmul.mubr.f32.gmra.mrb[0].mxu0 %v3609
        %v3685 = vpop.f32.mrb[0].mxu0
        %v3686 = vadd.f32 %v3603, %v3685
        %v3687 = vpop.f32.mrb[0].mxu0
        %3688 = vmatprep.mubr.f32.mxu0 0.0
        %3689 = vmatmul.mubr.f32.gmra.mrb[0].mxu0 %v3612
        %v3690 = vpop.f32.mrb[0].mxu0
        %v3691 = vadd.f32 %v3603, %v3690
        %v3692 = vpop.f32.mrb[0].mxu0
        %3693 = vdwg.mxu0
        %s3694 = scalar_lea.vmem %s6, 128
        %v3695 = vld [vmem:[%s3694] sm:$0xff]
        %v3696 = vld [vmem:[%s3694 + $0x8] sm:$0xff]
        %v3697 = vld [vmem:[%s3694 + $0x10] sm:$0xff]
        %v3698 = vld [vmem:[%s3694 + $0x18] sm:$0xff]
        %s3699 = scalar_lea.vmem %s7, 4
        %v3700 = vld [vmem:[%s3699] sm:$0x1]
        %v3702 = vlaneseq
        %v3703 = vshrl.u32 %v3702, 7
        %v3704 = vsub.s32 0, %v3703
        %v3705 = vrot.slane %v3700, %v3704
        %3707 = vmatprep.subr.mxu0 0.0
        %3708 = vmatpush1.msra.mxu0 %v3695
        %3709 = vmatprep.subr.mxu0 0.0
        %3710 = vmatpush1.msra.mxu0 %v3696
        %3711 = vmatprep.subr.mxu0 0.0
        %3712 = vmatpush1.msra.mxu0 %v3697
        %3713 = vmatprep.subr.mxu0 0.0
        %3714 = vmatpush1.msra.mxu0 %v3698
        %3715 = vmatprep.subr.mxu0 0.0
        %3716 = vmatpush1.msra.mxu0 0.0
        %3717 = vmatprep.subr.mxu0 0.0
        %3718 = vmatpush1.msra.mxu0 0.0
        %3719 = vmatprep.subr.mxu0 0.0
        %3720 = vmatpush1.msra.mxu0 0.0
        %3721 = vmatprep.subr.mxu0 0.0
        %3722 = vmatpush1.msra.mxu0 0.0
        %3723 = vmatprep.subr.mxu0 0.0
        %3724 = vmatpush1.msra.mxu0 0.0
        %3725 = vmatprep.subr.mxu0 0.0
        %3726 = vmatpush1.msra.mxu0 0.0
        %3727 = vmatprep.subr.mxu0 0.0
        %3728 = vmatpush1.msra.mxu0 0.0
        %3729 = vmatprep.subr.mxu0 0.0
        %3730 = vmatpush1.msra.mxu0 0.0
        %3731 = vmatprep.subr.mxu0 0.0
        %3732 = vmatpush1.msra.mxu0 0.0
        %3733 = vmatprep.subr.mxu0 0.0
        %3734 = vmatpush1.msra.mxu0 0.0
        %3735 = vmatprep.subr.mxu0 0.0
        %3736 = vmatpush1.msra.mxu0 0.0
        %3737 = vmatprep.subr.mxu0 0.0
        %3738 = vmatpush1.msra.mxu0 0.0
        %3739 = vmatprep.subr.mxu0 0.0
        %3740 = vmatpush1.msra.mxu0 0.0
        %3741 = vmatprep.subr.mxu0 0.0
        %3742 = vmatpush1.msra.mxu0 0.0
        %3743 = vmatprep.subr.mxu0 0.0
        %3744 = vmatpush1.msra.mxu0 0.0
        %3745 = vmatprep.subr.mxu0 0.0
        %3746 = vmatpush1.msra.mxu0 0.0
        %3747 = vmatprep.subr.mxu0 0.0
        %3748 = vmatpush1.msra.mxu0 0.0
        %3749 = vmatprep.subr.mxu0 0.0
        %3750 = vmatpush1.msra.mxu0 0.0
        %3751 = vmatprep.subr.mxu0 0.0
        %3752 = vmatpush1.msra.mxu0 0.0
        %3753 = vmatprep.subr.mxu0 0.0
        %3754 = vmatpush1.msra.mxu0 0.0
        %3755 = vmatprep.subr.mxu0 0.0
        %3756 = vmatpush1.msra.mxu0 0.0
        %3757 = vmatprep.subr.mxu0 0.0
        %3758 = vmatpush1.msra.mxu0 0.0
        %3759 = vmatprep.subr.mxu0 0.0
        %3760 = vmatpush1.msra.mxu0 0.0
        %3761 = vmatprep.subr.mxu0 0.0
        %3762 = vmatpush1.msra.mxu0 0.0
        %3763 = vmatprep.subr.mxu0 0.0
        %3764 = vmatpush1.msra.mxu0 0.0
        %3765 = vmatprep.subr.mxu0 0.0
        %3766 = vmatpush1.msra.mxu0 0.0
        %3767 = vmatprep.subr.mxu0 0.0
        %3768 = vmatpush1.msra.mxu0 0.0
        %3769 = vmatprep.subr.mxu0 0.0
        %3770 = vmatpush1.msra.mxu0 0.0
        %3771 = vmatprep.mubr.f32.mxu0 0.0
        %3772 = vmatmul.mubr.f32.gmra.mrb[0].mxu0 %v3606
        %v3773 = vpop.f32.mrb[0].mxu0
        %v3774 = vadd.f32 %v3705, %v3773
        %v3775 = vpop.f32.mrb[0].mxu0
        %3776 = vmatprep.mubr.f32.mxu0 0.0
        %3777 = vmatmul.mubr.f32.gmra.mrb[0].mxu0 %v3609
        %v3778 = vpop.f32.mrb[0].mxu0
        %v3779 = vadd.f32 %v3705, %v3778
        %v3780 = vpop.f32.mrb[0].mxu0
        %3781 = vmatprep.mubr.f32.mxu0 0.0
        %3782 = vmatmul.mubr.f32.gmra.mrb[0].mxu0 %v3612
        %v3783 = vpop.f32.mrb[0].mxu0
        %v3784 = vadd.f32 %v3705, %v3783
        %v3785 = vpop.f32.mrb[0].mxu0
        %3786 = vdwg.mxu0
        %s3787 = scalar_lea.vmem %s8, 128
        %v3788 = vld [vmem:[%s3787] sm:$0xff]
        %v3789 = vld [vmem:[%s3787 + $0x8] sm:$0xff]
        %v3790 = vld [vmem:[%s3787 + $0x10] sm:$0xff]
        %v3791 = vld [vmem:[%s3787 + $0x18] sm:$0xff]
        %s3792 = scalar_lea.vmem %s9, 4
        %v3793 = vld [vmem:[%s3792] sm:$0x1]
        %v3795 = vlaneseq
        %v3796 = vshrl.u32 %v3795, 7
        %v3797 = vsub.s32 0, %v3796
        %v3798 = vrot.slane %v3793, %v3797
        %3800 = vmatprep.subr.mxu0 0.0
        %3801 = vmatpush1.msra.mxu0 %v3788
        %3802 = vmatprep.subr.mxu0 0.0
        %3803 = vmatpush1.msra.mxu0 %v3789
        %3804 = vmatprep.subr.mxu0 0.0
        %3805 = vmatpush1.msra.mxu0 %v3790
        %3806 = vmatprep.subr.mxu0 0.0
        %3807 = vmatpush1.msra.mxu0 %v3791
        %3808 = vmatprep.subr.mxu0 0.0
        %3809 = vmatpush1.msra.mxu0 0.0
        %3810 = vmatprep.subr.mxu0 0.0
        %3811 = vmatpush1.msra.mxu0 0.0
        %3812 = vmatprep.subr.mxu0 0.0
        %3813 = vmatpush1.msra.mxu0 0.0
        %3814 = vmatprep.subr.mxu0 0.0
        %3815 = vmatpush1.msra.mxu0 0.0
        %3816 = vmatprep.subr.mxu0 0.0
        %3817 = vmatpush1.msra.mxu0 0.0
        %3818 = vmatprep.subr.mxu0 0.0
        %3819 = vmatpush1.msra.mxu0 0.0
        %3820 = vmatprep.subr.mxu0 0.0
        %3821 = vmatpush1.msra.mxu0 0.0
        %3822 = vmatprep.subr.mxu0 0.0
        %3823 = vmatpush1.msra.mxu0 0.0
        %3824 = vmatprep.subr.mxu0 0.0
        %3825 = vmatpush1.msra.mxu0 0.0
        %3826 = vmatprep.subr.mxu0 0.0
        %3827 = vmatpush1.msra.mxu0 0.0
        %3828 = vmatprep.subr.mxu0 0.0
        %3829 = vmatpush1.msra.mxu0 0.0
        %3830 = vmatprep.subr.mxu0 0.0
        %3831 = vmatpush1.msra.mxu0 0.0
        %3832 = vmatprep.subr.mxu0 0.0
        %3833 = vmatpush1.msra.mxu0 0.0
        %3834 = vmatprep.subr.mxu0 0.0
        %3835 = vmatpush1.msra.mxu0 0.0
        %3836 = vmatprep.subr.mxu0 0.0
        %3837 = vmatpush1.msra.mxu0 0.0
        %3838 = vmatprep.subr.mxu0 0.0
        %3839 = vmatpush1.msra.mxu0 0.0
        %3840 = vmatprep.subr.mxu0 0.0
        %3841 = vmatpush1.msra.mxu0 0.0
        %3842 = vmatprep.subr.mxu0 0.0
        %3843 = vmatpush1.msra.mxu0 0.0
        %3844 = vmatprep.subr.mxu0 0.0
        %3845 = vmatpush1.msra.mxu0 0.0
        %3846 = vmatprep.subr.mxu0 0.0
        %3847 = vmatpush1.msra.mxu0 0.0
        %3848 = vmatprep.subr.mxu0 0.0
        %3849 = vmatpush1.msra.mxu0 0.0
        %3850 = vmatprep.subr.mxu0 0.0
        %3851 = vmatpush1.msra.mxu0 0.0
        %3852 = vmatprep.subr.mxu0 0.0
        %3853 = vmatpush1.msra.mxu0 0.0
        %3854 = vmatprep.subr.mxu0 0.0
        %3855 = vmatpush1.msra.mxu0 0.0
        %3856 = vmatprep.subr.mxu0 0.0
        %3857 = vmatpush1.msra.mxu0 0.0
        %3858 = vmatprep.subr.mxu0 0.0
        %3859 = vmatpush1.msra.mxu0 0.0
        %3860 = vmatprep.subr.mxu0 0.0
        %3861 = vmatpush1.msra.mxu0 0.0
        %3862 = vmatprep.subr.mxu0 0.0
        %3863 = vmatpush1.msra.mxu0 0.0
        %3864 = vmatprep.mubr.f32.mxu0 0.0
        %3865 = vmatmul.mubr.f32.gmra.mrb[0].mxu0 %v3606
        %v3866 = vpop.f32.mrb[0].mxu0
        %v3867 = vadd.f32 %v3798, %v3866
        %v3868 = vpop.f32.mrb[0].mxu0
        %3869 = vmatprep.mubr.f32.mxu0 0.0
        %3870 = vmatmul.mubr.f32.gmra.mrb[0].mxu0 %v3609
        %v3871 = vpop.f32.mrb[0].mxu0
        %v3872 = vadd.f32 %v3798, %v3871
        %v3873 = vpop.f32.mrb[0].mxu0
        %3874 = vmatprep.mubr.f32.mxu0 0.0
        %3875 = vmatmul.mubr.f32.gmra.mrb[0].mxu0 %v3612
        %v3876 = vpop.f32.mrb[0].mxu0
        %v3877 = vadd.f32 %v3798, %v3876
        %v3878 = vpop.f32.mrb[0].mxu0
        %3879 = vdwg.mxu0
        %v3881 = vsel %vm1135, %v3681, 0
        %v3884 = vsel %vm1135, %v3686, 0
        %v3887 = vsel %vm1135, %v3691, 0
        %v3890 = vsel %vm1135, %v3774, 0
        %v3893 = vsel %vm1135, %v3779, 0
        %v3896 = vsel %vm1135, %v3784, 0
        %3898 = vmatprep.subr.mxu0 0.0
        %3899 = vmatpush1.xpose.msra.mxu0 %v3890
        %3900 = vmatprep.subr.mxu0 0.0
        %3901 = vmatpush1.xpose.msra.mxu0 %v3893
        %3902 = vmatprep.subr.mxu0 0.0
        %3903 = vmatpush1.xpose.msra.mxu0 %v3896
        %3904 = vmatprep.subr.mxu0 0.0
        %3905 = vmatpush1.xpose.msra.mxu0 0.0
        %3906 = vmatprep.subr.mxu0 0.0
        %3907 = vmatpush1.xpose.msra.mxu0 0.0
        %3908 = vmatprep.subr.mxu0 0.0
        %3909 = vmatpush1.xpose.msra.mxu0 0.0
        %3910 = vmatprep.subr.mxu0 0.0
        %3911 = vmatpush1.xpose.msra.mxu0 0.0
        %3912 = vmatprep.subr.mxu0 0.0
        %3913 = vmatpush1.xpose.msra.mxu0 0.0
        %3914 = vmatprep.subr.mxu0 0.0
        %3915 = vmatpush1.xpose.msra.mxu0 0.0
        %3916 = vmatprep.subr.mxu0 0.0
        %3917 = vmatpush1.xpose.msra.mxu0 0.0
        %3918 = vmatprep.subr.mxu0 0.0
        %3919 = vmatpush1.xpose.msra.mxu0 0.0
        %3920 = vmatprep.subr.mxu0 0.0
        %3921 = vmatpush1.xpose.msra.mxu0 0.0
        %3922 = vmatprep.subr.mxu0 0.0
        %3923 = vmatpush1.xpose.msra.mxu0 0.0
        %3924 = vmatprep.subr.mxu0 0.0
        %3925 = vmatpush1.xpose.msra.mxu0 0.0
        %3926 = vmatprep.subr.mxu0 0.0
        %3927 = vmatpush1.xpose.msra.mxu0 0.0
        %3928 = vmatprep.subr.mxu0 0.0
        %3929 = vmatpush1.xpose.msra.mxu0 0.0
        %3930 = vmatprep.subr.mxu0 0.0
        %3931 = vmatpush1.xpose.msra.mxu0 0.0
        %3932 = vmatprep.subr.mxu0 0.0
        %3933 = vmatpush1.xpose.msra.mxu0 0.0
        %3934 = vmatprep.subr.mxu0 0.0
        %3935 = vmatpush1.xpose.msra.mxu0 0.0
        %3936 = vmatprep.subr.mxu0 0.0
        %3937 = vmatpush1.xpose.msra.mxu0 0.0
        %3938 = vmatprep.subr.mxu0 0.0
        %3939 = vmatpush1.xpose.msra.mxu0 0.0
        %3940 = vmatprep.subr.mxu0 0.0
        %3941 = vmatpush1.xpose.msra.mxu0 0.0
        %3942 = vmatprep.subr.mxu0 0.0
        %3943 = vmatpush1.xpose.msra.mxu0 0.0
        %3944 = vmatprep.subr.mxu0 0.0
        %3945 = vmatpush1.xpose.msra.mxu0 0.0
        %3946 = vmatprep.subr.mxu0 0.0
        %3947 = vmatpush1.xpose.msra.mxu0 0.0
        %3948 = vmatprep.subr.mxu0 0.0
        %3949 = vmatpush1.xpose.msra.mxu0 0.0
        %3950 = vmatprep.subr.mxu0 0.0
        %3951 = vmatpush1.xpose.msra.mxu0 0.0
        %3952 = vmatprep.subr.mxu0 0.0
        %3953 = vmatpush1.xpose.msra.mxu0 0.0
        %3954 = vmatprep.subr.mxu0 0.0
        %3955 = vmatpush1.xpose.msra.mxu0 0.0
        %3956 = vmatprep.subr.mxu0 0.0
        %3957 = vmatpush1.xpose.msra.mxu0 0.0
        %3958 = vmatprep.subr.mxu0 0.0
        %3959 = vmatpush1.xpose.msra.mxu0 0.0
        %3960 = vmatprep.subr.mxu0 0.0
        %3961 = vmatpush1.xpose.msra.mxu0 0.0
        %3962 = vmatprep.mubr.f32.mxu0 0.0
        %3963 = vmatmul.mubr.f32.gmra.mrb[0].mxu0 %v3881
        %v3964 = vpop.f32.mrb[0].mxu0
        %v3965 = vadd.f32 0.0, %v3964
        %v3966 = vpop.f32.mrb[0].mxu0
        %3967 = vmatprep.mubr.f32.mxu0 0.0
        %3968 = vmatmul.mubr.f32.gmra.mrb[0].mxu0 %v3884
        %v3969 = vpop.f32.mrb[0].mxu0
        %v3970 = vadd.f32 0.0, %v3969
        %v3971 = vpop.f32.mrb[0].mxu0
        %3972 = vmatprep.mubr.f32.mxu0 0.0
        %3973 = vmatmul.mubr.f32.gmra.mrb[0].mxu0 %v3887
        %v3974 = vpop.f32.mrb[0].mxu0
        %v3975 = vadd.f32 0.0, %v3974
        %v3976 = vpop.f32.mrb[0].mxu0
        %3977 = vdwg.mxu0
        %v3978 = vmul.f32 %v3965, 0.35355338
        %v3979 = vmul.f32 %v3970, 0.35355338
        %v3980 = vmul.f32 %v3975, 0.35355338
        %v3981 = vsel %vm1237, %v3978, -inf
        %3982 = vmax.xlane.f32.xlu0 %v3981
        %v3983 = vpop.xlane.xlu0 %3982
        %v3984 = vsel %vm1237, %v3979, -inf
        %3985 = vmax.xlane.f32.xlu0 %v3984
        %v3986 = vpop.xlane.xlu0 %3985
        %v3987 = vsel %vm1244, %v3980, -inf
        %3988 = vmax.xlane.f32.xlu0 %v3987
        %v3989 = vpop.xlane.xlu0 %3988
        %v3990 = vsub.f32 %v3978, %v3983
        %v3991 = vsub.f32 %v3979, %v3986
        %v3992 = vsub.f32 %v3980, %v3989
        %v3993 = vmul.f32 %v3990, 1.442695
        %v3994 = vpow.pop %v3993
        %v3995 = vmul.f32 %v3991, 1.442695
        %v3996 = vpow.pop %v3995
        %v3997 = vmul.f32 %v3992, 1.442695
        %v3998 = vpow.pop %v3997
        %v3999 = vsel %vm1237, %v3994, 0.0
        %4000 = vadd.xlane.f32.xlu0 %v3999
        %v4001 = vpop.xlane.xlu0 %4000
        %v4002 = vsel %vm1237, %v3996, 0.0
        %4003 = vadd.xlane.f32.xlu0 %v4002
        %v4004 = vpop.xlane.xlu0 %4003
        %v4005 = vsel %vm1244, %v3998, 0.0
        %4006 = vadd.xlane.f32.xlu0 %v4005
        %v4007 = vpop.xlane.xlu0 %4006
        %v4008 = vrcp.pop %v4001
        %v4009 = vrcp.pop %v4004
        %v4010 = vrcp.pop %v4007
        %v4011 = vmul.f32 %v3994, %v4008
        %v4012 = vmul.f32 %v3996, %v4009
        %v4013 = vmul.f32 %v3998, %v4010
        %v4015 = vsel %vm1237, %v4011, 0
        %v4018 = vsel %vm1237, %v4012, 0
        %v4021 = vsel %vm1237, %v4013, 0
        %v4024 = vsel %vm762, %v3877, 0
        %4026 = vmatprep.subr.mxu0 0.0
        %4027 = vmatpush1.msra.mxu0 %v3867
        %4028 = vmatprep.subr.mxu0 0.0
        %4029 = vmatpush1.msra.mxu0 %v3872
        %4030 = vmatprep.subr.mxu0 0.0
        %4031 = vmatpush1.msra.mxu0 %v4024
        %4032 = vmatprep.subr.mxu0 0.0
        %4033 = vmatpush1.msra.mxu0 0.0
        %4034 = vmatprep.subr.mxu0 0.0
        %4035 = vmatpush1.msra.mxu0 0.0
        %4036 = vmatprep.subr.mxu0 0.0
        %4037 = vmatpush1.msra.mxu0 0.0
        %4038 = vmatprep.subr.mxu0 0.0
        %4039 = vmatpush1.msra.mxu0 0.0
        %4040 = vmatprep.subr.mxu0 0.0
        %4041 = vmatpush1.msra.mxu0 0.0
        %4042 = vmatprep.subr.mxu0 0.0
        %4043 = vmatpush1.msra.mxu0 0.0
        %4044 = vmatprep.subr.mxu0 0.0
        %4045 = vmatpush1.msra.mxu0 0.0
        %4046 = vmatprep.subr.mxu0 0.0
        %4047 = vmatpush1.msra.mxu0 0.0
        %4048 = vmatprep.subr.mxu0 0.0
        %4049 = vmatpush1.msra.mxu0 0.0
        %4050 = vmatprep.subr.mxu0 0.0
        %4051 = vmatpush1.msra.mxu0 0.0
        %4052 = vmatprep.subr.mxu0 0.0
        %4053 = vmatpush1.msra.mxu0 0.0
        %4054 = vmatprep.subr.mxu0 0.0
        %4055 = vmatpush1.msra.mxu0 0.0
        %4056 = vmatprep.subr.mxu0 0.0
        %4057 = vmatpush1.msra.mxu0 0.0
        %4058 = vmatprep.subr.mxu0 0.0
        %4059 = vmatpush1.msra.mxu0 0.0
        %4060 = vmatprep.subr.mxu0 0.0
        %4061 = vmatpush1.msra.mxu0 0.0
        %4062 = vmatprep.subr.mxu0 0.0
        %4063 = vmatpush1.msra.mxu0 0.0
        %4064 = vmatprep.subr.mxu0 0.0
        %4065 = vmatpush1.msra.mxu0 0.0
        %4066 = vmatprep.subr.mxu0 0.0
        %4067 = vmatpush1.msra.mxu0 0.0
        %4068 = vmatprep.subr.mxu0 0.0
        %4069 = vmatpush1.msra.mxu0 0.0
        %4070 = vmatprep.subr.mxu0 0.0
        %4071 = vmatpush1.msra.mxu0 0.0
        %4072 = vmatprep.subr.mxu0 0.0
        %4073 = vmatpush1.msra.mxu0 0.0
        %4074 = vmatprep.subr.mxu0 0.0
        %4075 = vmatpush1.msra.mxu0 0.0
        %4076 = vmatprep.subr.mxu0 0.0
        %4077 = vmatpush1.msra.mxu0 0.0
        %4078 = vmatprep.subr.mxu0 0.0
        %4079 = vmatpush1.msra.mxu0 0.0
        %4080 = vmatprep.subr.mxu0 0.0
        %4081 = vmatpush1.msra.mxu0 0.0
        %4082 = vmatprep.subr.mxu0 0.0
        %4083 = vmatpush1.msra.mxu0 0.0
        %4084 = vmatprep.subr.mxu0 0.0
        %4085 = vmatpush1.msra.mxu0 0.0
        %4086 = vmatprep.subr.mxu0 0.0
        %4087 = vmatpush1.msra.mxu0 0.0
        %4088 = vmatprep.subr.mxu0 0.0
        %4089 = vmatpush1.msra.mxu0 0.0
        %4090 = vmatprep.mubr.f32.mxu0 0.0
        %4091 = vmatmul.mubr.f32.gmra.mrb[0].mxu0 %v4015
        %v4092 = vpop.f32.mrb[0].mxu0
        %v4093 = vadd.f32 0.0, %v4092
        %v4094 = vpop.f32.mrb[0].mxu0
        %4095 = vmatprep.mubr.f32.mxu0 0.0
        %4096 = vmatmul.mubr.f32.gmra.mrb[0].mxu0 %v4018
        %v4097 = vpop.f32.mrb[0].mxu0
        %v4098 = vadd.f32 0.0, %v4097
        %v4099 = vpop.f32.mrb[0].mxu0
        %4100 = vmatprep.mubr.f32.mxu0 0.0
        %4101 = vmatmul.mubr.f32.gmra.mrb[0].mxu0 %v4021
        %v4102 = vpop.f32.mrb[0].mxu0
        %v4103 = vadd.f32 0.0, %v4102
        %v4104 = vpop.f32.mrb[0].mxu0
        %4105 = vdwg.mxu0
        %s4106 = scalar_lea.vmem %s10, 32
        %v4107 = vld [vmem:[%s4106] sm:$0xff]
        %s4108 = scalar_lea.vmem %s4, 160
        %v4109 = vld [vmem:[%s4108] sm:$0xff]
        %v4110 = vld [vmem:[%s4108 + $0x8] sm:$0xff]
        %v4111 = vld [vmem:[%s4108 + $0x10] sm:$0xff]
        %v4112 = vld [vmem:[%s4108 + $0x18] sm:$0xff]
        %s4113 = scalar_lea.vmem %s5, 5
        %v4114 = vld [vmem:[%s4113] sm:$0x1]
        %v4116 = vlaneseq
        %v4117 = vshrl.u32 %v4116, 7
        %v4118 = vsub.s32 0, %v4117
        %v4119 = vrot.slane %v4114, %v4118
        %4121 = vmatprep.subr.mxu0 0.0
        %4122 = vmatpush1.msra.mxu0 %v4109
        %4123 = vmatprep.subr.mxu0 0.0
        %4124 = vmatpush1.msra.mxu0 %v4110
        %4125 = vmatprep.subr.mxu0 0.0
        %4126 = vmatpush1.msra.mxu0 %v4111
        %4127 = vmatprep.subr.mxu0 0.0
        %4128 = vmatpush1.msra.mxu0 %v4112
        %4129 = vmatprep.subr.mxu0 0.0
        %4130 = vmatpush1.msra.mxu0 0.0
        %4131 = vmatprep.subr.mxu0 0.0
        %4132 = vmatpush1.msra.mxu0 0.0
        %4133 = vmatprep.subr.mxu0 0.0
        %4134 = vmatpush1.msra.mxu0 0.0
        %4135 = vmatprep.subr.mxu0 0.0
        %4136 = vmatpush1.msra.mxu0 0.0
        %4137 = vmatprep.subr.mxu0 0.0
        %4138 = vmatpush1.msra.mxu0 0.0
        %4139 = vmatprep.subr.mxu0 0.0
        %4140 = vmatpush1.msra.mxu0 0.0
        %4141 = vmatprep.subr.mxu0 0.0
        %4142 = vmatpush1.msra.mxu0 0.0
        %4143 = vmatprep.subr.mxu0 0.0
        %4144 = vmatpush1.msra.mxu0 0.0
        %4145 = vmatprep.subr.mxu0 0.0
        %4146 = vmatpush1.msra.mxu0 0.0
        %4147 = vmatprep.subr.mxu0 0.0
        %4148 = vmatpush1.msra.mxu0 0.0
        %4149 = vmatprep.subr.mxu0 0.0
        %4150 = vmatpush1.msra.mxu0 0.0
        %4151 = vmatprep.subr.mxu0 0.0
        %4152 = vmatpush1.msra.mxu0 0.0
        %4153 = vmatprep.subr.mxu0 0.0
        %4154 = vmatpush1.msra.mxu0 0.0
        %4155 = vmatprep.subr.mxu0 0.0
        %4156 = vmatpush1.msra.mxu0 0.0
        %4157 = vmatprep.subr.mxu0 0.0
        %4158 = vmatpush1.msra.mxu0 0.0
        %4159 = vmatprep.subr.mxu0 0.0
        %4160 = vmatpush1.msra.mxu0 0.0
        %4161 = vmatprep.subr.mxu0 0.0
        %4162 = vmatpush1.msra.mxu0 0.0
        %4163 = vmatprep.subr.mxu0 0.0
        %4164 = vmatpush1.msra.mxu0 0.0
        %4165 = vmatprep.subr.mxu0 0.0
        %4166 = vmatpush1.msra.mxu0 0.0
        %4167 = vmatprep.subr.mxu0 0.0
        %4168 = vmatpush1.msra.mxu0 0.0
        %4169 = vmatprep.subr.mxu0 0.0
        %4170 = vmatpush1.msra.mxu0 0.0
        %4171 = vmatprep.subr.mxu0 0.0
        %4172 = vmatpush1.msra.mxu0 0.0
        %4173 = vmatprep.subr.mxu0 0.0
        %4174 = vmatpush1.msra.mxu0 0.0
        %4175 = vmatprep.subr.mxu0 0.0
        %4176 = vmatpush1.msra.mxu0 0.0
        %4177 = vmatprep.subr.mxu0 0.0
        %4178 = vmatpush1.msra.mxu0 0.0
        %4179 = vmatprep.subr.mxu0 0.0
        %4180 = vmatpush1.msra.mxu0 0.0
        %4181 = vmatprep.subr.mxu0 0.0
        %4182 = vmatpush1.msra.mxu0 0.0
        %4183 = vmatprep.subr.mxu0 0.0
        %4184 = vmatpush1.msra.mxu0 0.0
        %4185 = vmatprep.mubr.f32.mxu0 0.0
        %4186 = vmatmul.mubr.f32.gmra.mrb[0].mxu0 %v3606
        %v4187 = vpop.f32.mrb[0].mxu0
        %v4188 = vadd.f32 %v4119, %v4187
        %v4189 = vpop.f32.mrb[0].mxu0
        %4190 = vmatprep.mubr.f32.mxu0 0.0
        %4191 = vmatmul.mubr.f32.gmra.mrb[0].mxu0 %v3609
        %v4192 = vpop.f32.mrb[0].mxu0
        %v4193 = vadd.f32 %v4119, %v4192
        %v4194 = vpop.f32.mrb[0].mxu0
        %4195 = vmatprep.mubr.f32.mxu0 0.0
        %4196 = vmatmul.mubr.f32.gmra.mrb[0].mxu0 %v3612
        %v4197 = vpop.f32.mrb[0].mxu0
        %v4198 = vadd.f32 %v4119, %v4197
        %v4199 = vpop.f32.mrb[0].mxu0
        %4200 = vdwg.mxu0
        %s4201 = scalar_lea.vmem %s6, 160
        %v4202 = vld [vmem:[%s4201] sm:$0xff]
        %v4203 = vld [vmem:[%s4201 + $0x8] sm:$0xff]
        %v4204 = vld [vmem:[%s4201 + $0x10] sm:$0xff]
        %v4205 = vld [vmem:[%s4201 + $0x18] sm:$0xff]
        %s4206 = scalar_lea.vmem %s7, 5
        %v4207 = vld [vmem:[%s4206] sm:$0x1]
        %v4209 = vlaneseq
        %v4210 = vshrl.u32 %v4209, 7
        %v4211 = vsub.s32 0, %v4210
        %v4212 = vrot.slane %v4207, %v4211
        %4214 = vmatprep.subr.mxu0 0.0
        %4215 = vmatpush1.msra.mxu0 %v4202
        %4216 = vmatprep.subr.mxu0 0.0
        %4217 = vmatpush1.msra.mxu0 %v4203
        %4218 = vmatprep.subr.mxu0 0.0
        %4219 = vmatpush1.msra.mxu0 %v4204
        %4220 = vmatprep.subr.mxu0 0.0
        %4221 = vmatpush1.msra.mxu0 %v4205
        %4222 = vmatprep.subr.mxu0 0.0
        %4223 = vmatpush1.msra.mxu0 0.0
        %4224 = vmatprep.subr.mxu0 0.0
        %4225 = vmatpush1.msra.mxu0 0.0
        %4226 = vmatprep.subr.mxu0 0.0
        %4227 = vmatpush1.msra.mxu0 0.0
        %4228 = vmatprep.subr.mxu0 0.0
        %4229 = vmatpush1.msra.mxu0 0.0
        %4230 = vmatprep.subr.mxu0 0.0
        %4231 = vmatpush1.msra.mxu0 0.0
        %4232 = vmatprep.subr.mxu0 0.0
        %4233 = vmatpush1.msra.mxu0 0.0
        %4234 = vmatprep.subr.mxu0 0.0
        %4235 = vmatpush1.msra.mxu0 0.0
        %4236 = vmatprep.subr.mxu0 0.0
        %4237 = vmatpush1.msra.mxu0 0.0
        %4238 = vmatprep.subr.mxu0 0.0
        %4239 = vmatpush1.msra.mxu0 0.0
        %4240 = vmatprep.subr.mxu0 0.0
        %4241 = vmatpush1.msra.mxu0 0.0
        %4242 = vmatprep.subr.mxu0 0.0
        %4243 = vmatpush1.msra.mxu0 0.0
        %4244 = vmatprep.subr.mxu0 0.0
        %4245 = vmatpush1.msra.mxu0 0.0
        %4246 = vmatprep.subr.mxu0 0.0
        %4247 = vmatpush1.msra.mxu0 0.0
        %4248 = vmatprep.subr.mxu0 0.0
        %4249 = vmatpush1.msra.mxu0 0.0
        %4250 = vmatprep.subr.mxu0 0.0
        %4251 = vmatpush1.msra.mxu0 0.0
        %4252 = vmatprep.subr.mxu0 0.0
        %4253 = vmatpush1.msra.mxu0 0.0
        %4254 = vmatprep.subr.mxu0 0.0
        %4255 = vmatpush1.msra.mxu0 0.0
        %4256 = vmatprep.subr.mxu0 0.0
        %4257 = vmatpush1.msra.mxu0 0.0
        %4258 = vmatprep.subr.mxu0 0.0
        %4259 = vmatpush1.msra.mxu0 0.0
        %4260 = vmatprep.subr.mxu0 0.0
        %4261 = vmatpush1.msra.mxu0 0.0
        %4262 = vmatprep.subr.mxu0 0.0
        %4263 = vmatpush1.msra.mxu0 0.0
        %4264 = vmatprep.subr.mxu0 0.0
        %4265 = vmatpush1.msra.mxu0 0.0
        %4266 = vmatprep.subr.mxu0 0.0
        %4267 = vmatpush1.msra.mxu0 0.0
        %4268 = vmatprep.subr.mxu0 0.0
        %4269 = vmatpush1.msra.mxu0 0.0
        %4270 = vmatprep.subr.mxu0 0.0
        %4271 = vmatpush1.msra.mxu0 0.0
        %4272 = vmatprep.subr.mxu0 0.0
        %4273 = vmatpush1.msra.mxu0 0.0
        %4274 = vmatprep.subr.mxu0 0.0
        %4275 = vmatpush1.msra.mxu0 0.0
        %4276 = vmatprep.subr.mxu0 0.0
        %4277 = vmatpush1.msra.mxu0 0.0
        %4278 = vmatprep.mubr.f32.mxu0 0.0
        %4279 = vmatmul.mubr.f32.gmra.mrb[0].mxu0 %v3606
        %v4280 = vpop.f32.mrb[0].mxu0
        %v4281 = vadd.f32 %v4212, %v4280
        %v4282 = vpop.f32.mrb[0].mxu0
        %4283 = vmatprep.mubr.f32.mxu0 0.0
        %4284 = vmatmul.mubr.f32.gmra.mrb[0].mxu0 %v3609
        %v4285 = vpop.f32.mrb[0].mxu0
        %v4286 = vadd.f32 %v4212, %v4285
        %v4287 = vpop.f32.mrb[0].mxu0
        %4288 = vmatprep.mubr.f32.mxu0 0.0
        %4289 = vmatmul.mubr.f32.gmra.mrb[0].mxu0 %v3612
        %v4290 = vpop.f32.mrb[0].mxu0
        %v4291 = vadd.f32 %v4212, %v4290
        %v4292 = vpop.f32.mrb[0].mxu0
        %4293 = vdwg.mxu0
        %s4294 = scalar_lea.vmem %s8, 160
        %v4295 = vld [vmem:[%s4294] sm:$0xff]
        %v4296 = vld [vmem:[%s4294 + $0x8] sm:$0xff]
        %v4297 = vld [vmem:[%s4294 + $0x10] sm:$0xff]
        %v4298 = vld [vmem:[%s4294 + $0x18] sm:$0xff]
        %s4299 = scalar_lea.vmem %s9, 5
        %v4300 = vld [vmem:[%s4299] sm:$0x1]
        %v4302 = vlaneseq
        %v4303 = vshrl.u32 %v4302, 7
        %v4304 = vsub.s32 0, %v4303
        %v4305 = vrot.slane %v4300, %v4304
        %4307 = vmatprep.subr.mxu0 0.0
        %4308 = vmatpush1.msra.mxu0 %v4295
        %4309 = vmatprep.subr.mxu0 0.0
        %4310 = vmatpush1.msra.mxu0 %v4296
        %4311 = vmatprep.subr.mxu0 0.0
        %4312 = vmatpush1.msra.mxu0 %v4297
        %4313 = vmatprep.subr.mxu0 0.0
        %4314 = vmatpush1.msra.mxu0 %v4298
        %4315 = vmatprep.subr.mxu0 0.0
        %4316 = vmatpush1.msra.mxu0 0.0
        %4317 = vmatprep.subr.mxu0 0.0
        %4318 = vmatpush1.msra.mxu0 0.0
        %4319 = vmatprep.subr.mxu0 0.0
        %4320 = vmatpush1.msra.mxu0 0.0
        %4321 = vmatprep.subr.mxu0 0.0
        %4322 = vmatpush1.msra.mxu0 0.0
        %4323 = vmatprep.subr.mxu0 0.0
        %4324 = vmatpush1.msra.mxu0 0.0
        %4325 = vmatprep.subr.mxu0 0.0
        %4326 = vmatpush1.msra.mxu0 0.0
        %4327 = vmatprep.subr.mxu0 0.0
        %4328 = vmatpush1.msra.mxu0 0.0
        %4329 = vmatprep.subr.mxu0 0.0
        %4330 = vmatpush1.msra.mxu0 0.0
        %4331 = vmatprep.subr.mxu0 0.0
        %4332 = vmatpush1.msra.mxu0 0.0
        %4333 = vmatprep.subr.mxu0 0.0
        %4334 = vmatpush1.msra.mxu0 0.0
        %4335 = vmatprep.subr.mxu0 0.0
        %4336 = vmatpush1.msra.mxu0 0.0
        %4337 = vmatprep.subr.mxu0 0.0
        %4338 = vmatpush1.msra.mxu0 0.0
        %4339 = vmatprep.subr.mxu0 0.0
        %4340 = vmatpush1.msra.mxu0 0.0
        %4341 = vmatprep.subr.mxu0 0.0
        %4342 = vmatpush1.msra.mxu0 0.0
        %4343 = vmatprep.subr.mxu0 0.0
        %4344 = vmatpush1.msra.mxu0 0.0
        %4345 = vmatprep.subr.mxu0 0.0
        %4346 = vmatpush1.msra.mxu0 0.0
        %4347 = vmatprep.subr.mxu0 0.0
        %4348 = vmatpush1.msra.mxu0 0.0
        %4349 = vmatprep.subr.mxu0 0.0
        %4350 = vmatpush1.msra.mxu0 0.0
        %4351 = vmatprep.subr.mxu0 0.0
        %4352 = vmatpush1.msra.mxu0 0.0
        %4353 = vmatprep.subr.mxu0 0.0
        %4354 = vmatpush1.msra.mxu0 0.0
        %4355 = vmatprep.subr.mxu0 0.0
        %4356 = vmatpush1.msra.mxu0 0.0
        %4357 = vmatprep.subr.mxu0 0.0
        %4358 = vmatpush1.msra.mxu0 0.0
        %4359 = vmatprep.subr.mxu0 0.0
        %4360 = vmatpush1.msra.mxu0 0.0
        %4361 = vmatprep.subr.mxu0 0.0
        %4362 = vmatpush1.msra.mxu0 0.0
        %4363 = vmatprep.subr.mxu0 0.0
        %4364 = vmatpush1.msra.mxu0 0.0
        %4365 = vmatprep.subr.mxu0 0.0
        %4366 = vmatpush1.msra.mxu0 0.0
        %4367 = vmatprep.subr.mxu0 0.0
        %4368 = vmatpush1.msra.mxu0 0.0
        %4369 = vmatprep.subr.mxu0 0.0
        %4370 = vmatpush1.msra.mxu0 0.0
        %4371 = vmatprep.mubr.f32.mxu0 0.0
        %4372 = vmatmul.mubr.f32.gmra.mrb[0].mxu0 %v3606
        %v4373 = vpop.f32.mrb[0].mxu0
        %v4374 = vadd.f32 %v4305, %v4373
        %v4375 = vpop.f32.mrb[0].mxu0
        %4376 = vmatprep.mubr.f32.mxu0 0.0
        %4377 = vmatmul.mubr.f32.gmra.mrb[0].mxu0 %v3609
        %v4378 = vpop.f32.mrb[0].mxu0
        %v4379 = vadd.f32 %v4305, %v4378
        %v4380 = vpop.f32.mrb[0].mxu0
        %4381 = vmatprep.mubr.f32.mxu0 0.0
        %4382 = vmatmul.mubr.f32.gmra.mrb[0].mxu0 %v3612
        %v4383 = vpop.f32.mrb[0].mxu0
        %v4384 = vadd.f32 %v4305, %v4383
        %v4385 = vpop.f32.mrb[0].mxu0
        %4386 = vdwg.mxu0
        %v4388 = vsel %vm1135, %v4188, 0
        %v4391 = vsel %vm1135, %v4193, 0
        %v4394 = vsel %vm1135, %v4198, 0
        %v4397 = vsel %vm1135, %v4281, 0
        %v4400 = vsel %vm1135, %v4286, 0
        %v4403 = vsel %vm1135, %v4291, 0
        %4405 = vmatprep.subr.mxu0 0.0
        %4406 = vmatpush1.xpose.msra.mxu0 %v4397
        %4407 = vmatprep.subr.mxu0 0.0
        %4408 = vmatpush1.xpose.msra.mxu0 %v4400
        %4409 = vmatprep.subr.mxu0 0.0
        %4410 = vmatpush1.xpose.msra.mxu0 %v4403
        %4411 = vmatprep.subr.mxu0 0.0
        %4412 = vmatpush1.xpose.msra.mxu0 0.0
        %4413 = vmatprep.subr.mxu0 0.0
        %4414 = vmatpush1.xpose.msra.mxu0 0.0
        %4415 = vmatprep.subr.mxu0 0.0
        %4416 = vmatpush1.xpose.msra.mxu0 0.0
        %4417 = vmatprep.subr.mxu0 0.0
        %4418 = vmatpush1.xpose.msra.mxu0 0.0
        %4419 = vmatprep.subr.mxu0 0.0
        %4420 = vmatpush1.xpose.msra.mxu0 0.0
        %4421 = vmatprep.subr.mxu0 0.0
        %4422 = vmatpush1.xpose.msra.mxu0 0.0
        %4423 = vmatprep.subr.mxu0 0.0
        %4424 = vmatpush1.xpose.msra.mxu0 0.0
        %4425 = vmatprep.subr.mxu0 0.0
        %4426 = vmatpush1.xpose.msra.mxu0 0.0
        %4427 = vmatprep.subr.mxu0 0.0
        %4428 = vmatpush1.xpose.msra.mxu0 0.0
        %4429 = vmatprep.subr.mxu0 0.0
        %4430 = vmatpush1.xpose.msra.mxu0 0.0
        %4431 = vmatprep.subr.mxu0 0.0
        %4432 = vmatpush1.xpose.msra.mxu0 0.0
        %4433 = vmatprep.subr.mxu0 0.0
        %4434 = vmatpush1.xpose.msra.mxu0 0.0
        %4435 = vmatprep.subr.mxu0 0.0
        %4436 = vmatpush1.xpose.msra.mxu0 0.0
        %4437 = vmatprep.subr.mxu0 0.0
        %4438 = vmatpush1.xpose.msra.mxu0 0.0
        %4439 = vmatprep.subr.mxu0 0.0
        %4440 = vmatpush1.xpose.msra.mxu0 0.0
        %4441 = vmatprep.subr.mxu0 0.0
        %4442 = vmatpush1.xpose.msra.mxu0 0.0
        %4443 = vmatprep.subr.mxu0 0.0
        %4444 = vmatpush1.xpose.msra.mxu0 0.0
        %4445 = vmatprep.subr.mxu0 0.0
        %4446 = vmatpush1.xpose.msra.mxu0 0.0
        %4447 = vmatprep.subr.mxu0 0.0
        %4448 = vmatpush1.xpose.msra.mxu0 0.0
        %4449 = vmatprep.subr.mxu0 0.0
        %4450 = vmatpush1.xpose.msra.mxu0 0.0
        %4451 = vmatprep.subr.mxu0 0.0
        %4452 = vmatpush1.xpose.msra.mxu0 0.0
        %4453 = vmatprep.subr.mxu0 0.0
        %4454 = vmatpush1.xpose.msra.mxu0 0.0
        %4455 = vmatprep.subr.mxu0 0.0
        %4456 = vmatpush1.xpose.msra.mxu0 0.0
        %4457 = vmatprep.subr.mxu0 0.0
        %4458 = vmatpush1.xpose.msra.mxu0 0.0
        %4459 = vmatprep.subr.mxu0 0.0
        %4460 = vmatpush1.xpose.msra.mxu0 0.0
        %4461 = vmatprep.subr.mxu0 0.0
        %4462 = vmatpush1.xpose.msra.mxu0 0.0
        %4463 = vmatprep.subr.mxu0 0.0
        %4464 = vmatpush1.xpose.msra.mxu0 0.0
        %4465 = vmatprep.subr.mxu0 0.0
        %4466 = vmatpush1.xpose.msra.mxu0 0.0
        %4467 = vmatprep.subr.mxu0 0.0
        %4468 = vmatpush1.xpose.msra.mxu0 0.0
        %4469 = vmatprep.mubr.f32.mxu0 0.0
        %4470 = vmatmul.mubr.f32.gmra.mrb[0].mxu0 %v4388
        %v4471 = vpop.f32.mrb[0].mxu0
        %v4472 = vadd.f32 0.0, %v4471
        %v4473 = vpop.f32.mrb[0].mxu0
        %4474 = vmatprep.mubr.f32.mxu0 0.0
        %4475 = vmatmul.mubr.f32.gmra.mrb[0].mxu0 %v4391
        %v4476 = vpop.f32.mrb[0].mxu0
        %v4477 = vadd.f32 0.0, %v4476
        %v4478 = vpop.f32.mrb[0].mxu0
        %4479 = vmatprep.mubr.f32.mxu0 0.0
        %4480 = vmatmul.mubr.f32.gmra.mrb[0].mxu0 %v4394
        %v4481 = vpop.f32.mrb[0].mxu0
        %v4482 = vadd.f32 0.0, %v4481
        %v4483 = vpop.f32.mrb[0].mxu0
        %4484 = vdwg.mxu0
        %v4485 = vmul.f32 %v4472, 0.35355338
        %v4486 = vmul.f32 %v4477, 0.35355338
        %v4487 = vmul.f32 %v4482, 0.35355338
        %v4488 = vsel %vm1237, %v4485, -inf
        %4489 = vmax.xlane.f32.xlu0 %v4488
        %v4490 = vpop.xlane.xlu0 %4489
        %v4491 = vsel %vm1237, %v4486, -inf
        %4492 = vmax.xlane.f32.xlu0 %v4491
        %v4493 = vpop.xlane.xlu0 %4492
        %v4494 = vsel %vm1244, %v4487, -inf
        %4495 = vmax.xlane.f32.xlu0 %v4494
        %v4496 = vpop.xlane.xlu0 %4495
        %v4497 = vsub.f32 %v4485, %v4490
        %v4498 = vsub.f32 %v4486, %v4493
        %v4499 = vsub.f32 %v4487, %v4496
        %v4500 = vmul.f32 %v4497, 1.442695
        %v4501 = vpow.pop %v4500
        %v4502 = vmul.f32 %v4498, 1.442695
        %v4503 = vpow.pop %v4502
        %v4504 = vmul.f32 %v4499, 1.442695
        %v4505 = vpow.pop %v4504
        %v4506 = vsel %vm1237, %v4501, 0.0
        %4507 = vadd.xlane.f32.xlu0 %v4506
        %v4508 = vpop.xlane.xlu0 %4507
        %v4509 = vsel %vm1237, %v4503, 0.0
        %4510 = vadd.xlane.f32.xlu0 %v4509
        %v4511 = vpop.xlane.xlu0 %4510
        %v4512 = vsel %vm1244, %v4505, 0.0
        %4513 = vadd.xlane.f32.xlu0 %v4512
        %v4514 = vpop.xlane.xlu0 %4513
        %v4515 = vrcp.pop %v4508
        %v4516 = vrcp.pop %v4511
        %v4517 = vrcp.pop %v4514
        %v4518 = vmul.f32 %v4501, %v4515
        %v4519 = vmul.f32 %v4503, %v4516
        %v4520 = vmul.f32 %v4505, %v4517
        %v4522 = vsel %vm1237, %v4518, 0
        %v4525 = vsel %vm1237, %v4519, 0
        %v4528 = vsel %vm1237, %v4520, 0
        %v4531 = vsel %vm762, %v4384, 0
        %4533 = vmatprep.subr.mxu0 0.0
        %4534 = vmatpush1.msra.mxu0 %v4374
        %4535 = vmatprep.subr.mxu0 0.0
        %4536 = vmatpush1.msra.mxu0 %v4379
        %4537 = vmatprep.subr.mxu0 0.0
        %4538 = vmatpush1.msra.mxu0 %v4531
        %4539 = vmatprep.subr.mxu0 0.0
        %4540 = vmatpush1.msra.mxu0 0.0
        %4541 = vmatprep.subr.mxu0 0.0
        %4542 = vmatpush1.msra.mxu0 0.0
        %4543 = vmatprep.subr.mxu0 0.0
        %4544 = vmatpush1.msra.mxu0 0.0
        %4545 = vmatprep.subr.mxu0 0.0
        %4546 = vmatpush1.msra.mxu0 0.0
        %4547 = vmatprep.subr.mxu0 0.0
        %4548 = vmatpush1.msra.mxu0 0.0
        %4549 = vmatprep.subr.mxu0 0.0
        %4550 = vmatpush1.msra.mxu0 0.0
        %4551 = vmatprep.subr.mxu0 0.0
        %4552 = vmatpush1.msra.mxu0 0.0
        %4553 = vmatprep.subr.mxu0 0.0
        %4554 = vmatpush1.msra.mxu0 0.0
        %4555 = vmatprep.subr.mxu0 0.0
        %4556 = vmatpush1.msra.mxu0 0.0
        %4557 = vmatprep.subr.mxu0 0.0
        %4558 = vmatpush1.msra.mxu0 0.0
        %4559 = vmatprep.subr.mxu0 0.0
        %4560 = vmatpush1.msra.mxu0 0.0
        %4561 = vmatprep.subr.mxu0 0.0
        %4562 = vmatpush1.msra.mxu0 0.0
        %4563 = vmatprep.subr.mxu0 0.0
        %4564 = vmatpush1.msra.mxu0 0.0
        %4565 = vmatprep.subr.mxu0 0.0
        %4566 = vmatpush1.msra.mxu0 0.0
        %4567 = vmatprep.subr.mxu0 0.0
        %4568 = vmatpush1.msra.mxu0 0.0
        %4569 = vmatprep.subr.mxu0 0.0
        %4570 = vmatpush1.msra.mxu0 0.0
        %4571 = vmatprep.subr.mxu0 0.0
        %4572 = vmatpush1.msra.mxu0 0.0
        %4573 = vmatprep.subr.mxu0 0.0
        %4574 = vmatpush1.msra.mxu0 0.0
        %4575 = vmatprep.subr.mxu0 0.0
        %4576 = vmatpush1.msra.mxu0 0.0
        %4577 = vmatprep.subr.mxu0 0.0
        %4578 = vmatpush1.msra.mxu0 0.0
        %4579 = vmatprep.subr.mxu0 0.0
        %4580 = vmatpush1.msra.mxu0 0.0
        %4581 = vmatprep.subr.mxu0 0.0
        %4582 = vmatpush1.msra.mxu0 0.0
        %4583 = vmatprep.subr.mxu0 0.0
        %4584 = vmatpush1.msra.mxu0 0.0
        %4585 = vmatprep.subr.mxu0 0.0
        %4586 = vmatpush1.msra.mxu0 0.0
        %4587 = vmatprep.subr.mxu0 0.0
        %4588 = vmatpush1.msra.mxu0 0.0
        %4589 = vmatprep.subr.mxu0 0.0
        %4590 = vmatpush1.msra.mxu0 0.0
        %4591 = vmatprep.subr.mxu0 0.0
        %4592 = vmatpush1.msra.mxu0 0.0
        %4593 = vmatprep.subr.mxu0 0.0
        %4594 = vmatpush1.msra.mxu0 0.0
        %4595 = vmatprep.subr.mxu0 0.0
        %4596 = vmatpush1.msra.mxu0 0.0
        %4597 = vmatprep.mubr.f32.mxu0 0.0
        %4598 = vmatmul.mubr.f32.gmra.mrb[0].mxu0 %v4522
        %v4599 = vpop.f32.mrb[0].mxu0
        %v4600 = vadd.f32 0.0, %v4599
        %v4601 = vpop.f32.mrb[0].mxu0
        %4602 = vmatprep.mubr.f32.mxu0 0.0
        %4603 = vmatmul.mubr.f32.gmra.mrb[0].mxu0 %v4525
        %v4604 = vpop.f32.mrb[0].mxu0
        %v4605 = vadd.f32 0.0, %v4604
        %v4606 = vpop.f32.mrb[0].mxu0
        %4607 = vmatprep.mubr.f32.mxu0 0.0
        %4608 = vmatmul.mubr.f32.gmra.mrb[0].mxu0 %v4528
        %v4609 = vpop.f32.mrb[0].mxu0
        %v4610 = vadd.f32 0.0, %v4609
        %v4611 = vpop.f32.mrb[0].mxu0
        %4612 = vdwg.mxu0
        %s4613 = scalar_lea.vmem %s10, 40
        %v4614 = vld [vmem:[%s4613] sm:$0xff]
        %v4616 = vsel %vm1135, %v4600, 0
        %v4619 = vsel %vm1135, %v4605, 0
        %v4622 = vsel %vm1135, %v4610, 0
        %4624 = vmatprep.subr.mxu0 0.0
        %4625 = vmatpush1.msra.mxu0 %v4614
        %4626 = vmatprep.subr.mxu0 0.0
        %4627 = vmatpush1.msra.mxu0 0.0
        %4628 = vmatprep.subr.mxu0 0.0
        %4629 = vmatpush1.msra.mxu0 0.0
        %4630 = vmatprep.subr.mxu0 0.0
        %4631 = vmatpush1.msra.mxu0 0.0
        %4632 = vmatprep.subr.mxu0 0.0
        %4633 = vmatpush1.msra.mxu0 0.0
        %4634 = vmatprep.subr.mxu0 0.0
        %4635 = vmatpush1.msra.mxu0 0.0
        %4636 = vmatprep.subr.mxu0 0.0
        %4637 = vmatpush1.msra.mxu0 0.0
        %4638 = vmatprep.subr.mxu0 0.0
        %4639 = vmatpush1.msra.mxu0 0.0
        %4640 = vmatprep.subr.mxu0 0.0
        %4641 = vmatpush1.msra.mxu0 0.0
        %4642 = vmatprep.subr.mxu0 0.0
        %4643 = vmatpush1.msra.mxu0 0.0
        %4644 = vmatprep.subr.mxu0 0.0
        %4645 = vmatpush1.msra.mxu0 0.0
        %4646 = vmatprep.subr.mxu0 0.0
        %4647 = vmatpush1.msra.mxu0 0.0
        %4648 = vmatprep.subr.mxu0 0.0
        %4649 = vmatpush1.msra.mxu0 0.0
        %4650 = vmatprep.subr.mxu0 0.0
        %4651 = vmatpush1.msra.mxu0 0.0
        %4652 = vmatprep.subr.mxu0 0.0
        %4653 = vmatpush1.msra.mxu0 0.0
        %4654 = vmatprep.subr.mxu0 0.0
        %4655 = vmatpush1.msra.mxu0 0.0
        %4656 = vmatprep.subr.mxu0 0.0
        %4657 = vmatpush1.msra.mxu0 0.0
        %4658 = vmatprep.subr.mxu0 0.0
        %4659 = vmatpush1.msra.mxu0 0.0
        %4660 = vmatprep.subr.mxu0 0.0
        %4661 = vmatpush1.msra.mxu0 0.0
        %4662 = vmatprep.subr.mxu0 0.0
        %4663 = vmatpush1.msra.mxu0 0.0
        %4664 = vmatprep.subr.mxu0 0.0
        %4665 = vmatpush1.msra.mxu0 0.0
        %4666 = vmatprep.subr.mxu0 0.0
        %4667 = vmatpush1.msra.mxu0 0.0
        %4668 = vmatprep.subr.mxu0 0.0
        %4669 = vmatpush1.msra.mxu0 0.0
        %4670 = vmatprep.subr.mxu0 0.0
        %4671 = vmatpush1.msra.mxu0 0.0
        %4672 = vmatprep.subr.mxu0 0.0
        %4673 = vmatpush1.msra.mxu0 0.0
        %4674 = vmatprep.subr.mxu0 0.0
        %4675 = vmatpush1.msra.mxu0 0.0
        %4676 = vmatprep.subr.mxu0 0.0
        %4677 = vmatpush1.msra.mxu0 0.0
        %4678 = vmatprep.subr.mxu0 0.0
        %4679 = vmatpush1.msra.mxu0 0.0
        %4680 = vmatprep.subr.mxu0 0.0
        %4681 = vmatpush1.msra.mxu0 0.0
        %4682 = vmatprep.subr.mxu0 0.0
        %4683 = vmatpush1.msra.mxu0 0.0
        %4684 = vmatprep.subr.mxu0 0.0
        %4685 = vmatpush1.msra.mxu0 0.0
        %4686 = vmatprep.subr.mxu0 0.0
        %4687 = vmatpush1.msra.mxu0 0.0
        %4688 = vmatprep.mubr.f32.mxu0 0.0
        %4689 = vmatmul.mubr.f32.gmra.mrb[0].mxu0 %v4616
        %v4690 = vpop.f32.mrb[0].mxu0
        %v4691 = vadd.f32 0.0, %v4690
        %v4692 = vpop.f32.mrb[0].mxu0
        %4693 = vmatprep.mubr.f32.mxu0 0.0
        %4694 = vmatmul.mubr.f32.gmra.mrb[0].mxu0 %v4619
        %v4695 = vpop.f32.mrb[0].mxu0
        %v4696 = vadd.f32 0.0, %v4695
        %v4697 = vpop.f32.mrb[0].mxu0
        %4698 = vmatprep.mubr.f32.mxu0 0.0
        %4699 = vmatmul.mubr.f32.gmra.mrb[0].mxu0 %v4622
        %v4700 = vpop.f32.mrb[0].mxu0
        %v4701 = vadd.f32 0.0, %v4700
        %v4702 = vpop.f32.mrb[0].mxu0
        %4703 = vdwg.mxu0
        %v4705 = vsel %vm1135, %v4093, 0
        %v4708 = vsel %vm1135, %v4098, 0
        %v4711 = vsel %vm1135, %v4103, 0
        %4713 = vmatprep.subr.mxu0 0.0
        %4714 = vmatpush1.msra.mxu0 %v4107
        %4715 = vmatprep.subr.mxu0 0.0
        %4716 = vmatpush1.msra.mxu0 0.0
        %4717 = vmatprep.subr.mxu0 0.0
        %4718 = vmatpush1.msra.mxu0 0.0
        %4719 = vmatprep.subr.mxu0 0.0
        %4720 = vmatpush1.msra.mxu0 0.0
        %4721 = vmatprep.subr.mxu0 0.0
        %4722 = vmatpush1.msra.mxu0 0.0
        %4723 = vmatprep.subr.mxu0 0.0
        %4724 = vmatpush1.msra.mxu0 0.0
        %4725 = vmatprep.subr.mxu0 0.0
        %4726 = vmatpush1.msra.mxu0 0.0
        %4727 = vmatprep.subr.mxu0 0.0
        %4728 = vmatpush1.msra.mxu0 0.0
        %4729 = vmatprep.subr.mxu0 0.0
        %4730 = vmatpush1.msra.mxu0 0.0
        %4731 = vmatprep.subr.mxu0 0.0
        %4732 = vmatpush1.msra.mxu0 0.0
        %4733 = vmatprep.subr.mxu0 0.0
        %4734 = vmatpush1.msra.mxu0 0.0
        %4735 = vmatprep.subr.mxu0 0.0
        %4736 = vmatpush1.msra.mxu0 0.0
        %4737 = vmatprep.subr.mxu0 0.0
        %4738 = vmatpush1.msra.mxu0 0.0
        %4739 = vmatprep.subr.mxu0 0.0
        %4740 = vmatpush1.msra.mxu0 0.0
        %4741 = vmatprep.subr.mxu0 0.0
        %4742 = vmatpush1.msra.mxu0 0.0
        %4743 = vmatprep.subr.mxu0 0.0
        %4744 = vmatpush1.msra.mxu0 0.0
        %4745 = vmatprep.subr.mxu0 0.0
        %4746 = vmatpush1.msra.mxu0 0.0
        %4747 = vmatprep.subr.mxu0 0.0
        %4748 = vmatpush1.msra.mxu0 0.0
        %4749 = vmatprep.subr.mxu0 0.0
        %4750 = vmatpush1.msra.mxu0 0.0
        %4751 = vmatprep.subr.mxu0 0.0
        %4752 = vmatpush1.msra.mxu0 0.0
        %4753 = vmatprep.subr.mxu0 0.0
        %4754 = vmatpush1.msra.mxu0 0.0
        %4755 = vmatprep.subr.mxu0 0.0
        %4756 = vmatpush1.msra.mxu0 0.0
        %4757 = vmatprep.subr.mxu0 0.0
        %4758 = vmatpush1.msra.mxu0 0.0
        %4759 = vmatprep.subr.mxu0 0.0
        %4760 = vmatpush1.msra.mxu0 0.0
        %4761 = vmatprep.subr.mxu0 0.0
        %4762 = vmatpush1.msra.mxu0 0.0
        %4763 = vmatprep.subr.mxu0 0.0
        %4764 = vmatpush1.msra.mxu0 0.0
        %4765 = vmatprep.subr.mxu0 0.0
        %4766 = vmatpush1.msra.mxu0 0.0
        %4767 = vmatprep.subr.mxu0 0.0
        %4768 = vmatpush1.msra.mxu0 0.0
        %4769 = vmatprep.subr.mxu0 0.0
        %4770 = vmatpush1.msra.mxu0 0.0
        %4771 = vmatprep.subr.mxu0 0.0
        %4772 = vmatpush1.msra.mxu0 0.0
        %4773 = vmatprep.subr.mxu0 0.0
        %4774 = vmatpush1.msra.mxu0 0.0
        %4775 = vmatprep.subr.mxu0 0.0
        %4776 = vmatpush1.msra.mxu0 0.0
        %4777 = vmatprep.mubr.f32.mxu0 0.0
        %4778 = vmatmul.mubr.f32.gmra.mrb[0].mxu0 %v4705
        %v4779 = vpop.f32.mrb[0].mxu0
        %v4780 = vadd.f32 %v4691, %v4779
        %v4781 = vpop.f32.mrb[0].mxu0
        %4782 = vmatprep.mubr.f32.mxu0 0.0
        %4783 = vmatmul.mubr.f32.gmra.mrb[0].mxu0 %v4708
        %v4784 = vpop.f32.mrb[0].mxu0
        %v4785 = vadd.f32 %v4696, %v4784
        %v4786 = vpop.f32.mrb[0].mxu0
        %4787 = vmatprep.mubr.f32.mxu0 0.0
        %4788 = vmatmul.mubr.f32.gmra.mrb[0].mxu0 %v4711
        %v4789 = vpop.f32.mrb[0].mxu0
        %v4790 = vadd.f32 %v4701, %v4789
        %v4791 = vpop.f32.mrb[0].mxu0
        %4792 = vdwg.mxu0
        %s4793 = scalar_lea.vmem %s4, 192
        %v4794 = vld [vmem:[%s4793] sm:$0xff]
        %v4795 = vld [vmem:[%s4793 + $0x8] sm:$0xff]
        %v4796 = vld [vmem:[%s4793 + $0x10] sm:$0xff]
        %v4797 = vld [vmem:[%s4793 + $0x18] sm:$0xff]
        %s4798 = scalar_lea.vmem %s5, 6
        %v4799 = vld [vmem:[%s4798] sm:$0x1]
        %v4801 = vlaneseq
        %v4802 = vshrl.u32 %v4801, 7
        %v4803 = vsub.s32 0, %v4802
        %v4804 = vrot.slane %v4799, %v4803
        %4806 = vmatprep.subr.mxu0 0.0
        %4807 = vmatpush1.msra.mxu0 %v4794
        %4808 = vmatprep.subr.mxu0 0.0
        %4809 = vmatpush1.msra.mxu0 %v4795
        %4810 = vmatprep.subr.mxu0 0.0
        %4811 = vmatpush1.msra.mxu0 %v4796
        %4812 = vmatprep.subr.mxu0 0.0
        %4813 = vmatpush1.msra.mxu0 %v4797
        %4814 = vmatprep.subr.mxu0 0.0
        %4815 = vmatpush1.msra.mxu0 0.0
        %4816 = vmatprep.subr.mxu0 0.0
        %4817 = vmatpush1.msra.mxu0 0.0
        %4818 = vmatprep.subr.mxu0 0.0
        %4819 = vmatpush1.msra.mxu0 0.0
        %4820 = vmatprep.subr.mxu0 0.0
        %4821 = vmatpush1.msra.mxu0 0.0
        %4822 = vmatprep.subr.mxu0 0.0
        %4823 = vmatpush1.msra.mxu0 0.0
        %4824 = vmatprep.subr.mxu0 0.0
        %4825 = vmatpush1.msra.mxu0 0.0
        %4826 = vmatprep.subr.mxu0 0.0
        %4827 = vmatpush1.msra.mxu0 0.0
        %4828 = vmatprep.subr.mxu0 0.0
        %4829 = vmatpush1.msra.mxu0 0.0
        %4830 = vmatprep.subr.mxu0 0.0
        %4831 = vmatpush1.msra.mxu0 0.0
        %4832 = vmatprep.subr.mxu0 0.0
        %4833 = vmatpush1.msra.mxu0 0.0
        %4834 = vmatprep.subr.mxu0 0.0
        %4835 = vmatpush1.msra.mxu0 0.0
        %4836 = vmatprep.subr.mxu0 0.0
        %4837 = vmatpush1.msra.mxu0 0.0
        %4838 = vmatprep.subr.mxu0 0.0
        %4839 = vmatpush1.msra.mxu0 0.0
        %4840 = vmatprep.subr.mxu0 0.0
        %4841 = vmatpush1.msra.mxu0 0.0
        %4842 = vmatprep.subr.mxu0 0.0
        %4843 = vmatpush1.msra.mxu0 0.0
        %4844 = vmatprep.subr.mxu0 0.0
        %4845 = vmatpush1.msra.mxu0 0.0
        %4846 = vmatprep.subr.mxu0 0.0
        %4847 = vmatpush1.msra.mxu0 0.0
        %4848 = vmatprep.subr.mxu0 0.0
        %4849 = vmatpush1.msra.mxu0 0.0
        %4850 = vmatprep.subr.mxu0 0.0
        %4851 = vmatpush1.msra.mxu0 0.0
        %4852 = vmatprep.subr.mxu0 0.0
        %4853 = vmatpush1.msra.mxu0 0.0
        %4854 = vmatprep.subr.mxu0 0.0
        %4855 = vmatpush1.msra.mxu0 0.0
        %4856 = vmatprep.subr.mxu0 0.0
        %4857 = vmatpush1.msra.mxu0 0.0
        %4858 = vmatprep.subr.mxu0 0.0
        %4859 = vmatpush1.msra.mxu0 0.0
        %4860 = vmatprep.subr.mxu0 0.0
        %4861 = vmatpush1.msra.mxu0 0.0
        %4862 = vmatprep.subr.mxu0 0.0
        %4863 = vmatpush1.msra.mxu0 0.0
        %4864 = vmatprep.subr.mxu0 0.0
        %4865 = vmatpush1.msra.mxu0 0.0
        %4866 = vmatprep.subr.mxu0 0.0
        %4867 = vmatpush1.msra.mxu0 0.0
        %4868 = vmatprep.subr.mxu0 0.0
        %4869 = vmatpush1.msra.mxu0 0.0
        %4870 = vmatprep.mubr.f32.mxu0 0.0
        %4871 = vmatmul.mubr.f32.gmra.mrb[0].mxu0 %v3606
        %v4872 = vpop.f32.mrb[0].mxu0
        %v4873 = vadd.f32 %v4804, %v4872
        %v4874 = vpop.f32.mrb[0].mxu0
        %4875 = vmatprep.mubr.f32.mxu0 0.0
        %4876 = vmatmul.mubr.f32.gmra.mrb[0].mxu0 %v3609
        %v4877 = vpop.f32.mrb[0].mxu0
        %v4878 = vadd.f32 %v4804, %v4877
        %v4879 = vpop.f32.mrb[0].mxu0
        %4880 = vmatprep.mubr.f32.mxu0 0.0
        %4881 = vmatmul.mubr.f32.gmra.mrb[0].mxu0 %v3612
        %v4882 = vpop.f32.mrb[0].mxu0
        %v4883 = vadd.f32 %v4804, %v4882
        %v4884 = vpop.f32.mrb[0].mxu0
        %4885 = vdwg.mxu0
        %s4886 = scalar_lea.vmem %s6, 192
        %v4887 = vld [vmem:[%s4886] sm:$0xff]
        %v4888 = vld [vmem:[%s4886 + $0x8] sm:$0xff]
        %v4889 = vld [vmem:[%s4886 + $0x10] sm:$0xff]
        %v4890 = vld [vmem:[%s4886 + $0x18] sm:$0xff]
        %s4891 = scalar_lea.vmem %s7, 6
        %v4892 = vld [vmem:[%s4891] sm:$0x1]
        %v4894 = vlaneseq
        %v4895 = vshrl.u32 %v4894, 7
        %v4896 = vsub.s32 0, %v4895
        %v4897 = vrot.slane %v4892, %v4896
        %4899 = vmatprep.subr.mxu0 0.0
        %4900 = vmatpush1.msra.mxu0 %v4887
        %4901 = vmatprep.subr.mxu0 0.0
        %4902 = vmatpush1.msra.mxu0 %v4888
        %4903 = vmatprep.subr.mxu0 0.0
        %4904 = vmatpush1.msra.mxu0 %v4889
        %4905 = vmatprep.subr.mxu0 0.0
        %4906 = vmatpush1.msra.mxu0 %v4890
        %4907 = vmatprep.subr.mxu0 0.0
        %4908 = vmatpush1.msra.mxu0 0.0
        %4909 = vmatprep.subr.mxu0 0.0
        %4910 = vmatpush1.msra.mxu0 0.0
        %4911 = vmatprep.subr.mxu0 0.0
        %4912 = vmatpush1.msra.mxu0 0.0
        %4913 = vmatprep.subr.mxu0 0.0
        %4914 = vmatpush1.msra.mxu0 0.0
        %4915 = vmatprep.subr.mxu0 0.0
        %4916 = vmatpush1.msra.mxu0 0.0
        %4917 = vmatprep.subr.mxu0 0.0
        %4918 = vmatpush1.msra.mxu0 0.0
        %4919 = vmatprep.subr.mxu0 0.0
        %4920 = vmatpush1.msra.mxu0 0.0
        %4921 = vmatprep.subr.mxu0 0.0
        %4922 = vmatpush1.msra.mxu0 0.0
        %4923 = vmatprep.subr.mxu0 0.0
        %4924 = vmatpush1.msra.mxu0 0.0
        %4925 = vmatprep.subr.mxu0 0.0
        %4926 = vmatpush1.msra.mxu0 0.0
        %4927 = vmatprep.subr.mxu0 0.0
        %4928 = vmatpush1.msra.mxu0 0.0
        %4929 = vmatprep.subr.mxu0 0.0
        %4930 = vmatpush1.msra.mxu0 0.0
        %4931 = vmatprep.subr.mxu0 0.0
        %4932 = vmatpush1.msra.mxu0 0.0
        %4933 = vmatprep.subr.mxu0 0.0
        %4934 = vmatpush1.msra.mxu0 0.0
        %4935 = vmatprep.subr.mxu0 0.0
        %4936 = vmatpush1.msra.mxu0 0.0
        %4937 = vmatprep.subr.mxu0 0.0
        %4938 = vmatpush1.msra.mxu0 0.0
        %4939 = vmatprep.subr.mxu0 0.0
        %4940 = vmatpush1.msra.mxu0 0.0
        %4941 = vmatprep.subr.mxu0 0.0
        %4942 = vmatpush1.msra.mxu0 0.0
        %4943 = vmatprep.subr.mxu0 0.0
        %4944 = vmatpush1.msra.mxu0 0.0
        %4945 = vmatprep.subr.mxu0 0.0
        %4946 = vmatpush1.msra.mxu0 0.0
        %4947 = vmatprep.subr.mxu0 0.0
        %4948 = vmatpush1.msra.mxu0 0.0
        %4949 = vmatprep.subr.mxu0 0.0
        %4950 = vmatpush1.msra.mxu0 0.0
        %4951 = vmatprep.subr.mxu0 0.0
        %4952 = vmatpush1.msra.mxu0 0.0
        %4953 = vmatprep.subr.mxu0 0.0
        %4954 = vmatpush1.msra.mxu0 0.0
        %4955 = vmatprep.subr.mxu0 0.0
        %4956 = vmatpush1.msra.mxu0 0.0
        %4957 = vmatprep.subr.mxu0 0.0
        %4958 = vmatpush1.msra.mxu0 0.0
        %4959 = vmatprep.subr.mxu0 0.0
        %4960 = vmatpush1.msra.mxu0 0.0
        %4961 = vmatprep.subr.mxu0 0.0
        %4962 = vmatpush1.msra.mxu0 0.0
        %4963 = vmatprep.mubr.f32.mxu0 0.0
        %4964 = vmatmul.mubr.f32.gmra.mrb[0].mxu0 %v3606
        %v4965 = vpop.f32.mrb[0].mxu0
        %v4966 = vadd.f32 %v4897, %v4965
        %v4967 = vpop.f32.mrb[0].mxu0
        %4968 = vmatprep.mubr.f32.mxu0 0.0
        %4969 = vmatmul.mubr.f32.gmra.mrb[0].mxu0 %v3609
        %v4970 = vpop.f32.mrb[0].mxu0
        %v4971 = vadd.f32 %v4897, %v4970
        %v4972 = vpop.f32.mrb[0].mxu0
        %4973 = vmatprep.mubr.f32.mxu0 0.0
        %4974 = vmatmul.mubr.f32.gmra.mrb[0].mxu0 %v3612
        %v4975 = vpop.f32.mrb[0].mxu0
        %v4976 = vadd.f32 %v4897, %v4975
        %v4977 = vpop.f32.mrb[0].mxu0
        %4978 = vdwg.mxu0
        %s4979 = scalar_lea.vmem %s8, 192
        %v4980 = vld [vmem:[%s4979] sm:$0xff]
        %v4981 = vld [vmem:[%s4979 + $0x8] sm:$0xff]
        %v4982 = vld [vmem:[%s4979 + $0x10] sm:$0xff]
        %v4983 = vld [vmem:[%s4979 + $0x18] sm:$0xff]
        %s4984 = scalar_lea.vmem %s9, 6
        %v4985 = vld [vmem:[%s4984] sm:$0x1]
        %v4987 = vlaneseq
        %v4988 = vshrl.u32 %v4987, 7
        %v4989 = vsub.s32 0, %v4988
        %v4990 = vrot.slane %v4985, %v4989
        %4992 = vmatprep.subr.mxu0 0.0
        %4993 = vmatpush1.msra.mxu0 %v4980
        %4994 = vmatprep.subr.mxu0 0.0
        %4995 = vmatpush1.msra.mxu0 %v4981
        %4996 = vmatprep.subr.mxu0 0.0
        %4997 = vmatpush1.msra.mxu0 %v4982
        %4998 = vmatprep.subr.mxu0 0.0
        %4999 = vmatpush1.msra.mxu0 %v4983
        %5000 = vmatprep.subr.mxu0 0.0
        %5001 = vmatpush1.msra.mxu0 0.0
        %5002 = vmatprep.subr.mxu0 0.0
        %5003 = vmatpush1.msra.mxu0 0.0
        %5004 = vmatprep.subr.mxu0 0.0
        %5005 = vmatpush1.msra.mxu0 0.0
        %5006 = vmatprep.subr.mxu0 0.0
        %5007 = vmatpush1.msra.mxu0 0.0
        %5008 = vmatprep.subr.mxu0 0.0
        %5009 = vmatpush1.msra.mxu0 0.0
        %5010 = vmatprep.subr.mxu0 0.0
        %5011 = vmatpush1.msra.mxu0 0.0
        %5012 = vmatprep.subr.mxu0 0.0
        %5013 = vmatpush1.msra.mxu0 0.0
        %5014 = vmatprep.subr.mxu0 0.0
        %5015 = vmatpush1.msra.mxu0 0.0
        %5016 = vmatprep.subr.mxu0 0.0
        %5017 = vmatpush1.msra.mxu0 0.0
        %5018 = vmatprep.subr.mxu0 0.0
        %5019 = vmatpush1.msra.mxu0 0.0
        %5020 = vmatprep.subr.mxu0 0.0
        %5021 = vmatpush1.msra.mxu0 0.0
        %5022 = vmatprep.subr.mxu0 0.0
        %5023 = vmatpush1.msra.mxu0 0.0
        %5024 = vmatprep.subr.mxu0 0.0
        %5025 = vmatpush1.msra.mxu0 0.0
        %5026 = vmatprep.subr.mxu0 0.0
        %5027 = vmatpush1.msra.mxu0 0.0
        %5028 = vmatprep.subr.mxu0 0.0
        %5029 = vmatpush1.msra.mxu0 0.0
        %5030 = vmatprep.subr.mxu0 0.0
        %5031 = vmatpush1.msra.mxu0 0.0
        %5032 = vmatprep.subr.mxu0 0.0
        %5033 = vmatpush1.msra.mxu0 0.0
        %5034 = vmatprep.subr.mxu0 0.0
        %5035 = vmatpush1.msra.mxu0 0.0
        %5036 = vmatprep.subr.mxu0 0.0
        %5037 = vmatpush1.msra.mxu0 0.0
        %5038 = vmatprep.subr.mxu0 0.0
        %5039 = vmatpush1.msra.mxu0 0.0
        %5040 = vmatprep.subr.mxu0 0.0
        %5041 = vmatpush1.msra.mxu0 0.0
        %5042 = vmatprep.subr.mxu0 0.0
        %5043 = vmatpush1.msra.mxu0 0.0
        %5044 = vmatprep.subr.mxu0 0.0
        %5045 = vmatpush1.msra.mxu0 0.0
        %5046 = vmatprep.subr.mxu0 0.0
        %5047 = vmatpush1.msra.mxu0 0.0
        %5048 = vmatprep.subr.mxu0 0.0
        %5049 = vmatpush1.msra.mxu0 0.0
        %5050 = vmatprep.subr.mxu0 0.0
        %5051 = vmatpush1.msra.mxu0 0.0
        %5052 = vmatprep.subr.mxu0 0.0
        %5053 = vmatpush1.msra.mxu0 0.0
        %5054 = vmatprep.subr.mxu0 0.0
        %5055 = vmatpush1.msra.mxu0 0.0
        %5056 = vmatprep.mubr.f32.mxu0 0.0
        %5057 = vmatmul.mubr.f32.gmra.mrb[0].mxu0 %v3606
        %v5058 = vpop.f32.mrb[0].mxu0
        %v5059 = vadd.f32 %v4990, %v5058
        %v5060 = vpop.f32.mrb[0].mxu0
        %5061 = vmatprep.mubr.f32.mxu0 0.0
        %5062 = vmatmul.mubr.f32.gmra.mrb[0].mxu0 %v3609
        %v5063 = vpop.f32.mrb[0].mxu0
        %v5064 = vadd.f32 %v4990, %v5063
        %v5065 = vpop.f32.mrb[0].mxu0
        %5066 = vmatprep.mubr.f32.mxu0 0.0
        %5067 = vmatmul.mubr.f32.gmra.mrb[0].mxu0 %v3612
        %v5068 = vpop.f32.mrb[0].mxu0
        %v5069 = vadd.f32 %v4990, %v5068
        %v5070 = vpop.f32.mrb[0].mxu0
        %5071 = vdwg.mxu0
        %v5073 = vsel %vm1135, %v4873, 0
        %v5076 = vsel %vm1135, %v4878, 0
        %v5079 = vsel %vm1135, %v4883, 0
        %v5082 = vsel %vm1135, %v4966, 0
        %v5085 = vsel %vm1135, %v4971, 0
        %v5088 = vsel %vm1135, %v4976, 0
        %5090 = vmatprep.subr.mxu0 0.0
        %5091 = vmatpush1.xpose.msra.mxu0 %v5082
        %5092 = vmatprep.subr.mxu0 0.0
        %5093 = vmatpush1.xpose.msra.mxu0 %v5085
        %5094 = vmatprep.subr.mxu0 0.0
        %5095 = vmatpush1.xpose.msra.mxu0 %v5088
        %5096 = vmatprep.subr.mxu0 0.0
        %5097 = vmatpush1.xpose.msra.mxu0 0.0
        %5098 = vmatprep.subr.mxu0 0.0
        %5099 = vmatpush1.xpose.msra.mxu0 0.0
        %5100 = vmatprep.subr.mxu0 0.0
        %5101 = vmatpush1.xpose.msra.mxu0 0.0
        %5102 = vmatprep.subr.mxu0 0.0
        %5103 = vmatpush1.xpose.msra.mxu0 0.0
        %5104 = vmatprep.subr.mxu0 0.0
        %5105 = vmatpush1.xpose.msra.mxu0 0.0
        %5106 = vmatprep.subr.mxu0 0.0
        %5107 = vmatpush1.xpose.msra.mxu0 0.0
        %5108 = vmatprep.subr.mxu0 0.0
        %5109 = vmatpush1.xpose.msra.mxu0 0.0
        %5110 = vmatprep.subr.mxu0 0.0
        %5111 = vmatpush1.xpose.msra.mxu0 0.0
        %5112 = vmatprep.subr.mxu0 0.0
        %5113 = vmatpush1.xpose.msra.mxu0 0.0
        %5114 = vmatprep.subr.mxu0 0.0
        %5115 = vmatpush1.xpose.msra.mxu0 0.0
        %5116 = vmatprep.subr.mxu0 0.0
        %5117 = vmatpush1.xpose.msra.mxu0 0.0
        %5118 = vmatprep.subr.mxu0 0.0
        %5119 = vmatpush1.xpose.msra.mxu0 0.0
        %5120 = vmatprep.subr.mxu0 0.0
        %5121 = vmatpush1.xpose.msra.mxu0 0.0
        %5122 = vmatprep.subr.mxu0 0.0
        %5123 = vmatpush1.xpose.msra.mxu0 0.0
        %5124 = vmatprep.subr.mxu0 0.0
        %5125 = vmatpush1.xpose.msra.mxu0 0.0
        %5126 = vmatprep.subr.mxu0 0.0
        %5127 = vmatpush1.xpose.msra.mxu0 0.0
        %5128 = vmatprep.subr.mxu0 0.0
        %5129 = vmatpush1.xpose.msra.mxu0 0.0
        %5130 = vmatprep.subr.mxu0 0.0
        %5131 = vmatpush1.xpose.msra.mxu0 0.0
        %5132 = vmatprep.subr.mxu0 0.0
        %5133 = vmatpush1.xpose.msra.mxu0 0.0
        %5134 = vmatprep.subr.mxu0 0.0
        %5135 = vmatpush1.xpose.msra.mxu0 0.0
        %5136 = vmatprep.subr.mxu0 0.0
        %5137 = vmatpush1.xpose.msra.mxu0 0.0
        %5138 = vmatprep.subr.mxu0 0.0
        %5139 = vmatpush1.xpose.msra.mxu0 0.0
        %5140 = vmatprep.subr.mxu0 0.0
        %5141 = vmatpush1.xpose.msra.mxu0 0.0
        %5142 = vmatprep.subr.mxu0 0.0
        %5143 = vmatpush1.xpose.msra.mxu0 0.0
        %5144 = vmatprep.subr.mxu0 0.0
        %5145 = vmatpush1.xpose.msra.mxu0 0.0
        %5146 = vmatprep.subr.mxu0 0.0
        %5147 = vmatpush1.xpose.msra.mxu0 0.0
        %5148 = vmatprep.subr.mxu0 0.0
        %5149 = vmatpush1.xpose.msra.mxu0 0.0
        %5150 = vmatprep.subr.mxu0 0.0
        %5151 = vmatpush1.xpose.msra.mxu0 0.0
        %5152 = vmatprep.subr.mxu0 0.0
        %5153 = vmatpush1.xpose.msra.mxu0 0.0
        %5154 = vmatprep.mubr.f32.mxu0 0.0
        %5155 = vmatmul.mubr.f32.gmra.mrb[0].mxu0 %v5073
        %v5156 = vpop.f32.mrb[0].mxu0
        %v5157 = vadd.f32 0.0, %v5156
        %v5158 = vpop.f32.mrb[0].mxu0
        %5159 = vmatprep.mubr.f32.mxu0 0.0
        %5160 = vmatmul.mubr.f32.gmra.mrb[0].mxu0 %v5076
        %v5161 = vpop.f32.mrb[0].mxu0
        %v5162 = vadd.f32 0.0, %v5161
        %v5163 = vpop.f32.mrb[0].mxu0
        %5164 = vmatprep.mubr.f32.mxu0 0.0
        %5165 = vmatmul.mubr.f32.gmra.mrb[0].mxu0 %v5079
        %v5166 = vpop.f32.mrb[0].mxu0
        %v5167 = vadd.f32 0.0, %v5166
        %v5168 = vpop.f32.mrb[0].mxu0
        %5169 = vdwg.mxu0
        %v5170 = vmul.f32 %v5157, 0.35355338
        %v5171 = vmul.f32 %v5162, 0.35355338
        %v5172 = vmul.f32 %v5167, 0.35355338
        %v5173 = vsel %vm1237, %v5170, -inf
        %5174 = vmax.xlane.f32.xlu0 %v5173
        %v5175 = vpop.xlane.xlu0 %5174
        %v5176 = vsel %vm1237, %v5171, -inf
        %5177 = vmax.xlane.f32.xlu0 %v5176
        %v5178 = vpop.xlane.xlu0 %5177
        %v5179 = vsel %vm1244, %v5172, -inf
        %5180 = vmax.xlane.f32.xlu0 %v5179
        %v5181 = vpop.xlane.xlu0 %5180
        %v5182 = vsub.f32 %v5170, %v5175
        %v5183 = vsub.f32 %v5171, %v5178
        %v5184 = vsub.f32 %v5172, %v5181
        %v5185 = vmul.f32 %v5182, 1.442695
        %v5186 = vpow.pop %v5185
        %v5187 = vmul.f32 %v5183, 1.442695
        %v5188 = vpow.pop %v5187
        %v5189 = vmul.f32 %v5184, 1.442695
        %v5190 = vpow.pop %v5189
        %v5191 = vsel %vm1237, %v5186, 0.0
        %5192 = vadd.xlane.f32.xlu0 %v5191
        %v5193 = vpop.xlane.xlu0 %5192
        %v5194 = vsel %vm1237, %v5188, 0.0
        %5195 = vadd.xlane.f32.xlu0 %v5194
        %v5196 = vpop.xlane.xlu0 %5195
        %v5197 = vsel %vm1244, %v5190, 0.0
        %5198 = vadd.xlane.f32.xlu0 %v5197
        %v5199 = vpop.xlane.xlu0 %5198
        %v5200 = vrcp.pop %v5193
        %v5201 = vrcp.pop %v5196
        %v5202 = vrcp.pop %v5199
        %v5203 = vmul.f32 %v5186, %v5200
        %v5204 = vmul.f32 %v5188, %v5201
        %v5205 = vmul.f32 %v5190, %v5202
        %v5207 = vsel %vm1237, %v5203, 0
        %v5210 = vsel %vm1237, %v5204, 0
        %v5213 = vsel %vm1237, %v5205, 0
        %v5216 = vsel %vm762, %v5069, 0
        %5218 = vmatprep.subr.mxu0 0.0
        %5219 = vmatpush1.msra.mxu0 %v5059
        %5220 = vmatprep.subr.mxu0 0.0
        %5221 = vmatpush1.msra.mxu0 %v5064
        %5222 = vmatprep.subr.mxu0 0.0
        %5223 = vmatpush1.msra.mxu0 %v5216
        %5224 = vmatprep.subr.mxu0 0.0
        %5225 = vmatpush1.msra.mxu0 0.0
        %5226 = vmatprep.subr.mxu0 0.0
        %5227 = vmatpush1.msra.mxu0 0.0
        %5228 = vmatprep.subr.mxu0 0.0
        %5229 = vmatpush1.msra.mxu0 0.0
        %5230 = vmatprep.subr.mxu0 0.0
        %5231 = vmatpush1.msra.mxu0 0.0
        %5232 = vmatprep.subr.mxu0 0.0
        %5233 = vmatpush1.msra.mxu0 0.0
        %5234 = vmatprep.subr.mxu0 0.0
        %5235 = vmatpush1.msra.mxu0 0.0
        %5236 = vmatprep.subr.mxu0 0.0
        %5237 = vmatpush1.msra.mxu0 0.0
        %5238 = vmatprep.subr.mxu0 0.0
        %5239 = vmatpush1.msra.mxu0 0.0
        %5240 = vmatprep.subr.mxu0 0.0
        %5241 = vmatpush1.msra.mxu0 0.0
        %5242 = vmatprep.subr.mxu0 0.0
        %5243 = vmatpush1.msra.mxu0 0.0
        %5244 = vmatprep.subr.mxu0 0.0
        %5245 = vmatpush1.msra.mxu0 0.0
        %5246 = vmatprep.subr.mxu0 0.0
        %5247 = vmatpush1.msra.mxu0 0.0
        %5248 = vmatprep.subr.mxu0 0.0
        %5249 = vmatpush1.msra.mxu0 0.0
        %5250 = vmatprep.subr.mxu0 0.0
        %5251 = vmatpush1.msra.mxu0 0.0
        %5252 = vmatprep.subr.mxu0 0.0
        %5253 = vmatpush1.msra.mxu0 0.0
        %5254 = vmatprep.subr.mxu0 0.0
        %5255 = vmatpush1.msra.mxu0 0.0
        %5256 = vmatprep.subr.mxu0 0.0
        %5257 = vmatpush1.msra.mxu0 0.0
        %5258 = vmatprep.subr.mxu0 0.0
        %5259 = vmatpush1.msra.mxu0 0.0
        %5260 = vmatprep.subr.mxu0 0.0
        %5261 = vmatpush1.msra.mxu0 0.0
        %5262 = vmatprep.subr.mxu0 0.0
        %5263 = vmatpush1.msra.mxu0 0.0
        %5264 = vmatprep.subr.mxu0 0.0
        %5265 = vmatpush1.msra.mxu0 0.0
        %5266 = vmatprep.subr.mxu0 0.0
        %5267 = vmatpush1.msra.mxu0 0.0
        %5268 = vmatprep.subr.mxu0 0.0
        %5269 = vmatpush1.msra.mxu0 0.0
        %5270 = vmatprep.subr.mxu0 0.0
        %5271 = vmatpush1.msra.mxu0 0.0
        %5272 = vmatprep.subr.mxu0 0.0
        %5273 = vmatpush1.msra.mxu0 0.0
        %5274 = vmatprep.subr.mxu0 0.0
        %5275 = vmatpush1.msra.mxu0 0.0
        %5276 = vmatprep.subr.mxu0 0.0
        %5277 = vmatpush1.msra.mxu0 0.0
        %5278 = vmatprep.subr.mxu0 0.0
        %5279 = vmatpush1.msra.mxu0 0.0
        %5280 = vmatprep.subr.mxu0 0.0
        %5281 = vmatpush1.msra.mxu0 0.0
        %5282 = vmatprep.mubr.f32.mxu0 0.0
        %5283 = vmatmul.mubr.f32.gmra.mrb[0].mxu0 %v5207
        %v5284 = vpop.f32.mrb[0].mxu0
        %v5285 = vadd.f32 0.0, %v5284
        %v5286 = vpop.f32.mrb[0].mxu0
        %5287 = vmatprep.mubr.f32.mxu0 0.0
        %5288 = vmatmul.mubr.f32.gmra.mrb[0].mxu0 %v5210
        %v5289 = vpop.f32.mrb[0].mxu0
        %v5290 = vadd.f32 0.0, %v5289
        %v5291 = vpop.f32.mrb[0].mxu0
        %5292 = vmatprep.mubr.f32.mxu0 0.0
        %5293 = vmatmul.mubr.f32.gmra.mrb[0].mxu0 %v5213
        %v5294 = vpop.f32.mrb[0].mxu0
        %v5295 = vadd.f32 0.0, %v5294
        %v5296 = vpop.f32.mrb[0].mxu0
        %5297 = vdwg.mxu0
        %s5298 = scalar_lea.vmem %s10, 48
        %v5299 = vld [vmem:[%s5298] sm:$0xff]
        %v5301 = vsel %vm1135, %v5285, 0
        %v5304 = vsel %vm1135, %v5290, 0
        %v5307 = vsel %vm1135, %v5295, 0
        %5309 = vmatprep.subr.mxu0 0.0
        %5310 = vmatpush1.msra.mxu0 %v5299
        %5311 = vmatprep.subr.mxu0 0.0
        %5312 = vmatpush1.msra.mxu0 0.0
        %5313 = vmatprep.subr.mxu0 0.0
        %5314 = vmatpush1.msra.mxu0 0.0
        %5315 = vmatprep.subr.mxu0 0.0
        %5316 = vmatpush1.msra.mxu0 0.0
        %5317 = vmatprep.subr.mxu0 0.0
        %5318 = vmatpush1.msra.mxu0 0.0
        %5319 = vmatprep.subr.mxu0 0.0
        %5320 = vmatpush1.msra.mxu0 0.0
        %5321 = vmatprep.subr.mxu0 0.0
        %5322 = vmatpush1.msra.mxu0 0.0
        %5323 = vmatprep.subr.mxu0 0.0
        %5324 = vmatpush1.msra.mxu0 0.0
        %5325 = vmatprep.subr.mxu0 0.0
        %5326 = vmatpush1.msra.mxu0 0.0
        %5327 = vmatprep.subr.mxu0 0.0
        %5328 = vmatpush1.msra.mxu0 0.0
        %5329 = vmatprep.subr.mxu0 0.0
        %5330 = vmatpush1.msra.mxu0 0.0
        %5331 = vmatprep.subr.mxu0 0.0
        %5332 = vmatpush1.msra.mxu0 0.0
        %5333 = vmatprep.subr.mxu0 0.0
        %5334 = vmatpush1.msra.mxu0 0.0
        %5335 = vmatprep.subr.mxu0 0.0
        %5336 = vmatpush1.msra.mxu0 0.0
        %5337 = vmatprep.subr.mxu0 0.0
        %5338 = vmatpush1.msra.mxu0 0.0
        %5339 = vmatprep.subr.mxu0 0.0
        %5340 = vmatpush1.msra.mxu0 0.0
        %5341 = vmatprep.subr.mxu0 0.0
        %5342 = vmatpush1.msra.mxu0 0.0
        %5343 = vmatprep.subr.mxu0 0.0
        %5344 = vmatpush1.msra.mxu0 0.0
        %5345 = vmatprep.subr.mxu0 0.0
        %5346 = vmatpush1.msra.mxu0 0.0
        %5347 = vmatprep.subr.mxu0 0.0
        %5348 = vmatpush1.msra.mxu0 0.0
        %5349 = vmatprep.subr.mxu0 0.0
        %5350 = vmatpush1.msra.mxu0 0.0
        %5351 = vmatprep.subr.mxu0 0.0
        %5352 = vmatpush1.msra.mxu0 0.0
        %5353 = vmatprep.subr.mxu0 0.0
        %5354 = vmatpush1.msra.mxu0 0.0
        %5355 = vmatprep.subr.mxu0 0.0
        %5356 = vmatpush1.msra.mxu0 0.0
        %5357 = vmatprep.subr.mxu0 0.0
        %5358 = vmatpush1.msra.mxu0 0.0
        %5359 = vmatprep.subr.mxu0 0.0
        %5360 = vmatpush1.msra.mxu0 0.0
        %5361 = vmatprep.subr.mxu0 0.0
        %5362 = vmatpush1.msra.mxu0 0.0
        %5363 = vmatprep.subr.mxu0 0.0
        %5364 = vmatpush1.msra.mxu0 0.0
        %5365 = vmatprep.subr.mxu0 0.0
        %5366 = vmatpush1.msra.mxu0 0.0
        %5367 = vmatprep.subr.mxu0 0.0
        %5368 = vmatpush1.msra.mxu0 0.0
        %5369 = vmatprep.subr.mxu0 0.0
        %5370 = vmatpush1.msra.mxu0 0.0
        %5371 = vmatprep.subr.mxu0 0.0
        %5372 = vmatpush1.msra.mxu0 0.0
        %5373 = vmatprep.mubr.f32.mxu0 0.0
        %5374 = vmatmul.mubr.f32.gmra.mrb[0].mxu0 %v5301
        %v5375 = vpop.f32.mrb[0].mxu0
        %v5376 = vadd.f32 0.0, %v5375
        %v5377 = vpop.f32.mrb[0].mxu0
        %5378 = vmatprep.mubr.f32.mxu0 0.0
        %5379 = vmatmul.mubr.f32.gmra.mrb[0].mxu0 %v5304
        %v5380 = vpop.f32.mrb[0].mxu0
        %v5381 = vadd.f32 0.0, %v5380
        %v5382 = vpop.f32.mrb[0].mxu0
        %5383 = vmatprep.mubr.f32.mxu0 0.0
        %5384 = vmatmul.mubr.f32.gmra.mrb[0].mxu0 %v5307
        %v5385 = vpop.f32.mrb[0].mxu0
        %v5386 = vadd.f32 0.0, %v5385
        %v5387 = vpop.f32.mrb[0].mxu0
        %5388 = vdwg.mxu0
        %v5389 = vadd.f32 %v4780, %v5376
        %v5390 = vadd.f32 %v4785, %v5381
        %v5391 = vadd.f32 %v4790, %v5386
        %s5392 = scalar_lea.vmem %s4, 224
        %v5393 = vld [vmem:[%s5392] sm:$0xff]
        %v5394 = vld [vmem:[%s5392 + $0x8] sm:$0xff]
        %v5395 = vld [vmem:[%s5392 + $0x10] sm:$0xff]
        %v5396 = vld [vmem:[%s5392 + $0x18] sm:$0xff]
        %s5397 = scalar_lea.vmem %s5, 7
        %v5398 = vld [vmem:[%s5397] sm:$0x1]
        %v5400 = vlaneseq
        %v5401 = vshrl.u32 %v5400, 7
        %v5402 = vsub.s32 0, %v5401
        %v5403 = vrot.slane %v5398, %v5402
        %5405 = vmatprep.subr.mxu0 0.0
        %5406 = vmatpush1.msra.mxu0 %v5393
        %5407 = vmatprep.subr.mxu0 0.0
        %5408 = vmatpush1.msra.mxu0 %v5394
        %5409 = vmatprep.subr.mxu0 0.0
        %5410 = vmatpush1.msra.mxu0 %v5395
        %5411 = vmatprep.subr.mxu0 0.0
        %5412 = vmatpush1.msra.mxu0 %v5396
        %5413 = vmatprep.subr.mxu0 0.0
        %5414 = vmatpush1.msra.mxu0 0.0
        %5415 = vmatprep.subr.mxu0 0.0
        %5416 = vmatpush1.msra.mxu0 0.0
        %5417 = vmatprep.subr.mxu0 0.0
        %5418 = vmatpush1.msra.mxu0 0.0
        %5419 = vmatprep.subr.mxu0 0.0
        %5420 = vmatpush1.msra.mxu0 0.0
        %5421 = vmatprep.subr.mxu0 0.0
        %5422 = vmatpush1.msra.mxu0 0.0
        %5423 = vmatprep.subr.mxu0 0.0
        %5424 = vmatpush1.msra.mxu0 0.0
        %5425 = vmatprep.subr.mxu0 0.0
        %5426 = vmatpush1.msra.mxu0 0.0
        %5427 = vmatprep.subr.mxu0 0.0
        %5428 = vmatpush1.msra.mxu0 0.0
        %5429 = vmatprep.subr.mxu0 0.0
        %5430 = vmatpush1.msra.mxu0 0.0
        %5431 = vmatprep.subr.mxu0 0.0
        %5432 = vmatpush1.msra.mxu0 0.0
        %5433 = vmatprep.subr.mxu0 0.0
        %5434 = vmatpush1.msra.mxu0 0.0
        %5435 = vmatprep.subr.mxu0 0.0
        %5436 = vmatpush1.msra.mxu0 0.0
        %5437 = vmatprep.subr.mxu0 0.0
        %5438 = vmatpush1.msra.mxu0 0.0
        %5439 = vmatprep.subr.mxu0 0.0
        %5440 = vmatpush1.msra.mxu0 0.0
        %5441 = vmatprep.subr.mxu0 0.0
        %5442 = vmatpush1.msra.mxu0 0.0
        %5443 = vmatprep.subr.mxu0 0.0
        %5444 = vmatpush1.msra.mxu0 0.0
        %5445 = vmatprep.subr.mxu0 0.0
        %5446 = vmatpush1.msra.mxu0 0.0
        %5447 = vmatprep.subr.mxu0 0.0
        %5448 = vmatpush1.msra.mxu0 0.0
        %5449 = vmatprep.subr.mxu0 0.0
        %5450 = vmatpush1.msra.mxu0 0.0
        %5451 = vmatprep.subr.mxu0 0.0
        %5452 = vmatpush1.msra.mxu0 0.0
        %5453 = vmatprep.subr.mxu0 0.0
        %5454 = vmatpush1.msra.mxu0 0.0
        %5455 = vmatprep.subr.mxu0 0.0
        %5456 = vmatpush1.msra.mxu0 0.0
        %5457 = vmatprep.subr.mxu0 0.0
        %5458 = vmatpush1.msra.mxu0 0.0
        %5459 = vmatprep.subr.mxu0 0.0
        %5460 = vmatpush1.msra.mxu0 0.0
        %5461 = vmatprep.subr.mxu0 0.0
        %5462 = vmatpush1.msra.mxu0 0.0
        %5463 = vmatprep.subr.mxu0 0.0
        %5464 = vmatpush1.msra.mxu0 0.0
        %5465 = vmatprep.subr.mxu0 0.0
        %5466 = vmatpush1.msra.mxu0 0.0
        %5467 = vmatprep.subr.mxu0 0.0
        %5468 = vmatpush1.msra.mxu0 0.0
        %5469 = vmatprep.mubr.f32.mxu0 0.0
        %5470 = vmatmul.mubr.f32.gmra.mrb[0].mxu0 %v3606
        %v5471 = vpop.f32.mrb[0].mxu0
        %v5472 = vadd.f32 %v5403, %v5471
        %v5473 = vpop.f32.mrb[0].mxu0
        %5474 = vmatprep.mubr.f32.mxu0 0.0
        %5475 = vmatmul.mubr.f32.gmra.mrb[0].mxu0 %v3609
        %v5476 = vpop.f32.mrb[0].mxu0
        %v5477 = vadd.f32 %v5403, %v5476
        %v5478 = vpop.f32.mrb[0].mxu0
        %5479 = vmatprep.mubr.f32.mxu0 0.0
        %5480 = vmatmul.mubr.f32.gmra.mrb[0].mxu0 %v3612
        %v5481 = vpop.f32.mrb[0].mxu0
        %v5482 = vadd.f32 %v5403, %v5481
        %v5483 = vpop.f32.mrb[0].mxu0
        %5484 = vdwg.mxu0
        %s5485 = scalar_lea.vmem %s6, 224
        %v5486 = vld [vmem:[%s5485] sm:$0xff]
        %v5487 = vld [vmem:[%s5485 + $0x8] sm:$0xff]
        %v5488 = vld [vmem:[%s5485 + $0x10] sm:$0xff]
        %v5489 = vld [vmem:[%s5485 + $0x18] sm:$0xff]
        %s5490 = scalar_lea.vmem %s7, 7
        %v5491 = vld [vmem:[%s5490] sm:$0x1]
        %v5493 = vlaneseq
        %v5494 = vshrl.u32 %v5493, 7
        %v5495 = vsub.s32 0, %v5494
        %v5496 = vrot.slane %v5491, %v5495
        %5498 = vmatprep.subr.mxu0 0.0
        %5499 = vmatpush1.msra.mxu0 %v5486
        %5500 = vmatprep.subr.mxu0 0.0
        %5501 = vmatpush1.msra.mxu0 %v5487
        %5502 = vmatprep.subr.mxu0 0.0
        %5503 = vmatpush1.msra.mxu0 %v5488
        %5504 = vmatprep.subr.mxu0 0.0
        %5505 = vmatpush1.msra.mxu0 %v5489
        %5506 = vmatprep.subr.mxu0 0.0
        %5507 = vmatpush1.msra.mxu0 0.0
        %5508 = vmatprep.subr.mxu0 0.0
        %5509 = vmatpush1.msra.mxu0 0.0
        %5510 = vmatprep.subr.mxu0 0.0
        %5511 = vmatpush1.msra.mxu0 0.0
        %5512 = vmatprep.subr.mxu0 0.0
        %5513 = vmatpush1.msra.mxu0 0.0
        %5514 = vmatprep.subr.mxu0 0.0
        %5515 = vmatpush1.msra.mxu0 0.0
        %5516 = vmatprep.subr.mxu0 0.0
        %5517 = vmatpush1.msra.mxu0 0.0
        %5518 = vmatprep.subr.mxu0 0.0
        %5519 = vmatpush1.msra.mxu0 0.0
        %5520 = vmatprep.subr.mxu0 0.0
        %5521 = vmatpush1.msra.mxu0 0.0
        %5522 = vmatprep.subr.mxu0 0.0
        %5523 = vmatpush1.msra.mxu0 0.0
        %5524 = vmatprep.subr.mxu0 0.0
        %5525 = vmatpush1.msra.mxu0 0.0
        %5526 = vmatprep.subr.mxu0 0.0
        %5527 = vmatpush1.msra.mxu0 0.0
        %5528 = vmatprep.subr.mxu0 0.0
        %5529 = vmatpush1.msra.mxu0 0.0
        %5530 = vmatprep.subr.mxu0 0.0
        %5531 = vmatpush1.msra.mxu0 0.0
        %5532 = vmatprep.subr.mxu0 0.0
        %5533 = vmatpush1.msra.mxu0 0.0
        %5534 = vmatprep.subr.mxu0 0.0
        %5535 = vmatpush1.msra.mxu0 0.0
        %5536 = vmatprep.subr.mxu0 0.0
        %5537 = vmatpush1.msra.mxu0 0.0
        %5538 = vmatprep.subr.mxu0 0.0
        %5539 = vmatpush1.msra.mxu0 0.0
        %5540 = vmatprep.subr.mxu0 0.0
        %5541 = vmatpush1.msra.mxu0 0.0
        %5542 = vmatprep.subr.mxu0 0.0
        %5543 = vmatpush1.msra.mxu0 0.0
        %5544 = vmatprep.subr.mxu0 0.0
        %5545 = vmatpush1.msra.mxu0 0.0
        %5546 = vmatprep.subr.mxu0 0.0
        %5547 = vmatpush1.msra.mxu0 0.0
        %5548 = vmatprep.subr.mxu0 0.0
        %5549 = vmatpush1.msra.mxu0 0.0
        %5550 = vmatprep.subr.mxu0 0.0
        %5551 = vmatpush1.msra.mxu0 0.0
        %5552 = vmatprep.subr.mxu0 0.0
        %5553 = vmatpush1.msra.mxu0 0.0
        %5554 = vmatprep.subr.mxu0 0.0
        %5555 = vmatpush1.msra.mxu0 0.0
        %5556 = vmatprep.subr.mxu0 0.0
        %5557 = vmatpush1.msra.mxu0 0.0
        %5558 = vmatprep.subr.mxu0 0.0
        %5559 = vmatpush1.msra.mxu0 0.0
        %5560 = vmatprep.subr.mxu0 0.0
        %5561 = vmatpush1.msra.mxu0 0.0
        %5562 = vmatprep.mubr.f32.mxu0 0.0
        %5563 = vmatmul.mubr.f32.gmra.mrb[0].mxu0 %v3606
        %v5564 = vpop.f32.mrb[0].mxu0
        %v5565 = vadd.f32 %v5496, %v5564
        %v5566 = vpop.f32.mrb[0].mxu0
        %5567 = vmatprep.mubr.f32.mxu0 0.0
        %5568 = vmatmul.mubr.f32.gmra.mrb[0].mxu0 %v3609
        %v5569 = vpop.f32.mrb[0].mxu0
        %v5570 = vadd.f32 %v5496, %v5569
        %v5571 = vpop.f32.mrb[0].mxu0
        %5572 = vmatprep.mubr.f32.mxu0 0.0
        %5573 = vmatmul.mubr.f32.gmra.mrb[0].mxu0 %v3612
        %v5574 = vpop.f32.mrb[0].mxu0
        %v5575 = vadd.f32 %v5496, %v5574
        %v5576 = vpop.f32.mrb[0].mxu0
        %5577 = vdwg.mxu0
        %s5578 = scalar_lea.vmem %s8, 224
        %v5579 = vld [vmem:[%s5578] sm:$0xff]
        %v5580 = vld [vmem:[%s5578 + $0x8] sm:$0xff]
        %v5581 = vld [vmem:[%s5578 + $0x10] sm:$0xff]
        %v5582 = vld [vmem:[%s5578 + $0x18] sm:$0xff]
        %s5583 = scalar_lea.vmem %s9, 7
        %v5584 = vld [vmem:[%s5583] sm:$0x1]
        %v5586 = vlaneseq
        %v5587 = vshrl.u32 %v5586, 7
        %v5588 = vsub.s32 0, %v5587
        %v5589 = vrot.slane %v5584, %v5588
        %5591 = vmatprep.subr.mxu0 0.0
        %5592 = vmatpush1.msra.mxu0 %v5579
        %5593 = vmatprep.subr.mxu0 0.0
        %5594 = vmatpush1.msra.mxu0 %v5580
        %5595 = vmatprep.subr.mxu0 0.0
        %5596 = vmatpush1.msra.mxu0 %v5581
        %5597 = vmatprep.subr.mxu0 0.0
        %5598 = vmatpush1.msra.mxu0 %v5582
        %5599 = vmatprep.subr.mxu0 0.0
        %5600 = vmatpush1.msra.mxu0 0.0
        %5601 = vmatprep.subr.mxu0 0.0
        %5602 = vmatpush1.msra.mxu0 0.0
        %5603 = vmatprep.subr.mxu0 0.0
        %5604 = vmatpush1.msra.mxu0 0.0
        %5605 = vmatprep.subr.mxu0 0.0
        %5606 = vmatpush1.msra.mxu0 0.0
        %5607 = vmatprep.subr.mxu0 0.0
        %5608 = vmatpush1.msra.mxu0 0.0
        %5609 = vmatprep.subr.mxu0 0.0
        %5610 = vmatpush1.msra.mxu0 0.0
        %5611 = vmatprep.subr.mxu0 0.0
        %5612 = vmatpush1.msra.mxu0 0.0
        %5613 = vmatprep.subr.mxu0 0.0
        %5614 = vmatpush1.msra.mxu0 0.0
        %5615 = vmatprep.subr.mxu0 0.0
        %5616 = vmatpush1.msra.mxu0 0.0
        %5617 = vmatprep.subr.mxu0 0.0
        %5618 = vmatpush1.msra.mxu0 0.0
        %5619 = vmatprep.subr.mxu0 0.0
        %5620 = vmatpush1.msra.mxu0 0.0
        %5621 = vmatprep.subr.mxu0 0.0
        %5622 = vmatpush1.msra.mxu0 0.0
        %5623 = vmatprep.subr.mxu0 0.0
        %5624 = vmatpush1.msra.mxu0 0.0
        %5625 = vmatprep.subr.mxu0 0.0
        %5626 = vmatpush1.msra.mxu0 0.0
        %5627 = vmatprep.subr.mxu0 0.0
        %5628 = vmatpush1.msra.mxu0 0.0
        %5629 = vmatprep.subr.mxu0 0.0
        %5630 = vmatpush1.msra.mxu0 0.0
        %5631 = vmatprep.subr.mxu0 0.0
        %5632 = vmatpush1.msra.mxu0 0.0
        %5633 = vmatprep.subr.mxu0 0.0
        %5634 = vmatpush1.msra.mxu0 0.0
        %5635 = vmatprep.subr.mxu0 0.0
        %5636 = vmatpush1.msra.mxu0 0.0
        %5637 = vmatprep.subr.mxu0 0.0
        %5638 = vmatpush1.msra.mxu0 0.0
        %5639 = vmatprep.subr.mxu0 0.0
        %5640 = vmatpush1.msra.mxu0 0.0
        %5641 = vmatprep.subr.mxu0 0.0
        %5642 = vmatpush1.msra.mxu0 0.0
        %5643 = vmatprep.subr.mxu0 0.0
        %5644 = vmatpush1.msra.mxu0 0.0
        %5645 = vmatprep.subr.mxu0 0.0
        %5646 = vmatpush1.msra.mxu0 0.0
        %5647 = vmatprep.subr.mxu0 0.0
        %5648 = vmatpush1.msra.mxu0 0.0
        %5649 = vmatprep.subr.mxu0 0.0
        %5650 = vmatpush1.msra.mxu0 0.0
        %5651 = vmatprep.subr.mxu0 0.0
        %5652 = vmatpush1.msra.mxu0 0.0
        %5653 = vmatprep.subr.mxu0 0.0
        %5654 = vmatpush1.msra.mxu0 0.0
        %5655 = vmatprep.mubr.f32.mxu0 0.0
        %5656 = vmatmul.mubr.f32.gmra.mrb[0].mxu0 %v3606
        %v5657 = vpop.f32.mrb[0].mxu0
        %v5658 = vadd.f32 %v5589, %v5657
        %v5659 = vpop.f32.mrb[0].mxu0
        %5660 = vmatprep.mubr.f32.mxu0 0.0
        %5661 = vmatmul.mubr.f32.gmra.mrb[0].mxu0 %v3609
        %v5662 = vpop.f32.mrb[0].mxu0
        %v5663 = vadd.f32 %v5589, %v5662
        %v5664 = vpop.f32.mrb[0].mxu0
        %5665 = vmatprep.mubr.f32.mxu0 0.0
        %5666 = vmatmul.mubr.f32.gmra.mrb[0].mxu0 %v3612
        %v5667 = vpop.f32.mrb[0].mxu0
        %v5668 = vadd.f32 %v5589, %v5667
        %v5669 = vpop.f32.mrb[0].mxu0
        %5670 = vdwg.mxu0
        %v5672 = vsel %vm1135, %v5472, 0
        %v5675 = vsel %vm1135, %v5477, 0
        %v5678 = vsel %vm1135, %v5482, 0
        %v5681 = vsel %vm1135, %v5565, 0
        %v5684 = vsel %vm1135, %v5570, 0
        %v5687 = vsel %vm1135, %v5575, 0
        %5689 = vmatprep.subr.mxu0 0.0
        %5690 = vmatpush1.xpose.msra.mxu0 %v5681
        %5691 = vmatprep.subr.mxu0 0.0
        %5692 = vmatpush1.xpose.msra.mxu0 %v5684
        %5693 = vmatprep.subr.mxu0 0.0
        %5694 = vmatpush1.xpose.msra.mxu0 %v5687
        %5695 = vmatprep.subr.mxu0 0.0
        %5696 = vmatpush1.xpose.msra.mxu0 0.0
        %5697 = vmatprep.subr.mxu0 0.0
        %5698 = vmatpush1.xpose.msra.mxu0 0.0
        %5699 = vmatprep.subr.mxu0 0.0
        %5700 = vmatpush1.xpose.msra.mxu0 0.0
        %5701 = vmatprep.subr.mxu0 0.0
        %5702 = vmatpush1.xpose.msra.mxu0 0.0
        %5703 = vmatprep.subr.mxu0 0.0
        %5704 = vmatpush1.xpose.msra.mxu0 0.0
        %5705 = vmatprep.subr.mxu0 0.0
        %5706 = vmatpush1.xpose.msra.mxu0 0.0
        %5707 = vmatprep.subr.mxu0 0.0
        %5708 = vmatpush1.xpose.msra.mxu0 0.0
        %5709 = vmatprep.subr.mxu0 0.0
        %5710 = vmatpush1.xpose.msra.mxu0 0.0
        %5711 = vmatprep.subr.mxu0 0.0
        %5712 = vmatpush1.xpose.msra.mxu0 0.0
        %5713 = vmatprep.subr.mxu0 0.0
        %5714 = vmatpush1.xpose.msra.mxu0 0.0
        %5715 = vmatprep.subr.mxu0 0.0
        %5716 = vmatpush1.xpose.msra.mxu0 0.0
        %5717 = vmatprep.subr.mxu0 0.0
        %5718 = vmatpush1.xpose.msra.mxu0 0.0
        %5719 = vmatprep.subr.mxu0 0.0
        %5720 = vmatpush1.xpose.msra.mxu0 0.0
        %5721 = vmatprep.subr.mxu0 0.0
        %5722 = vmatpush1.xpose.msra.mxu0 0.0
        %5723 = vmatprep.subr.mxu0 0.0
        %5724 = vmatpush1.xpose.msra.mxu0 0.0
        %5725 = vmatprep.subr.mxu0 0.0
        %5726 = vmatpush1.xpose.msra.mxu0 0.0
        %5727 = vmatprep.subr.mxu0 0.0
        %5728 = vmatpush1.xpose.msra.mxu0 0.0
        %5729 = vmatprep.subr.mxu0 0.0
        %5730 = vmatpush1.xpose.msra.mxu0 0.0
        %5731 = vmatprep.subr.mxu0 0.0
        %5732 = vmatpush1.xpose.msra.mxu0 0.0
        %5733 = vmatprep.subr.mxu0 0.0
        %5734 = vmatpush1.xpose.msra.mxu0 0.0
        %5735 = vmatprep.subr.mxu0 0.0
        %5736 = vmatpush1.xpose.msra.mxu0 0.0
        %5737 = vmatprep.subr.mxu0 0.0
        %5738 = vmatpush1.xpose.msra.mxu0 0.0
        %5739 = vmatprep.subr.mxu0 0.0
        %5740 = vmatpush1.xpose.msra.mxu0 0.0
        %5741 = vmatprep.subr.mxu0 0.0
        %5742 = vmatpush1.xpose.msra.mxu0 0.0
        %5743 = vmatprep.subr.mxu0 0.0
        %5744 = vmatpush1.xpose.msra.mxu0 0.0
        %5745 = vmatprep.subr.mxu0 0.0
        %5746 = vmatpush1.xpose.msra.mxu0 0.0
        %5747 = vmatprep.subr.mxu0 0.0
        %5748 = vmatpush1.xpose.msra.mxu0 0.0
        %5749 = vmatprep.subr.mxu0 0.0
        %5750 = vmatpush1.xpose.msra.mxu0 0.0
        %5751 = vmatprep.subr.mxu0 0.0
        %5752 = vmatpush1.xpose.msra.mxu0 0.0
        %5753 = vmatprep.mubr.f32.mxu0 0.0
        %5754 = vmatmul.mubr.f32.gmra.mrb[0].mxu0 %v5672
        %v5755 = vpop.f32.mrb[0].mxu0
        %v5756 = vadd.f32 0.0, %v5755
        %v5757 = vpop.f32.mrb[0].mxu0
        %5758 = vmatprep.mubr.f32.mxu0 0.0
        %5759 = vmatmul.mubr.f32.gmra.mrb[0].mxu0 %v5675
        %v5760 = vpop.f32.mrb[0].mxu0
        %v5761 = vadd.f32 0.0, %v5760
        %v5762 = vpop.f32.mrb[0].mxu0
        %5763 = vmatprep.mubr.f32.mxu0 0.0
        %5764 = vmatmul.mubr.f32.gmra.mrb[0].mxu0 %v5678
        %v5765 = vpop.f32.mrb[0].mxu0
        %v5766 = vadd.f32 0.0, %v5765
        %v5767 = vpop.f32.mrb[0].mxu0
        %5768 = vdwg.mxu0
        %v5769 = vmul.f32 %v5756, 0.35355338
        %v5770 = vmul.f32 %v5761, 0.35355338
        %v5771 = vmul.f32 %v5766, 0.35355338
        %v5772 = vsel %vm1237, %v5769, -inf
        %5773 = vmax.xlane.f32.xlu0 %v5772
        %v5774 = vpop.xlane.xlu0 %5773
        %v5775 = vsel %vm1237, %v5770, -inf
        %5776 = vmax.xlane.f32.xlu0 %v5775
        %v5777 = vpop.xlane.xlu0 %5776
        %v5778 = vsel %vm1244, %v5771, -inf
        %5779 = vmax.xlane.f32.xlu0 %v5778
        %v5780 = vpop.xlane.xlu0 %5779
        %v5781 = vsub.f32 %v5769, %v5774
        %v5782 = vsub.f32 %v5770, %v5777
        %v5783 = vsub.f32 %v5771, %v5780
        %v5784 = vmul.f32 %v5781, 1.442695
        %v5785 = vpow.pop %v5784
        %v5786 = vmul.f32 %v5782, 1.442695
        %v5787 = vpow.pop %v5786
        %v5788 = vmul.f32 %v5783, 1.442695
        %v5789 = vpow.pop %v5788
        %v5790 = vsel %vm1237, %v5785, 0.0
        %5791 = vadd.xlane.f32.xlu0 %v5790
        %v5792 = vpop.xlane.xlu0 %5791
        %v5793 = vsel %vm1237, %v5787, 0.0
        %5794 = vadd.xlane.f32.xlu0 %v5793
        %v5795 = vpop.xlane.xlu0 %5794
        %v5796 = vsel %vm1244, %v5789, 0.0
        %5797 = vadd.xlane.f32.xlu0 %v5796
        %v5798 = vpop.xlane.xlu0 %5797
        %v5799 = vrcp.pop %v5792
        %v5800 = vrcp.pop %v5795
        %v5801 = vrcp.pop %v5798
        %v5802 = vmul.f32 %v5785, %v5799
        %v5803 = vmul.f32 %v5787, %v5800
        %v5804 = vmul.f32 %v5789, %v5801
        %v5806 = vsel %vm1237, %v5802, 0
        %v5809 = vsel %vm1237, %v5803, 0
        %v5812 = vsel %vm1237, %v5804, 0
        %v5815 = vsel %vm762, %v5668, 0
        %5817 = vmatprep.subr.mxu0 0.0
        %5818 = vmatpush1.msra.mxu0 %v5658
        %5819 = vmatprep.subr.mxu0 0.0
        %5820 = vmatpush1.msra.mxu0 %v5663
        %5821 = vmatprep.subr.mxu0 0.0
        %5822 = vmatpush1.msra.mxu0 %v5815
        %5823 = vmatprep.subr.mxu0 0.0
        %5824 = vmatpush1.msra.mxu0 0.0
        %5825 = vmatprep.subr.mxu0 0.0
        %5826 = vmatpush1.msra.mxu0 0.0
        %5827 = vmatprep.subr.mxu0 0.0
        %5828 = vmatpush1.msra.mxu0 0.0
        %5829 = vmatprep.subr.mxu0 0.0
        %5830 = vmatpush1.msra.mxu0 0.0
        %5831 = vmatprep.subr.mxu0 0.0
        %5832 = vmatpush1.msra.mxu0 0.0
        %5833 = vmatprep.subr.mxu0 0.0
        %5834 = vmatpush1.msra.mxu0 0.0
        %5835 = vmatprep.subr.mxu0 0.0
        %5836 = vmatpush1.msra.mxu0 0.0
        %5837 = vmatprep.subr.mxu0 0.0
        %5838 = vmatpush1.msra.mxu0 0.0
        %5839 = vmatprep.subr.mxu0 0.0
        %5840 = vmatpush1.msra.mxu0 0.0
        %5841 = vmatprep.subr.mxu0 0.0
        %5842 = vmatpush1.msra.mxu0 0.0
        %5843 = vmatprep.subr.mxu0 0.0
        %5844 = vmatpush1.msra.mxu0 0.0
        %5845 = vmatprep.subr.mxu0 0.0
        %5846 = vmatpush1.msra.mxu0 0.0
        %5847 = vmatprep.subr.mxu0 0.0
        %5848 = vmatpush1.msra.mxu0 0.0
        %5849 = vmatprep.subr.mxu0 0.0
        %5850 = vmatpush1.msra.mxu0 0.0
        %5851 = vmatprep.subr.mxu0 0.0
        %5852 = vmatpush1.msra.mxu0 0.0
        %5853 = vmatprep.subr.mxu0 0.0
        %5854 = vmatpush1.msra.mxu0 0.0
        %5855 = vmatprep.subr.mxu0 0.0
        %5856 = vmatpush1.msra.mxu0 0.0
        %5857 = vmatprep.subr.mxu0 0.0
        %5858 = vmatpush1.msra.mxu0 0.0
        %5859 = vmatprep.subr.mxu0 0.0
        %5860 = vmatpush1.msra.mxu0 0.0
        %5861 = vmatprep.subr.mxu0 0.0
        %5862 = vmatpush1.msra.mxu0 0.0
        %5863 = vmatprep.subr.mxu0 0.0
        %5864 = vmatpush1.msra.mxu0 0.0
        %5865 = vmatprep.subr.mxu0 0.0
        %5866 = vmatpush1.msra.mxu0 0.0
        %5867 = vmatprep.subr.mxu0 0.0
        %5868 = vmatpush1.msra.mxu0 0.0
        %5869 = vmatprep.subr.mxu0 0.0
        %5870 = vmatpush1.msra.mxu0 0.0
        %5871 = vmatprep.subr.mxu0 0.0
        %5872 = vmatpush1.msra.mxu0 0.0
        %5873 = vmatprep.subr.mxu0 0.0
        %5874 = vmatpush1.msra.mxu0 0.0
        %5875 = vmatprep.subr.mxu0 0.0
        %5876 = vmatpush1.msra.mxu0 0.0
        %5877 = vmatprep.subr.mxu0 0.0
        %5878 = vmatpush1.msra.mxu0 0.0
        %5879 = vmatprep.subr.mxu0 0.0
        %5880 = vmatpush1.msra.mxu0 0.0
        %5881 = vmatprep.mubr.f32.mxu0 0.0
        %5882 = vmatmul.mubr.f32.gmra.mrb[0].mxu0 %v5806
        %v5883 = vpop.f32.mrb[0].mxu0
        %v5884 = vadd.f32 0.0, %v5883
        %v5885 = vpop.f32.mrb[0].mxu0
        %5886 = vmatprep.mubr.f32.mxu0 0.0
        %5887 = vmatmul.mubr.f32.gmra.mrb[0].mxu0 %v5809
        %v5888 = vpop.f32.mrb[0].mxu0
        %v5889 = vadd.f32 0.0, %v5888
        %v5890 = vpop.f32.mrb[0].mxu0
        %5891 = vmatprep.mubr.f32.mxu0 0.0
        %5892 = vmatmul.mubr.f32.gmra.mrb[0].mxu0 %v5812
        %v5893 = vpop.f32.mrb[0].mxu0
        %v5894 = vadd.f32 0.0, %v5893
        %v5895 = vpop.f32.mrb[0].mxu0
        %5896 = vdwg.mxu0
        %s5897 = scalar_lea.vmem %s10, 56
        %v5898 = vld [vmem:[%s5897] sm:$0xff]
        %v5900 = vsel %vm1135, %v5884, 0
        %v5903 = vsel %vm1135, %v5889, 0
        %v5906 = vsel %vm1135, %v5894, 0
        %5908 = vmatprep.subr.mxu0 0.0
        %5909 = vmatpush1.msra.mxu0 %v5898
        %5910 = vmatprep.subr.mxu0 0.0
        %5911 = vmatpush1.msra.mxu0 0.0
        %5912 = vmatprep.subr.mxu0 0.0
        %5913 = vmatpush1.msra.mxu0 0.0
        %5914 = vmatprep.subr.mxu0 0.0
        %5915 = vmatpush1.msra.mxu0 0.0
        %5916 = vmatprep.subr.mxu0 0.0
        %5917 = vmatpush1.msra.mxu0 0.0
        %5918 = vmatprep.subr.mxu0 0.0
        %5919 = vmatpush1.msra.mxu0 0.0
        %5920 = vmatprep.subr.mxu0 0.0
        %5921 = vmatpush1.msra.mxu0 0.0
        %5922 = vmatprep.subr.mxu0 0.0
        %5923 = vmatpush1.msra.mxu0 0.0
        %5924 = vmatprep.subr.mxu0 0.0
        %5925 = vmatpush1.msra.mxu0 0.0
        %5926 = vmatprep.subr.mxu0 0.0
        %5927 = vmatpush1.msra.mxu0 0.0
        %5928 = vmatprep.subr.mxu0 0.0
        %5929 = vmatpush1.msra.mxu0 0.0
        %5930 = vmatprep.subr.mxu0 0.0
        %5931 = vmatpush1.msra.mxu0 0.0
        %5932 = vmatprep.subr.mxu0 0.0
        %5933 = vmatpush1.msra.mxu0 0.0
        %5934 = vmatprep.subr.mxu0 0.0
        %5935 = vmatpush1.msra.mxu0 0.0
        %5936 = vmatprep.subr.mxu0 0.0
        %5937 = vmatpush1.msra.mxu0 0.0
        %5938 = vmatprep.subr.mxu0 0.0
        %5939 = vmatpush1.msra.mxu0 0.0
        %5940 = vmatprep.subr.mxu0 0.0
        %5941 = vmatpush1.msra.mxu0 0.0
        %5942 = vmatprep.subr.mxu0 0.0
        %5943 = vmatpush1.msra.mxu0 0.0
        %5944 = vmatprep.subr.mxu0 0.0
        %5945 = vmatpush1.msra.mxu0 0.0
        %5946 = vmatprep.subr.mxu0 0.0
        %5947 = vmatpush1.msra.mxu0 0.0
        %5948 = vmatprep.subr.mxu0 0.0
        %5949 = vmatpush1.msra.mxu0 0.0
        %5950 = vmatprep.subr.mxu0 0.0
        %5951 = vmatpush1.msra.mxu0 0.0
        %5952 = vmatprep.subr.mxu0 0.0
        %5953 = vmatpush1.msra.mxu0 0.0
        %5954 = vmatprep.subr.mxu0 0.0
        %5955 = vmatpush1.msra.mxu0 0.0
        %5956 = vmatprep.subr.mxu0 0.0
        %5957 = vmatpush1.msra.mxu0 0.0
        %5958 = vmatprep.subr.mxu0 0.0
        %5959 = vmatpush1.msra.mxu0 0.0
        %5960 = vmatprep.subr.mxu0 0.0
        %5961 = vmatpush1.msra.mxu0 0.0
        %5962 = vmatprep.subr.mxu0 0.0
        %5963 = vmatpush1.msra.mxu0 0.0
        %5964 = vmatprep.subr.mxu0 0.0
        %5965 = vmatpush1.msra.mxu0 0.0
        %5966 = vmatprep.subr.mxu0 0.0
        %5967 = vmatpush1.msra.mxu0 0.0
        %5968 = vmatprep.subr.mxu0 0.0
        %5969 = vmatpush1.msra.mxu0 0.0
        %5970 = vmatprep.subr.mxu0 0.0
        %5971 = vmatpush1.msra.mxu0 0.0
        %5972 = vmatprep.mubr.f32.mxu0 0.0
        %5973 = vmatmul.mubr.f32.gmra.mrb[0].mxu0 %v5900
        %v5974 = vpop.f32.mrb[0].mxu0
        %v5975 = vadd.f32 0.0, %v5974
        %v5976 = vpop.f32.mrb[0].mxu0
        %5977 = vmatprep.mubr.f32.mxu0 0.0
        %5978 = vmatmul.mubr.f32.gmra.mrb[0].mxu0 %v5903
        %v5979 = vpop.f32.mrb[0].mxu0
        %v5980 = vadd.f32 0.0, %v5979
        %v5981 = vpop.f32.mrb[0].mxu0
        %5982 = vmatprep.mubr.f32.mxu0 0.0
        %5983 = vmatmul.mubr.f32.gmra.mrb[0].mxu0 %v5906
        %v5984 = vpop.f32.mrb[0].mxu0
        %v5985 = vadd.f32 0.0, %v5984
        %v5986 = vpop.f32.mrb[0].mxu0
        %5987 = vdwg.mxu0
        %v5988 = vadd.f32 %v5389, %v5975
        %v5989 = vadd.f32 %v5390, %v5980
        %v5990 = vadd.f32 %v5391, %v5985
        %s5991 = scalar_lea.vmem %s11, 1
        %v5992 = vld [vmem:[%s5991] sm:$0x1]
        %v5994 = vlaneseq
        %v5995 = vshrl.u32 %v5994, 7
        %v5996 = vsub.s32 0, %v5995
        %v5997 = vrot.slane %v5992, %v5996
        %v5999 = vadd.f32 %v5988, %v5997
        %v6000 = vadd.f32 %v5989, %v5997
        %v6001 = vadd.f32 %v5990, %v5997
        %v6002 = vadd.f32 %v3589, %v5999
        %v6003 = vadd.f32 %v3590, %v6000
        %v6004 = vadd.f32 %v3591, %v6001
        %s6005 = scalar_lea.vmem %s12, 1
        %v6006 = vld [vmem:[%s6005] sm:$0x1]
        %s6007 = scalar_lea.vmem %s13, 1
        %v6008 = vld [vmem:[%s6007] sm:$0x1]
        %v6009 = vsel %vm863, %v6002, 0.0
        %6010 = vadd.xlane.f32.xlu0 %v6009
        %v6011 = vpop.xlane.xlu0 %6010
        %v6012 = vsel %vm863, %v6003, 0.0
        %6013 = vadd.xlane.f32.xlu0 %v6012
        %v6014 = vpop.xlane.xlu0 %6013
        %v6015 = vsel %vm3269, %v6004, 0.0
        %6016 = vadd.xlane.f32.xlu0 %v6015
        %v6017 = vpop.xlane.xlu0 %6016
        %v6018 = vmul.f32 %v6011, %v3273
        %v6019 = vmul.f32 %v6014, %v3273
        %v6020 = vmul.f32 %v6017, %v3273
        %v6021 = vsub.f32 %v6002, %v6018
        %v6022 = vsub.f32 %v6003, %v6019
        %v6023 = vsub.f32 %v6004, %v6020
        %v6024 = vmul.f32 %v6021, %v6021
        %v6025 = vmul.f32 %v6022, %v6022
        %v6026 = vmul.f32 %v6023, %v6023
        %v6027 = vsel %vm863, %v6024, 0.0
        %6028 = vadd.xlane.f32.xlu0 %v6027
        %v6029 = vpop.xlane.xlu0 %6028
        %v6030 = vsel %vm863, %v6025, 0.0
        %6031 = vadd.xlane.f32.xlu0 %v6030
        %v6032 = vpop.xlane.xlu0 %6031
        %v6033 = vsel %vm3269, %v6026, 0.0
        %6034 = vadd.xlane.f32.xlu0 %v6033
        %v6035 = vpop.xlane.xlu0 %6034
        %v6036 = vmul.f32 %v6029, %v3273
        %v6037 = vmul.f32 %v6032, %v3273
        %v6038 = vmul.f32 %v6035, %v3273
        %v6039 = vadd.f32 %v6036, 1e-05
        %v6040 = vadd.f32 %v6037, 1e-05
        %v6041 = vadd.f32 %v6038, 1e-05
        %v6042 = vrsqrt.pop %v6039
        %v6043 = vrsqrt.pop %v6040
        %v6044 = vrsqrt.pop %v6041
        %v6045 = vmul.f32 %v6021, %v6042
        %v6046 = vmul.f32 %v6022, %v6043
        %v6047 = vmul.f32 %v6023, %v6044
        %v6049 = vlaneseq
        %v6050 = vshrl.u32 %v6049, 7
        %v6051 = vsub.s32 0, %v6050
        %v6052 = vrot.slane %v6006, %v6051
        %v6054 = vmul.f32 %v6045, %v6052
        %v6055 = vmul.f32 %v6046, %v6052
        %v6056 = vmul.f32 %v6047, %v6052
        %v6058 = vlaneseq
        %v6059 = vshrl.u32 %v6058, 7
        %v6060 = vsub.s32 0, %v6059
        %v6061 = vrot.slane %v6008, %v6060
        %v6063 = vadd.f32 %v6054, %v6061
        %v6064 = vadd.f32 %v6055, %v6061
        %v6065 = vadd.f32 %v6056, %v6061
        %s6066 = scalar_lea.vmem %s14, 32
        %v6067 = vld [vmem:[%s6066] sm:$0xff]
        %v6068 = vld [vmem:[%s6066 + $0x8] sm:$0xff]
        %v6069 = vld [vmem:[%s6066 + $0x10] sm:$0xff]
        %v6070 = vld [vmem:[%s6066 + $0x18] sm:$0xff]
        %s6071 = scalar_lea.vmem %s15, 1
        %v6072 = vld [vmem:[%s6071] sm:$0x1]
        %v6074 = vlaneseq
        %v6075 = vshrl.u32 %v6074, 7
        %v6076 = vsub.s32 0, %v6075
        %v6077 = vrot.slane %v6072, %v6076
        %v6080 = vsel %vm863, %v6063, 0
        %v6083 = vsel %vm863, %v6064, 0
        %v6086 = vsel %vm863, %v6065, 0
        %6088 = vmatprep.subr.mxu0 0.0
        %6089 = vmatpush1.msra.mxu0 %v6067
        %6090 = vmatprep.subr.mxu0 0.0
        %6091 = vmatpush1.msra.mxu0 %v6068
        %6092 = vmatprep.subr.mxu0 0.0
        %6093 = vmatpush1.msra.mxu0 %v6069
        %6094 = vmatprep.subr.mxu0 0.0
        %6095 = vmatpush1.msra.mxu0 %v6070
        %6096 = vmatprep.subr.mxu0 0.0
        %6097 = vmatpush1.msra.mxu0 0.0
        %6098 = vmatprep.subr.mxu0 0.0
        %6099 = vmatpush1.msra.mxu0 0.0
        %6100 = vmatprep.subr.mxu0 0.0
        %6101 = vmatpush1.msra.mxu0 0.0
        %6102 = vmatprep.subr.mxu0 0.0
        %6103 = vmatpush1.msra.mxu0 0.0
        %6104 = vmatprep.subr.mxu0 0.0
        %6105 = vmatpush1.msra.mxu0 0.0
        %6106 = vmatprep.subr.mxu0 0.0
        %6107 = vmatpush1.msra.mxu0 0.0
        %6108 = vmatprep.subr.mxu0 0.0
        %6109 = vmatpush1.msra.mxu0 0.0
        %6110 = vmatprep.subr.mxu0 0.0
        %6111 = vmatpush1.msra.mxu0 0.0
        %6112 = vmatprep.subr.mxu0 0.0
        %6113 = vmatpush1.msra.mxu0 0.0
        %6114 = vmatprep.subr.mxu0 0.0
        %6115 = vmatpush1.msra.mxu0 0.0
        %6116 = vmatprep.subr.mxu0 0.0
        %6117 = vmatpush1.msra.mxu0 0.0
        %6118 = vmatprep.subr.mxu0 0.0
        %6119 = vmatpush1.msra.mxu0 0.0
        %6120 = vmatprep.subr.mxu0 0.0
        %6121 = vmatpush1.msra.mxu0 0.0
        %6122 = vmatprep.subr.mxu0 0.0
        %6123 = vmatpush1.msra.mxu0 0.0
        %6124 = vmatprep.subr.mxu0 0.0
        %6125 = vmatpush1.msra.mxu0 0.0
        %6126 = vmatprep.subr.mxu0 0.0
        %6127 = vmatpush1.msra.mxu0 0.0
        %6128 = vmatprep.subr.mxu0 0.0
        %6129 = vmatpush1.msra.mxu0 0.0
        %6130 = vmatprep.subr.mxu0 0.0
        %6131 = vmatpush1.msra.mxu0 0.0
        %6132 = vmatprep.subr.mxu0 0.0
        %6133 = vmatpush1.msra.mxu0 0.0
        %6134 = vmatprep.subr.mxu0 0.0
        %6135 = vmatpush1.msra.mxu0 0.0
        %6136 = vmatprep.subr.mxu0 0.0
        %6137 = vmatpush1.msra.mxu0 0.0
        %6138 = vmatprep.subr.mxu0 0.0
        %6139 = vmatpush1.msra.mxu0 0.0
        %6140 = vmatprep.subr.mxu0 0.0
        %6141 = vmatpush1.msra.mxu0 0.0
        %6142 = vmatprep.subr.mxu0 0.0
        %6143 = vmatpush1.msra.mxu0 0.0
        %6144 = vmatprep.subr.mxu0 0.0
        %6145 = vmatpush1.msra.mxu0 0.0
        %6146 = vmatprep.subr.mxu0 0.0
        %6147 = vmatpush1.msra.mxu0 0.0
        %6148 = vmatprep.subr.mxu0 0.0
        %6149 = vmatpush1.msra.mxu0 0.0
        %6150 = vmatprep.subr.mxu0 0.0
        %6151 = vmatpush1.msra.mxu0 0.0
        %6152 = vmatprep.mubr.f32.mxu0 0.0
        %6153 = vmatmul.mubr.f32.gmra.mrb[0].mxu0 %v6080
        %v6154 = vpop.f32.mrb[0].mxu0
        %v6155 = vadd.f32 %v6077, %v6154
        %v6156 = vpop.f32.mrb[0].mxu0
        %6157 = vmatprep.mubr.f32.mxu0 0.0
        %6158 = vmatmul.mubr.f32.gmra.mrb[0].mxu0 %v6083
        %v6159 = vpop.f32.mrb[0].mxu0
        %v6160 = vadd.f32 %v6077, %v6159
        %v6161 = vpop.f32.mrb[0].mxu0
        %6162 = vmatprep.mubr.f32.mxu0 0.0
        %6163 = vmatmul.mubr.f32.gmra.mrb[0].mxu0 %v6086
        %v6164 = vpop.f32.mrb[0].mxu0
        %v6165 = vadd.f32 %v6077, %v6164
        %v6166 = vpop.f32.mrb[0].mxu0
        %6167 = vdwg.mxu0
        %v6168 = vmax.f32 %v6155, 0.0
        %v6169 = vmax.f32 %v6160, 0.0
        %v6170 = vmax.f32 %v6165, 0.0
        %s6171 = scalar_lea.vmem %s16, 64
        %v6172 = vld [vmem:[%s6171] sm:$0xff]
        %v6173 = vld [vmem:[%s6171 + $0x8] sm:$0xff]
        %v6174 = vld [vmem:[%s6171 + $0x10] sm:$0xff]
        %v6175 = vld [vmem:[%s6171 + $0x18] sm:$0xff]
        %v6176 = vld [vmem:[%s6171 + $0x20] sm:$0xff]
        %v6177 = vld [vmem:[%s6171 + $0x28] sm:$0xff]
        %v6178 = vld [vmem:[%s6171 + $0x30] sm:$0xff]
        %v6179 = vld [vmem:[%s6171 + $0x38] sm:$0xff]
        %s6180 = scalar_lea.vmem %s17, 1
        %v6181 = vld [vmem:[%s6180] sm:$0x1]
        %v6183 = vlaneseq
        %v6184 = vshrl.u32 %v6183, 7
        %v6185 = vsub.s32 0, %v6184
        %v6186 = vrot.slane %v6181, %v6185
        %v6189 = vsel %vm3440, %v6168, 0
        %v6192 = vsel %vm3440, %v6169, 0
        %v6195 = vsel %vm3440, %v6170, 0
        %6197 = vmatprep.subr.mxu0 0.0
        %6198 = vmatpush1.msra.mxu0 %v6172
        %6199 = vmatprep.subr.mxu0 0.0
        %6200 = vmatpush1.msra.mxu0 %v6173
        %6201 = vmatprep.subr.mxu0 0.0
        %6202 = vmatpush1.msra.mxu0 %v6174
        %6203 = vmatprep.subr.mxu0 0.0
        %6204 = vmatpush1.msra.mxu0 %v6175
        %6205 = vmatprep.subr.mxu0 0.0
        %6206 = vmatpush1.msra.mxu0 %v6176
        %6207 = vmatprep.subr.mxu0 0.0
        %6208 = vmatpush1.msra.mxu0 %v6177
        %6209 = vmatprep.subr.mxu0 0.0
        %6210 = vmatpush1.msra.mxu0 %v6178
        %6211 = vmatprep.subr.mxu0 0.0
        %6212 = vmatpush1.msra.mxu0 %v6179
        %6213 = vmatprep.subr.mxu0 0.0
        %6214 = vmatpush1.msra.mxu0 0.0
        %6215 = vmatprep.subr.mxu0 0.0
        %6216 = vmatpush1.msra.mxu0 0.0
        %6217 = vmatprep.subr.mxu0 0.0
        %6218 = vmatpush1.msra.mxu0 0.0
        %6219 = vmatprep.subr.mxu0 0.0
        %6220 = vmatpush1.msra.mxu0 0.0
        %6221 = vmatprep.subr.mxu0 0.0
        %6222 = vmatpush1.msra.mxu0 0.0
        %6223 = vmatprep.subr.mxu0 0.0
        %6224 = vmatpush1.msra.mxu0 0.0
        %6225 = vmatprep.subr.mxu0 0.0
        %6226 = vmatpush1.msra.mxu0 0.0
        %6227 = vmatprep.subr.mxu0 0.0
        %6228 = vmatpush1.msra.mxu0 0.0
        %6229 = vmatprep.subr.mxu0 0.0
        %6230 = vmatpush1.msra.mxu0 0.0
        %6231 = vmatprep.subr.mxu0 0.0
        %6232 = vmatpush1.msra.mxu0 0.0
        %6233 = vmatprep.subr.mxu0 0.0
        %6234 = vmatpush1.msra.mxu0 0.0
        %6235 = vmatprep.subr.mxu0 0.0
        %6236 = vmatpush1.msra.mxu0 0.0
        %6237 = vmatprep.subr.mxu0 0.0
        %6238 = vmatpush1.msra.mxu0 0.0
        %6239 = vmatprep.subr.mxu0 0.0
        %6240 = vmatpush1.msra.mxu0 0.0
        %6241 = vmatprep.subr.mxu0 0.0
        %6242 = vmatpush1.msra.mxu0 0.0
        %6243 = vmatprep.subr.mxu0 0.0
        %6244 = vmatpush1.msra.mxu0 0.0
        %6245 = vmatprep.subr.mxu0 0.0
        %6246 = vmatpush1.msra.mxu0 0.0
        %6247 = vmatprep.subr.mxu0 0.0
        %6248 = vmatpush1.msra.mxu0 0.0
        %6249 = vmatprep.subr.mxu0 0.0
        %6250 = vmatpush1.msra.mxu0 0.0
        %6251 = vmatprep.subr.mxu0 0.0
        %6252 = vmatpush1.msra.mxu0 0.0
        %6253 = vmatprep.subr.mxu0 0.0
        %6254 = vmatpush1.msra.mxu0 0.0
        %6255 = vmatprep.subr.mxu0 0.0
        %6256 = vmatpush1.msra.mxu0 0.0
        %6257 = vmatprep.subr.mxu0 0.0
        %6258 = vmatpush1.msra.mxu0 0.0
        %6259 = vmatprep.subr.mxu0 0.0
        %6260 = vmatpush1.msra.mxu0 0.0
        %6261 = vmatprep.mubr.f32.mxu0 0.0
        %6262 = vmatmul.mubr.f32.gmra.mrb[0].mxu0 %v6189
        %v6263 = vpop.f32.mrb[0].mxu0
        %v6264 = vadd.f32 %v6186, %v6263
        %v6265 = vpop.f32.mrb[0].mxu0
        %6266 = vmatprep.mubr.f32.mxu0 0.0
        %6267 = vmatmul.mubr.f32.gmra.mrb[0].mxu0 %v6192
        %v6268 = vpop.f32.mrb[0].mxu0
        %v6269 = vpop.f32.mrb[0].mxu0
        %6270 = vmatprep.mubr.f32.mxu0 0.0
        %6271 = vmatmul.mubr.f32.gmra.mrb[0].mxu0 %v6195
        %v6272 = vpop.f32.mrb[0].mxu0
        %v6273 = vpop.f32.mrb[0].mxu0
        %6274 = vdwg.mxu0
        %v6275 = vadd.f32 %v6063, %v6264
        %s6276 = scalar_lea.vmem %s18, 1
        %v6277 = vld [vmem:[%s6276] sm:$0x1]
        %s6278 = scalar_lea.vmem %s19, 1
        %v6279 = vld [vmem:[%s6278] sm:$0x1]
        %v6280 = vsel %vm863, %v6275, 0.0
        %6281 = vadd.xlane.f32.xlu0 %v6280
        %v6282 = vpop.xlane.xlu0 %6281
        %v6283 = vmul.f32 %v6282, %v3273
        %v6284 = vsub.f32 %v6275, %v6283
        %v6285 = vmul.f32 %v6284, %v6284
        %v6286 = vsel %vm863, %v6285, 0.0
        %6287 = vadd.xlane.f32.xlu0 %v6286
        %v6288 = vpop.xlane.xlu0 %6287
        %v6289 = vmul.f32 %v6288, %v3273
        %v6290 = vadd.f32 %v6289, 1e-05
        %v6291 = vrsqrt.pop %v6290
        %v6292 = vmul.f32 %v6284, %v6291
        %v6294 = vlaneseq
        %v6295 = vshrl.u32 %v6294, 7
        %v6296 = vsub.s32 0, %v6295
        %v6297 = vrot.slane %v6277, %v6296
        %v6299 = vmul.f32 %v6292, %v6297
        %v6301 = vlaneseq
        %v6302 = vshrl.u32 %v6301, 7
        %v6303 = vsub.s32 0, %v6302
        %v6304 = vrot.slane %v6279, %v6303
        %v6306 = vadd.f32 %v6299, %v6304
        %v6307 = vld [vmem:[%s20] sm:$0x1]
        %v6308 = vld [vmem:[%s21] sm:$0x1]
        %v6309 = vsel %vm3269, %v6306, 0.0
        %6310 = vadd.xlane.f32.xlu0 %v6309
        %v6311 = vpop.xlane.xlu0 %6310
        %v6312 = vmul.f32 %v6311, %v3273
        %v6313 = vsub.f32 %v6306, %v6312
        %v6314 = vmul.f32 %v6313, %v6313
        %v6315 = vsel %vm3269, %v6314, 0.0
        %6316 = vadd.xlane.f32.xlu0 %v6315
        %v6317 = vpop.xlane.xlu0 %6316
        %v6318 = vmul.f32 %v6317, %v3273
        %v6319 = vadd.f32 %v6318, 1e-05
        %v6320 = vrsqrt.pop %v6319
        %v6321 = vmul.f32 %v6313, %v6320
        %v6322 = vmul.f32 %v6321, %v6307
        %v6323 = vadd.f32 %v6322, %v6308
        %v6324 = vld [vmem:[%s22] sm:$0xff]
        %v6325 = vld [vmem:[%s22 + $0x8] sm:$0xff]
        %v6326 = vld [vmem:[%s22 + $0x10] sm:$0xff]
        %v6327 = vld [vmem:[%s22 + $0x18] sm:$0xff]
        %v6328 = vld [vmem:[%s23] sm:$0x1]
        %v6330 = vsel %vm863, %v6323, 0
        %6332 = vmatprep.subr.mxu0 0.0
        %6333 = vmatpush1.msra.mxu0 %v6324
        %6334 = vmatprep.subr.mxu0 0.0
        %6335 = vmatpush1.msra.mxu0 %v6325
        %6336 = vmatprep.subr.mxu0 0.0
        %6337 = vmatpush1.msra.mxu0 %v6326
        %6338 = vmatprep.subr.mxu0 0.0
        %6339 = vmatpush1.msra.mxu0 %v6327
        %6340 = vmatprep.subr.mxu0 0.0
        %6341 = vmatpush1.msra.mxu0 0.0
        %6342 = vmatprep.subr.mxu0 0.0
        %6343 = vmatpush1.msra.mxu0 0.0
        %6344 = vmatprep.subr.mxu0 0.0
        %6345 = vmatpush1.msra.mxu0 0.0
        %6346 = vmatprep.subr.mxu0 0.0
        %6347 = vmatpush1.msra.mxu0 0.0
        %6348 = vmatprep.subr.mxu0 0.0
        %6349 = vmatpush1.msra.mxu0 0.0
        %6350 = vmatprep.subr.mxu0 0.0
        %6351 = vmatpush1.msra.mxu0 0.0
        %6352 = vmatprep.subr.mxu0 0.0
        %6353 = vmatpush1.msra.mxu0 0.0
        %6354 = vmatprep.subr.mxu0 0.0
        %6355 = vmatpush1.msra.mxu0 0.0
        %6356 = vmatprep.subr.mxu0 0.0
        %6357 = vmatpush1.msra.mxu0 0.0
        %6358 = vmatprep.subr.mxu0 0.0
        %6359 = vmatpush1.msra.mxu0 0.0
        %6360 = vmatprep.subr.mxu0 0.0
        %6361 = vmatpush1.msra.mxu0 0.0
        %6362 = vmatprep.subr.mxu0 0.0
        %6363 = vmatpush1.msra.mxu0 0.0
        %6364 = vmatprep.subr.mxu0 0.0
        %6365 = vmatpush1.msra.mxu0 0.0
        %6366 = vmatprep.subr.mxu0 0.0
        %6367 = vmatpush1.msra.mxu0 0.0
        %6368 = vmatprep.subr.mxu0 0.0
        %6369 = vmatpush1.msra.mxu0 0.0
        %6370 = vmatprep.subr.mxu0 0.0
        %6371 = vmatpush1.msra.mxu0 0.0
        %6372 = vmatprep.subr.mxu0 0.0
        %6373 = vmatpush1.msra.mxu0 0.0
        %6374 = vmatprep.subr.mxu0 0.0
        %6375 = vmatpush1.msra.mxu0 0.0
        %6376 = vmatprep.subr.mxu0 0.0
        %6377 = vmatpush1.msra.mxu0 0.0
        %6378 = vmatprep.subr.mxu0 0.0
        %6379 = vmatpush1.msra.mxu0 0.0
        %6380 = vmatprep.subr.mxu0 0.0
        %6381 = vmatpush1.msra.mxu0 0.0
        %6382 = vmatprep.subr.mxu0 0.0
        %6383 = vmatpush1.msra.mxu0 0.0
        %6384 = vmatprep.subr.mxu0 0.0
        %6385 = vmatpush1.msra.mxu0 0.0
        %6386 = vmatprep.subr.mxu0 0.0
        %6387 = vmatpush1.msra.mxu0 0.0
        %6388 = vmatprep.subr.mxu0 0.0
        %6389 = vmatpush1.msra.mxu0 0.0
        %6390 = vmatprep.subr.mxu0 0.0
        %6391 = vmatpush1.msra.mxu0 0.0
        %6392 = vmatprep.subr.mxu0 0.0
        %6393 = vmatpush1.msra.mxu0 0.0
        %6394 = vmatprep.subr.mxu0 0.0
        %6395 = vmatpush1.msra.mxu0 0.0
        %6396 = vmatprep.mubr.f32.mxu0 0.0
        %6397 = vmatmul.mubr.f32.gmra.mrb[0].mxu0 %v6330
        %v6398 = vpop.f32.mrb[0].mxu0
        %v6399 = vadd.f32 %v6328, %v6398
        %v6400 = vpop.f32.mrb[0].mxu0
        %6401 = vdwg.mxu0
        %vm6402 = vcmask 73728
        %6403 = vst.msk [vmem:[%s729] sm:$0x1] %vm6402, %v6399
        %s6404 = sand.u32 %s555, 1
        %s6405 = scalar_lea.sflag [#allocation3], %s6404
        %s6406 = sand.u32 %s555, 1
        %s6407 = scalar_lea.vmem [#allocation2], %s6406
        // Predicated region
        $region117: #{vit_forward.1} parent=115 // pred_check
          %p6408 = pneg %p565
        $region118: #{vit_forward.1} parent=115 // pred_check_branch
          %6410 = sbr.rel (%p6408) target = $region120
        $region119: #{vit_forward.1} parent=115 // pred_region
          %s6412 = ssub.s32 16, 16
          %6413 = vsyncadd %s6405, %s6412
          %s6414 = smul.addr %s38, 16
          %s6415 = scalar_lea.hbm %s24, %s6414
          %s6417 = sshll.u32 %s6407, 4
          %s6418 = int_to_ptr.vmem [resolvable:$true] %s6417
          %6420 = dma.vmem_to_hbm [thread:$0]  %s6418, 16, %s6415, %s6405
        $region120: #{vit_forward.1} parent=115 // pred_fallthru
          _
      $region116: #{vit_forward.1} parent=5 // pred_fallthru
        _
      %p6421 = scmp.le.s32.totalorder 2, %s33
      // Predicated region
      $region121: #{vit_forward.1} parent=5 // pred_check
        %p6422 = pneg %p6421
      $region122: #{vit_forward.1} parent=5 // pred_check_branch
        %6424 = sbr.rel (%p6422) target = $region124
      $region123: #{vit_forward.1} parent=5 // pred_region
        %s6425 = ssub.s32 %s33, 2
        // Predicated region
        $region125: #{vit_forward.1} parent=123 // pred_check
          %p6426 = pneg %p571
        $region126: #{vit_forward.1} parent=123 // pred_check_branch
          %6428 = sbr.rel (%p6426) target = $region128
        $region127: #{vit_forward.1} parent=123 // pred_region
          %s6429 = sand.u32 %s556, 1
          %s6430 = scalar_lea.sflag [#allocation3], %s6429
          %s6431 = sand.u32 %s556, 1
          %s6432 = scalar_lea.vmem [#allocation2], %s6431
          %6433 = dma.done %s6430, 16
        $region128: #{vit_forward.1} parent=123 // pred_fallthru
          _
      $region124: #{vit_forward.1} parent=5 // pred_fallthru
        _
    $region6: #{vit_forward.1} parent=1 // loop_footer
      %s37 = sadd.s32 1, %s33
    $region7: #{vit_forward.1} parent=1 // loop_footer_branch
      %32 = sbr.rel target = $region3
    $region8: #{vit_forward.1} parent=1 // loop_exit
      _
    %6434 = vsyncpa [#allocation3], 1
    %s6435 = scalar_lea.sflag [#allocation3], 1
    %6436 = vsyncpa %s6435, 1

</llo_original>
